<compile_context>
chip_gen: v6e
topology: v6e:2x2x1
jax: 0.10.0
libtpu: 0.0.40
codegen_flags: <defaults>
</compile_context>

<pallas_src>
import functools
import math

import jax
import jax.numpy as jnp
from jax.experimental import pallas as pl
from jax.experimental.pallas import tpu as pltpu

NEG_SLOPE = 0.1  # LeakyReLU negative_slope used by the PyTorch module


def _leaky(x):
    # max(x, 0.1*x) == LeakyReLU(negative_slope=0.1)
    return jnp.maximum(x, NEG_SLOPE * x)


# ---------------------------------------------------------------------------
# Fused Pallas kernel
#   xs_ref : (1, Hs, 4*Cin, Ws)  bf16   space-to-depth input (H, C, W layout)
#   wX_ref : (CoutX, KX)         bf16   packed conv weights (weight-stationary)
#   bX_ref : (CoutX, 1)          f32    biases
#   o_ref  : (1, Ho, Cout, Wo)   f32    output rows (transposed to NCHW outside)
#   a1/a2  : padded intermediate activations in VMEM (H, C, W layout)
#   p1/p2/p3: (K, Wo) im2col patch tiles built in VMEM before each matmul
# ---------------------------------------------------------------------------
def _down2d_kernel(xs_ref, w1_ref, b1_ref, w2_ref, b2_ref, w3_ref, b3_ref,
                   o_ref, a1_ref, a2_ref, p1_ref, p2_ref, p3_ref,
                   *, ho_n, wo_n, fs, c0s, c1, c2):
    pad = (fs - 1) // 2

    # zero the halo of the padded intermediate activation buffers
    a1_ref[...] = jnp.zeros_like(a1_ref)
    a2_ref[...] = jnp.zeros_like(a2_ref)

    # ---- conv1: stride-2 k=4 conv == 2x2 stride-1 conv on space-to-depth input
    w1 = w1_ref[...]
    b1 = b1_ref[...]
    for ho in range(ho_n):
        t = 0
        for dh in range(2):
            for dw in range(2):
                # im2col tap -> (4*Cin, Wo) slab, written into the patch tile
                p1_ref[t * c0s:(t + 1) * c0s, :] = xs_ref[0, dh + ho, :, dw:dw + wo_n]
                t += 1
        y = jnp.dot(w1, p1_ref[...], preferred_element_type=jnp.float32) + b1
        a1_ref[pad + ho, :, pad:pad + wo_n] = _leaky(y).astype(a1_ref.dtype)

    # ---- conv2: fs x fs, stride 1, padding (fs-1)//2
    w2 = w2_ref[...]
    b2 = b2_ref[...]
    for ho in range(ho_n):
        t = 0
        for kh in range(fs):
            for kw in range(fs):
                p2_ref[t * c1:(t + 1) * c1, :] = a1_ref[kh + ho, :, kw:kw + wo_n]
                t += 1
        y = jnp.dot(w2, p2_ref[...], preferred_element_type=jnp.float32) + b2
        a2_ref[pad + ho, :, pad:pad + wo_n] = _leaky(y).astype(a2_ref.dtype)

    # ---- conv3: fs x fs, stride 1 -> final rows (lane dim = W)
    w3 = w3_ref[...]
    b3 = b3_ref[...]
    for ho in range(ho_n):
        t = 0
        for kh in range(fs):
            for kw in range(fs):
                p3_ref[t * c2:(t + 1) * c2, :] = a2_ref[kh + ho, :, kw:kw + wo_n]
                t += 1
        y = jnp.dot(w3, p3_ref[...], preferred_element_type=jnp.float32) + b3
        o_ref[0, ho, :, :] = _leaky(y).astype(o_ref.dtype)


# ---------------------------------------------------------------------------
# Weight packing (wrapper-side, cheap one-time reshapes)
# ---------------------------------------------------------------------------
def _pack_conv_weight(w_oihw):
    """(Co, Ci, kh, kw) -> (Co, kh*kw*Ci); column index = (kh*fs + kw)*Ci + ci."""
    co, ci, kh, kw = w_oihw.shape
    return jnp.transpose(w_oihw, (0, 2, 3, 1)).reshape(co, kh * kw * ci)


def _pack_strided_conv1_weight(w_oihw):
    """Stride-2 k=4 conv weight -> weight of the equivalent 2x2 stride-1 conv on
    the 2x2 space-to-depth input.  kh = 2*dh + r, kw = 2*dw + c; column index =
    ((dh*2 + dw)*4 + (r*2 + c)) * Ci + ci  (matches the kernel's patch order)."""
    co, ci, _, _ = w_oihw.shape
    w = w_oihw.reshape(co, ci, 2, 2, 2, 2)        # [co, ci, dh, r, dw, c]
    w = jnp.transpose(w, (0, 2, 4, 3, 5, 1))      # [co, dh, dw, r, c, ci]
    return w.reshape(co, 16 * ci)


def _vmem_padded_bytes(shape, dtype):
    """Approximate VMEM footprint with (sublane, lane) padding of the last 2 dims."""
    itemsize = jnp.dtype(dtype).itemsize
    sub = 8 * (4 // itemsize)                     # 8 for f32, 16 for bf16
    s = list(shape)
    s[-1] = -(-s[-1] // 128) * 128
    if len(s) >= 2:
        s[-2] = -(-s[-2] // sub) * sub
    n = 1
    for d in s:
        n *= d
    return n * itemsize


# ---------------------------------------------------------------------------
# Forward pass: NCHW in -> NCHW out (exactly the PyTorch module semantics)
# ---------------------------------------------------------------------------
@functools.partial(jax.jit, static_argnames=("filter_size",))
def down2d_forward(params, x, filter_size):
    fs = filter_size
    n, cin, h, w = x.shape
    assert h % 2 == 0 and w % 2 == 0
    c1 = params["w1"].shape[0]          # == in_channels
    c2 = params["w2"].shape[0]          # == out_channels
    ho, wo = h // 2, w // 2
    hs, ws = ho + 1, wo + 1
    c0s = 4 * cin
    k1, k2, k3 = 16 * cin, fs * fs * c1, fs * fs * c2
    pad = (fs - 1) // 2

    # cheap XLA glue: pad by 1 + 2x2 space-to-depth (1x data volume), then put
    # the input in (N, H, C, W) layout so W sits on lanes inside the kernel.
    xp = jnp.pad(x, ((0, 0), (0, 0), (1, 1), (1, 1)))
    xs = jnp.concatenate(
        [xp[:, :, r::2, c::2] for r in (0, 1) for c in (0, 1)], axis=1)
    xs = jnp.transpose(xs, (0, 2, 1, 3)).astype(jnp.bfloat16)   # (N, Hs, 4Cin, Ws)

    # pack weights for the in-kernel (Cout, K) @ (K, Wo) matmuls (bf16 on MXU)
    w1 = _pack_strided_conv1_weight(params["w1"]).astype(jnp.bfloat16)
    w2 = _pack_conv_weight(params["w2"]).astype(jnp.bfloat16)
    w3 = _pack_conv_weight(params["w3"]).astype(jnp.bfloat16)
    b1 = params["b1"].reshape(c1, 1).astype(jnp.float32)
    b2 = params["b2"].reshape(c2, 1).astype(jnp.float32)
    b3 = params["b3"].reshape(c2, 1).astype(jnp.float32)

    # explicit VMEM budget computed from the actual buffers (+ headroom)
    block_bytes = (
        2 * _vmem_padded_bytes((1, hs, c0s, ws), jnp.bfloat16)      # input (2x buffered)
        + 2 * _vmem_padded_bytes((1, ho, c2, wo), jnp.float32)      # output (2x buffered)
        + 2 * (_vmem_padded_bytes((c1, k1), jnp.bfloat16)
               + _vmem_padded_bytes((c2, k2), jnp.bfloat16)
               + _vmem_padded_bytes((c2, k3), jnp.bfloat16)
               + _vmem_padded_bytes((c1, 1), jnp.float32)
               + 2 * _vmem_padded_bytes((c2, 1), jnp.float32)))
    scratch_bytes = (
        _vmem_padded_bytes((ho + 2 * pad, c1, wo + 2 * pad), jnp.bfloat16)
        + _vmem_padded_bytes((ho + 2 * pad, c2, wo + 2 * pad), jnp.bfloat16)
        + _vmem_padded_bytes((k1, wo), jnp.bfloat16)
        + _vmem_padded_bytes((k2, wo), jnp.bfloat16)
        + _vmem_padded_bytes((k3, wo), jnp.bfloat16))
    vmem_limit = int(min(64 * 2**20,
                         max(4 * 2**20, 2 * (block_bytes + scratch_bytes) + 2 * 2**20)))

    kernel = functools.partial(_down2d_kernel, ho_n=ho, wo_n=wo, fs=fs,
                               c0s=c0s, c1=c1, c2=c2)

    out = pl.pallas_call(
        kernel,
        out_shape=jax.ShapeDtypeStruct((n, ho, c2, wo), jnp.float32),
        grid_spec=pltpu.PrefetchScalarGridSpec(
            num_scalar_prefetch=0,
            grid=(n,),
            in_specs=[
                pl.BlockSpec((1, hs, c0s, ws), lambda i: (i, 0, 0, 0)),
                pl.BlockSpec((c1, k1), lambda i: (0, 0)),
                pl.BlockSpec((c1, 1), lambda i: (0, 0)),
                pl.BlockSpec((c2, k2), lambda i: (0, 0)),
                pl.BlockSpec((c2, 1), lambda i: (0, 0)),
                pl.BlockSpec((c2, k3), lambda i: (0, 0)),
                pl.BlockSpec((c2, 1), lambda i: (0, 0)),
            ],
            out_specs=pl.BlockSpec((1, ho, c2, wo), lambda i: (i, 0, 0, 0)),
            scratch_shapes=[
                pltpu.VMEM((ho + 2 * pad, c1, wo + 2 * pad), jnp.bfloat16),  # a1 (padded)
                pltpu.VMEM((ho + 2 * pad, c2, wo + 2 * pad), jnp.bfloat16),  # a2 (padded)
                pltpu.VMEM((k1, wo), jnp.bfloat16),                          # patch tile 1
                pltpu.VMEM((k2, wo), jnp.bfloat16),                          # patch tile 2
                pltpu.VMEM((k3, wo), jnp.bfloat16),                          # patch tile 3
            ]),
        compiler_params=pltpu.CompilerParams(
            dimension_semantics=("parallel",),
            vmem_limit_bytes=vmem_limit),
    )(xs, w1, b1, w2, b2, w3, b3)

    # (N, Ho, Cout, Wo) -> NCHW, matching the PyTorch module
    return jnp.transpose(out, (0, 2, 1, 3))


# ---------------------------------------------------------------------------
# Pure-JAX f32 reference (for validation) and deterministic PyTorch-style init
# ---------------------------------------------------------------------------
def down2d_reference(params, x, filter_size):
    p = (filter_size - 1) // 2

    def conv(x, w, b, stride, padding):
        y = jax.lax.conv_general_dilated(
            x, w, window_strides=(stride, stride),
            padding=[(padding, padding), (padding, padding)],
            dimension_numbers=("NCHW", "OIHW", "NCHW"))
        return y + b[None, :, None, None]

    y = _leaky(conv(x, params["w1"], params["b1"], 2, 1))
    y = _leaky(conv(y, params["w2"], params["b2"], 1, p))
    y = _leaky(conv(y, params["w3"], params["b3"], 1, p))
    return y


def init_down2d(key, in_channels, out_channels, filter_size):
    ks = jax.random.split(key, 6)

    def conv_init(kw_, kb_, co, ci, k):
        bound = 1.0 / math.sqrt(ci * k * k)
        w = jax.random.uniform(kw_, (co, ci, k, k), jnp.float32, -bound, bound)
        b = jax.random.uniform(kb_, (co,), jnp.float32, -bound, bound)
        return w, b

    w1, b1 = conv_init(ks[0], ks[1], in_channels, in_channels, 4)
    w2, b2 = conv_init(ks[2], ks[3], out_channels, in_channels, filter_size)
    w3, b3 = conv_init(ks[4], ks[5], out_channels, out_channels, filter_size)
    return {"w1": w1, "b1": b1, "w2": w2, "b2": b2, "w3": w3, "b3": b3}


# ---------------------------------------------------------------------------
if __name__ == "__main__":
    batch, in_channels, out_channels, filter_size = 2, 4, 8, 3
    H = W = 16

    key = jax.random.PRNGKey(0)
    pkey, xkey = jax.random.split(key)
    params = init_down2d(pkey, in_channels, out_channels, filter_size)
    x = jax.random.normal(xkey, (batch, in_channels, H, W), jnp.float32)

    y = down2d_forward(params, x, filter_size)
    jax.block_until_ready(y)

    assert y.shape == (batch, out_channels, H // 2, W // 2)
    assert bool(jnp.all(jnp.isfinite(y)))

    # validate against a pure-JAX f32 reference (kernel uses bf16 MXU inputs
    # with f32 accumulation, hence the loose-but-meaningful tolerance)
    y_ref = down2d_reference(params, x, filter_size)
    max_err = float(jnp.max(jnp.abs(y - y_ref)))
    assert max_err < 1e-1, f"max abs err vs reference = {max_err}"

    print("KERNEL_OK")
</pallas_src>

<mosaic_0001>
module attributes {stable_mosaic.version = 11 : i64} {
  func.func @_down2d_kernel(%arg0: i32, %arg1: memref<1x9x16x9xbf16, #tpu.memory_space<vmem>>, %arg2: memref<4x64xbf16, #tpu.memory_space<vmem>>, %arg3: memref<4x1xf32, #tpu.memory_space<vmem>>, %arg4: memref<8x36xbf16, #tpu.memory_space<vmem>>, %arg5: memref<8x1xf32, #tpu.memory_space<vmem>>, %arg6: memref<8x72xbf16, #tpu.memory_space<vmem>>, %arg7: memref<8x1xf32, #tpu.memory_space<vmem>>, %arg8: memref<1x8x8x8xf32, #tpu.memory_space<vmem>>, %arg9: memref<10x4x10xbf16, #tpu.memory_space<vmem>>, %arg10: memref<10x8x10xbf16, #tpu.memory_space<vmem>>, %arg11: memref<64x8xbf16, #tpu.memory_space<vmem>>, %arg12: memref<36x8xbf16, #tpu.memory_space<vmem>>, %arg13: memref<72x8xbf16, #tpu.memory_space<vmem>>) attributes {dimension_semantics = [#tpu.dimension_semantics<parallel>], iteration_bounds = array<i64: 2>, scalar_prefetch = 0 : i64, scratch_operands = 5 : i64, tpu.core_type = #tpu.core_type<tc>, window_params = [{transform_indices = @transform_0, window_bounds = array<i64: 1, 9, 16, 9>}, {pipeline_mode = #tpu.pipeline_mode<synchronous>, transform_indices = @transform_1, window_bounds = array<i64: 4, 64>}, {pipeline_mode = #tpu.pipeline_mode<synchronous>, transform_indices = @transform_2, window_bounds = array<i64: 4, 1>}, {pipeline_mode = #tpu.pipeline_mode<synchronous>, transform_indices = @transform_3, window_bounds = array<i64: 8, 36>}, {pipeline_mode = #tpu.pipeline_mode<synchronous>, transform_indices = @transform_4, window_bounds = array<i64: 8, 1>}, {pipeline_mode = #tpu.pipeline_mode<synchronous>, transform_indices = @transform_5, window_bounds = array<i64: 8, 72>}, {pipeline_mode = #tpu.pipeline_mode<synchronous>, transform_indices = @transform_6, window_bounds = array<i64: 8, 1>}, {transform_indices = @transform_7, window_bounds = array<i64: 1, 8, 8, 8>}]} {
    %cst = arith.constant 0.000000e+00 : bf16
    %0 = vector.broadcast %cst : bf16 to vector<10x4x10xbf16>
    %c0 = arith.constant 0 : index
    %c0_0 = arith.constant 0 : index
    %c0_1 = arith.constant 0 : index
    %1 = vector.load %arg9[%c0, %c0_0, %c0_1] : memref<10x4x10xbf16, #tpu.memory_space<vmem>>, vector<10x4x10xbf16>
    tpu.vector_store %arg9[%c0, %c0_0, %c0_1], %0 {strides = array<i32>} : memref<10x4x10xbf16, #tpu.memory_space<vmem>>, vector<10x4x10xbf16>,
    %cst_2 = arith.constant 0.000000e+00 : bf16
    %2 = vector.broadcast %cst_2 : bf16 to vector<10x8x10xbf16>
    %c0_3 = arith.constant 0 : index
    %c0_4 = arith.constant 0 : index
    %c0_5 = arith.constant 0 : index
    %3 = vector.load %arg10[%c0_3, %c0_4, %c0_5] : memref<10x8x10xbf16, #tpu.memory_space<vmem>>, vector<10x8x10xbf16>
    tpu.vector_store %arg10[%c0_3, %c0_4, %c0_5], %2 {strides = array<i32>} : memref<10x8x10xbf16, #tpu.memory_space<vmem>>, vector<10x8x10xbf16>,
    %c0_6 = arith.constant 0 : index
    %c0_7 = arith.constant 0 : index
    %4 = vector.load %arg2[%c0_6, %c0_7] : memref<4x64xbf16, #tpu.memory_space<vmem>>, vector<4x64xbf16>
    %c0_8 = arith.constant 0 : index
    %c0_9 = arith.constant 0 : index
    %5 = vector.load %arg3[%c0_8, %c0_9] : memref<4x1xf32, #tpu.memory_space<vmem>>, vector<4x1xf32>
    %c0_10 = arith.constant 0 : index
    %c0_11 = arith.constant 0 : index
    %c0_12 = arith.constant 0 : index
    %c0_13 = arith.constant 0 : index
    %6 = vector.load %arg1[%c0_10, %c0_11, %c0_12, %c0_13] : memref<1x9x16x9xbf16, #tpu.memory_space<vmem>>, vector<1x1x16x8xbf16>
    %7 = vector.shape_cast %6 : vector<1x1x16x8xbf16> to vector<16x8xbf16>
    %c0_14 = arith.constant 0 : index
    %c0_15 = arith.constant 0 : index
    %8 = vector.load %arg11[%c0_14, %c0_15] : memref<64x8xbf16, #tpu.memory_space<vmem>>, vector<16x8xbf16>
    tpu.vector_store %arg11[%c0_14, %c0_15], %7 {strides = array<i32>} : memref<64x8xbf16, #tpu.memory_space<vmem>>, vector<16x8xbf16>,
    %c0_16 = arith.constant 0 : index
    %c0_17 = arith.constant 0 : index
    %c0_18 = arith.constant 0 : index
    %c1 = arith.constant 1 : index
    %9 = vector.load %arg1[%c0_16, %c0_17, %c0_18, %c1] : memref<1x9x16x9xbf16, #tpu.memory_space<vmem>>, vector<1x1x16x8xbf16>
    %10 = vector.shape_cast %9 : vector<1x1x16x8xbf16> to vector<16x8xbf16>
    %c16 = arith.constant 16 : index
    %c0_19 = arith.constant 0 : index
    %11 = vector.load %arg11[%c16, %c0_19] : memref<64x8xbf16, #tpu.memory_space<vmem>>, vector<16x8xbf16>
    tpu.vector_store %arg11[%c16, %c0_19], %10 {strides = array<i32>} : memref<64x8xbf16, #tpu.memory_space<vmem>>, vector<16x8xbf16>,
    %c0_20 = arith.constant 0 : index
    %c1_21 = arith.constant 1 : index
    %c0_22 = arith.constant 0 : index
    %c0_23 = arith.constant 0 : index
    %12 = vector.load %arg1[%c0_20, %c1_21, %c0_22, %c0_23] : memref<1x9x16x9xbf16, #tpu.memory_space<vmem>>, vector<1x1x16x8xbf16>
    %13 = vector.shape_cast %12 : vector<1x1x16x8xbf16> to vector<16x8xbf16>
    %c32 = arith.constant 32 : index
    %c0_24 = arith.constant 0 : index
    %14 = vector.load %arg11[%c32, %c0_24] : memref<64x8xbf16, #tpu.memory_space<vmem>>, vector<16x8xbf16>
    tpu.vector_store %arg11[%c32, %c0_24], %13 {strides = array<i32>} : memref<64x8xbf16, #tpu.memory_space<vmem>>, vector<16x8xbf16>,
    %c0_25 = arith.constant 0 : index
    %c1_26 = arith.constant 1 : index
    %c0_27 = arith.constant 0 : index
    %c1_28 = arith.constant 1 : index
    %15 = vector.load %arg1[%c0_25, %c1_26, %c0_27, %c1_28] : memref<1x9x16x9xbf16, #tpu.memory_space<vmem>>, vector<1x1x16x8xbf16>
    %16 = vector.shape_cast %15 : vector<1x1x16x8xbf16> to vector<16x8xbf16>
    %c48 = arith.constant 48 : index
    %c0_29 = arith.constant 0 : index
    %17 = vector.load %arg11[%c48, %c0_29] : memref<64x8xbf16, #tpu.memory_space<vmem>>, vector<16x8xbf16>
    tpu.vector_store %arg11[%c48, %c0_29], %16 {strides = array<i32>} : memref<64x8xbf16, #tpu.memory_space<vmem>>, vector<16x8xbf16>,
    %c0_30 = arith.constant 0 : index
    %c0_31 = arith.constant 0 : index
    %18 = vector.load %arg11[%c0_30, %c0_31] : memref<64x8xbf16, #tpu.memory_space<vmem>>, vector<64x8xbf16>
    %cst_32 = arith.constant dense<0.000000e+00> : vector<4x8xf32>
    %19 = tpu.matmul %4, %18, %cst_32 {dimension_numbers = #tpu.dot_dimension_numbers<[1], [0], [0], [1], [0, 0, 1, 1], [], []>} : vector<4x64xbf16>, vector<64x8xbf16>, vector<4x8xf32> -> vector<4x8xf32>
    %20 = vector.broadcast %5 : vector<4x1xf32> to vector<4x8xf32>
    %21 = arith.addf %19, %20 : vector<4x8xf32>
    %cst_33 = arith.constant 1.000000e-01 : f32
    %22 = vector.broadcast %cst_33 : f32 to vector<4x8xf32>
    %23 = arith.mulf %22, %21 : vector<4x8xf32>
    %24 = arith.maximumf %21, %23 : vector<4x8xf32>
    %25 = arith.truncf %24 : vector<4x8xf32> to vector<4x8xbf16>
    %c1_34 = arith.constant 1 : index
    %c0_35 = arith.constant 0 : index
    %c1_36 = arith.constant 1 : index
    %26 = vector.load %arg9[%c1_34, %c0_35, %c1_36] : memref<10x4x10xbf16, #tpu.memory_space<vmem>>, vector<1x4x8xbf16>
    %27 = vector.shape_cast %26 : vector<1x4x8xbf16> to vector<4x8xbf16>
    %28 = vector.shape_cast %25 : vector<4x8xbf16> to vector<1x4x8xbf16>
    tpu.vector_store %arg9[%c1_34, %c0_35, %c1_36], %28 {strides = array<i32>} : memref<10x4x10xbf16, #tpu.memory_space<vmem>>, vector<1x4x8xbf16>,
    %c0_37 = arith.constant 0 : index
    %c1_38 = arith.constant 1 : index
    %c0_39 = arith.constant 0 : index
    %c0_40 = arith.constant 0 : index
    %29 = vector.load %arg1[%c0_37, %c1_38, %c0_39, %c0_40] : memref<1x9x16x9xbf16, #tpu.memory_space<vmem>>, vector<1x1x16x8xbf16>
    %30 = vector.shape_cast %29 : vector<1x1x16x8xbf16> to vector<16x8xbf16>
    %c0_41 = arith.constant 0 : index
    %c0_42 = arith.constant 0 : index
    %31 = vector.load %arg11[%c0_41, %c0_42] : memref<64x8xbf16, #tpu.memory_space<vmem>>, vector<16x8xbf16>
    tpu.vector_store %arg11[%c0_41, %c0_42], %30 {strides = array<i32>} : memref<64x8xbf16, #tpu.memory_space<vmem>>, vector<16x8xbf16>,
    %c0_43 = arith.constant 0 : index
    %c1_44 = arith.constant 1 : index
    %c0_45 = arith.constant 0 : index
    %c1_46 = arith.constant 1 : index
    %32 = vector.load %arg1[%c0_43, %c1_44, %c0_45, %c1_46] : memref<1x9x16x9xbf16, #tpu.memory_space<vmem>>, vector<1x1x16x8xbf16>
    %33 = vector.shape_cast %32 : vector<1x1x16x8xbf16> to vector<16x8xbf16>
    %c16_47 = arith.constant 16 : index
    %c0_48 = arith.constant 0 : index
    %34 = vector.load %arg11[%c16_47, %c0_48] : memref<64x8xbf16, #tpu.memory_space<vmem>>, vector<16x8xbf16>
    tpu.vector_store %arg11[%c16_47, %c0_48], %33 {strides = array<i32>} : memref<64x8xbf16, #tpu.memory_space<vmem>>, vector<16x8xbf16>,
    %c0_49 = arith.constant 0 : index
    %c2 = arith.constant 2 : index
    %c0_50 = arith.constant 0 : index
    %c0_51 = arith.constant 0 : index
    %35 = vector.load %arg1[%c0_49, %c2, %c0_50, %c0_51] : memref<1x9x16x9xbf16, #tpu.memory_space<vmem>>, vector<1x1x16x8xbf16>
    %36 = vector.shape_cast %35 : vector<1x1x16x8xbf16> to vector<16x8xbf16>
    %c32_52 = arith.constant 32 : index
    %c0_53 = arith.constant 0 : index
    %37 = vector.load %arg11[%c32_52, %c0_53] : memref<64x8xbf16, #tpu.memory_space<vmem>>, vector<16x8xbf16>
    tpu.vector_store %arg11[%c32_52, %c0_53], %36 {strides = array<i32>} : memref<64x8xbf16, #tpu.memory_space<vmem>>, vector<16x8xbf16>,
    %c0_54 = arith.constant 0 : index
    %c2_55 = arith.constant 2 : index
    %c0_56 = arith.constant 0 : index
    %c1_57 = arith.constant 1 : index
    %38 = vector.load %arg1[%c0_54, %c2_55, %c0_56, %c1_57] : memref<1x9x16x9xbf16, #tpu.memory_space<vmem>>, vector<1x1x16x8xbf16>
    %39 = vector.shape_cast %38 : vector<1x1x16x8xbf16> to vector<16x8xbf16>
    %c48_58 = arith.constant 48 : index
    %c0_59 = arith.constant 0 : index
    %40 = vector.load %arg11[%c48_58, %c0_59] : memref<64x8xbf16, #tpu.memory_space<vmem>>, vector<16x8xbf16>
    tpu.vector_store %arg11[%c48_58, %c0_59], %39 {strides = array<i32>} : memref<64x8xbf16, #tpu.memory_space<vmem>>, vector<16x8xbf16>,
    %c0_60 = arith.constant 0 : index
    %c0_61 = arith.constant 0 : index
    %41 = vector.load %arg11[%c0_60, %c0_61] : memref<64x8xbf16, #tpu.memory_space<vmem>>, vector<64x8xbf16>
    %cst_62 = arith.constant dense<0.000000e+00> : vector<4x8xf32>
    %42 = tpu.matmul %4, %41, %cst_62 {dimension_numbers = #tpu.dot_dimension_numbers<[1], [0], [0], [1], [0, 0, 1, 1], [], []>} : vector<4x64xbf16>, vector<64x8xbf16>, vector<4x8xf32> -> vector<4x8xf32>
    %43 = vector.broadcast %5 : vector<4x1xf32> to vector<4x8xf32>
    %44 = arith.addf %42, %43 : vector<4x8xf32>
    %cst_63 = arith.constant 1.000000e-01 : f32
    %45 = vector.broadcast %cst_63 : f32 to vector<4x8xf32>
    %46 = arith.mulf %45, %44 : vector<4x8xf32>
    %47 = arith.maximumf %44, %46 : vector<4x8xf32>
    %48 = arith.truncf %47 : vector<4x8xf32> to vector<4x8xbf16>
    %c2_64 = arith.constant 2 : index
    %c0_65 = arith.constant 0 : index
    %c1_66 = arith.constant 1 : index
    %49 = vector.load %arg9[%c2_64, %c0_65, %c1_66] : memref<10x4x10xbf16, #tpu.memory_space<vmem>>, vector<1x4x8xbf16>
    %50 = vector.shape_cast %49 : vector<1x4x8xbf16> to vector<4x8xbf16>
    %51 = vector.shape_cast %48 : vector<4x8xbf16> to vector<1x4x8xbf16>
    tpu.vector_store %arg9[%c2_64, %c0_65, %c1_66], %51 {strides = array<i32>} : memref<10x4x10xbf16, #tpu.memory_space<vmem>>, vector<1x4x8xbf16>,
    %c0_67 = arith.constant 0 : index
    %c2_68 = arith.constant 2 : index
    %c0_69 = arith.constant 0 : index
    %c0_70 = arith.constant 0 : index
    %52 = vector.load %arg1[%c0_67, %c2_68, %c0_69, %c0_70] : memref<1x9x16x9xbf16, #tpu.memory_space<vmem>>, vector<1x1x16x8xbf16>
    %53 = vector.shape_cast %52 : vector<1x1x16x8xbf16> to vector<16x8xbf16>
    %c0_71 = arith.constant 0 : index
    %c0_72 = arith.constant 0 : index
    %54 = vector.load %arg11[%c0_71, %c0_72] : memref<64x8xbf16, #tpu.memory_space<vmem>>, vector<16x8xbf16>
    tpu.vector_store %arg11[%c0_71, %c0_72], %53 {strides = array<i32>} : memref<64x8xbf16, #tpu.memory_space<vmem>>, vector<16x8xbf16>,
    %c0_73 = arith.constant 0 : index
    %c2_74 = arith.constant 2 : index
    %c0_75 = arith.constant 0 : index
    %c1_76 = arith.constant 1 : index
    %55 = vector.load %arg1[%c0_73, %c2_74, %c0_75, %c1_76] : memref<1x9x16x9xbf16, #tpu.memory_space<vmem>>, vector<1x1x16x8xbf16>
    %56 = vector.shape_cast %55 : vector<1x1x16x8xbf16> to vector<16x8xbf16>
    %c16_77 = arith.constant 16 : index
    %c0_78 = arith.constant 0 : index
    %57 = vector.load %arg11[%c16_77, %c0_78] : memref<64x8xbf16, #tpu.memory_space<vmem>>, vector<16x8xbf16>
    tpu.vector_store %arg11[%c16_77, %c0_78], %56 {strides = array<i32>} : memref<64x8xbf16, #tpu.memory_space<vmem>>, vector<16x8xbf16>,
    %c0_79 = arith.constant 0 : index
    %c3 = arith.constant 3 : index
    %c0_80 = arith.constant 0 : index
    %c0_81 = arith.constant 0 : index
    %58 = vector.load %arg1[%c0_79, %c3, %c0_80, %c0_81] : memref<1x9x16x9xbf16, #tpu.memory_space<vmem>>, vector<1x1x16x8xbf16>
    %59 = vector.shape_cast %58 : vector<1x1x16x8xbf16> to vector<16x8xbf16>
    %c32_82 = arith.constant 32 : index
    %c0_83 = arith.constant 0 : index
    %60 = vector.load %arg11[%c32_82, %c0_83] : memref<64x8xbf16, #tpu.memory_space<vmem>>, vector<16x8xbf16>
    tpu.vector_store %arg11[%c32_82, %c0_83], %59 {strides = array<i32>} : memref<64x8xbf16, #tpu.memory_space<vmem>>, vector<16x8xbf16>,
    %c0_84 = arith.constant 0 : index
    %c3_85 = arith.constant 3 : index
    %c0_86 = arith.constant 0 : index
    %c1_87 = arith.constant 1 : index
    %61 = vector.load %arg1[%c0_84, %c3_85, %c0_86, %c1_87] : memref<1x9x16x9xbf16, #tpu.memory_space<vmem>>, vector<1x1x16x8xbf16>
    %62 = vector.shape_cast %61 : vector<1x1x16x8xbf16> to vector<16x8xbf16>
    %c48_88 = arith.constant 48 : index
    %c0_89 = arith.constant 0 : index
    %63 = vector.load %arg11[%c48_88, %c0_89] : memref<64x8xbf16, #tpu.memory_space<vmem>>, vector<16x8xbf16>
    tpu.vector_store %arg11[%c48_88, %c0_89], %62 {strides = array<i32>} : memref<64x8xbf16, #tpu.memory_space<vmem>>, vector<16x8xbf16>,
    %c0_90 = arith.constant 0 : index
    %c0_91 = arith.constant 0 : index
    %64 = vector.load %arg11[%c0_90, %c0_91] : memref<64x8xbf16, #tpu.memory_space<vmem>>, vector<64x8xbf16>
    %cst_92 = arith.constant dense<0.000000e+00> : vector<4x8xf32>
    %65 = tpu.matmul %4, %64, %cst_92 {dimension_numbers = #tpu.dot_dimension_numbers<[1], [0], [0], [1], [0, 0, 1, 1], [], []>} : vector<4x64xbf16>, vector<64x8xbf16>, vector<4x8xf32> -> vector<4x8xf32>
    %66 = vector.broadcast %5 : vector<4x1xf32> to vector<4x8xf32>
    %67 = arith.addf %65, %66 : vector<4x8xf32>
    %cst_93 = arith.constant 1.000000e-01 : f32
    %68 = vector.broadcast %cst_93 : f32 to vector<4x8xf32>
    %69 = arith.mulf %68, %67 : vector<4x8xf32>
    %70 = arith.maximumf %67, %69 : vector<4x8xf32>
    %71 = arith.truncf %70 : vector<4x8xf32> to vector<4x8xbf16>
    %c3_94 = arith.constant 3 : index
    %c0_95 = arith.constant 0 : index
    %c1_96 = arith.constant 1 : index
    %72 = vector.load %arg9[%c3_94, %c0_95, %c1_96] : memref<10x4x10xbf16, #tpu.memory_space<vmem>>, vector<1x4x8xbf16>
    %73 = vector.shape_cast %72 : vector<1x4x8xbf16> to vector<4x8xbf16>
    %74 = vector.shape_cast %71 : vector<4x8xbf16> to vector<1x4x8xbf16>
    tpu.vector_store %arg9[%c3_94, %c0_95, %c1_96], %74 {strides = array<i32>} : memref<10x4x10xbf16, #tpu.memory_space<vmem>>, vector<1x4x8xbf16>,
    %c0_97 = arith.constant 0 : index
    %c3_98 = arith.constant 3 : index
    %c0_99 = arith.constant 0 : index
    %c0_100 = arith.constant 0 : index
    %75 = vector.load %arg1[%c0_97, %c3_98, %c0_99, %c0_100] : memref<1x9x16x9xbf16, #tpu.memory_space<vmem>>, vector<1x1x16x8xbf16>
    %76 = vector.shape_cast %75 : vector<1x1x16x8xbf16> to vector<16x8xbf16>
    %c0_101 = arith.constant 0 : index
    %c0_102 = arith.constant 0 : index
    %77 = vector.load %arg11[%c0_101, %c0_102] : memref<64x8xbf16, #tpu.memory_space<vmem>>, vector<16x8xbf16>
    tpu.vector_store %arg11[%c0_101, %c0_102], %76 {strides = array<i32>} : memref<64x8xbf16, #tpu.memory_space<vmem>>, vector<16x8xbf16>,
    %c0_103 = arith.constant 0 : index
    %c3_104 = arith.constant 3 : index
    %c0_105 = arith.constant 0 : index
    %c1_106 = arith.constant 1 : index
    %78 = vector.load %arg1[%c0_103, %c3_104, %c0_105, %c1_106] : memref<1x9x16x9xbf16, #tpu.memory_space<vmem>>, vector<1x1x16x8xbf16>
    %79 = vector.shape_cast %78 : vector<1x1x16x8xbf16> to vector<16x8xbf16>
    %c16_107 = arith.constant 16 : index
    %c0_108 = arith.constant 0 : index
    %80 = vector.load %arg11[%c16_107, %c0_108] : memref<64x8xbf16, #tpu.memory_space<vmem>>, vector<16x8xbf16>
    tpu.vector_store %arg11[%c16_107, %c0_108], %79 {strides = array<i32>} : memref<64x8xbf16, #tpu.memory_space<vmem>>, vector<16x8xbf16>,
    %c0_109 = arith.constant 0 : index
    %c4 = arith.constant 4 : index
    %c0_110 = arith.constant 0 : index
    %c0_111 = arith.constant 0 : index
    %81 = vector.load %arg1[%c0_109, %c4, %c0_110, %c0_111] : memref<1x9x16x9xbf16, #tpu.memory_space<vmem>>, vector<1x1x16x8xbf16>
    %82 = vector.shape_cast %81 : vector<1x1x16x8xbf16> to vector<16x8xbf16>
    %c32_112 = arith.constant 32 : index
    %c0_113 = arith.constant 0 : index
    %83 = vector.load %arg11[%c32_112, %c0_113] : memref<64x8xbf16, #tpu.memory_space<vmem>>, vector<16x8xbf16>
    tpu.vector_store %arg11[%c32_112, %c0_113], %82 {strides = array<i32>} : memref<64x8xbf16, #tpu.memory_space<vmem>>, vector<16x8xbf16>,
    %c0_114 = arith.constant 0 : index
    %c4_115 = arith.constant 4 : index
    %c0_116 = arith.constant 0 : index
    %c1_117 = arith.constant 1 : index
    %84 = vector.load %arg1[%c0_114, %c4_115, %c0_116, %c1_117] : memref<1x9x16x9xbf16, #tpu.memory_space<vmem>>, vector<1x1x16x8xbf16>
    %85 = vector.shape_cast %84 : vector<1x1x16x8xbf16> to vector<16x8xbf16>
    %c48_118 = arith.constant 48 : index
    %c0_119 = arith.constant 0 : index
    %86 = vector.load %arg11[%c48_118, %c0_119] : memref<64x8xbf16, #tpu.memory_space<vmem>>, vector<16x8xbf16>
    tpu.vector_store %arg11[%c48_118, %c0_119], %85 {strides = array<i32>} : memref<64x8xbf16, #tpu.memory_space<vmem>>, vector<16x8xbf16>,
    %c0_120 = arith.constant 0 : index
    %c0_121 = arith.constant 0 : index
    %87 = vector.load %arg11[%c0_120, %c0_121] : memref<64x8xbf16, #tpu.memory_space<vmem>>, vector<64x8xbf16>
    %cst_122 = arith.constant dense<0.000000e+00> : vector<4x8xf32>
    %88 = tpu.matmul %4, %87, %cst_122 {dimension_numbers = #tpu.dot_dimension_numbers<[1], [0], [0], [1], [0, 0, 1, 1], [], []>} : vector<4x64xbf16>, vector<64x8xbf16>, vector<4x8xf32> -> vector<4x8xf32>
    %89 = vector.broadcast %5 : vector<4x1xf32> to vector<4x8xf32>
    %90 = arith.addf %88, %89 : vector<4x8xf32>
    %cst_123 = arith.constant 1.000000e-01 : f32
    %91 = vector.broadcast %cst_123 : f32 to vector<4x8xf32>
    %92 = arith.mulf %91, %90 : vector<4x8xf32>
    %93 = arith.maximumf %90, %92 : vector<4x8xf32>
    %94 = arith.truncf %93 : vector<4x8xf32> to vector<4x8xbf16>
    %c4_124 = arith.constant 4 : index
    %c0_125 = arith.constant 0 : index
    %c1_126 = arith.constant 1 : index
    %95 = vector.load %arg9[%c4_124, %c0_125, %c1_126] : memref<10x4x10xbf16, #tpu.memory_space<vmem>>, vector<1x4x8xbf16>
    %96 = vector.shape_cast %95 : vector<1x4x8xbf16> to vector<4x8xbf16>
    %97 = vector.shape_cast %94 : vector<4x8xbf16> to vector<1x4x8xbf16>
    tpu.vector_store %arg9[%c4_124, %c0_125, %c1_126], %97 {strides = array<i32>} : memref<10x4x10xbf16, #tpu.memory_space<vmem>>, vector<1x4x8xbf16>,
    %c0_127 = arith.constant 0 : index
    %c4_128 = arith.constant 4 : index
    %c0_129 = arith.constant 0 : index
    %c0_130 = arith.constant 0 : index
    %98 = vector.load %arg1[%c0_127, %c4_128, %c0_129, %c0_130] : memref<1x9x16x9xbf16, #tpu.memory_space<vmem>>, vector<1x1x16x8xbf16>
    %99 = vector.shape_cast %98 : vector<1x1x16x8xbf16> to vector<16x8xbf16>
    %c0_131 = arith.constant 0 : index
    %c0_132 = arith.constant 0 : index
    %100 = vector.load %arg11[%c0_131, %c0_132] : memref<64x8xbf16, #tpu.memory_space<vmem>>, vector<16x8xbf16>
    tpu.vector_store %arg11[%c0_131, %c0_132], %99 {strides = array<i32>} : memref<64x8xbf16, #tpu.memory_space<vmem>>, vector<16x8xbf16>,
    %c0_133 = arith.constant 0 : index
    %c4_134 = arith.constant 4 : index
    %c0_135 = arith.constant 0 : index
    %c1_136 = arith.constant 1 : index
    %101 = vector.load %arg1[%c0_133, %c4_134, %c0_135, %c1_136] : memref<1x9x16x9xbf16, #tpu.memory_space<vmem>>, vector<1x1x16x8xbf16>
    %102 = vector.shape_cast %101 : vector<1x1x16x8xbf16> to vector<16x8xbf16>
    %c16_137 = arith.constant 16 : index
    %c0_138 = arith.constant 0 : index
    %103 = vector.load %arg11[%c16_137, %c0_138] : memref<64x8xbf16, #tpu.memory_space<vmem>>, vector<16x8xbf16>
    tpu.vector_store %arg11[%c16_137, %c0_138], %102 {strides = array<i32>} : memref<64x8xbf16, #tpu.memory_space<vmem>>, vector<16x8xbf16>,
    %c0_139 = arith.constant 0 : index
    %c5 = arith.constant 5 : index
    %c0_140 = arith.constant 0 : index
    %c0_141 = arith.constant 0 : index
    %104 = vector.load %arg1[%c0_139, %c5, %c0_140, %c0_141] : memref<1x9x16x9xbf16, #tpu.memory_space<vmem>>, vector<1x1x16x8xbf16>
    %105 = vector.shape_cast %104 : vector<1x1x16x8xbf16> to vector<16x8xbf16>
    %c32_142 = arith.constant 32 : index
    %c0_143 = arith.constant 0 : index
    %106 = vector.load %arg11[%c32_142, %c0_143] : memref<64x8xbf16, #tpu.memory_space<vmem>>, vector<16x8xbf16>
    tpu.vector_store %arg11[%c32_142, %c0_143], %105 {strides = array<i32>} : memref<64x8xbf16, #tpu.memory_space<vmem>>, vector<16x8xbf16>,
    %c0_144 = arith.constant 0 : index
    %c5_145 = arith.constant 5 : index
    %c0_146 = arith.constant 0 : index
    %c1_147 = arith.constant 1 : index
    %107 = vector.load %arg1[%c0_144, %c5_145, %c0_146, %c1_147] : memref<1x9x16x9xbf16, #tpu.memory_space<vmem>>, vector<1x1x16x8xbf16>
    %108 = vector.shape_cast %107 : vector<1x1x16x8xbf16> to vector<16x8xbf16>
    %c48_148 = arith.constant 48 : index
    %c0_149 = arith.constant 0 : index
    %109 = vector.load %arg11[%c48_148, %c0_149] : memref<64x8xbf16, #tpu.memory_space<vmem>>, vector<16x8xbf16>
    tpu.vector_store %arg11[%c48_148, %c0_149], %108 {strides = array<i32>} : memref<64x8xbf16, #tpu.memory_space<vmem>>, vector<16x8xbf16>,
    %c0_150 = arith.constant 0 : index
    %c0_151 = arith.constant 0 : index
    %110 = vector.load %arg11[%c0_150, %c0_151] : memref<64x8xbf16, #tpu.memory_space<vmem>>, vector<64x8xbf16>
    %cst_152 = arith.constant dense<0.000000e+00> : vector<4x8xf32>
    %111 = tpu.matmul %4, %110, %cst_152 {dimension_numbers = #tpu.dot_dimension_numbers<[1], [0], [0], [1], [0, 0, 1, 1], [], []>} : vector<4x64xbf16>, vector<64x8xbf16>, vector<4x8xf32> -> vector<4x8xf32>
    %112 = vector.broadcast %5 : vector<4x1xf32> to vector<4x8xf32>
    %113 = arith.addf %111, %112 : vector<4x8xf32>
    %cst_153 = arith.constant 1.000000e-01 : f32
    %114 = vector.broadcast %cst_153 : f32 to vector<4x8xf32>
    %115 = arith.mulf %114, %113 : vector<4x8xf32>
    %116 = arith.maximumf %113, %115 : vector<4x8xf32>
    %117 = arith.truncf %116 : vector<4x8xf32> to vector<4x8xbf16>
    %c5_154 = arith.constant 5 : index
    %c0_155 = arith.constant 0 : index
    %c1_156 = arith.constant 1 : index
    %118 = vector.load %arg9[%c5_154, %c0_155, %c1_156] : memref<10x4x10xbf16, #tpu.memory_space<vmem>>, vector<1x4x8xbf16>
    %119 = vector.shape_cast %118 : vector<1x4x8xbf16> to vector<4x8xbf16>
    %120 = vector.shape_cast %117 : vector<4x8xbf16> to vector<1x4x8xbf16>
    tpu.vector_store %arg9[%c5_154, %c0_155, %c1_156], %120 {strides = array<i32>} : memref<10x4x10xbf16, #tpu.memory_space<vmem>>, vector<1x4x8xbf16>,
    %c0_157 = arith.constant 0 : index
    %c5_158 = arith.constant 5 : index
    %c0_159 = arith.constant 0 : index
    %c0_160 = arith.constant 0 : index
    %121 = vector.load %arg1[%c0_157, %c5_158, %c0_159, %c0_160] : memref<1x9x16x9xbf16, #tpu.memory_space<vmem>>, vector<1x1x16x8xbf16>
    %122 = vector.shape_cast %121 : vector<1x1x16x8xbf16> to vector<16x8xbf16>
    %c0_161 = arith.constant 0 : index
    %c0_162 = arith.constant 0 : index
    %123 = vector.load %arg11[%c0_161, %c0_162] : memref<64x8xbf16, #tpu.memory_space<vmem>>, vector<16x8xbf16>
    tpu.vector_store %arg11[%c0_161, %c0_162], %122 {strides = array<i32>} : memref<64x8xbf16, #tpu.memory_space<vmem>>, vector<16x8xbf16>,
    %c0_163 = arith.constant 0 : index
    %c5_164 = arith.constant 5 : index
    %c0_165 = arith.constant 0 : index
    %c1_166 = arith.constant 1 : index
    %124 = vector.load %arg1[%c0_163, %c5_164, %c0_165, %c1_166] : memref<1x9x16x9xbf16, #tpu.memory_space<vmem>>, vector<1x1x16x8xbf16>
    %125 = vector.shape_cast %124 : vector<1x1x16x8xbf16> to vector<16x8xbf16>
    %c16_167 = arith.constant 16 : index
    %c0_168 = arith.constant 0 : index
    %126 = vector.load %arg11[%c16_167, %c0_168] : memref<64x8xbf16, #tpu.memory_space<vmem>>, vector<16x8xbf16>
    tpu.vector_store %arg11[%c16_167, %c0_168], %125 {strides = array<i32>} : memref<64x8xbf16, #tpu.memory_space<vmem>>, vector<16x8xbf16>,
    %c0_169 = arith.constant 0 : index
    %c6 = arith.constant 6 : index
    %c0_170 = arith.constant 0 : index
    %c0_171 = arith.constant 0 : index
    %127 = vector.load %arg1[%c0_169, %c6, %c0_170, %c0_171] : memref<1x9x16x9xbf16, #tpu.memory_space<vmem>>, vector<1x1x16x8xbf16>
    %128 = vector.shape_cast %127 : vector<1x1x16x8xbf16> to vector<16x8xbf16>
    %c32_172 = arith.constant 32 : index
    %c0_173 = arith.constant 0 : index
    %129 = vector.load %arg11[%c32_172, %c0_173] : memref<64x8xbf16, #tpu.memory_space<vmem>>, vector<16x8xbf16>
    tpu.vector_store %arg11[%c32_172, %c0_173], %128 {strides = array<i32>} : memref<64x8xbf16, #tpu.memory_space<vmem>>, vector<16x8xbf16>,
    %c0_174 = arith.constant 0 : index
    %c6_175 = arith.constant 6 : index
    %c0_176 = arith.constant 0 : index
    %c1_177 = arith.constant 1 : index
    %130 = vector.load %arg1[%c0_174, %c6_175, %c0_176, %c1_177] : memref<1x9x16x9xbf16, #tpu.memory_space<vmem>>, vector<1x1x16x8xbf16>
    %131 = vector.shape_cast %130 : vector<1x1x16x8xbf16> to vector<16x8xbf16>
    %c48_178 = arith.constant 48 : index
    %c0_179 = arith.constant 0 : index
    %132 = vector.load %arg11[%c48_178, %c0_179] : memref<64x8xbf16, #tpu.memory_space<vmem>>, vector<16x8xbf16>
    tpu.vector_store %arg11[%c48_178, %c0_179], %131 {strides = array<i32>} : memref<64x8xbf16, #tpu.memory_space<vmem>>, vector<16x8xbf16>,
    %c0_180 = arith.constant 0 : index
    %c0_181 = arith.constant 0 : index
    %133 = vector.load %arg11[%c0_180, %c0_181] : memref<64x8xbf16, #tpu.memory_space<vmem>>, vector<64x8xbf16>
    %cst_182 = arith.constant dense<0.000000e+00> : vector<4x8xf32>
    %134 = tpu.matmul %4, %133, %cst_182 {dimension_numbers = #tpu.dot_dimension_numbers<[1], [0], [0], [1], [0, 0, 1, 1], [], []>} : vector<4x64xbf16>, vector<64x8xbf16>, vector<4x8xf32> -> vector<4x8xf32>
    %135 = vector.broadcast %5 : vector<4x1xf32> to vector<4x8xf32>
    %136 = arith.addf %134, %135 : vector<4x8xf32>
    %cst_183 = arith.constant 1.000000e-01 : f32
    %137 = vector.broadcast %cst_183 : f32 to vector<4x8xf32>
    %138 = arith.mulf %137, %136 : vector<4x8xf32>
    %139 = arith.maximumf %136, %138 : vector<4x8xf32>
    %140 = arith.truncf %139 : vector<4x8xf32> to vector<4x8xbf16>
    %c6_184 = arith.constant 6 : index
    %c0_185 = arith.constant 0 : index
    %c1_186 = arith.constant 1 : index
    %141 = vector.load %arg9[%c6_184, %c0_185, %c1_186] : memref<10x4x10xbf16, #tpu.memory_space<vmem>>, vector<1x4x8xbf16>
    %142 = vector.shape_cast %141 : vector<1x4x8xbf16> to vector<4x8xbf16>
    %143 = vector.shape_cast %140 : vector<4x8xbf16> to vector<1x4x8xbf16>
    tpu.vector_store %arg9[%c6_184, %c0_185, %c1_186], %143 {strides = array<i32>} : memref<10x4x10xbf16, #tpu.memory_space<vmem>>, vector<1x4x8xbf16>,
    %c0_187 = arith.constant 0 : index
    %c6_188 = arith.constant 6 : index
    %c0_189 = arith.constant 0 : index
    %c0_190 = arith.constant 0 : index
    %144 = vector.load %arg1[%c0_187, %c6_188, %c0_189, %c0_190] : memref<1x9x16x9xbf16, #tpu.memory_space<vmem>>, vector<1x1x16x8xbf16>
    %145 = vector.shape_cast %144 : vector<1x1x16x8xbf16> to vector<16x8xbf16>
    %c0_191 = arith.constant 0 : index
    %c0_192 = arith.constant 0 : index
    %146 = vector.load %arg11[%c0_191, %c0_192] : memref<64x8xbf16, #tpu.memory_space<vmem>>, vector<16x8xbf16>
    tpu.vector_store %arg11[%c0_191, %c0_192], %145 {strides = array<i32>} : memref<64x8xbf16, #tpu.memory_space<vmem>>, vector<16x8xbf16>,
    %c0_193 = arith.constant 0 : index
    %c6_194 = arith.constant 6 : index
    %c0_195 = arith.constant 0 : index
    %c1_196 = arith.constant 1 : index
    %147 = vector.load %arg1[%c0_193, %c6_194, %c0_195, %c1_196] : memref<1x9x16x9xbf16, #tpu.memory_space<vmem>>, vector<1x1x16x8xbf16>
    %148 = vector.shape_cast %147 : vector<1x1x16x8xbf16> to vector<16x8xbf16>
    %c16_197 = arith.constant 16 : index
    %c0_198 = arith.constant 0 : index
    %149 = vector.load %arg11[%c16_197, %c0_198] : memref<64x8xbf16, #tpu.memory_space<vmem>>, vector<16x8xbf16>
    tpu.vector_store %arg11[%c16_197, %c0_198], %148 {strides = array<i32>} : memref<64x8xbf16, #tpu.memory_space<vmem>>, vector<16x8xbf16>,
    %c0_199 = arith.constant 0 : index
    %c7 = arith.constant 7 : index
    %c0_200 = arith.constant 0 : index
    %c0_201 = arith.constant 0 : index
    %150 = vector.load %arg1[%c0_199, %c7, %c0_200, %c0_201] : memref<1x9x16x9xbf16, #tpu.memory_space<vmem>>, vector<1x1x16x8xbf16>
    %151 = vector.shape_cast %150 : vector<1x1x16x8xbf16> to vector<16x8xbf16>
    %c32_202 = arith.constant 32 : index
    %c0_203 = arith.constant 0 : index
    %152 = vector.load %arg11[%c32_202, %c0_203] : memref<64x8xbf16, #tpu.memory_space<vmem>>, vector<16x8xbf16>
    tpu.vector_store %arg11[%c32_202, %c0_203], %151 {strides = array<i32>} : memref<64x8xbf16, #tpu.memory_space<vmem>>, vector<16x8xbf16>,
    %c0_204 = arith.constant 0 : index
    %c7_205 = arith.constant 7 : index
    %c0_206 = arith.constant 0 : index
    %c1_207 = arith.constant 1 : index
    %153 = vector.load %arg1[%c0_204, %c7_205, %c0_206, %c1_207] : memref<1x9x16x9xbf16, #tpu.memory_space<vmem>>, vector<1x1x16x8xbf16>
    %154 = vector.shape_cast %153 : vector<1x1x16x8xbf16> to vector<16x8xbf16>
    %c48_208 = arith.constant 48 : index
    %c0_209 = arith.constant 0 : index
    %155 = vector.load %arg11[%c48_208, %c0_209] : memref<64x8xbf16, #tpu.memory_space<vmem>>, vector<16x8xbf16>
    tpu.vector_store %arg11[%c48_208, %c0_209], %154 {strides = array<i32>} : memref<64x8xbf16, #tpu.memory_space<vmem>>, vector<16x8xbf16>,
    %c0_210 = arith.constant 0 : index
    %c0_211 = arith.constant 0 : index
    %156 = vector.load %arg11[%c0_210, %c0_211] : memref<64x8xbf16, #tpu.memory_space<vmem>>, vector<64x8xbf16>
    %cst_212 = arith.constant dense<0.000000e+00> : vector<4x8xf32>
    %157 = tpu.matmul %4, %156, %cst_212 {dimension_numbers = #tpu.dot_dimension_numbers<[1], [0], [0], [1], [0, 0, 1, 1], [], []>} : vector<4x64xbf16>, vector<64x8xbf16>, vector<4x8xf32> -> vector<4x8xf32>
    %158 = vector.broadcast %5 : vector<4x1xf32> to vector<4x8xf32>
    %159 = arith.addf %157, %158 : vector<4x8xf32>
    %cst_213 = arith.constant 1.000000e-01 : f32
    %160 = vector.broadcast %cst_213 : f32 to vector<4x8xf32>
    %161 = arith.mulf %160, %159 : vector<4x8xf32>
    %162 = arith.maximumf %159, %161 : vector<4x8xf32>
    %163 = arith.truncf %162 : vector<4x8xf32> to vector<4x8xbf16>
    %c7_214 = arith.constant 7 : index
    %c0_215 = arith.constant 0 : index
    %c1_216 = arith.constant 1 : index
    %164 = vector.load %arg9[%c7_214, %c0_215, %c1_216] : memref<10x4x10xbf16, #tpu.memory_space<vmem>>, vector<1x4x8xbf16>
    %165 = vector.shape_cast %164 : vector<1x4x8xbf16> to vector<4x8xbf16>
    %166 = vector.shape_cast %163 : vector<4x8xbf16> to vector<1x4x8xbf16>
    tpu.vector_store %arg9[%c7_214, %c0_215, %c1_216], %166 {strides = array<i32>} : memref<10x4x10xbf16, #tpu.memory_space<vmem>>, vector<1x4x8xbf16>,
    %c0_217 = arith.constant 0 : index
    %c7_218 = arith.constant 7 : index
    %c0_219 = arith.constant 0 : index
    %c0_220 = arith.constant 0 : index
    %167 = vector.load %arg1[%c0_217, %c7_218, %c0_219, %c0_220] : memref<1x9x16x9xbf16, #tpu.memory_space<vmem>>, vector<1x1x16x8xbf16>
    %168 = vector.shape_cast %167 : vector<1x1x16x8xbf16> to vector<16x8xbf16>
    %c0_221 = arith.constant 0 : index
    %c0_222 = arith.constant 0 : index
    %169 = vector.load %arg11[%c0_221, %c0_222] : memref<64x8xbf16, #tpu.memory_space<vmem>>, vector<16x8xbf16>
    tpu.vector_store %arg11[%c0_221, %c0_222], %168 {strides = array<i32>} : memref<64x8xbf16, #tpu.memory_space<vmem>>, vector<16x8xbf16>,
    %c0_223 = arith.constant 0 : index
    %c7_224 = arith.constant 7 : index
    %c0_225 = arith.constant 0 : index
    %c1_226 = arith.constant 1 : index
    %170 = vector.load %arg1[%c0_223, %c7_224, %c0_225, %c1_226] : memref<1x9x16x9xbf16, #tpu.memory_space<vmem>>, vector<1x1x16x8xbf16>
    %171 = vector.shape_cast %170 : vector<1x1x16x8xbf16> to vector<16x8xbf16>
    %c16_227 = arith.constant 16 : index
    %c0_228 = arith.constant 0 : index
    %172 = vector.load %arg11[%c16_227, %c0_228] : memref<64x8xbf16, #tpu.memory_space<vmem>>, vector<16x8xbf16>
    tpu.vector_store %arg11[%c16_227, %c0_228], %171 {strides = array<i32>} : memref<64x8xbf16, #tpu.memory_space<vmem>>, vector<16x8xbf16>,
    %c0_229 = arith.constant 0 : index
    %c8 = arith.constant 8 : index
    %c0_230 = arith.constant 0 : index
    %c0_231 = arith.constant 0 : index
    %173 = vector.load %arg1[%c0_229, %c8, %c0_230, %c0_231] : memref<1x9x16x9xbf16, #tpu.memory_space<vmem>>, vector<1x1x16x8xbf16>
    %174 = vector.shape_cast %173 : vector<1x1x16x8xbf16> to vector<16x8xbf16>
    %c32_232 = arith.constant 32 : index
    %c0_233 = arith.constant 0 : index
    %175 = vector.load %arg11[%c32_232, %c0_233] : memref<64x8xbf16, #tpu.memory_space<vmem>>, vector<16x8xbf16>
    tpu.vector_store %arg11[%c32_232, %c0_233], %174 {strides = array<i32>} : memref<64x8xbf16, #tpu.memory_space<vmem>>, vector<16x8xbf16>,
    %c0_234 = arith.constant 0 : index
    %c8_235 = arith.constant 8 : index
    %c0_236 = arith.constant 0 : index
    %c1_237 = arith.constant 1 : index
    %176 = vector.load %arg1[%c0_234, %c8_235, %c0_236, %c1_237] : memref<1x9x16x9xbf16, #tpu.memory_space<vmem>>, vector<1x1x16x8xbf16>
    %177 = vector.shape_cast %176 : vector<1x1x16x8xbf16> to vector<16x8xbf16>
    %c48_238 = arith.constant 48 : index
    %c0_239 = arith.constant 0 : index
    %178 = vector.load %arg11[%c48_238, %c0_239] : memref<64x8xbf16, #tpu.memory_space<vmem>>, vector<16x8xbf16>
    tpu.vector_store %arg11[%c48_238, %c0_239], %177 {strides = array<i32>} : memref<64x8xbf16, #tpu.memory_space<vmem>>, vector<16x8xbf16>,
    %c0_240 = arith.constant 0 : index
    %c0_241 = arith.constant 0 : index
    %179 = vector.load %arg11[%c0_240, %c0_241] : memref<64x8xbf16, #tpu.memory_space<vmem>>, vector<64x8xbf16>
    %cst_242 = arith.constant dense<0.000000e+00> : vector<4x8xf32>
    %180 = tpu.matmul %4, %179, %cst_242 {dimension_numbers = #tpu.dot_dimension_numbers<[1], [0], [0], [1], [0, 0, 1, 1], [], []>} : vector<4x64xbf16>, vector<64x8xbf16>, vector<4x8xf32> -> vector<4x8xf32>
    %181 = vector.broadcast %5 : vector<4x1xf32> to vector<4x8xf32>
    %182 = arith.addf %180, %181 : vector<4x8xf32>
    %cst_243 = arith.constant 1.000000e-01 : f32
    %183 = vector.broadcast %cst_243 : f32 to vector<4x8xf32>
    %184 = arith.mulf %183, %182 : vector<4x8xf32>
    %185 = arith.maximumf %182, %184 : vector<4x8xf32>
    %186 = arith.truncf %185 : vector<4x8xf32> to vector<4x8xbf16>
    %c8_244 = arith.constant 8 : index
    %c0_245 = arith.constant 0 : index
    %c1_246 = arith.constant 1 : index
    %187 = vector.load %arg9[%c8_244, %c0_245, %c1_246] : memref<10x4x10xbf16, #tpu.memory_space<vmem>>, vector<1x4x8xbf16>
    %188 = vector.shape_cast %187 : vector<1x4x8xbf16> to vector<4x8xbf16>
    %189 = vector.shape_cast %186 : vector<4x8xbf16> to vector<1x4x8xbf16>
    tpu.vector_store %arg9[%c8_244, %c0_245, %c1_246], %189 {strides = array<i32>} : memref<10x4x10xbf16, #tpu.memory_space<vmem>>, vector<1x4x8xbf16>,
    %c0_247 = arith.constant 0 : index
    %c0_248 = arith.constant 0 : index
    %190 = vector.load %arg4[%c0_247, %c0_248] : memref<8x36xbf16, #tpu.memory_space<vmem>>, vector<8x36xbf16>
    %c0_249 = arith.constant 0 : index
    %c0_250 = arith.constant 0 : index
    %191 = vector.load %arg5[%c0_249, %c0_250] : memref<8x1xf32, #tpu.memory_space<vmem>>, vector<8x1xf32>
    %c0_251 = arith.constant 0 : index
    %c0_252 = arith.constant 0 : index
    %c0_253 = arith.constant 0 : index
    %192 = vector.load %arg9[%c0_251, %c0_252, %c0_253] : memref<10x4x10xbf16, #tpu.memory_space<vmem>>, vector<1x4x8xbf16>
    %193 = vector.shape_cast %192 : vector<1x4x8xbf16> to vector<4x8xbf16>
    %c0_254 = arith.constant 0 : index
    %c0_255 = arith.constant 0 : index
    %194 = vector.load %arg12[%c0_254, %c0_255] : memref<36x8xbf16, #tpu.memory_space<vmem>>, vector<4x8xbf16>
    tpu.vector_store %arg12[%c0_254, %c0_255], %193 {strides = array<i32>} : memref<36x8xbf16, #tpu.memory_space<vmem>>, vector<4x8xbf16>,
    %c0_256 = arith.constant 0 : index
    %c0_257 = arith.constant 0 : index
    %c1_258 = arith.constant 1 : index
    %195 = vector.load %arg9[%c0_256, %c0_257, %c1_258] : memref<10x4x10xbf16, #tpu.memory_space<vmem>>, vector<1x4x8xbf16>
    %196 = vector.shape_cast %195 : vector<1x4x8xbf16> to vector<4x8xbf16>
    %c4_259 = arith.constant 4 : index
    %c0_260 = arith.constant 0 : index
    %197 = vector.load %arg12[%c4_259, %c0_260] : memref<36x8xbf16, #tpu.memory_space<vmem>>, vector<4x8xbf16>
    tpu.vector_store %arg12[%c4_259, %c0_260], %196 {strides = array<i32>} : memref<36x8xbf16, #tpu.memory_space<vmem>>, vector<4x8xbf16>,
    %c0_261 = arith.constant 0 : index
    %c0_262 = arith.constant 0 : index
    %c2_263 = arith.constant 2 : index
    %198 = vector.load %arg9[%c0_261, %c0_262, %c2_263] : memref<10x4x10xbf16, #tpu.memory_space<vmem>>, vector<1x4x8xbf16>
    %199 = vector.shape_cast %198 : vector<1x4x8xbf16> to vector<4x8xbf16>
    %c8_264 = arith.constant 8 : index
    %c0_265 = arith.constant 0 : index
    %200 = vector.load %arg12[%c8_264, %c0_265] : memref<36x8xbf16, #tpu.memory_space<vmem>>, vector<4x8xbf16>
    tpu.vector_store %arg12[%c8_264, %c0_265], %199 {strides = array<i32>} : memref<36x8xbf16, #tpu.memory_space<vmem>>, vector<4x8xbf16>,
    %c1_266 = arith.constant 1 : index
    %c0_267 = arith.constant 0 : index
    %c0_268 = arith.constant 0 : index
    %201 = vector.load %arg9[%c1_266, %c0_267, %c0_268] : memref<10x4x10xbf16, #tpu.memory_space<vmem>>, vector<1x4x8xbf16>
    %202 = vector.shape_cast %201 : vector<1x4x8xbf16> to vector<4x8xbf16>
    %c12 = arith.constant 12 : index
    %c0_269 = arith.constant 0 : index
    %203 = vector.load %arg12[%c12, %c0_269] : memref<36x8xbf16, #tpu.memory_space<vmem>>, vector<4x8xbf16>
    tpu.vector_store %arg12[%c12, %c0_269], %202 {strides = array<i32>} : memref<36x8xbf16, #tpu.memory_space<vmem>>, vector<4x8xbf16>,
    %c1_270 = arith.constant 1 : index
    %c0_271 = arith.constant 0 : index
    %c1_272 = arith.constant 1 : index
    %204 = vector.load %arg9[%c1_270, %c0_271, %c1_272] : memref<10x4x10xbf16, #tpu.memory_space<vmem>>, vector<1x4x8xbf16>
    %205 = vector.shape_cast %204 : vector<1x4x8xbf16> to vector<4x8xbf16>
    %c16_273 = arith.constant 16 : index
    %c0_274 = arith.constant 0 : index
    %206 = vector.load %arg12[%c16_273, %c0_274] : memref<36x8xbf16, #tpu.memory_space<vmem>>, vector<4x8xbf16>
    tpu.vector_store %arg12[%c16_273, %c0_274], %205 {strides = array<i32>} : memref<36x8xbf16, #tpu.memory_space<vmem>>, vector<4x8xbf16>,
    %c1_275 = arith.constant 1 : index
    %c0_276 = arith.constant 0 : index
    %c2_277 = arith.constant 2 : index
    %207 = vector.load %arg9[%c1_275, %c0_276, %c2_277] : memref<10x4x10xbf16, #tpu.memory_space<vmem>>, vector<1x4x8xbf16>
    %208 = vector.shape_cast %207 : vector<1x4x8xbf16> to vector<4x8xbf16>
    %c20 = arith.constant 20 : index
    %c0_278 = arith.constant 0 : index
    %209 = vector.load %arg12[%c20, %c0_278] : memref<36x8xbf16, #tpu.memory_space<vmem>>, vector<4x8xbf16>
    tpu.vector_store %arg12[%c20, %c0_278], %208 {strides = array<i32>} : memref<36x8xbf16, #tpu.memory_space<vmem>>, vector<4x8xbf16>,
    %c2_279 = arith.constant 2 : index
    %c0_280 = arith.constant 0 : index
    %c0_281 = arith.constant 0 : index
    %210 = vector.load %arg9[%c2_279, %c0_280, %c0_281] : memref<10x4x10xbf16, #tpu.memory_space<vmem>>, vector<1x4x8xbf16>
    %211 = vector.shape_cast %210 : vector<1x4x8xbf16> to vector<4x8xbf16>
    %c24 = arith.constant 24 : index
    %c0_282 = arith.constant 0 : index
    %212 = vector.load %arg12[%c24, %c0_282] : memref<36x8xbf16, #tpu.memory_space<vmem>>, vector<4x8xbf16>
    tpu.vector_store %arg12[%c24, %c0_282], %211 {strides = array<i32>} : memref<36x8xbf16, #tpu.memory_space<vmem>>, vector<4x8xbf16>,
    %c2_283 = arith.constant 2 : index
    %c0_284 = arith.constant 0 : index
    %c1_285 = arith.constant 1 : index
    %213 = vector.load %arg9[%c2_283, %c0_284, %c1_285] : memref<10x4x10xbf16, #tpu.memory_space<vmem>>, vector<1x4x8xbf16>
    %214 = vector.shape_cast %213 : vector<1x4x8xbf16> to vector<4x8xbf16>
    %c28 = arith.constant 28 : index
    %c0_286 = arith.constant 0 : index
    %215 = vector.load %arg12[%c28, %c0_286] : memref<36x8xbf16, #tpu.memory_space<vmem>>, vector<4x8xbf16>
    tpu.vector_store %arg12[%c28, %c0_286], %214 {strides = array<i32>} : memref<36x8xbf16, #tpu.memory_space<vmem>>, vector<4x8xbf16>,
    %c2_287 = arith.constant 2 : index
    %c0_288 = arith.constant 0 : index
    %c2_289 = arith.constant 2 : index
    %216 = vector.load %arg9[%c2_287, %c0_288, %c2_289] : memref<10x4x10xbf16, #tpu.memory_space<vmem>>, vector<1x4x8xbf16>
    %217 = vector.shape_cast %216 : vector<1x4x8xbf16> to vector<4x8xbf16>
    %c32_290 = arith.constant 32 : index
    %c0_291 = arith.constant 0 : index
    %218 = vector.load %arg12[%c32_290, %c0_291] : memref<36x8xbf16, #tpu.memory_space<vmem>>, vector<4x8xbf16>
    tpu.vector_store %arg12[%c32_290, %c0_291], %217 {strides = array<i32>} : memref<36x8xbf16, #tpu.memory_space<vmem>>, vector<4x8xbf16>,
    %c0_292 = arith.constant 0 : index
    %c0_293 = arith.constant 0 : index
    %219 = vector.load %arg12[%c0_292, %c0_293] : memref<36x8xbf16, #tpu.memory_space<vmem>>, vector<36x8xbf16>
    %cst_294 = arith.constant dense<0.000000e+00> : vector<8x8xf32>
    %220 = tpu.matmul %190, %219, %cst_294 {dimension_numbers = #tpu.dot_dimension_numbers<[1], [0], [0], [1], [0, 0, 1, 1], [], []>} : vector<8x36xbf16>, vector<36x8xbf16>, vector<8x8xf32> -> vector<8x8xf32>
    %221 = vector.broadcast %191 : vector<8x1xf32> to vector<8x8xf32>
    %222 = arith.addf %220, %221 : vector<8x8xf32>
    %cst_295 = arith.constant 1.000000e-01 : f32
    %223 = vector.broadcast %cst_295 : f32 to vector<8x8xf32>
    %224 = arith.mulf %223, %222 : vector<8x8xf32>
    %225 = arith.maximumf %222, %224 : vector<8x8xf32>
    %226 = arith.truncf %225 : vector<8x8xf32> to vector<8x8xbf16>
    %c1_296 = arith.constant 1 : index
    %c0_297 = arith.constant 0 : index
    %c1_298 = arith.constant 1 : index
    %227 = vector.load %arg10[%c1_296, %c0_297, %c1_298] : memref<10x8x10xbf16, #tpu.memory_space<vmem>>, vector<1x8x8xbf16>
    %228 = vector.shape_cast %227 : vector<1x8x8xbf16> to vector<8x8xbf16>
    %229 = vector.shape_cast %226 : vector<8x8xbf16> to vector<1x8x8xbf16>
    tpu.vector_store %arg10[%c1_296, %c0_297, %c1_298], %229 {strides = array<i32>} : memref<10x8x10xbf16, #tpu.memory_space<vmem>>, vector<1x8x8xbf16>,
    %c1_299 = arith.constant 1 : index
    %c0_300 = arith.constant 0 : index
    %c0_301 = arith.constant 0 : index
    %230 = vector.load %arg9[%c1_299, %c0_300, %c0_301] : memref<10x4x10xbf16, #tpu.memory_space<vmem>>, vector<1x4x8xbf16>
    %231 = vector.shape_cast %230 : vector<1x4x8xbf16> to vector<4x8xbf16>
    %c0_302 = arith.constant 0 : index
    %c0_303 = arith.constant 0 : index
    %232 = vector.load %arg12[%c0_302, %c0_303] : memref<36x8xbf16, #tpu.memory_space<vmem>>, vector<4x8xbf16>
    tpu.vector_store %arg12[%c0_302, %c0_303], %231 {strides = array<i32>} : memref<36x8xbf16, #tpu.memory_space<vmem>>, vector<4x8xbf16>,
    %c1_304 = arith.constant 1 : index
    %c0_305 = arith.constant 0 : index
    %c1_306 = arith.constant 1 : index
    %233 = vector.load %arg9[%c1_304, %c0_305, %c1_306] : memref<10x4x10xbf16, #tpu.memory_space<vmem>>, vector<1x4x8xbf16>
    %234 = vector.shape_cast %233 : vector<1x4x8xbf16> to vector<4x8xbf16>
    %c4_307 = arith.constant 4 : index
    %c0_308 = arith.constant 0 : index
    %235 = vector.load %arg12[%c4_307, %c0_308] : memref<36x8xbf16, #tpu.memory_space<vmem>>, vector<4x8xbf16>
    tpu.vector_store %arg12[%c4_307, %c0_308], %234 {strides = array<i32>} : memref<36x8xbf16, #tpu.memory_space<vmem>>, vector<4x8xbf16>,
    %c1_309 = arith.constant 1 : index
    %c0_310 = arith.constant 0 : index
    %c2_311 = arith.constant 2 : index
    %236 = vector.load %arg9[%c1_309, %c0_310, %c2_311] : memref<10x4x10xbf16, #tpu.memory_space<vmem>>, vector<1x4x8xbf16>
    %237 = vector.shape_cast %236 : vector<1x4x8xbf16> to vector<4x8xbf16>
    %c8_312 = arith.constant 8 : index
    %c0_313 = arith.constant 0 : index
    %238 = vector.load %arg12[%c8_312, %c0_313] : memref<36x8xbf16, #tpu.memory_space<vmem>>, vector<4x8xbf16>
    tpu.vector_store %arg12[%c8_312, %c0_313], %237 {strides = array<i32>} : memref<36x8xbf16, #tpu.memory_space<vmem>>, vector<4x8xbf16>,
    %c2_314 = arith.constant 2 : index
    %c0_315 = arith.constant 0 : index
    %c0_316 = arith.constant 0 : index
    %239 = vector.load %arg9[%c2_314, %c0_315, %c0_316] : memref<10x4x10xbf16, #tpu.memory_space<vmem>>, vector<1x4x8xbf16>
    %240 = vector.shape_cast %239 : vector<1x4x8xbf16> to vector<4x8xbf16>
    %c12_317 = arith.constant 12 : index
    %c0_318 = arith.constant 0 : index
    %241 = vector.load %arg12[%c12_317, %c0_318] : memref<36x8xbf16, #tpu.memory_space<vmem>>, vector<4x8xbf16>
    tpu.vector_store %arg12[%c12_317, %c0_318], %240 {strides = array<i32>} : memref<36x8xbf16, #tpu.memory_space<vmem>>, vector<4x8xbf16>,
    %c2_319 = arith.constant 2 : index
    %c0_320 = arith.constant 0 : index
    %c1_321 = arith.constant 1 : index
    %242 = vector.load %arg9[%c2_319, %c0_320, %c1_321] : memref<10x4x10xbf16, #tpu.memory_space<vmem>>, vector<1x4x8xbf16>
    %243 = vector.shape_cast %242 : vector<1x4x8xbf16> to vector<4x8xbf16>
    %c16_322 = arith.constant 16 : index
    %c0_323 = arith.constant 0 : index
    %244 = vector.load %arg12[%c16_322, %c0_323] : memref<36x8xbf16, #tpu.memory_space<vmem>>, vector<4x8xbf16>
    tpu.vector_store %arg12[%c16_322, %c0_323], %243 {strides = array<i32>} : memref<36x8xbf16, #tpu.memory_space<vmem>>, vector<4x8xbf16>,
    %c2_324 = arith.constant 2 : index
    %c0_325 = arith.constant 0 : index
    %c2_326 = arith.constant 2 : index
    %245 = vector.load %arg9[%c2_324, %c0_325, %c2_326] : memref<10x4x10xbf16, #tpu.memory_space<vmem>>, vector<1x4x8xbf16>
    %246 = vector.shape_cast %245 : vector<1x4x8xbf16> to vector<4x8xbf16>
    %c20_327 = arith.constant 20 : index
    %c0_328 = arith.constant 0 : index
    %247 = vector.load %arg12[%c20_327, %c0_328] : memref<36x8xbf16, #tpu.memory_space<vmem>>, vector<4x8xbf16>
    tpu.vector_store %arg12[%c20_327, %c0_328], %246 {strides = array<i32>} : memref<36x8xbf16, #tpu.memory_space<vmem>>, vector<4x8xbf16>,
    %c3_329 = arith.constant 3 : index
    %c0_330 = arith.constant 0 : index
    %c0_331 = arith.constant 0 : index
    %248 = vector.load %arg9[%c3_329, %c0_330, %c0_331] : memref<10x4x10xbf16, #tpu.memory_space<vmem>>, vector<1x4x8xbf16>
    %249 = vector.shape_cast %248 : vector<1x4x8xbf16> to vector<4x8xbf16>
    %c24_332 = arith.constant 24 : index
    %c0_333 = arith.constant 0 : index
    %250 = vector.load %arg12[%c24_332, %c0_333] : memref<36x8xbf16, #tpu.memory_space<vmem>>, vector<4x8xbf16>
    tpu.vector_store %arg12[%c24_332, %c0_333], %249 {strides = array<i32>} : memref<36x8xbf16, #tpu.memory_space<vmem>>, vector<4x8xbf16>,
    %c3_334 = arith.constant 3 : index
    %c0_335 = arith.constant 0 : index
    %c1_336 = arith.constant 1 : index
    %251 = vector.load %arg9[%c3_334, %c0_335, %c1_336] : memref<10x4x10xbf16, #tpu.memory_space<vmem>>, vector<1x4x8xbf16>
    %252 = vector.shape_cast %251 : vector<1x4x8xbf16> to vector<4x8xbf16>
    %c28_337 = arith.constant 28 : index
    %c0_338 = arith.constant 0 : index
    %253 = vector.load %arg12[%c28_337, %c0_338] : memref<36x8xbf16, #tpu.memory_space<vmem>>, vector<4x8xbf16>
    tpu.vector_store %arg12[%c28_337, %c0_338], %252 {strides = array<i32>} : memref<36x8xbf16, #tpu.memory_space<vmem>>, vector<4x8xbf16>,
    %c3_339 = arith.constant 3 : index
    %c0_340 = arith.constant 0 : index
    %c2_341 = arith.constant 2 : index
    %254 = vector.load %arg9[%c3_339, %c0_340, %c2_341] : memref<10x4x10xbf16, #tpu.memory_space<vmem>>, vector<1x4x8xbf16>
    %255 = vector.shape_cast %254 : vector<1x4x8xbf16> to vector<4x8xbf16>
    %c32_342 = arith.constant 32 : index
    %c0_343 = arith.constant 0 : index
    %256 = vector.load %arg12[%c32_342, %c0_343] : memref<36x8xbf16, #tpu.memory_space<vmem>>, vector<4x8xbf16>
    tpu.vector_store %arg12[%c32_342, %c0_343], %255 {strides = array<i32>} : memref<36x8xbf16, #tpu.memory_space<vmem>>, vector<4x8xbf16>,
    %c0_344 = arith.constant 0 : index
    %c0_345 = arith.constant 0 : index
    %257 = vector.load %arg12[%c0_344, %c0_345] : memref<36x8xbf16, #tpu.memory_space<vmem>>, vector<36x8xbf16>
    %cst_346 = arith.constant dense<0.000000e+00> : vector<8x8xf32>
    %258 = tpu.matmul %190, %257, %cst_346 {dimension_numbers = #tpu.dot_dimension_numbers<[1], [0], [0], [1], [0, 0, 1, 1], [], []>} : vector<8x36xbf16>, vector<36x8xbf16>, vector<8x8xf32> -> vector<8x8xf32>
    %259 = vector.broadcast %191 : vector<8x1xf32> to vector<8x8xf32>
    %260 = arith.addf %258, %259 : vector<8x8xf32>
    %cst_347 = arith.constant 1.000000e-01 : f32
    %261 = vector.broadcast %cst_347 : f32 to vector<8x8xf32>
    %262 = arith.mulf %261, %260 : vector<8x8xf32>
    %263 = arith.maximumf %260, %262 : vector<8x8xf32>
    %264 = arith.truncf %263 : vector<8x8xf32> to vector<8x8xbf16>
    %c2_348 = arith.constant 2 : index
    %c0_349 = arith.constant 0 : index
    %c1_350 = arith.constant 1 : index
    %265 = vector.load %arg10[%c2_348, %c0_349, %c1_350] : memref<10x8x10xbf16, #tpu.memory_space<vmem>>, vector<1x8x8xbf16>
    %266 = vector.shape_cast %265 : vector<1x8x8xbf16> to vector<8x8xbf16>
    %267 = vector.shape_cast %264 : vector<8x8xbf16> to vector<1x8x8xbf16>
    tpu.vector_store %arg10[%c2_348, %c0_349, %c1_350], %267 {strides = array<i32>} : memref<10x8x10xbf16, #tpu.memory_space<vmem>>, vector<1x8x8xbf16>,
    %c2_351 = arith.constant 2 : index
    %c0_352 = arith.constant 0 : index
    %c0_353 = arith.constant 0 : index
    %268 = vector.load %arg9[%c2_351, %c0_352, %c0_353] : memref<10x4x10xbf16, #tpu.memory_space<vmem>>, vector<1x4x8xbf16>
    %269 = vector.shape_cast %268 : vector<1x4x8xbf16> to vector<4x8xbf16>
    %c0_354 = arith.constant 0 : index
    %c0_355 = arith.constant 0 : index
    %270 = vector.load %arg12[%c0_354, %c0_355] : memref<36x8xbf16, #tpu.memory_space<vmem>>, vector<4x8xbf16>
    tpu.vector_store %arg12[%c0_354, %c0_355], %269 {strides = array<i32>} : memref<36x8xbf16, #tpu.memory_space<vmem>>, vector<4x8xbf16>,
    %c2_356 = arith.constant 2 : index
    %c0_357 = arith.constant 0 : index
    %c1_358 = arith.constant 1 : index
    %271 = vector.load %arg9[%c2_356, %c0_357, %c1_358] : memref<10x4x10xbf16, #tpu.memory_space<vmem>>, vector<1x4x8xbf16>
    %272 = vector.shape_cast %271 : vector<1x4x8xbf16> to vector<4x8xbf16>
    %c4_359 = arith.constant 4 : index
    %c0_360 = arith.constant 0 : index
    %273 = vector.load %arg12[%c4_359, %c0_360] : memref<36x8xbf16, #tpu.memory_space<vmem>>, vector<4x8xbf16>
    tpu.vector_store %arg12[%c4_359, %c0_360], %272 {strides = array<i32>} : memref<36x8xbf16, #tpu.memory_space<vmem>>, vector<4x8xbf16>,
    %c2_361 = arith.constant 2 : index
    %c0_362 = arith.constant 0 : index
    %c2_363 = arith.constant 2 : index
    %274 = vector.load %arg9[%c2_361, %c0_362, %c2_363] : memref<10x4x10xbf16, #tpu.memory_space<vmem>>, vector<1x4x8xbf16>
    %275 = vector.shape_cast %274 : vector<1x4x8xbf16> to vector<4x8xbf16>
    %c8_364 = arith.constant 8 : index
    %c0_365 = arith.constant 0 : index
    %276 = vector.load %arg12[%c8_364, %c0_365] : memref<36x8xbf16, #tpu.memory_space<vmem>>, vector<4x8xbf16>
    tpu.vector_store %arg12[%c8_364, %c0_365], %275 {strides = array<i32>} : memref<36x8xbf16, #tpu.memory_space<vmem>>, vector<4x8xbf16>,
    %c3_366 = arith.constant 3 : index
    %c0_367 = arith.constant 0 : index
    %c0_368 = arith.constant 0 : index
    %277 = vector.load %arg9[%c3_366, %c0_367, %c0_368] : memref<10x4x10xbf16, #tpu.memory_space<vmem>>, vector<1x4x8xbf16>
    %278 = vector.shape_cast %277 : vector<1x4x8xbf16> to vector<4x8xbf16>
    %c12_369 = arith.constant 12 : index
    %c0_370 = arith.constant 0 : index
    %279 = vector.load %arg12[%c12_369, %c0_370] : memref<36x8xbf16, #tpu.memory_space<vmem>>, vector<4x8xbf16>
    tpu.vector_store %arg12[%c12_369, %c0_370], %278 {strides = array<i32>} : memref<36x8xbf16, #tpu.memory_space<vmem>>, vector<4x8xbf16>,
    %c3_371 = arith.constant 3 : index
    %c0_372 = arith.constant 0 : index
    %c1_373 = arith.constant 1 : index
    %280 = vector.load %arg9[%c3_371, %c0_372, %c1_373] : memref<10x4x10xbf16, #tpu.memory_space<vmem>>, vector<1x4x8xbf16>
    %281 = vector.shape_cast %280 : vector<1x4x8xbf16> to vector<4x8xbf16>
    %c16_374 = arith.constant 16 : index
    %c0_375 = arith.constant 0 : index
    %282 = vector.load %arg12[%c16_374, %c0_375] : memref<36x8xbf16, #tpu.memory_space<vmem>>, vector<4x8xbf16>
    tpu.vector_store %arg12[%c16_374, %c0_375], %281 {strides = array<i32>} : memref<36x8xbf16, #tpu.memory_space<vmem>>, vector<4x8xbf16>,
    %c3_376 = arith.constant 3 : index
    %c0_377 = arith.constant 0 : index
    %c2_378 = arith.constant 2 : index
    %283 = vector.load %arg9[%c3_376, %c0_377, %c2_378] : memref<10x4x10xbf16, #tpu.memory_space<vmem>>, vector<1x4x8xbf16>
    %284 = vector.shape_cast %283 : vector<1x4x8xbf16> to vector<4x8xbf16>
    %c20_379 = arith.constant 20 : index
    %c0_380 = arith.constant 0 : index
    %285 = vector.load %arg12[%c20_379, %c0_380] : memref<36x8xbf16, #tpu.memory_space<vmem>>, vector<4x8xbf16>
    tpu.vector_store %arg12[%c20_379, %c0_380], %284 {strides = array<i32>} : memref<36x8xbf16, #tpu.memory_space<vmem>>, vector<4x8xbf16>,
    %c4_381 = arith.constant 4 : index
    %c0_382 = arith.constant 0 : index
    %c0_383 = arith.constant 0 : index
    %286 = vector.load %arg9[%c4_381, %c0_382, %c0_383] : memref<10x4x10xbf16, #tpu.memory_space<vmem>>, vector<1x4x8xbf16>
    %287 = vector.shape_cast %286 : vector<1x4x8xbf16> to vector<4x8xbf16>
    %c24_384 = arith.constant 24 : index
    %c0_385 = arith.constant 0 : index
    %288 = vector.load %arg12[%c24_384, %c0_385] : memref<36x8xbf16, #tpu.memory_space<vmem>>, vector<4x8xbf16>
    tpu.vector_store %arg12[%c24_384, %c0_385], %287 {strides = array<i32>} : memref<36x8xbf16, #tpu.memory_space<vmem>>, vector<4x8xbf16>,
    %c4_386 = arith.constant 4 : index
    %c0_387 = arith.constant 0 : index
    %c1_388 = arith.constant 1 : index
    %289 = vector.load %arg9[%c4_386, %c0_387, %c1_388] : memref<10x4x10xbf16, #tpu.memory_space<vmem>>, vector<1x4x8xbf16>
    %290 = vector.shape_cast %289 : vector<1x4x8xbf16> to vector<4x8xbf16>
    %c28_389 = arith.constant 28 : index
    %c0_390 = arith.constant 0 : index
    %291 = vector.load %arg12[%c28_389, %c0_390] : memref<36x8xbf16, #tpu.memory_space<vmem>>, vector<4x8xbf16>
    tpu.vector_store %arg12[%c28_389, %c0_390], %290 {strides = array<i32>} : memref<36x8xbf16, #tpu.memory_space<vmem>>, vector<4x8xbf16>,
    %c4_391 = arith.constant 4 : index
    %c0_392 = arith.constant 0 : index
    %c2_393 = arith.constant 2 : index
    %292 = vector.load %arg9[%c4_391, %c0_392, %c2_393] : memref<10x4x10xbf16, #tpu.memory_space<vmem>>, vector<1x4x8xbf16>
    %293 = vector.shape_cast %292 : vector<1x4x8xbf16> to vector<4x8xbf16>
    %c32_394 = arith.constant 32 : index
    %c0_395 = arith.constant 0 : index
    %294 = vector.load %arg12[%c32_394, %c0_395] : memref<36x8xbf16, #tpu.memory_space<vmem>>, vector<4x8xbf16>
    tpu.vector_store %arg12[%c32_394, %c0_395], %293 {strides = array<i32>} : memref<36x8xbf16, #tpu.memory_space<vmem>>, vector<4x8xbf16>,
    %c0_396 = arith.constant 0 : index
    %c0_397 = arith.constant 0 : index
    %295 = vector.load %arg12[%c0_396, %c0_397] : memref<36x8xbf16, #tpu.memory_space<vmem>>, vector<36x8xbf16>
    %cst_398 = arith.constant dense<0.000000e+00> : vector<8x8xf32>
    %296 = tpu.matmul %190, %295, %cst_398 {dimension_numbers = #tpu.dot_dimension_numbers<[1], [0], [0], [1], [0, 0, 1, 1], [], []>} : vector<8x36xbf16>, vector<36x8xbf16>, vector<8x8xf32> -> vector<8x8xf32>
    %297 = vector.broadcast %191 : vector<8x1xf32> to vector<8x8xf32>
    %298 = arith.addf %296, %297 : vector<8x8xf32>
    %cst_399 = arith.constant 1.000000e-01 : f32
    %299 = vector.broadcast %cst_399 : f32 to vector<8x8xf32>
    %300 = arith.mulf %299, %298 : vector<8x8xf32>
    %301 = arith.maximumf %298, %300 : vector<8x8xf32>
    %302 = arith.truncf %301 : vector<8x8xf32> to vector<8x8xbf16>
    %c3_400 = arith.constant 3 : index
    %c0_401 = arith.constant 0 : index
    %c1_402 = arith.constant 1 : index
    %303 = vector.load %arg10[%c3_400, %c0_401, %c1_402] : memref<10x8x10xbf16, #tpu.memory_space<vmem>>, vector<1x8x8xbf16>
    %304 = vector.shape_cast %303 : vector<1x8x8xbf16> to vector<8x8xbf16>
    %305 = vector.shape_cast %302 : vector<8x8xbf16> to vector<1x8x8xbf16>
    tpu.vector_store %arg10[%c3_400, %c0_401, %c1_402], %305 {strides = array<i32>} : memref<10x8x10xbf16, #tpu.memory_space<vmem>>, vector<1x8x8xbf16>,
    %c3_403 = arith.constant 3 : index
    %c0_404 = arith.constant 0 : index
    %c0_405 = arith.constant 0 : index
    %306 = vector.load %arg9[%c3_403, %c0_404, %c0_405] : memref<10x4x10xbf16, #tpu.memory_space<vmem>>, vector<1x4x8xbf16>
    %307 = vector.shape_cast %306 : vector<1x4x8xbf16> to vector<4x8xbf16>
    %c0_406 = arith.constant 0 : index
    %c0_407 = arith.constant 0 : index
    %308 = vector.load %arg12[%c0_406, %c0_407] : memref<36x8xbf16, #tpu.memory_space<vmem>>, vector<4x8xbf16>
    tpu.vector_store %arg12[%c0_406, %c0_407], %307 {strides = array<i32>} : memref<36x8xbf16, #tpu.memory_space<vmem>>, vector<4x8xbf16>,
    %c3_408 = arith.constant 3 : index
    %c0_409 = arith.constant 0 : index
    %c1_410 = arith.constant 1 : index
    %309 = vector.load %arg9[%c3_408, %c0_409, %c1_410] : memref<10x4x10xbf16, #tpu.memory_space<vmem>>, vector<1x4x8xbf16>
    %310 = vector.shape_cast %309 : vector<1x4x8xbf16> to vector<4x8xbf16>
    %c4_411 = arith.constant 4 : index
    %c0_412 = arith.constant 0 : index
    %311 = vector.load %arg12[%c4_411, %c0_412] : memref<36x8xbf16, #tpu.memory_space<vmem>>, vector<4x8xbf16>
    tpu.vector_store %arg12[%c4_411, %c0_412], %310 {strides = array<i32>} : memref<36x8xbf16, #tpu.memory_space<vmem>>, vector<4x8xbf16>,
    %c3_413 = arith.constant 3 : index
    %c0_414 = arith.constant 0 : index
    %c2_415 = arith.constant 2 : index
    %312 = vector.load %arg9[%c3_413, %c0_414, %c2_415] : memref<10x4x10xbf16, #tpu.memory_space<vmem>>, vector<1x4x8xbf16>
    %313 = vector.shape_cast %312 : vector<1x4x8xbf16> to vector<4x8xbf16>
    %c8_416 = arith.constant 8 : index
    %c0_417 = arith.constant 0 : index
    %314 = vector.load %arg12[%c8_416, %c0_417] : memref<36x8xbf16, #tpu.memory_space<vmem>>, vector<4x8xbf16>
    tpu.vector_store %arg12[%c8_416, %c0_417], %313 {strides = array<i32>} : memref<36x8xbf16, #tpu.memory_space<vmem>>, vector<4x8xbf16>,
    %c4_418 = arith.constant 4 : index
    %c0_419 = arith.constant 0 : index
    %c0_420 = arith.constant 0 : index
    %315 = vector.load %arg9[%c4_418, %c0_419, %c0_420] : memref<10x4x10xbf16, #tpu.memory_space<vmem>>, vector<1x4x8xbf16>
    %316 = vector.shape_cast %315 : vector<1x4x8xbf16> to vector<4x8xbf16>
    %c12_421 = arith.constant 12 : index
    %c0_422 = arith.constant 0 : index
    %317 = vector.load %arg12[%c12_421, %c0_422] : memref<36x8xbf16, #tpu.memory_space<vmem>>, vector<4x8xbf16>
    tpu.vector_store %arg12[%c12_421, %c0_422], %316 {strides = array<i32>} : memref<36x8xbf16, #tpu.memory_space<vmem>>, vector<4x8xbf16>,
    %c4_423 = arith.constant 4 : index
    %c0_424 = arith.constant 0 : index
    %c1_425 = arith.constant 1 : index
    %318 = vector.load %arg9[%c4_423, %c0_424, %c1_425] : memref<10x4x10xbf16, #tpu.memory_space<vmem>>, vector<1x4x8xbf16>
    %319 = vector.shape_cast %318 : vector<1x4x8xbf16> to vector<4x8xbf16>
    %c16_426 = arith.constant 16 : index
    %c0_427 = arith.constant 0 : index
    %320 = vector.load %arg12[%c16_426, %c0_427] : memref<36x8xbf16, #tpu.memory_space<vmem>>, vector<4x8xbf16>
    tpu.vector_store %arg12[%c16_426, %c0_427], %319 {strides = array<i32>} : memref<36x8xbf16, #tpu.memory_space<vmem>>, vector<4x8xbf16>,
    %c4_428 = arith.constant 4 : index
    %c0_429 = arith.constant 0 : index
    %c2_430 = arith.constant 2 : index
    %321 = vector.load %arg9[%c4_428, %c0_429, %c2_430] : memref<10x4x10xbf16, #tpu.memory_space<vmem>>, vector<1x4x8xbf16>
    %322 = vector.shape_cast %321 : vector<1x4x8xbf16> to vector<4x8xbf16>
    %c20_431 = arith.constant 20 : index
    %c0_432 = arith.constant 0 : index
    %323 = vector.load %arg12[%c20_431, %c0_432] : memref<36x8xbf16, #tpu.memory_space<vmem>>, vector<4x8xbf16>
    tpu.vector_store %arg12[%c20_431, %c0_432], %322 {strides = array<i32>} : memref<36x8xbf16, #tpu.memory_space<vmem>>, vector<4x8xbf16>,
    %c5_433 = arith.constant 5 : index
    %c0_434 = arith.constant 0 : index
    %c0_435 = arith.constant 0 : index
    %324 = vector.load %arg9[%c5_433, %c0_434, %c0_435] : memref<10x4x10xbf16, #tpu.memory_space<vmem>>, vector<1x4x8xbf16>
    %325 = vector.shape_cast %324 : vector<1x4x8xbf16> to vector<4x8xbf16>
    %c24_436 = arith.constant 24 : index
    %c0_437 = arith.constant 0 : index
    %326 = vector.load %arg12[%c24_436, %c0_437] : memref<36x8xbf16, #tpu.memory_space<vmem>>, vector<4x8xbf16>
    tpu.vector_store %arg12[%c24_436, %c0_437], %325 {strides = array<i32>} : memref<36x8xbf16, #tpu.memory_space<vmem>>, vector<4x8xbf16>,
    %c5_438 = arith.constant 5 : index
    %c0_439 = arith.constant 0 : index
    %c1_440 = arith.constant 1 : index
    %327 = vector.load %arg9[%c5_438, %c0_439, %c1_440] : memref<10x4x10xbf16, #tpu.memory_space<vmem>>, vector<1x4x8xbf16>
    %328 = vector.shape_cast %327 : vector<1x4x8xbf16> to vector<4x8xbf16>
    %c28_441 = arith.constant 28 : index
    %c0_442 = arith.constant 0 : index
    %329 = vector.load %arg12[%c28_441, %c0_442] : memref<36x8xbf16, #tpu.memory_space<vmem>>, vector<4x8xbf16>
    tpu.vector_store %arg12[%c28_441, %c0_442], %328 {strides = array<i32>} : memref<36x8xbf16, #tpu.memory_space<vmem>>, vector<4x8xbf16>,
    %c5_443 = arith.constant 5 : index
    %c0_444 = arith.constant 0 : index
    %c2_445 = arith.constant 2 : index
    %330 = vector.load %arg9[%c5_443, %c0_444, %c2_445] : memref<10x4x10xbf16, #tpu.memory_space<vmem>>, vector<1x4x8xbf16>
    %331 = vector.shape_cast %330 : vector<1x4x8xbf16> to vector<4x8xbf16>
    %c32_446 = arith.constant 32 : index
    %c0_447 = arith.constant 0 : index
    %332 = vector.load %arg12[%c32_446, %c0_447] : memref<36x8xbf16, #tpu.memory_space<vmem>>, vector<4x8xbf16>
    tpu.vector_store %arg12[%c32_446, %c0_447], %331 {strides = array<i32>} : memref<36x8xbf16, #tpu.memory_space<vmem>>, vector<4x8xbf16>,
    %c0_448 = arith.constant 0 : index
    %c0_449 = arith.constant 0 : index
    %333 = vector.load %arg12[%c0_448, %c0_449] : memref<36x8xbf16, #tpu.memory_space<vmem>>, vector<36x8xbf16>
    %cst_450 = arith.constant dense<0.000000e+00> : vector<8x8xf32>
    %334 = tpu.matmul %190, %333, %cst_450 {dimension_numbers = #tpu.dot_dimension_numbers<[1], [0], [0], [1], [0, 0, 1, 1], [], []>} : vector<8x36xbf16>, vector<36x8xbf16>, vector<8x8xf32> -> vector<8x8xf32>
    %335 = vector.broadcast %191 : vector<8x1xf32> to vector<8x8xf32>
    %336 = arith.addf %334, %335 : vector<8x8xf32>
    %cst_451 = arith.constant 1.000000e-01 : f32
    %337 = vector.broadcast %cst_451 : f32 to vector<8x8xf32>
    %338 = arith.mulf %337, %336 : vector<8x8xf32>
    %339 = arith.maximumf %336, %338 : vector<8x8xf32>
    %340 = arith.truncf %339 : vector<8x8xf32> to vector<8x8xbf16>
    %c4_452 = arith.constant 4 : index
    %c0_453 = arith.constant 0 : index
    %c1_454 = arith.constant 1 : index
    %341 = vector.load %arg10[%c4_452, %c0_453, %c1_454] : memref<10x8x10xbf16, #tpu.memory_space<vmem>>, vector<1x8x8xbf16>
    %342 = vector.shape_cast %341 : vector<1x8x8xbf16> to vector<8x8xbf16>
    %343 = vector.shape_cast %340 : vector<8x8xbf16> to vector<1x8x8xbf16>
    tpu.vector_store %arg10[%c4_452, %c0_453, %c1_454], %343 {strides = array<i32>} : memref<10x8x10xbf16, #tpu.memory_space<vmem>>, vector<1x8x8xbf16>,
    %c4_455 = arith.constant 4 : index
    %c0_456 = arith.constant 0 : index
    %c0_457 = arith.constant 0 : index
    %344 = vector.load %arg9[%c4_455, %c0_456, %c0_457] : memref<10x4x10xbf16, #tpu.memory_space<vmem>>, vector<1x4x8xbf16>
    %345 = vector.shape_cast %344 : vector<1x4x8xbf16> to vector<4x8xbf16>
    %c0_458 = arith.constant 0 : index
    %c0_459 = arith.constant 0 : index
    %346 = vector.load %arg12[%c0_458, %c0_459] : memref<36x8xbf16, #tpu.memory_space<vmem>>, vector<4x8xbf16>
    tpu.vector_store %arg12[%c0_458, %c0_459], %345 {strides = array<i32>} : memref<36x8xbf16, #tpu.memory_space<vmem>>, vector<4x8xbf16>,
    %c4_460 = arith.constant 4 : index
    %c0_461 = arith.constant 0 : index
    %c1_462 = arith.constant 1 : index
    %347 = vector.load %arg9[%c4_460, %c0_461, %c1_462] : memref<10x4x10xbf16, #tpu.memory_space<vmem>>, vector<1x4x8xbf16>
    %348 = vector.shape_cast %347 : vector<1x4x8xbf16> to vector<4x8xbf16>
    %c4_463 = arith.constant 4 : index
    %c0_464 = arith.constant 0 : index
    %349 = vector.load %arg12[%c4_463, %c0_464] : memref<36x8xbf16, #tpu.memory_space<vmem>>, vector<4x8xbf16>
    tpu.vector_store %arg12[%c4_463, %c0_464], %348 {strides = array<i32>} : memref<36x8xbf16, #tpu.memory_space<vmem>>, vector<4x8xbf16>,
    %c4_465 = arith.constant 4 : index
    %c0_466 = arith.constant 0 : index
    %c2_467 = arith.constant 2 : index
    %350 = vector.load %arg9[%c4_465, %c0_466, %c2_467] : memref<10x4x10xbf16, #tpu.memory_space<vmem>>, vector<1x4x8xbf16>
    %351 = vector.shape_cast %350 : vector<1x4x8xbf16> to vector<4x8xbf16>
    %c8_468 = arith.constant 8 : index
    %c0_469 = arith.constant 0 : index
    %352 = vector.load %arg12[%c8_468, %c0_469] : memref<36x8xbf16, #tpu.memory_space<vmem>>, vector<4x8xbf16>
    tpu.vector_store %arg12[%c8_468, %c0_469], %351 {strides = array<i32>} : memref<36x8xbf16, #tpu.memory_space<vmem>>, vector<4x8xbf16>,
    %c5_470 = arith.constant 5 : index
    %c0_471 = arith.constant 0 : index
    %c0_472 = arith.constant 0 : index
    %353 = vector.load %arg9[%c5_470, %c0_471, %c0_472] : memref<10x4x10xbf16, #tpu.memory_space<vmem>>, vector<1x4x8xbf16>
    %354 = vector.shape_cast %353 : vector<1x4x8xbf16> to vector<4x8xbf16>
    %c12_473 = arith.constant 12 : index
    %c0_474 = arith.constant 0 : index
    %355 = vector.load %arg12[%c12_473, %c0_474] : memref<36x8xbf16, #tpu.memory_space<vmem>>, vector<4x8xbf16>
    tpu.vector_store %arg12[%c12_473, %c0_474], %354 {strides = array<i32>} : memref<36x8xbf16, #tpu.memory_space<vmem>>, vector<4x8xbf16>,
    %c5_475 = arith.constant 5 : index
    %c0_476 = arith.constant 0 : index
    %c1_477 = arith.constant 1 : index
    %356 = vector.load %arg9[%c5_475, %c0_476, %c1_477] : memref<10x4x10xbf16, #tpu.memory_space<vmem>>, vector<1x4x8xbf16>
    %357 = vector.shape_cast %356 : vector<1x4x8xbf16> to vector<4x8xbf16>
    %c16_478 = arith.constant 16 : index
    %c0_479 = arith.constant 0 : index
    %358 = vector.load %arg12[%c16_478, %c0_479] : memref<36x8xbf16, #tpu.memory_space<vmem>>, vector<4x8xbf16>
    tpu.vector_store %arg12[%c16_478, %c0_479], %357 {strides = array<i32>} : memref<36x8xbf16, #tpu.memory_space<vmem>>, vector<4x8xbf16>,
    %c5_480 = arith.constant 5 : index
    %c0_481 = arith.constant 0 : index
    %c2_482 = arith.constant 2 : index
    %359 = vector.load %arg9[%c5_480, %c0_481, %c2_482] : memref<10x4x10xbf16, #tpu.memory_space<vmem>>, vector<1x4x8xbf16>
    %360 = vector.shape_cast %359 : vector<1x4x8xbf16> to vector<4x8xbf16>
    %c20_483 = arith.constant 20 : index
    %c0_484 = arith.constant 0 : index
    %361 = vector.load %arg12[%c20_483, %c0_484] : memref<36x8xbf16, #tpu.memory_space<vmem>>, vector<4x8xbf16>
    tpu.vector_store %arg12[%c20_483, %c0_484], %360 {strides = array<i32>} : memref<36x8xbf16, #tpu.memory_space<vmem>>, vector<4x8xbf16>,
    %c6_485 = arith.constant 6 : index
    %c0_486 = arith.constant 0 : index
    %c0_487 = arith.constant 0 : index
    %362 = vector.load %arg9[%c6_485, %c0_486, %c0_487] : memref<10x4x10xbf16, #tpu.memory_space<vmem>>, vector<1x4x8xbf16>
    %363 = vector.shape_cast %362 : vector<1x4x8xbf16> to vector<4x8xbf16>
    %c24_488 = arith.constant 24 : index
    %c0_489 = arith.constant 0 : index
    %364 = vector.load %arg12[%c24_488, %c0_489] : memref<36x8xbf16, #tpu.memory_space<vmem>>, vector<4x8xbf16>
    tpu.vector_store %arg12[%c24_488, %c0_489], %363 {strides = array<i32>} : memref<36x8xbf16, #tpu.memory_space<vmem>>, vector<4x8xbf16>,
    %c6_490 = arith.constant 6 : index
    %c0_491 = arith.constant 0 : index
    %c1_492 = arith.constant 1 : index
    %365 = vector.load %arg9[%c6_490, %c0_491, %c1_492] : memref<10x4x10xbf16, #tpu.memory_space<vmem>>, vector<1x4x8xbf16>
    %366 = vector.shape_cast %365 : vector<1x4x8xbf16> to vector<4x8xbf16>
    %c28_493 = arith.constant 28 : index
    %c0_494 = arith.constant 0 : index
    %367 = vector.load %arg12[%c28_493, %c0_494] : memref<36x8xbf16, #tpu.memory_space<vmem>>, vector<4x8xbf16>
    tpu.vector_store %arg12[%c28_493, %c0_494], %366 {strides = array<i32>} : memref<36x8xbf16, #tpu.memory_space<vmem>>, vector<4x8xbf16>,
    %c6_495 = arith.constant 6 : index
    %c0_496 = arith.constant 0 : index
    %c2_497 = arith.constant 2 : index
    %368 = vector.load %arg9[%c6_495, %c0_496, %c2_497] : memref<10x4x10xbf16, #tpu.memory_space<vmem>>, vector<1x4x8xbf16>
    %369 = vector.shape_cast %368 : vector<1x4x8xbf16> to vector<4x8xbf16>
    %c32_498 = arith.constant 32 : index
    %c0_499 = arith.constant 0 : index
    %370 = vector.load %arg12[%c32_498, %c0_499] : memref<36x8xbf16, #tpu.memory_space<vmem>>, vector<4x8xbf16>
    tpu.vector_store %arg12[%c32_498, %c0_499], %369 {strides = array<i32>} : memref<36x8xbf16, #tpu.memory_space<vmem>>, vector<4x8xbf16>,
    %c0_500 = arith.constant 0 : index
    %c0_501 = arith.constant 0 : index
    %371 = vector.load %arg12[%c0_500, %c0_501] : memref<36x8xbf16, #tpu.memory_space<vmem>>, vector<36x8xbf16>
    %cst_502 = arith.constant dense<0.000000e+00> : vector<8x8xf32>
    %372 = tpu.matmul %190, %371, %cst_502 {dimension_numbers = #tpu.dot_dimension_numbers<[1], [0], [0], [1], [0, 0, 1, 1], [], []>} : vector<8x36xbf16>, vector<36x8xbf16>, vector<8x8xf32> -> vector<8x8xf32>
    %373 = vector.broadcast %191 : vector<8x1xf32> to vector<8x8xf32>
    %374 = arith.addf %372, %373 : vector<8x8xf32>
    %cst_503 = arith.constant 1.000000e-01 : f32
    %375 = vector.broadcast %cst_503 : f32 to vector<8x8xf32>
    %376 = arith.mulf %375, %374 : vector<8x8xf32>
    %377 = arith.maximumf %374, %376 : vector<8x8xf32>
    %378 = arith.truncf %377 : vector<8x8xf32> to vector<8x8xbf16>
    %c5_504 = arith.constant 5 : index
    %c0_505 = arith.constant 0 : index
    %c1_506 = arith.constant 1 : index
    %379 = vector.load %arg10[%c5_504, %c0_505, %c1_506] : memref<10x8x10xbf16, #tpu.memory_space<vmem>>, vector<1x8x8xbf16>
    %380 = vector.shape_cast %379 : vector<1x8x8xbf16> to vector<8x8xbf16>
    %381 = vector.shape_cast %378 : vector<8x8xbf16> to vector<1x8x8xbf16>
    tpu.vector_store %arg10[%c5_504, %c0_505, %c1_506], %381 {strides = array<i32>} : memref<10x8x10xbf16, #tpu.memory_space<vmem>>, vector<1x8x8xbf16>,
    %c5_507 = arith.constant 5 : index
    %c0_508 = arith.constant 0 : index
    %c0_509 = arith.constant 0 : index
    %382 = vector.load %arg9[%c5_507, %c0_508, %c0_509] : memref<10x4x10xbf16, #tpu.memory_space<vmem>>, vector<1x4x8xbf16>
    %383 = vector.shape_cast %382 : vector<1x4x8xbf16> to vector<4x8xbf16>
    %c0_510 = arith.constant 0 : index
    %c0_511 = arith.constant 0 : index
    %384 = vector.load %arg12[%c0_510, %c0_511] : memref<36x8xbf16, #tpu.memory_space<vmem>>, vector<4x8xbf16>
    tpu.vector_store %arg12[%c0_510, %c0_511], %383 {strides = array<i32>} : memref<36x8xbf16, #tpu.memory_space<vmem>>, vector<4x8xbf16>,
    %c5_512 = arith.constant 5 : index
    %c0_513 = arith.constant 0 : index
    %c1_514 = arith.constant 1 : index
    %385 = vector.load %arg9[%c5_512, %c0_513, %c1_514] : memref<10x4x10xbf16, #tpu.memory_space<vmem>>, vector<1x4x8xbf16>
    %386 = vector.shape_cast %385 : vector<1x4x8xbf16> to vector<4x8xbf16>
    %c4_515 = arith.constant 4 : index
    %c0_516 = arith.constant 0 : index
    %387 = vector.load %arg12[%c4_515, %c0_516] : memref<36x8xbf16, #tpu.memory_space<vmem>>, vector<4x8xbf16>
    tpu.vector_store %arg12[%c4_515, %c0_516], %386 {strides = array<i32>} : memref<36x8xbf16, #tpu.memory_space<vmem>>, vector<4x8xbf16>,
    %c5_517 = arith.constant 5 : index
    %c0_518 = arith.constant 0 : index
    %c2_519 = arith.constant 2 : index
    %388 = vector.load %arg9[%c5_517, %c0_518, %c2_519] : memref<10x4x10xbf16, #tpu.memory_space<vmem>>, vector<1x4x8xbf16>
    %389 = vector.shape_cast %388 : vector<1x4x8xbf16> to vector<4x8xbf16>
    %c8_520 = arith.constant 8 : index
    %c0_521 = arith.constant 0 : index
    %390 = vector.load %arg12[%c8_520, %c0_521] : memref<36x8xbf16, #tpu.memory_space<vmem>>, vector<4x8xbf16>
    tpu.vector_store %arg12[%c8_520, %c0_521], %389 {strides = array<i32>} : memref<36x8xbf16, #tpu.memory_space<vmem>>, vector<4x8xbf16>,
    %c6_522 = arith.constant 6 : index
    %c0_523 = arith.constant 0 : index
    %c0_524 = arith.constant 0 : index
    %391 = vector.load %arg9[%c6_522, %c0_523, %c0_524] : memref<10x4x10xbf16, #tpu.memory_space<vmem>>, vector<1x4x8xbf16>
    %392 = vector.shape_cast %391 : vector<1x4x8xbf16> to vector<4x8xbf16>
    %c12_525 = arith.constant 12 : index
    %c0_526 = arith.constant 0 : index
    %393 = vector.load %arg12[%c12_525, %c0_526] : memref<36x8xbf16, #tpu.memory_space<vmem>>, vector<4x8xbf16>
    tpu.vector_store %arg12[%c12_525, %c0_526], %392 {strides = array<i32>} : memref<36x8xbf16, #tpu.memory_space<vmem>>, vector<4x8xbf16>,
    %c6_527 = arith.constant 6 : index
    %c0_528 = arith.constant 0 : index
    %c1_529 = arith.constant 1 : index
    %394 = vector.load %arg9[%c6_527, %c0_528, %c1_529] : memref<10x4x10xbf16, #tpu.memory_space<vmem>>, vector<1x4x8xbf16>
    %395 = vector.shape_cast %394 : vector<1x4x8xbf16> to vector<4x8xbf16>
    %c16_530 = arith.constant 16 : index
    %c0_531 = arith.constant 0 : index
    %396 = vector.load %arg12[%c16_530, %c0_531] : memref<36x8xbf16, #tpu.memory_space<vmem>>, vector<4x8xbf16>
    tpu.vector_store %arg12[%c16_530, %c0_531], %395 {strides = array<i32>} : memref<36x8xbf16, #tpu.memory_space<vmem>>, vector<4x8xbf16>,
    %c6_532 = arith.constant 6 : index
    %c0_533 = arith.constant 0 : index
    %c2_534 = arith.constant 2 : index
    %397 = vector.load %arg9[%c6_532, %c0_533, %c2_534] : memref<10x4x10xbf16, #tpu.memory_space<vmem>>, vector<1x4x8xbf16>
    %398 = vector.shape_cast %397 : vector<1x4x8xbf16> to vector<4x8xbf16>
    %c20_535 = arith.constant 20 : index
    %c0_536 = arith.constant 0 : index
    %399 = vector.load %arg12[%c20_535, %c0_536] : memref<36x8xbf16, #tpu.memory_space<vmem>>, vector<4x8xbf16>
    tpu.vector_store %arg12[%c20_535, %c0_536], %398 {strides = array<i32>} : memref<36x8xbf16, #tpu.memory_space<vmem>>, vector<4x8xbf16>,
    %c7_537 = arith.constant 7 : index
    %c0_538 = arith.constant 0 : index
    %c0_539 = arith.constant 0 : index
    %400 = vector.load %arg9[%c7_537, %c0_538, %c0_539] : memref<10x4x10xbf16, #tpu.memory_space<vmem>>, vector<1x4x8xbf16>
    %401 = vector.shape_cast %400 : vector<1x4x8xbf16> to vector<4x8xbf16>
    %c24_540 = arith.constant 24 : index
    %c0_541 = arith.constant 0 : index
    %402 = vector.load %arg12[%c24_540, %c0_541] : memref<36x8xbf16, #tpu.memory_space<vmem>>, vector<4x8xbf16>
    tpu.vector_store %arg12[%c24_540, %c0_541], %401 {strides = array<i32>} : memref<36x8xbf16, #tpu.memory_space<vmem>>, vector<4x8xbf16>,
    %c7_542 = arith.constant 7 : index
    %c0_543 = arith.constant 0 : index
    %c1_544 = arith.constant 1 : index
    %403 = vector.load %arg9[%c7_542, %c0_543, %c1_544] : memref<10x4x10xbf16, #tpu.memory_space<vmem>>, vector<1x4x8xbf16>
    %404 = vector.shape_cast %403 : vector<1x4x8xbf16> to vector<4x8xbf16>
    %c28_545 = arith.constant 28 : index
    %c0_546 = arith.constant 0 : index
    %405 = vector.load %arg12[%c28_545, %c0_546] : memref<36x8xbf16, #tpu.memory_space<vmem>>, vector<4x8xbf16>
    tpu.vector_store %arg12[%c28_545, %c0_546], %404 {strides = array<i32>} : memref<36x8xbf16, #tpu.memory_space<vmem>>, vector<4x8xbf16>,
    %c7_547 = arith.constant 7 : index
    %c0_548 = arith.constant 0 : index
    %c2_549 = arith.constant 2 : index
    %406 = vector.load %arg9[%c7_547, %c0_548, %c2_549] : memref<10x4x10xbf16, #tpu.memory_space<vmem>>, vector<1x4x8xbf16>
    %407 = vector.shape_cast %406 : vector<1x4x8xbf16> to vector<4x8xbf16>
    %c32_550 = arith.constant 32 : index
    %c0_551 = arith.constant 0 : index
    %408 = vector.load %arg12[%c32_550, %c0_551] : memref<36x8xbf16, #tpu.memory_space<vmem>>, vector<4x8xbf16>
    tpu.vector_store %arg12[%c32_550, %c0_551], %407 {strides = array<i32>} : memref<36x8xbf16, #tpu.memory_space<vmem>>, vector<4x8xbf16>,
    %c0_552 = arith.constant 0 : index
    %c0_553 = arith.constant 0 : index
    %409 = vector.load %arg12[%c0_552, %c0_553] : memref<36x8xbf16, #tpu.memory_space<vmem>>, vector<36x8xbf16>
    %cst_554 = arith.constant dense<0.000000e+00> : vector<8x8xf32>
    %410 = tpu.matmul %190, %409, %cst_554 {dimension_numbers = #tpu.dot_dimension_numbers<[1], [0], [0], [1], [0, 0, 1, 1], [], []>} : vector<8x36xbf16>, vector<36x8xbf16>, vector<8x8xf32> -> vector<8x8xf32>
    %411 = vector.broadcast %191 : vector<8x1xf32> to vector<8x8xf32>
    %412 = arith.addf %410, %411 : vector<8x8xf32>
    %cst_555 = arith.constant 1.000000e-01 : f32
    %413 = vector.broadcast %cst_555 : f32 to vector<8x8xf32>
    %414 = arith.mulf %413, %412 : vector<8x8xf32>
    %415 = arith.maximumf %412, %414 : vector<8x8xf32>
    %416 = arith.truncf %415 : vector<8x8xf32> to vector<8x8xbf16>
    %c6_556 = arith.constant 6 : index
    %c0_557 = arith.constant 0 : index
    %c1_558 = arith.constant 1 : index
    %417 = vector.load %arg10[%c6_556, %c0_557, %c1_558] : memref<10x8x10xbf16, #tpu.memory_space<vmem>>, vector<1x8x8xbf16>
    %418 = vector.shape_cast %417 : vector<1x8x8xbf16> to vector<8x8xbf16>
    %419 = vector.shape_cast %416 : vector<8x8xbf16> to vector<1x8x8xbf16>
    tpu.vector_store %arg10[%c6_556, %c0_557, %c1_558], %419 {strides = array<i32>} : memref<10x8x10xbf16, #tpu.memory_space<vmem>>, vector<1x8x8xbf16>,
    %c6_559 = arith.constant 6 : index
    %c0_560 = arith.constant 0 : index
    %c0_561 = arith.constant 0 : index
    %420 = vector.load %arg9[%c6_559, %c0_560, %c0_561] : memref<10x4x10xbf16, #tpu.memory_space<vmem>>, vector<1x4x8xbf16>
    %421 = vector.shape_cast %420 : vector<1x4x8xbf16> to vector<4x8xbf16>
    %c0_562 = arith.constant 0 : index
    %c0_563 = arith.constant 0 : index
    %422 = vector.load %arg12[%c0_562, %c0_563] : memref<36x8xbf16, #tpu.memory_space<vmem>>, vector<4x8xbf16>
    tpu.vector_store %arg12[%c0_562, %c0_563], %421 {strides = array<i32>} : memref<36x8xbf16, #tpu.memory_space<vmem>>, vector<4x8xbf16>,
    %c6_564 = arith.constant 6 : index
    %c0_565 = arith.constant 0 : index
    %c1_566 = arith.constant 1 : index
    %423 = vector.load %arg9[%c6_564, %c0_565, %c1_566] : memref<10x4x10xbf16, #tpu.memory_space<vmem>>, vector<1x4x8xbf16>
    %424 = vector.shape_cast %423 : vector<1x4x8xbf16> to vector<4x8xbf16>
    %c4_567 = arith.constant 4 : index
    %c0_568 = arith.constant 0 : index
    %425 = vector.load %arg12[%c4_567, %c0_568] : memref<36x8xbf16, #tpu.memory_space<vmem>>, vector<4x8xbf16>
    tpu.vector_store %arg12[%c4_567, %c0_568], %424 {strides = array<i32>} : memref<36x8xbf16, #tpu.memory_space<vmem>>, vector<4x8xbf16>,
    %c6_569 = arith.constant 6 : index
    %c0_570 = arith.constant 0 : index
    %c2_571 = arith.constant 2 : index
    %426 = vector.load %arg9[%c6_569, %c0_570, %c2_571] : memref<10x4x10xbf16, #tpu.memory_space<vmem>>, vector<1x4x8xbf16>
    %427 = vector.shape_cast %426 : vector<1x4x8xbf16> to vector<4x8xbf16>
    %c8_572 = arith.constant 8 : index
    %c0_573 = arith.constant 0 : index
    %428 = vector.load %arg12[%c8_572, %c0_573] : memref<36x8xbf16, #tpu.memory_space<vmem>>, vector<4x8xbf16>
    tpu.vector_store %arg12[%c8_572, %c0_573], %427 {strides = array<i32>} : memref<36x8xbf16, #tpu.memory_space<vmem>>, vector<4x8xbf16>,
    %c7_574 = arith.constant 7 : index
    %c0_575 = arith.constant 0 : index
    %c0_576 = arith.constant 0 : index
    %429 = vector.load %arg9[%c7_574, %c0_575, %c0_576] : memref<10x4x10xbf16, #tpu.memory_space<vmem>>, vector<1x4x8xbf16>
    %430 = vector.shape_cast %429 : vector<1x4x8xbf16> to vector<4x8xbf16>
    %c12_577 = arith.constant 12 : index
    %c0_578 = arith.constant 0 : index
    %431 = vector.load %arg12[%c12_577, %c0_578] : memref<36x8xbf16, #tpu.memory_space<vmem>>, vector<4x8xbf16>
    tpu.vector_store %arg12[%c12_577, %c0_578], %430 {strides = array<i32>} : memref<36x8xbf16, #tpu.memory_space<vmem>>, vector<4x8xbf16>,
    %c7_579 = arith.constant 7 : index
    %c0_580 = arith.constant 0 : index
    %c1_581 = arith.constant 1 : index
    %432 = vector.load %arg9[%c7_579, %c0_580, %c1_581] : memref<10x4x10xbf16, #tpu.memory_space<vmem>>, vector<1x4x8xbf16>
    %433 = vector.shape_cast %432 : vector<1x4x8xbf16> to vector<4x8xbf16>
    %c16_582 = arith.constant 16 : index
    %c0_583 = arith.constant 0 : index
    %434 = vector.load %arg12[%c16_582, %c0_583] : memref<36x8xbf16, #tpu.memory_space<vmem>>, vector<4x8xbf16>
    tpu.vector_store %arg12[%c16_582, %c0_583], %433 {strides = array<i32>} : memref<36x8xbf16, #tpu.memory_space<vmem>>, vector<4x8xbf16>,
    %c7_584 = arith.constant 7 : index
    %c0_585 = arith.constant 0 : index
    %c2_586 = arith.constant 2 : index
    %435 = vector.load %arg9[%c7_584, %c0_585, %c2_586] : memref<10x4x10xbf16, #tpu.memory_space<vmem>>, vector<1x4x8xbf16>
    %436 = vector.shape_cast %435 : vector<1x4x8xbf16> to vector<4x8xbf16>
    %c20_587 = arith.constant 20 : index
    %c0_588 = arith.constant 0 : index
    %437 = vector.load %arg12[%c20_587, %c0_588] : memref<36x8xbf16, #tpu.memory_space<vmem>>, vector<4x8xbf16>
    tpu.vector_store %arg12[%c20_587, %c0_588], %436 {strides = array<i32>} : memref<36x8xbf16, #tpu.memory_space<vmem>>, vector<4x8xbf16>,
    %c8_589 = arith.constant 8 : index
    %c0_590 = arith.constant 0 : index
    %c0_591 = arith.constant 0 : index
    %438 = vector.load %arg9[%c8_589, %c0_590, %c0_591] : memref<10x4x10xbf16, #tpu.memory_space<vmem>>, vector<1x4x8xbf16>
    %439 = vector.shape_cast %438 : vector<1x4x8xbf16> to vector<4x8xbf16>
    %c24_592 = arith.constant 24 : index
    %c0_593 = arith.constant 0 : index
    %440 = vector.load %arg12[%c24_592, %c0_593] : memref<36x8xbf16, #tpu.memory_space<vmem>>, vector<4x8xbf16>
    tpu.vector_store %arg12[%c24_592, %c0_593], %439 {strides = array<i32>} : memref<36x8xbf16, #tpu.memory_space<vmem>>, vector<4x8xbf16>,
    %c8_594 = arith.constant 8 : index
    %c0_595 = arith.constant 0 : index
    %c1_596 = arith.constant 1 : index
    %441 = vector.load %arg9[%c8_594, %c0_595, %c1_596] : memref<10x4x10xbf16, #tpu.memory_space<vmem>>, vector<1x4x8xbf16>
    %442 = vector.shape_cast %441 : vector<1x4x8xbf16> to vector<4x8xbf16>
    %c28_597 = arith.constant 28 : index
    %c0_598 = arith.constant 0 : index
    %443 = vector.load %arg12[%c28_597, %c0_598] : memref<36x8xbf16, #tpu.memory_space<vmem>>, vector<4x8xbf16>
    tpu.vector_store %arg12[%c28_597, %c0_598], %442 {strides = array<i32>} : memref<36x8xbf16, #tpu.memory_space<vmem>>, vector<4x8xbf16>,
    %c8_599 = arith.constant 8 : index
    %c0_600 = arith.constant 0 : index
    %c2_601 = arith.constant 2 : index
    %444 = vector.load %arg9[%c8_599, %c0_600, %c2_601] : memref<10x4x10xbf16, #tpu.memory_space<vmem>>, vector<1x4x8xbf16>
    %445 = vector.shape_cast %444 : vector<1x4x8xbf16> to vector<4x8xbf16>
    %c32_602 = arith.constant 32 : index
    %c0_603 = arith.constant 0 : index
    %446 = vector.load %arg12[%c32_602, %c0_603] : memref<36x8xbf16, #tpu.memory_space<vmem>>, vector<4x8xbf16>
    tpu.vector_store %arg12[%c32_602, %c0_603], %445 {strides = array<i32>} : memref<36x8xbf16, #tpu.memory_space<vmem>>, vector<4x8xbf16>,
    %c0_604 = arith.constant 0 : index
    %c0_605 = arith.constant 0 : index
    %447 = vector.load %arg12[%c0_604, %c0_605] : memref<36x8xbf16, #tpu.memory_space<vmem>>, vector<36x8xbf16>
    %cst_606 = arith.constant dense<0.000000e+00> : vector<8x8xf32>
    %448 = tpu.matmul %190, %447, %cst_606 {dimension_numbers = #tpu.dot_dimension_numbers<[1], [0], [0], [1], [0, 0, 1, 1], [], []>} : vector<8x36xbf16>, vector<36x8xbf16>, vector<8x8xf32> -> vector<8x8xf32>
    %449 = vector.broadcast %191 : vector<8x1xf32> to vector<8x8xf32>
    %450 = arith.addf %448, %449 : vector<8x8xf32>
    %cst_607 = arith.constant 1.000000e-01 : f32
    %451 = vector.broadcast %cst_607 : f32 to vector<8x8xf32>
    %452 = arith.mulf %451, %450 : vector<8x8xf32>
    %453 = arith.maximumf %450, %452 : vector<8x8xf32>
    %454 = arith.truncf %453 : vector<8x8xf32> to vector<8x8xbf16>
    %c7_608 = arith.constant 7 : index
    %c0_609 = arith.constant 0 : index
    %c1_610 = arith.constant 1 : index
    %455 = vector.load %arg10[%c7_608, %c0_609, %c1_610] : memref<10x8x10xbf16, #tpu.memory_space<vmem>>, vector<1x8x8xbf16>
    %456 = vector.shape_cast %455 : vector<1x8x8xbf16> to vector<8x8xbf16>
    %457 = vector.shape_cast %454 : vector<8x8xbf16> to vector<1x8x8xbf16>
    tpu.vector_store %arg10[%c7_608, %c0_609, %c1_610], %457 {strides = array<i32>} : memref<10x8x10xbf16, #tpu.memory_space<vmem>>, vector<1x8x8xbf16>,
    %c7_611 = arith.constant 7 : index
    %c0_612 = arith.constant 0 : index
    %c0_613 = arith.constant 0 : index
    %458 = vector.load %arg9[%c7_611, %c0_612, %c0_613] : memref<10x4x10xbf16, #tpu.memory_space<vmem>>, vector<1x4x8xbf16>
    %459 = vector.shape_cast %458 : vector<1x4x8xbf16> to vector<4x8xbf16>
    %c0_614 = arith.constant 0 : index
    %c0_615 = arith.constant 0 : index
    %460 = vector.load %arg12[%c0_614, %c0_615] : memref<36x8xbf16, #tpu.memory_space<vmem>>, vector<4x8xbf16>
    tpu.vector_store %arg12[%c0_614, %c0_615], %459 {strides = array<i32>} : memref<36x8xbf16, #tpu.memory_space<vmem>>, vector<4x8xbf16>,
    %c7_616 = arith.constant 7 : index
    %c0_617 = arith.constant 0 : index
    %c1_618 = arith.constant 1 : index
    %461 = vector.load %arg9[%c7_616, %c0_617, %c1_618] : memref<10x4x10xbf16, #tpu.memory_space<vmem>>, vector<1x4x8xbf16>
    %462 = vector.shape_cast %461 : vector<1x4x8xbf16> to vector<4x8xbf16>
    %c4_619 = arith.constant 4 : index
    %c0_620 = arith.constant 0 : index
    %463 = vector.load %arg12[%c4_619, %c0_620] : memref<36x8xbf16, #tpu.memory_space<vmem>>, vector<4x8xbf16>
    tpu.vector_store %arg12[%c4_619, %c0_620], %462 {strides = array<i32>} : memref<36x8xbf16, #tpu.memory_space<vmem>>, vector<4x8xbf16>,
    %c7_621 = arith.constant 7 : index
    %c0_622 = arith.constant 0 : index
    %c2_623 = arith.constant 2 : index
    %464 = vector.load %arg9[%c7_621, %c0_622, %c2_623] : memref<10x4x10xbf16, #tpu.memory_space<vmem>>, vector<1x4x8xbf16>
    %465 = vector.shape_cast %464 : vector<1x4x8xbf16> to vector<4x8xbf16>
    %c8_624 = arith.constant 8 : index
    %c0_625 = arith.constant 0 : index
    %466 = vector.load %arg12[%c8_624, %c0_625] : memref<36x8xbf16, #tpu.memory_space<vmem>>, vector<4x8xbf16>
    tpu.vector_store %arg12[%c8_624, %c0_625], %465 {strides = array<i32>} : memref<36x8xbf16, #tpu.memory_space<vmem>>, vector<4x8xbf16>,
    %c8_626 = arith.constant 8 : index
    %c0_627 = arith.constant 0 : index
    %c0_628 = arith.constant 0 : index
    %467 = vector.load %arg9[%c8_626, %c0_627, %c0_628] : memref<10x4x10xbf16, #tpu.memory_space<vmem>>, vector<1x4x8xbf16>
    %468 = vector.shape_cast %467 : vector<1x4x8xbf16> to vector<4x8xbf16>
    %c12_629 = arith.constant 12 : index
    %c0_630 = arith.constant 0 : index
    %469 = vector.load %arg12[%c12_629, %c0_630] : memref<36x8xbf16, #tpu.memory_space<vmem>>, vector<4x8xbf16>
    tpu.vector_store %arg12[%c12_629, %c0_630], %468 {strides = array<i32>} : memref<36x8xbf16, #tpu.memory_space<vmem>>, vector<4x8xbf16>,
    %c8_631 = arith.constant 8 : index
    %c0_632 = arith.constant 0 : index
    %c1_633 = arith.constant 1 : index
    %470 = vector.load %arg9[%c8_631, %c0_632, %c1_633] : memref<10x4x10xbf16, #tpu.memory_space<vmem>>, vector<1x4x8xbf16>
    %471 = vector.shape_cast %470 : vector<1x4x8xbf16> to vector<4x8xbf16>
    %c16_634 = arith.constant 16 : index
    %c0_635 = arith.constant 0 : index
    %472 = vector.load %arg12[%c16_634, %c0_635] : memref<36x8xbf16, #tpu.memory_space<vmem>>, vector<4x8xbf16>
    tpu.vector_store %arg12[%c16_634, %c0_635], %471 {strides = array<i32>} : memref<36x8xbf16, #tpu.memory_space<vmem>>, vector<4x8xbf16>,
    %c8_636 = arith.constant 8 : index
    %c0_637 = arith.constant 0 : index
    %c2_638 = arith.constant 2 : index
    %473 = vector.load %arg9[%c8_636, %c0_637, %c2_638] : memref<10x4x10xbf16, #tpu.memory_space<vmem>>, vector<1x4x8xbf16>
    %474 = vector.shape_cast %473 : vector<1x4x8xbf16> to vector<4x8xbf16>
    %c20_639 = arith.constant 20 : index
    %c0_640 = arith.constant 0 : index
    %475 = vector.load %arg12[%c20_639, %c0_640] : memref<36x8xbf16, #tpu.memory_space<vmem>>, vector<4x8xbf16>
    tpu.vector_store %arg12[%c20_639, %c0_640], %474 {strides = array<i32>} : memref<36x8xbf16, #tpu.memory_space<vmem>>, vector<4x8xbf16>,
    %c9 = arith.constant 9 : index
    %c0_641 = arith.constant 0 : index
    %c0_642 = arith.constant 0 : index
    %476 = vector.load %arg9[%c9, %c0_641, %c0_642] : memref<10x4x10xbf16, #tpu.memory_space<vmem>>, vector<1x4x8xbf16>
    %477 = vector.shape_cast %476 : vector<1x4x8xbf16> to vector<4x8xbf16>
    %c24_643 = arith.constant 24 : index
    %c0_644 = arith.constant 0 : index
    %478 = vector.load %arg12[%c24_643, %c0_644] : memref<36x8xbf16, #tpu.memory_space<vmem>>, vector<4x8xbf16>
    tpu.vector_store %arg12[%c24_643, %c0_644], %477 {strides = array<i32>} : memref<36x8xbf16, #tpu.memory_space<vmem>>, vector<4x8xbf16>,
    %c9_645 = arith.constant 9 : index
    %c0_646 = arith.constant 0 : index
    %c1_647 = arith.constant 1 : index
    %479 = vector.load %arg9[%c9_645, %c0_646, %c1_647] : memref<10x4x10xbf16, #tpu.memory_space<vmem>>, vector<1x4x8xbf16>
    %480 = vector.shape_cast %479 : vector<1x4x8xbf16> to vector<4x8xbf16>
    %c28_648 = arith.constant 28 : index
    %c0_649 = arith.constant 0 : index
    %481 = vector.load %arg12[%c28_648, %c0_649] : memref<36x8xbf16, #tpu.memory_space<vmem>>, vector<4x8xbf16>
    tpu.vector_store %arg12[%c28_648, %c0_649], %480 {strides = array<i32>} : memref<36x8xbf16, #tpu.memory_space<vmem>>, vector<4x8xbf16>,
    %c9_650 = arith.constant 9 : index
    %c0_651 = arith.constant 0 : index
    %c2_652 = arith.constant 2 : index
    %482 = vector.load %arg9[%c9_650, %c0_651, %c2_652] : memref<10x4x10xbf16, #tpu.memory_space<vmem>>, vector<1x4x8xbf16>
    %483 = vector.shape_cast %482 : vector<1x4x8xbf16> to vector<4x8xbf16>
    %c32_653 = arith.constant 32 : index
    %c0_654 = arith.constant 0 : index
    %484 = vector.load %arg12[%c32_653, %c0_654] : memref<36x8xbf16, #tpu.memory_space<vmem>>, vector<4x8xbf16>
    tpu.vector_store %arg12[%c32_653, %c0_654], %483 {strides = array<i32>} : memref<36x8xbf16, #tpu.memory_space<vmem>>, vector<4x8xbf16>,
    %c0_655 = arith.constant 0 : index
    %c0_656 = arith.constant 0 : index
    %485 = vector.load %arg12[%c0_655, %c0_656] : memref<36x8xbf16, #tpu.memory_space<vmem>>, vector<36x8xbf16>
    %cst_657 = arith.constant dense<0.000000e+00> : vector<8x8xf32>
    %486 = tpu.matmul %190, %485, %cst_657 {dimension_numbers = #tpu.dot_dimension_numbers<[1], [0], [0], [1], [0, 0, 1, 1], [], []>} : vector<8x36xbf16>, vector<36x8xbf16>, vector<8x8xf32> -> vector<8x8xf32>
    %487 = vector.broadcast %191 : vector<8x1xf32> to vector<8x8xf32>
    %488 = arith.addf %486, %487 : vector<8x8xf32>
    %cst_658 = arith.constant 1.000000e-01 : f32
    %489 = vector.broadcast %cst_658 : f32 to vector<8x8xf32>
    %490 = arith.mulf %489, %488 : vector<8x8xf32>
    %491 = arith.maximumf %488, %490 : vector<8x8xf32>
    %492 = arith.truncf %491 : vector<8x8xf32> to vector<8x8xbf16>
    %c8_659 = arith.constant 8 : index
    %c0_660 = arith.constant 0 : index
    %c1_661 = arith.constant 1 : index
    %493 = vector.load %arg10[%c8_659, %c0_660, %c1_661] : memref<10x8x10xbf16, #tpu.memory_space<vmem>>, vector<1x8x8xbf16>
    %494 = vector.shape_cast %493 : vector<1x8x8xbf16> to vector<8x8xbf16>
    %495 = vector.shape_cast %492 : vector<8x8xbf16> to vector<1x8x8xbf16>
    tpu.vector_store %arg10[%c8_659, %c0_660, %c1_661], %495 {strides = array<i32>} : memref<10x8x10xbf16, #tpu.memory_space<vmem>>, vector<1x8x8xbf16>,
    %c0_662 = arith.constant 0 : index
    %c0_663 = arith.constant 0 : index
    %496 = vector.load %arg6[%c0_662, %c0_663] : memref<8x72xbf16, #tpu.memory_space<vmem>>, vector<8x72xbf16>
    %c0_664 = arith.constant 0 : index
    %c0_665 = arith.constant 0 : index
    %497 = vector.load %arg7[%c0_664, %c0_665] : memref<8x1xf32, #tpu.memory_space<vmem>>, vector<8x1xf32>
    %c0_666 = arith.constant 0 : index
    %c0_667 = arith.constant 0 : index
    %c0_668 = arith.constant 0 : index
    %498 = vector.load %arg10[%c0_666, %c0_667, %c0_668] : memref<10x8x10xbf16, #tpu.memory_space<vmem>>, vector<1x8x8xbf16>
    %499 = vector.shape_cast %498 : vector<1x8x8xbf16> to vector<8x8xbf16>
    %c0_669 = arith.constant 0 : index
    %c0_670 = arith.constant 0 : index
    %500 = vector.load %arg13[%c0_669, %c0_670] : memref<72x8xbf16, #tpu.memory_space<vmem>>, vector<8x8xbf16>
    tpu.vector_store %arg13[%c0_669, %c0_670], %499 {strides = array<i32>} : memref<72x8xbf16, #tpu.memory_space<vmem>>, vector<8x8xbf16>,
    %c0_671 = arith.constant 0 : index
    %c0_672 = arith.constant 0 : index
    %c1_673 = arith.constant 1 : index
    %501 = vector.load %arg10[%c0_671, %c0_672, %c1_673] : memref<10x8x10xbf16, #tpu.memory_space<vmem>>, vector<1x8x8xbf16>
    %502 = vector.shape_cast %501 : vector<1x8x8xbf16> to vector<8x8xbf16>
    %c8_674 = arith.constant 8 : index
    %c0_675 = arith.constant 0 : index
    %503 = vector.load %arg13[%c8_674, %c0_675] : memref<72x8xbf16, #tpu.memory_space<vmem>>, vector<8x8xbf16>
    tpu.vector_store %arg13[%c8_674, %c0_675], %502 {strides = array<i32>} : memref<72x8xbf16, #tpu.memory_space<vmem>>, vector<8x8xbf16>,
    %c0_676 = arith.constant 0 : index
    %c0_677 = arith.constant 0 : index
    %c2_678 = arith.constant 2 : index
    %504 = vector.load %arg10[%c0_676, %c0_677, %c2_678] : memref<10x8x10xbf16, #tpu.memory_space<vmem>>, vector<1x8x8xbf16>
    %505 = vector.shape_cast %504 : vector<1x8x8xbf16> to vector<8x8xbf16>
    %c16_679 = arith.constant 16 : index
    %c0_680 = arith.constant 0 : index
    %506 = vector.load %arg13[%c16_679, %c0_680] : memref<72x8xbf16, #tpu.memory_space<vmem>>, vector<8x8xbf16>
    tpu.vector_store %arg13[%c16_679, %c0_680], %505 {strides = array<i32>} : memref<72x8xbf16, #tpu.memory_space<vmem>>, vector<8x8xbf16>,
    %c1_681 = arith.constant 1 : index
    %c0_682 = arith.constant 0 : index
    %c0_683 = arith.constant 0 : index
    %507 = vector.load %arg10[%c1_681, %c0_682, %c0_683] : memref<10x8x10xbf16, #tpu.memory_space<vmem>>, vector<1x8x8xbf16>
    %508 = vector.shape_cast %507 : vector<1x8x8xbf16> to vector<8x8xbf16>
    %c24_684 = arith.constant 24 : index
    %c0_685 = arith.constant 0 : index
    %509 = vector.load %arg13[%c24_684, %c0_685] : memref<72x8xbf16, #tpu.memory_space<vmem>>, vector<8x8xbf16>
    tpu.vector_store %arg13[%c24_684, %c0_685], %508 {strides = array<i32>} : memref<72x8xbf16, #tpu.memory_space<vmem>>, vector<8x8xbf16>,
    %c1_686 = arith.constant 1 : index
    %c0_687 = arith.constant 0 : index
    %c1_688 = arith.constant 1 : index
    %510 = vector.load %arg10[%c1_686, %c0_687, %c1_688] : memref<10x8x10xbf16, #tpu.memory_space<vmem>>, vector<1x8x8xbf16>
    %511 = vector.shape_cast %510 : vector<1x8x8xbf16> to vector<8x8xbf16>
    %c32_689 = arith.constant 32 : index
    %c0_690 = arith.constant 0 : index
    %512 = vector.load %arg13[%c32_689, %c0_690] : memref<72x8xbf16, #tpu.memory_space<vmem>>, vector<8x8xbf16>
    tpu.vector_store %arg13[%c32_689, %c0_690], %511 {strides = array<i32>} : memref<72x8xbf16, #tpu.memory_space<vmem>>, vector<8x8xbf16>,
    %c1_691 = arith.constant 1 : index
    %c0_692 = arith.constant 0 : index
    %c2_693 = arith.constant 2 : index
    %513 = vector.load %arg10[%c1_691, %c0_692, %c2_693] : memref<10x8x10xbf16, #tpu.memory_space<vmem>>, vector<1x8x8xbf16>
    %514 = vector.shape_cast %513 : vector<1x8x8xbf16> to vector<8x8xbf16>
    %c40 = arith.constant 40 : index
    %c0_694 = arith.constant 0 : index
    %515 = vector.load %arg13[%c40, %c0_694] : memref<72x8xbf16, #tpu.memory_space<vmem>>, vector<8x8xbf16>
    tpu.vector_store %arg13[%c40, %c0_694], %514 {strides = array<i32>} : memref<72x8xbf16, #tpu.memory_space<vmem>>, vector<8x8xbf16>,
    %c2_695 = arith.constant 2 : index
    %c0_696 = arith.constant 0 : index
    %c0_697 = arith.constant 0 : index
    %516 = vector.load %arg10[%c2_695, %c0_696, %c0_697] : memref<10x8x10xbf16, #tpu.memory_space<vmem>>, vector<1x8x8xbf16>
    %517 = vector.shape_cast %516 : vector<1x8x8xbf16> to vector<8x8xbf16>
    %c48_698 = arith.constant 48 : index
    %c0_699 = arith.constant 0 : index
    %518 = vector.load %arg13[%c48_698, %c0_699] : memref<72x8xbf16, #tpu.memory_space<vmem>>, vector<8x8xbf16>
    tpu.vector_store %arg13[%c48_698, %c0_699], %517 {strides = array<i32>} : memref<72x8xbf16, #tpu.memory_space<vmem>>, vector<8x8xbf16>,
    %c2_700 = arith.constant 2 : index
    %c0_701 = arith.constant 0 : index
    %c1_702 = arith.constant 1 : index
    %519 = vector.load %arg10[%c2_700, %c0_701, %c1_702] : memref<10x8x10xbf16, #tpu.memory_space<vmem>>, vector<1x8x8xbf16>
    %520 = vector.shape_cast %519 : vector<1x8x8xbf16> to vector<8x8xbf16>
    %c56 = arith.constant 56 : index
    %c0_703 = arith.constant 0 : index
    %521 = vector.load %arg13[%c56, %c0_703] : memref<72x8xbf16, #tpu.memory_space<vmem>>, vector<8x8xbf16>
    tpu.vector_store %arg13[%c56, %c0_703], %520 {strides = array<i32>} : memref<72x8xbf16, #tpu.memory_space<vmem>>, vector<8x8xbf16>,
    %c2_704 = arith.constant 2 : index
    %c0_705 = arith.constant 0 : index
    %c2_706 = arith.constant 2 : index
    %522 = vector.load %arg10[%c2_704, %c0_705, %c2_706] : memref<10x8x10xbf16, #tpu.memory_space<vmem>>, vector<1x8x8xbf16>
    %523 = vector.shape_cast %522 : vector<1x8x8xbf16> to vector<8x8xbf16>
    %c64 = arith.constant 64 : index
    %c0_707 = arith.constant 0 : index
    %524 = vector.load %arg13[%c64, %c0_707] : memref<72x8xbf16, #tpu.memory_space<vmem>>, vector<8x8xbf16>
    tpu.vector_store %arg13[%c64, %c0_707], %523 {strides = array<i32>} : memref<72x8xbf16, #tpu.memory_space<vmem>>, vector<8x8xbf16>,
    %c0_708 = arith.constant 0 : index
    %c0_709 = arith.constant 0 : index
    %525 = vector.load %arg13[%c0_708, %c0_709] : memref<72x8xbf16, #tpu.memory_space<vmem>>, vector<72x8xbf16>
    %cst_710 = arith.constant dense<0.000000e+00> : vector<8x8xf32>
    %526 = tpu.matmul %496, %525, %cst_710 {dimension_numbers = #tpu.dot_dimension_numbers<[1], [0], [0], [1], [0, 0, 1, 1], [], []>} : vector<8x72xbf16>, vector<72x8xbf16>, vector<8x8xf32> -> vector<8x8xf32>
    %527 = vector.broadcast %497 : vector<8x1xf32> to vector<8x8xf32>
    %528 = arith.addf %526, %527 : vector<8x8xf32>
    %cst_711 = arith.constant 1.000000e-01 : f32
    %529 = vector.broadcast %cst_711 : f32 to vector<8x8xf32>
    %530 = arith.mulf %529, %528 : vector<8x8xf32>
    %531 = arith.maximumf %528, %530 : vector<8x8xf32>
    %c0_712 = arith.constant 0 : index
    %c0_713 = arith.constant 0 : index
    %c0_714 = arith.constant 0 : index
    %c0_715 = arith.constant 0 : index
    %532 = vector.load %arg8[%c0_712, %c0_713, %c0_714, %c0_715] : memref<1x8x8x8xf32, #tpu.memory_space<vmem>>, vector<1x1x8x8xf32>
    %533 = vector.shape_cast %532 : vector<1x1x8x8xf32> to vector<8x8xf32>
    %534 = vector.shape_cast %531 : vector<8x8xf32> to vector<1x1x8x8xf32>
    tpu.vector_store %arg8[%c0_712, %c0_713, %c0_714, %c0_715], %534 {strides = array<i32>} : memref<1x8x8x8xf32, #tpu.memory_space<vmem>>, vector<1x1x8x8xf32>,
    %c1_716 = arith.constant 1 : index
    %c0_717 = arith.constant 0 : index
    %c0_718 = arith.constant 0 : index
    %535 = vector.load %arg10[%c1_716, %c0_717, %c0_718] : memref<10x8x10xbf16, #tpu.memory_space<vmem>>, vector<1x8x8xbf16>
    %536 = vector.shape_cast %535 : vector<1x8x8xbf16> to vector<8x8xbf16>
    %c0_719 = arith.constant 0 : index
    %c0_720 = arith.constant 0 : index
    %537 = vector.load %arg13[%c0_719, %c0_720] : memref<72x8xbf16, #tpu.memory_space<vmem>>, vector<8x8xbf16>
    tpu.vector_store %arg13[%c0_719, %c0_720], %536 {strides = array<i32>} : memref<72x8xbf16, #tpu.memory_space<vmem>>, vector<8x8xbf16>,
    %c1_721 = arith.constant 1 : index
    %c0_722 = arith.constant 0 : index
    %c1_723 = arith.constant 1 : index
    %538 = vector.load %arg10[%c1_721, %c0_722, %c1_723] : memref<10x8x10xbf16, #tpu.memory_space<vmem>>, vector<1x8x8xbf16>
    %539 = vector.shape_cast %538 : vector<1x8x8xbf16> to vector<8x8xbf16>
    %c8_724 = arith.constant 8 : index
    %c0_725 = arith.constant 0 : index
    %540 = vector.load %arg13[%c8_724, %c0_725] : memref<72x8xbf16, #tpu.memory_space<vmem>>, vector<8x8xbf16>
    tpu.vector_store %arg13[%c8_724, %c0_725], %539 {strides = array<i32>} : memref<72x8xbf16, #tpu.memory_space<vmem>>, vector<8x8xbf16>,
    %c1_726 = arith.constant 1 : index
    %c0_727 = arith.constant 0 : index
    %c2_728 = arith.constant 2 : index
    %541 = vector.load %arg10[%c1_726, %c0_727, %c2_728] : memref<10x8x10xbf16, #tpu.memory_space<vmem>>, vector<1x8x8xbf16>
    %542 = vector.shape_cast %541 : vector<1x8x8xbf16> to vector<8x8xbf16>
    %c16_729 = arith.constant 16 : index
    %c0_730 = arith.constant 0 : index
    %543 = vector.load %arg13[%c16_729, %c0_730] : memref<72x8xbf16, #tpu.memory_space<vmem>>, vector<8x8xbf16>
    tpu.vector_store %arg13[%c16_729, %c0_730], %542 {strides = array<i32>} : memref<72x8xbf16, #tpu.memory_space<vmem>>, vector<8x8xbf16>,
    %c2_731 = arith.constant 2 : index
    %c0_732 = arith.constant 0 : index
    %c0_733 = arith.constant 0 : index
    %544 = vector.load %arg10[%c2_731, %c0_732, %c0_733] : memref<10x8x10xbf16, #tpu.memory_space<vmem>>, vector<1x8x8xbf16>
    %545 = vector.shape_cast %544 : vector<1x8x8xbf16> to vector<8x8xbf16>
    %c24_734 = arith.constant 24 : index
    %c0_735 = arith.constant 0 : index
    %546 = vector.load %arg13[%c24_734, %c0_735] : memref<72x8xbf16, #tpu.memory_space<vmem>>, vector<8x8xbf16>
    tpu.vector_store %arg13[%c24_734, %c0_735], %545 {strides = array<i32>} : memref<72x8xbf16, #tpu.memory_space<vmem>>, vector<8x8xbf16>,
    %c2_736 = arith.constant 2 : index
    %c0_737 = arith.constant 0 : index
    %c1_738 = arith.constant 1 : index
    %547 = vector.load %arg10[%c2_736, %c0_737, %c1_738] : memref<10x8x10xbf16, #tpu.memory_space<vmem>>, vector<1x8x8xbf16>
    %548 = vector.shape_cast %547 : vector<1x8x8xbf16> to vector<8x8xbf16>
    %c32_739 = arith.constant 32 : index
    %c0_740 = arith.constant 0 : index
    %549 = vector.load %arg13[%c32_739, %c0_740] : memref<72x8xbf16, #tpu.memory_space<vmem>>, vector<8x8xbf16>
    tpu.vector_store %arg13[%c32_739, %c0_740], %548 {strides = array<i32>} : memref<72x8xbf16, #tpu.memory_space<vmem>>, vector<8x8xbf16>,
    %c2_741 = arith.constant 2 : index
    %c0_742 = arith.constant 0 : index
    %c2_743 = arith.constant 2 : index
    %550 = vector.load %arg10[%c2_741, %c0_742, %c2_743] : memref<10x8x10xbf16, #tpu.memory_space<vmem>>, vector<1x8x8xbf16>
    %551 = vector.shape_cast %550 : vector<1x8x8xbf16> to vector<8x8xbf16>
    %c40_744 = arith.constant 40 : index
    %c0_745 = arith.constant 0 : index
    %552 = vector.load %arg13[%c40_744, %c0_745] : memref<72x8xbf16, #tpu.memory_space<vmem>>, vector<8x8xbf16>
    tpu.vector_store %arg13[%c40_744, %c0_745], %551 {strides = array<i32>} : memref<72x8xbf16, #tpu.memory_space<vmem>>, vector<8x8xbf16>,
    %c3_746 = arith.constant 3 : index
    %c0_747 = arith.constant 0 : index
    %c0_748 = arith.constant 0 : index
    %553 = vector.load %arg10[%c3_746, %c0_747, %c0_748] : memref<10x8x10xbf16, #tpu.memory_space<vmem>>, vector<1x8x8xbf16>
    %554 = vector.shape_cast %553 : vector<1x8x8xbf16> to vector<8x8xbf16>
    %c48_749 = arith.constant 48 : index
    %c0_750 = arith.constant 0 : index
    %555 = vector.load %arg13[%c48_749, %c0_750] : memref<72x8xbf16, #tpu.memory_space<vmem>>, vector<8x8xbf16>
    tpu.vector_store %arg13[%c48_749, %c0_750], %554 {strides = array<i32>} : memref<72x8xbf16, #tpu.memory_space<vmem>>, vector<8x8xbf16>,
    %c3_751 = arith.constant 3 : index
    %c0_752 = arith.constant 0 : index
    %c1_753 = arith.constant 1 : index
    %556 = vector.load %arg10[%c3_751, %c0_752, %c1_753] : memref<10x8x10xbf16, #tpu.memory_space<vmem>>, vector<1x8x8xbf16>
    %557 = vector.shape_cast %556 : vector<1x8x8xbf16> to vector<8x8xbf16>
    %c56_754 = arith.constant 56 : index
    %c0_755 = arith.constant 0 : index
    %558 = vector.load %arg13[%c56_754, %c0_755] : memref<72x8xbf16, #tpu.memory_space<vmem>>, vector<8x8xbf16>
    tpu.vector_store %arg13[%c56_754, %c0_755], %557 {strides = array<i32>} : memref<72x8xbf16, #tpu.memory_space<vmem>>, vector<8x8xbf16>,
    %c3_756 = arith.constant 3 : index
    %c0_757 = arith.constant 0 : index
    %c2_758 = arith.constant 2 : index
    %559 = vector.load %arg10[%c3_756, %c0_757, %c2_758] : memref<10x8x10xbf16, #tpu.memory_space<vmem>>, vector<1x8x8xbf16>
    %560 = vector.shape_cast %559 : vector<1x8x8xbf16> to vector<8x8xbf16>
    %c64_759 = arith.constant 64 : index
    %c0_760 = arith.constant 0 : index
    %561 = vector.load %arg13[%c64_759, %c0_760] : memref<72x8xbf16, #tpu.memory_space<vmem>>, vector<8x8xbf16>
    tpu.vector_store %arg13[%c64_759, %c0_760], %560 {strides = array<i32>} : memref<72x8xbf16, #tpu.memory_space<vmem>>, vector<8x8xbf16>,
    %c0_761 = arith.constant 0 : index
    %c0_762 = arith.constant 0 : index
    %562 = vector.load %arg13[%c0_761, %c0_762] : memref<72x8xbf16, #tpu.memory_space<vmem>>, vector<72x8xbf16>
    %cst_763 = arith.constant dense<0.000000e+00> : vector<8x8xf32>
    %563 = tpu.matmul %496, %562, %cst_763 {dimension_numbers = #tpu.dot_dimension_numbers<[1], [0], [0], [1], [0, 0, 1, 1], [], []>} : vector<8x72xbf16>, vector<72x8xbf16>, vector<8x8xf32> -> vector<8x8xf32>
    %564 = vector.broadcast %497 : vector<8x1xf32> to vector<8x8xf32>
    %565 = arith.addf %563, %564 : vector<8x8xf32>
    %cst_764 = arith.constant 1.000000e-01 : f32
    %566 = vector.broadcast %cst_764 : f32 to vector<8x8xf32>
    %567 = arith.mulf %566, %565 : vector<8x8xf32>
    %568 = arith.maximumf %565, %567 : vector<8x8xf32>
    %c0_765 = arith.constant 0 : index
    %c1_766 = arith.constant 1 : index
    %c0_767 = arith.constant 0 : index
    %c0_768 = arith.constant 0 : index
    %569 = vector.load %arg8[%c0_765, %c1_766, %c0_767, %c0_768] : memref<1x8x8x8xf32, #tpu.memory_space<vmem>>, vector<1x1x8x8xf32>
    %570 = vector.shape_cast %569 : vector<1x1x8x8xf32> to vector<8x8xf32>
    %571 = vector.shape_cast %568 : vector<8x8xf32> to vector<1x1x8x8xf32>
    tpu.vector_store %arg8[%c0_765, %c1_766, %c0_767, %c0_768], %571 {strides = array<i32>} : memref<1x8x8x8xf32, #tpu.memory_space<vmem>>, vector<1x1x8x8xf32>,
    %c2_769 = arith.constant 2 : index
    %c0_770 = arith.constant 0 : index
    %c0_771 = arith.constant 0 : index
    %572 = vector.load %arg10[%c2_769, %c0_770, %c0_771] : memref<10x8x10xbf16, #tpu.memory_space<vmem>>, vector<1x8x8xbf16>
    %573 = vector.shape_cast %572 : vector<1x8x8xbf16> to vector<8x8xbf16>
    %c0_772 = arith.constant 0 : index
    %c0_773 = arith.constant 0 : index
    %574 = vector.load %arg13[%c0_772, %c0_773] : memref<72x8xbf16, #tpu.memory_space<vmem>>, vector<8x8xbf16>
    tpu.vector_store %arg13[%c0_772, %c0_773], %573 {strides = array<i32>} : memref<72x8xbf16, #tpu.memory_space<vmem>>, vector<8x8xbf16>,
    %c2_774 = arith.constant 2 : index
    %c0_775 = arith.constant 0 : index
    %c1_776 = arith.constant 1 : index
    %575 = vector.load %arg10[%c2_774, %c0_775, %c1_776] : memref<10x8x10xbf16, #tpu.memory_space<vmem>>, vector<1x8x8xbf16>
    %576 = vector.shape_cast %575 : vector<1x8x8xbf16> to vector<8x8xbf16>
    %c8_777 = arith.constant 8 : index
    %c0_778 = arith.constant 0 : index
    %577 = vector.load %arg13[%c8_777, %c0_778] : memref<72x8xbf16, #tpu.memory_space<vmem>>, vector<8x8xbf16>
    tpu.vector_store %arg13[%c8_777, %c0_778], %576 {strides = array<i32>} : memref<72x8xbf16, #tpu.memory_space<vmem>>, vector<8x8xbf16>,
    %c2_779 = arith.constant 2 : index
    %c0_780 = arith.constant 0 : index
    %c2_781 = arith.constant 2 : index
    %578 = vector.load %arg10[%c2_779, %c0_780, %c2_781] : memref<10x8x10xbf16, #tpu.memory_space<vmem>>, vector<1x8x8xbf16>
    %579 = vector.shape_cast %578 : vector<1x8x8xbf16> to vector<8x8xbf16>
    %c16_782 = arith.constant 16 : index
    %c0_783 = arith.constant 0 : index
    %580 = vector.load %arg13[%c16_782, %c0_783] : memref<72x8xbf16, #tpu.memory_space<vmem>>, vector<8x8xbf16>
    tpu.vector_store %arg13[%c16_782, %c0_783], %579 {strides = array<i32>} : memref<72x8xbf16, #tpu.memory_space<vmem>>, vector<8x8xbf16>,
    %c3_784 = arith.constant 3 : index
    %c0_785 = arith.constant 0 : index
    %c0_786 = arith.constant 0 : index
    %581 = vector.load %arg10[%c3_784, %c0_785, %c0_786] : memref<10x8x10xbf16, #tpu.memory_space<vmem>>, vector<1x8x8xbf16>
    %582 = vector.shape_cast %581 : vector<1x8x8xbf16> to vector<8x8xbf16>
    %c24_787 = arith.constant 24 : index
    %c0_788 = arith.constant 0 : index
    %583 = vector.load %arg13[%c24_787, %c0_788] : memref<72x8xbf16, #tpu.memory_space<vmem>>, vector<8x8xbf16>
    tpu.vector_store %arg13[%c24_787, %c0_788], %582 {strides = array<i32>} : memref<72x8xbf16, #tpu.memory_space<vmem>>, vector<8x8xbf16>,
    %c3_789 = arith.constant 3 : index
    %c0_790 = arith.constant 0 : index
    %c1_791 = arith.constant 1 : index
    %584 = vector.load %arg10[%c3_789, %c0_790, %c1_791] : memref<10x8x10xbf16, #tpu.memory_space<vmem>>, vector<1x8x8xbf16>
    %585 = vector.shape_cast %584 : vector<1x8x8xbf16> to vector<8x8xbf16>
    %c32_792 = arith.constant 32 : index
    %c0_793 = arith.constant 0 : index
    %586 = vector.load %arg13[%c32_792, %c0_793] : memref<72x8xbf16, #tpu.memory_space<vmem>>, vector<8x8xbf16>
    tpu.vector_store %arg13[%c32_792, %c0_793], %585 {strides = array<i32>} : memref<72x8xbf16, #tpu.memory_space<vmem>>, vector<8x8xbf16>,
    %c3_794 = arith.constant 3 : index
    %c0_795 = arith.constant 0 : index
    %c2_796 = arith.constant 2 : index
    %587 = vector.load %arg10[%c3_794, %c0_795, %c2_796] : memref<10x8x10xbf16, #tpu.memory_space<vmem>>, vector<1x8x8xbf16>
    %588 = vector.shape_cast %587 : vector<1x8x8xbf16> to vector<8x8xbf16>
    %c40_797 = arith.constant 40 : index
    %c0_798 = arith.constant 0 : index
    %589 = vector.load %arg13[%c40_797, %c0_798] : memref<72x8xbf16, #tpu.memory_space<vmem>>, vector<8x8xbf16>
    tpu.vector_store %arg13[%c40_797, %c0_798], %588 {strides = array<i32>} : memref<72x8xbf16, #tpu.memory_space<vmem>>, vector<8x8xbf16>,
    %c4_799 = arith.constant 4 : index
    %c0_800 = arith.constant 0 : index
    %c0_801 = arith.constant 0 : index
    %590 = vector.load %arg10[%c4_799, %c0_800, %c0_801] : memref<10x8x10xbf16, #tpu.memory_space<vmem>>, vector<1x8x8xbf16>
    %591 = vector.shape_cast %590 : vector<1x8x8xbf16> to vector<8x8xbf16>
    %c48_802 = arith.constant 48 : index
    %c0_803 = arith.constant 0 : index
    %592 = vector.load %arg13[%c48_802, %c0_803] : memref<72x8xbf16, #tpu.memory_space<vmem>>, vector<8x8xbf16>
    tpu.vector_store %arg13[%c48_802, %c0_803], %591 {strides = array<i32>} : memref<72x8xbf16, #tpu.memory_space<vmem>>, vector<8x8xbf16>,
    %c4_804 = arith.constant 4 : index
    %c0_805 = arith.constant 0 : index
    %c1_806 = arith.constant 1 : index
    %593 = vector.load %arg10[%c4_804, %c0_805, %c1_806] : memref<10x8x10xbf16, #tpu.memory_space<vmem>>, vector<1x8x8xbf16>
    %594 = vector.shape_cast %593 : vector<1x8x8xbf16> to vector<8x8xbf16>
    %c56_807 = arith.constant 56 : index
    %c0_808 = arith.constant 0 : index
    %595 = vector.load %arg13[%c56_807, %c0_808] : memref<72x8xbf16, #tpu.memory_space<vmem>>, vector<8x8xbf16>
    tpu.vector_store %arg13[%c56_807, %c0_808], %594 {strides = array<i32>} : memref<72x8xbf16, #tpu.memory_space<vmem>>, vector<8x8xbf16>,
    %c4_809 = arith.constant 4 : index
    %c0_810 = arith.constant 0 : index
    %c2_811 = arith.constant 2 : index
    %596 = vector.load %arg10[%c4_809, %c0_810, %c2_811] : memref<10x8x10xbf16, #tpu.memory_space<vmem>>, vector<1x8x8xbf16>
    %597 = vector.shape_cast %596 : vector<1x8x8xbf16> to vector<8x8xbf16>
    %c64_812 = arith.constant 64 : index
    %c0_813 = arith.constant 0 : index
    %598 = vector.load %arg13[%c64_812, %c0_813] : memref<72x8xbf16, #tpu.memory_space<vmem>>, vector<8x8xbf16>
    tpu.vector_store %arg13[%c64_812, %c0_813], %597 {strides = array<i32>} : memref<72x8xbf16, #tpu.memory_space<vmem>>, vector<8x8xbf16>,
    %c0_814 = arith.constant 0 : index
    %c0_815 = arith.constant 0 : index
    %599 = vector.load %arg13[%c0_814, %c0_815] : memref<72x8xbf16, #tpu.memory_space<vmem>>, vector<72x8xbf16>
    %cst_816 = arith.constant dense<0.000000e+00> : vector<8x8xf32>
    %600 = tpu.matmul %496, %599, %cst_816 {dimension_numbers = #tpu.dot_dimension_numbers<[1], [0], [0], [1], [0, 0, 1, 1], [], []>} : vector<8x72xbf16>, vector<72x8xbf16>, vector<8x8xf32> -> vector<8x8xf32>
    %601 = vector.broadcast %497 : vector<8x1xf32> to vector<8x8xf32>
    %602 = arith.addf %600, %601 : vector<8x8xf32>
    %cst_817 = arith.constant 1.000000e-01 : f32
    %603 = vector.broadcast %cst_817 : f32 to vector<8x8xf32>
    %604 = arith.mulf %603, %602 : vector<8x8xf32>
    %605 = arith.maximumf %602, %604 : vector<8x8xf32>
    %c0_818 = arith.constant 0 : index
    %c2_819 = arith.constant 2 : index
    %c0_820 = arith.constant 0 : index
    %c0_821 = arith.constant 0 : index
    %606 = vector.load %arg8[%c0_818, %c2_819, %c0_820, %c0_821] : memref<1x8x8x8xf32, #tpu.memory_space<vmem>>, vector<1x1x8x8xf32>
    %607 = vector.shape_cast %606 : vector<1x1x8x8xf32> to vector<8x8xf32>
    %608 = vector.shape_cast %605 : vector<8x8xf32> to vector<1x1x8x8xf32>
    tpu.vector_store %arg8[%c0_818, %c2_819, %c0_820, %c0_821], %608 {strides = array<i32>} : memref<1x8x8x8xf32, #tpu.memory_space<vmem>>, vector<1x1x8x8xf32>,
    %c3_822 = arith.constant 3 : index
    %c0_823 = arith.constant 0 : index
    %c0_824 = arith.constant 0 : index
    %609 = vector.load %arg10[%c3_822, %c0_823, %c0_824] : memref<10x8x10xbf16, #tpu.memory_space<vmem>>, vector<1x8x8xbf16>
    %610 = vector.shape_cast %609 : vector<1x8x8xbf16> to vector<8x8xbf16>
    %c0_825 = arith.constant 0 : index
    %c0_826 = arith.constant 0 : index
    %611 = vector.load %arg13[%c0_825, %c0_826] : memref<72x8xbf16, #tpu.memory_space<vmem>>, vector<8x8xbf16>
    tpu.vector_store %arg13[%c0_825, %c0_826], %610 {strides = array<i32>} : memref<72x8xbf16, #tpu.memory_space<vmem>>, vector<8x8xbf16>,
    %c3_827 = arith.constant 3 : index
    %c0_828 = arith.constant 0 : index
    %c1_829 = arith.constant 1 : index
    %612 = vector.load %arg10[%c3_827, %c0_828, %c1_829] : memref<10x8x10xbf16, #tpu.memory_space<vmem>>, vector<1x8x8xbf16>
    %613 = vector.shape_cast %612 : vector<1x8x8xbf16> to vector<8x8xbf16>
    %c8_830 = arith.constant 8 : index
    %c0_831 = arith.constant 0 : index
    %614 = vector.load %arg13[%c8_830, %c0_831] : memref<72x8xbf16, #tpu.memory_space<vmem>>, vector<8x8xbf16>
    tpu.vector_store %arg13[%c8_830, %c0_831], %613 {strides = array<i32>} : memref<72x8xbf16, #tpu.memory_space<vmem>>, vector<8x8xbf16>,
    %c3_832 = arith.constant 3 : index
    %c0_833 = arith.constant 0 : index
    %c2_834 = arith.constant 2 : index
    %615 = vector.load %arg10[%c3_832, %c0_833, %c2_834] : memref<10x8x10xbf16, #tpu.memory_space<vmem>>, vector<1x8x8xbf16>
    %616 = vector.shape_cast %615 : vector<1x8x8xbf16> to vector<8x8xbf16>
    %c16_835 = arith.constant 16 : index
    %c0_836 = arith.constant 0 : index
    %617 = vector.load %arg13[%c16_835, %c0_836] : memref<72x8xbf16, #tpu.memory_space<vmem>>, vector<8x8xbf16>
    tpu.vector_store %arg13[%c16_835, %c0_836], %616 {strides = array<i32>} : memref<72x8xbf16, #tpu.memory_space<vmem>>, vector<8x8xbf16>,
    %c4_837 = arith.constant 4 : index
    %c0_838 = arith.constant 0 : index
    %c0_839 = arith.constant 0 : index
    %618 = vector.load %arg10[%c4_837, %c0_838, %c0_839] : memref<10x8x10xbf16, #tpu.memory_space<vmem>>, vector<1x8x8xbf16>
    %619 = vector.shape_cast %618 : vector<1x8x8xbf16> to vector<8x8xbf16>
    %c24_840 = arith.constant 24 : index
    %c0_841 = arith.constant 0 : index
    %620 = vector.load %arg13[%c24_840, %c0_841] : memref<72x8xbf16, #tpu.memory_space<vmem>>, vector<8x8xbf16>
    tpu.vector_store %arg13[%c24_840, %c0_841], %619 {strides = array<i32>} : memref<72x8xbf16, #tpu.memory_space<vmem>>, vector<8x8xbf16>,
    %c4_842 = arith.constant 4 : index
    %c0_843 = arith.constant 0 : index
    %c1_844 = arith.constant 1 : index
    %621 = vector.load %arg10[%c4_842, %c0_843, %c1_844] : memref<10x8x10xbf16, #tpu.memory_space<vmem>>, vector<1x8x8xbf16>
    %622 = vector.shape_cast %621 : vector<1x8x8xbf16> to vector<8x8xbf16>
    %c32_845 = arith.constant 32 : index
    %c0_846 = arith.constant 0 : index
    %623 = vector.load %arg13[%c32_845, %c0_846] : memref<72x8xbf16, #tpu.memory_space<vmem>>, vector<8x8xbf16>
    tpu.vector_store %arg13[%c32_845, %c0_846], %622 {strides = array<i32>} : memref<72x8xbf16, #tpu.memory_space<vmem>>, vector<8x8xbf16>,
    %c4_847 = arith.constant 4 : index
    %c0_848 = arith.constant 0 : index
    %c2_849 = arith.constant 2 : index
    %624 = vector.load %arg10[%c4_847, %c0_848, %c2_849] : memref<10x8x10xbf16, #tpu.memory_space<vmem>>, vector<1x8x8xbf16>
    %625 = vector.shape_cast %624 : vector<1x8x8xbf16> to vector<8x8xbf16>
    %c40_850 = arith.constant 40 : index
    %c0_851 = arith.constant 0 : index
    %626 = vector.load %arg13[%c40_850, %c0_851] : memref<72x8xbf16, #tpu.memory_space<vmem>>, vector<8x8xbf16>
    tpu.vector_store %arg13[%c40_850, %c0_851], %625 {strides = array<i32>} : memref<72x8xbf16, #tpu.memory_space<vmem>>, vector<8x8xbf16>,
    %c5_852 = arith.constant 5 : index
    %c0_853 = arith.constant 0 : index
    %c0_854 = arith.constant 0 : index
    %627 = vector.load %arg10[%c5_852, %c0_853, %c0_854] : memref<10x8x10xbf16, #tpu.memory_space<vmem>>, vector<1x8x8xbf16>
    %628 = vector.shape_cast %627 : vector<1x8x8xbf16> to vector<8x8xbf16>
    %c48_855 = arith.constant 48 : index
    %c0_856 = arith.constant 0 : index
    %629 = vector.load %arg13[%c48_855, %c0_856] : memref<72x8xbf16, #tpu.memory_space<vmem>>, vector<8x8xbf16>
    tpu.vector_store %arg13[%c48_855, %c0_856], %628 {strides = array<i32>} : memref<72x8xbf16, #tpu.memory_space<vmem>>, vector<8x8xbf16>,
    %c5_857 = arith.constant 5 : index
    %c0_858 = arith.constant 0 : index
    %c1_859 = arith.constant 1 : index
    %630 = vector.load %arg10[%c5_857, %c0_858, %c1_859] : memref<10x8x10xbf16, #tpu.memory_space<vmem>>, vector<1x8x8xbf16>
    %631 = vector.shape_cast %630 : vector<1x8x8xbf16> to vector<8x8xbf16>
    %c56_860 = arith.constant 56 : index
    %c0_861 = arith.constant 0 : index
    %632 = vector.load %arg13[%c56_860, %c0_861] : memref<72x8xbf16, #tpu.memory_space<vmem>>, vector<8x8xbf16>
    tpu.vector_store %arg13[%c56_860, %c0_861], %631 {strides = array<i32>} : memref<72x8xbf16, #tpu.memory_space<vmem>>, vector<8x8xbf16>,
    %c5_862 = arith.constant 5 : index
    %c0_863 = arith.constant 0 : index
    %c2_864 = arith.constant 2 : index
    %633 = vector.load %arg10[%c5_862, %c0_863, %c2_864] : memref<10x8x10xbf16, #tpu.memory_space<vmem>>, vector<1x8x8xbf16>
    %634 = vector.shape_cast %633 : vector<1x8x8xbf16> to vector<8x8xbf16>
    %c64_865 = arith.constant 64 : index
    %c0_866 = arith.constant 0 : index
    %635 = vector.load %arg13[%c64_865, %c0_866] : memref<72x8xbf16, #tpu.memory_space<vmem>>, vector<8x8xbf16>
    tpu.vector_store %arg13[%c64_865, %c0_866], %634 {strides = array<i32>} : memref<72x8xbf16, #tpu.memory_space<vmem>>, vector<8x8xbf16>,
    %c0_867 = arith.constant 0 : index
    %c0_868 = arith.constant 0 : index
    %636 = vector.load %arg13[%c0_867, %c0_868] : memref<72x8xbf16, #tpu.memory_space<vmem>>, vector<72x8xbf16>
    %cst_869 = arith.constant dense<0.000000e+00> : vector<8x8xf32>
    %637 = tpu.matmul %496, %636, %cst_869 {dimension_numbers = #tpu.dot_dimension_numbers<[1], [0], [0], [1], [0, 0, 1, 1], [], []>} : vector<8x72xbf16>, vector<72x8xbf16>, vector<8x8xf32> -> vector<8x8xf32>
    %638 = vector.broadcast %497 : vector<8x1xf32> to vector<8x8xf32>
    %639 = arith.addf %637, %638 : vector<8x8xf32>
    %cst_870 = arith.constant 1.000000e-01 : f32
    %640 = vector.broadcast %cst_870 : f32 to vector<8x8xf32>
    %641 = arith.mulf %640, %639 : vector<8x8xf32>
    %642 = arith.maximumf %639, %641 : vector<8x8xf32>
    %c0_871 = arith.constant 0 : index
    %c3_872 = arith.constant 3 : index
    %c0_873 = arith.constant 0 : index
    %c0_874 = arith.constant 0 : index
    %643 = vector.load %arg8[%c0_871, %c3_872, %c0_873, %c0_874] : memref<1x8x8x8xf32, #tpu.memory_space<vmem>>, vector<1x1x8x8xf32>
    %644 = vector.shape_cast %643 : vector<1x1x8x8xf32> to vector<8x8xf32>
    %645 = vector.shape_cast %642 : vector<8x8xf32> to vector<1x1x8x8xf32>
    tpu.vector_store %arg8[%c0_871, %c3_872, %c0_873, %c0_874], %645 {strides = array<i32>} : memref<1x8x8x8xf32, #tpu.memory_space<vmem>>, vector<1x1x8x8xf32>,
    %c4_875 = arith.constant 4 : index
    %c0_876 = arith.constant 0 : index
    %c0_877 = arith.constant 0 : index
    %646 = vector.load %arg10[%c4_875, %c0_876, %c0_877] : memref<10x8x10xbf16, #tpu.memory_space<vmem>>, vector<1x8x8xbf16>
    %647 = vector.shape_cast %646 : vector<1x8x8xbf16> to vector<8x8xbf16>
    %c0_878 = arith.constant 0 : index
    %c0_879 = arith.constant 0 : index
    %648 = vector.load %arg13[%c0_878, %c0_879] : memref<72x8xbf16, #tpu.memory_space<vmem>>, vector<8x8xbf16>
    tpu.vector_store %arg13[%c0_878, %c0_879], %647 {strides = array<i32>} : memref<72x8xbf16, #tpu.memory_space<vmem>>, vector<8x8xbf16>,
    %c4_880 = arith.constant 4 : index
    %c0_881 = arith.constant 0 : index
    %c1_882 = arith.constant 1 : index
    %649 = vector.load %arg10[%c4_880, %c0_881, %c1_882] : memref<10x8x10xbf16, #tpu.memory_space<vmem>>, vector<1x8x8xbf16>
    %650 = vector.shape_cast %649 : vector<1x8x8xbf16> to vector<8x8xbf16>
    %c8_883 = arith.constant 8 : index
    %c0_884 = arith.constant 0 : index
    %651 = vector.load %arg13[%c8_883, %c0_884] : memref<72x8xbf16, #tpu.memory_space<vmem>>, vector<8x8xbf16>
    tpu.vector_store %arg13[%c8_883, %c0_884], %650 {strides = array<i32>} : memref<72x8xbf16, #tpu.memory_space<vmem>>, vector<8x8xbf16>,
    %c4_885 = arith.constant 4 : index
    %c0_886 = arith.constant 0 : index
    %c2_887 = arith.constant 2 : index
    %652 = vector.load %arg10[%c4_885, %c0_886, %c2_887] : memref<10x8x10xbf16, #tpu.memory_space<vmem>>, vector<1x8x8xbf16>
    %653 = vector.shape_cast %652 : vector<1x8x8xbf16> to vector<8x8xbf16>
    %c16_888 = arith.constant 16 : index
    %c0_889 = arith.constant 0 : index
    %654 = vector.load %arg13[%c16_888, %c0_889] : memref<72x8xbf16, #tpu.memory_space<vmem>>, vector<8x8xbf16>
    tpu.vector_store %arg13[%c16_888, %c0_889], %653 {strides = array<i32>} : memref<72x8xbf16, #tpu.memory_space<vmem>>, vector<8x8xbf16>,
    %c5_890 = arith.constant 5 : index
    %c0_891 = arith.constant 0 : index
    %c0_892 = arith.constant 0 : index
    %655 = vector.load %arg10[%c5_890, %c0_891, %c0_892] : memref<10x8x10xbf16, #tpu.memory_space<vmem>>, vector<1x8x8xbf16>
    %656 = vector.shape_cast %655 : vector<1x8x8xbf16> to vector<8x8xbf16>
    %c24_893 = arith.constant 24 : index
    %c0_894 = arith.constant 0 : index
    %657 = vector.load %arg13[%c24_893, %c0_894] : memref<72x8xbf16, #tpu.memory_space<vmem>>, vector<8x8xbf16>
    tpu.vector_store %arg13[%c24_893, %c0_894], %656 {strides = array<i32>} : memref<72x8xbf16, #tpu.memory_space<vmem>>, vector<8x8xbf16>,
    %c5_895 = arith.constant 5 : index
    %c0_896 = arith.constant 0 : index
    %c1_897 = arith.constant 1 : index
    %658 = vector.load %arg10[%c5_895, %c0_896, %c1_897] : memref<10x8x10xbf16, #tpu.memory_space<vmem>>, vector<1x8x8xbf16>
    %659 = vector.shape_cast %658 : vector<1x8x8xbf16> to vector<8x8xbf16>
    %c32_898 = arith.constant 32 : index
    %c0_899 = arith.constant 0 : index
    %660 = vector.load %arg13[%c32_898, %c0_899] : memref<72x8xbf16, #tpu.memory_space<vmem>>, vector<8x8xbf16>
    tpu.vector_store %arg13[%c32_898, %c0_899], %659 {strides = array<i32>} : memref<72x8xbf16, #tpu.memory_space<vmem>>, vector<8x8xbf16>,
    %c5_900 = arith.constant 5 : index
    %c0_901 = arith.constant 0 : index
    %c2_902 = arith.constant 2 : index
    %661 = vector.load %arg10[%c5_900, %c0_901, %c2_902] : memref<10x8x10xbf16, #tpu.memory_space<vmem>>, vector<1x8x8xbf16>
    %662 = vector.shape_cast %661 : vector<1x8x8xbf16> to vector<8x8xbf16>
    %c40_903 = arith.constant 40 : index
    %c0_904 = arith.constant 0 : index
    %663 = vector.load %arg13[%c40_903, %c0_904] : memref<72x8xbf16, #tpu.memory_space<vmem>>, vector<8x8xbf16>
    tpu.vector_store %arg13[%c40_903, %c0_904], %662 {strides = array<i32>} : memref<72x8xbf16, #tpu.memory_space<vmem>>, vector<8x8xbf16>,
    %c6_905 = arith.constant 6 : index
    %c0_906 = arith.constant 0 : index
    %c0_907 = arith.constant 0 : index
    %664 = vector.load %arg10[%c6_905, %c0_906, %c0_907] : memref<10x8x10xbf16, #tpu.memory_space<vmem>>, vector<1x8x8xbf16>
    %665 = vector.shape_cast %664 : vector<1x8x8xbf16> to vector<8x8xbf16>
    %c48_908 = arith.constant 48 : index
    %c0_909 = arith.constant 0 : index
    %666 = vector.load %arg13[%c48_908, %c0_909] : memref<72x8xbf16, #tpu.memory_space<vmem>>, vector<8x8xbf16>
    tpu.vector_store %arg13[%c48_908, %c0_909], %665 {strides = array<i32>} : memref<72x8xbf16, #tpu.memory_space<vmem>>, vector<8x8xbf16>,
    %c6_910 = arith.constant 6 : index
    %c0_911 = arith.constant 0 : index
    %c1_912 = arith.constant 1 : index
    %667 = vector.load %arg10[%c6_910, %c0_911, %c1_912] : memref<10x8x10xbf16, #tpu.memory_space<vmem>>, vector<1x8x8xbf16>
    %668 = vector.shape_cast %667 : vector<1x8x8xbf16> to vector<8x8xbf16>
    %c56_913 = arith.constant 56 : index
    %c0_914 = arith.constant 0 : index
    %669 = vector.load %arg13[%c56_913, %c0_914] : memref<72x8xbf16, #tpu.memory_space<vmem>>, vector<8x8xbf16>
    tpu.vector_store %arg13[%c56_913, %c0_914], %668 {strides = array<i32>} : memref<72x8xbf16, #tpu.memory_space<vmem>>, vector<8x8xbf16>,
    %c6_915 = arith.constant 6 : index
    %c0_916 = arith.constant 0 : index
    %c2_917 = arith.constant 2 : index
    %670 = vector.load %arg10[%c6_915, %c0_916, %c2_917] : memref<10x8x10xbf16, #tpu.memory_space<vmem>>, vector<1x8x8xbf16>
    %671 = vector.shape_cast %670 : vector<1x8x8xbf16> to vector<8x8xbf16>
    %c64_918 = arith.constant 64 : index
    %c0_919 = arith.constant 0 : index
    %672 = vector.load %arg13[%c64_918, %c0_919] : memref<72x8xbf16, #tpu.memory_space<vmem>>, vector<8x8xbf16>
    tpu.vector_store %arg13[%c64_918, %c0_919], %671 {strides = array<i32>} : memref<72x8xbf16, #tpu.memory_space<vmem>>, vector<8x8xbf16>,
    %c0_920 = arith.constant 0 : index
    %c0_921 = arith.constant 0 : index
    %673 = vector.load %arg13[%c0_920, %c0_921] : memref<72x8xbf16, #tpu.memory_space<vmem>>, vector<72x8xbf16>
    %cst_922 = arith.constant dense<0.000000e+00> : vector<8x8xf32>
    %674 = tpu.matmul %496, %673, %cst_922 {dimension_numbers = #tpu.dot_dimension_numbers<[1], [0], [0], [1], [0, 0, 1, 1], [], []>} : vector<8x72xbf16>, vector<72x8xbf16>, vector<8x8xf32> -> vector<8x8xf32>
    %675 = vector.broadcast %497 : vector<8x1xf32> to vector<8x8xf32>
    %676 = arith.addf %674, %675 : vector<8x8xf32>
    %cst_923 = arith.constant 1.000000e-01 : f32
    %677 = vector.broadcast %cst_923 : f32 to vector<8x8xf32>
    %678 = arith.mulf %677, %676 : vector<8x8xf32>
    %679 = arith.maximumf %676, %678 : vector<8x8xf32>
    %c0_924 = arith.constant 0 : index
    %c4_925 = arith.constant 4 : index
    %c0_926 = arith.constant 0 : index
    %c0_927 = arith.constant 0 : index
    %680 = vector.load %arg8[%c0_924, %c4_925, %c0_926, %c0_927] : memref<1x8x8x8xf32, #tpu.memory_space<vmem>>, vector<1x1x8x8xf32>
    %681 = vector.shape_cast %680 : vector<1x1x8x8xf32> to vector<8x8xf32>
    %682 = vector.shape_cast %679 : vector<8x8xf32> to vector<1x1x8x8xf32>
    tpu.vector_store %arg8[%c0_924, %c4_925, %c0_926, %c0_927], %682 {strides = array<i32>} : memref<1x8x8x8xf32, #tpu.memory_space<vmem>>, vector<1x1x8x8xf32>,
    %c5_928 = arith.constant 5 : index
    %c0_929 = arith.constant 0 : index
    %c0_930 = arith.constant 0 : index
    %683 = vector.load %arg10[%c5_928, %c0_929, %c0_930] : memref<10x8x10xbf16, #tpu.memory_space<vmem>>, vector<1x8x8xbf16>
    %684 = vector.shape_cast %683 : vector<1x8x8xbf16> to vector<8x8xbf16>
    %c0_931 = arith.constant 0 : index
    %c0_932 = arith.constant 0 : index
    %685 = vector.load %arg13[%c0_931, %c0_932] : memref<72x8xbf16, #tpu.memory_space<vmem>>, vector<8x8xbf16>
    tpu.vector_store %arg13[%c0_931, %c0_932], %684 {strides = array<i32>} : memref<72x8xbf16, #tpu.memory_space<vmem>>, vector<8x8xbf16>,
    %c5_933 = arith.constant 5 : index
    %c0_934 = arith.constant 0 : index
    %c1_935 = arith.constant 1 : index
    %686 = vector.load %arg10[%c5_933, %c0_934, %c1_935] : memref<10x8x10xbf16, #tpu.memory_space<vmem>>, vector<1x8x8xbf16>
    %687 = vector.shape_cast %686 : vector<1x8x8xbf16> to vector<8x8xbf16>
    %c8_936 = arith.constant 8 : index
    %c0_937 = arith.constant 0 : index
    %688 = vector.load %arg13[%c8_936, %c0_937] : memref<72x8xbf16, #tpu.memory_space<vmem>>, vector<8x8xbf16>
    tpu.vector_store %arg13[%c8_936, %c0_937], %687 {strides = array<i32>} : memref<72x8xbf16, #tpu.memory_space<vmem>>, vector<8x8xbf16>,
    %c5_938 = arith.constant 5 : index
    %c0_939 = arith.constant 0 : index
    %c2_940 = arith.constant 2 : index
    %689 = vector.load %arg10[%c5_938, %c0_939, %c2_940] : memref<10x8x10xbf16, #tpu.memory_space<vmem>>, vector<1x8x8xbf16>
    %690 = vector.shape_cast %689 : vector<1x8x8xbf16> to vector<8x8xbf16>
    %c16_941 = arith.constant 16 : index
    %c0_942 = arith.constant 0 : index
    %691 = vector.load %arg13[%c16_941, %c0_942] : memref<72x8xbf16, #tpu.memory_space<vmem>>, vector<8x8xbf16>
    tpu.vector_store %arg13[%c16_941, %c0_942], %690 {strides = array<i32>} : memref<72x8xbf16, #tpu.memory_space<vmem>>, vector<8x8xbf16>,
    %c6_943 = arith.constant 6 : index
    %c0_944 = arith.constant 0 : index
    %c0_945 = arith.constant 0 : index
    %692 = vector.load %arg10[%c6_943, %c0_944, %c0_945] : memref<10x8x10xbf16, #tpu.memory_space<vmem>>, vector<1x8x8xbf16>
    %693 = vector.shape_cast %692 : vector<1x8x8xbf16> to vector<8x8xbf16>
    %c24_946 = arith.constant 24 : index
    %c0_947 = arith.constant 0 : index
    %694 = vector.load %arg13[%c24_946, %c0_947] : memref<72x8xbf16, #tpu.memory_space<vmem>>, vector<8x8xbf16>
    tpu.vector_store %arg13[%c24_946, %c0_947], %693 {strides = array<i32>} : memref<72x8xbf16, #tpu.memory_space<vmem>>, vector<8x8xbf16>,
    %c6_948 = arith.constant 6 : index
    %c0_949 = arith.constant 0 : index
    %c1_950 = arith.constant 1 : index
    %695 = vector.load %arg10[%c6_948, %c0_949, %c1_950] : memref<10x8x10xbf16, #tpu.memory_space<vmem>>, vector<1x8x8xbf16>
    %696 = vector.shape_cast %695 : vector<1x8x8xbf16> to vector<8x8xbf16>
    %c32_951 = arith.constant 32 : index
    %c0_952 = arith.constant 0 : index
    %697 = vector.load %arg13[%c32_951, %c0_952] : memref<72x8xbf16, #tpu.memory_space<vmem>>, vector<8x8xbf16>
    tpu.vector_store %arg13[%c32_951, %c0_952], %696 {strides = array<i32>} : memref<72x8xbf16, #tpu.memory_space<vmem>>, vector<8x8xbf16>,
    %c6_953 = arith.constant 6 : index
    %c0_954 = arith.constant 0 : index
    %c2_955 = arith.constant 2 : index
    %698 = vector.load %arg10[%c6_953, %c0_954, %c2_955] : memref<10x8x10xbf16, #tpu.memory_space<vmem>>, vector<1x8x8xbf16>
    %699 = vector.shape_cast %698 : vector<1x8x8xbf16> to vector<8x8xbf16>
    %c40_956 = arith.constant 40 : index
    %c0_957 = arith.constant 0 : index
    %700 = vector.load %arg13[%c40_956, %c0_957] : memref<72x8xbf16, #tpu.memory_space<vmem>>, vector<8x8xbf16>
    tpu.vector_store %arg13[%c40_956, %c0_957], %699 {strides = array<i32>} : memref<72x8xbf16, #tpu.memory_space<vmem>>, vector<8x8xbf16>,
    %c7_958 = arith.constant 7 : index
    %c0_959 = arith.constant 0 : index
    %c0_960 = arith.constant 0 : index
    %701 = vector.load %arg10[%c7_958, %c0_959, %c0_960] : memref<10x8x10xbf16, #tpu.memory_space<vmem>>, vector<1x8x8xbf16>
    %702 = vector.shape_cast %701 : vector<1x8x8xbf16> to vector<8x8xbf16>
    %c48_961 = arith.constant 48 : index
    %c0_962 = arith.constant 0 : index
    %703 = vector.load %arg13[%c48_961, %c0_962] : memref<72x8xbf16, #tpu.memory_space<vmem>>, vector<8x8xbf16>
    tpu.vector_store %arg13[%c48_961, %c0_962], %702 {strides = array<i32>} : memref<72x8xbf16, #tpu.memory_space<vmem>>, vector<8x8xbf16>,
    %c7_963 = arith.constant 7 : index
    %c0_964 = arith.constant 0 : index
    %c1_965 = arith.constant 1 : index
    %704 = vector.load %arg10[%c7_963, %c0_964, %c1_965] : memref<10x8x10xbf16, #tpu.memory_space<vmem>>, vector<1x8x8xbf16>
    %705 = vector.shape_cast %704 : vector<1x8x8xbf16> to vector<8x8xbf16>
    %c56_966 = arith.constant 56 : index
    %c0_967 = arith.constant 0 : index
    %706 = vector.load %arg13[%c56_966, %c0_967] : memref<72x8xbf16, #tpu.memory_space<vmem>>, vector<8x8xbf16>
    tpu.vector_store %arg13[%c56_966, %c0_967], %705 {strides = array<i32>} : memref<72x8xbf16, #tpu.memory_space<vmem>>, vector<8x8xbf16>,
    %c7_968 = arith.constant 7 : index
    %c0_969 = arith.constant 0 : index
    %c2_970 = arith.constant 2 : index
    %707 = vector.load %arg10[%c7_968, %c0_969, %c2_970] : memref<10x8x10xbf16, #tpu.memory_space<vmem>>, vector<1x8x8xbf16>
    %708 = vector.shape_cast %707 : vector<1x8x8xbf16> to vector<8x8xbf16>
    %c64_971 = arith.constant 64 : index
    %c0_972 = arith.constant 0 : index
    %709 = vector.load %arg13[%c64_971, %c0_972] : memref<72x8xbf16, #tpu.memory_space<vmem>>, vector<8x8xbf16>
    tpu.vector_store %arg13[%c64_971, %c0_972], %708 {strides = array<i32>} : memref<72x8xbf16, #tpu.memory_space<vmem>>, vector<8x8xbf16>,
    %c0_973 = arith.constant 0 : index
    %c0_974 = arith.constant 0 : index
    %710 = vector.load %arg13[%c0_973, %c0_974] : memref<72x8xbf16, #tpu.memory_space<vmem>>, vector<72x8xbf16>
    %cst_975 = arith.constant dense<0.000000e+00> : vector<8x8xf32>
    %711 = tpu.matmul %496, %710, %cst_975 {dimension_numbers = #tpu.dot_dimension_numbers<[1], [0], [0], [1], [0, 0, 1, 1], [], []>} : vector<8x72xbf16>, vector<72x8xbf16>, vector<8x8xf32> -> vector<8x8xf32>
    %712 = vector.broadcast %497 : vector<8x1xf32> to vector<8x8xf32>
    %713 = arith.addf %711, %712 : vector<8x8xf32>
    %cst_976 = arith.constant 1.000000e-01 : f32
    %714 = vector.broadcast %cst_976 : f32 to vector<8x8xf32>
    %715 = arith.mulf %714, %713 : vector<8x8xf32>
    %716 = arith.maximumf %713, %715 : vector<8x8xf32>
    %c0_977 = arith.constant 0 : index
    %c5_978 = arith.constant 5 : index
    %c0_979 = arith.constant 0 : index
    %c0_980 = arith.constant 0 : index
    %717 = vector.load %arg8[%c0_977, %c5_978, %c0_979, %c0_980] : memref<1x8x8x8xf32, #tpu.memory_space<vmem>>, vector<1x1x8x8xf32>
    %718 = vector.shape_cast %717 : vector<1x1x8x8xf32> to vector<8x8xf32>
    %719 = vector.shape_cast %716 : vector<8x8xf32> to vector<1x1x8x8xf32>
    tpu.vector_store %arg8[%c0_977, %c5_978, %c0_979, %c0_980], %719 {strides = array<i32>} : memref<1x8x8x8xf32, #tpu.memory_space<vmem>>, vector<1x1x8x8xf32>,
    %c6_981 = arith.constant 6 : index
    %c0_982 = arith.constant 0 : index
    %c0_983 = arith.constant 0 : index
    %720 = vector.load %arg10[%c6_981, %c0_982, %c0_983] : memref<10x8x10xbf16, #tpu.memory_space<vmem>>, vector<1x8x8xbf16>
    %721 = vector.shape_cast %720 : vector<1x8x8xbf16> to vector<8x8xbf16>
    %c0_984 = arith.constant 0 : index
    %c0_985 = arith.constant 0 : index
    %722 = vector.load %arg13[%c0_984, %c0_985] : memref<72x8xbf16, #tpu.memory_space<vmem>>, vector<8x8xbf16>
    tpu.vector_store %arg13[%c0_984, %c0_985], %721 {strides = array<i32>} : memref<72x8xbf16, #tpu.memory_space<vmem>>, vector<8x8xbf16>,
    %c6_986 = arith.constant 6 : index
    %c0_987 = arith.constant 0 : index
    %c1_988 = arith.constant 1 : index
    %723 = vector.load %arg10[%c6_986, %c0_987, %c1_988] : memref<10x8x10xbf16, #tpu.memory_space<vmem>>, vector<1x8x8xbf16>
    %724 = vector.shape_cast %723 : vector<1x8x8xbf16> to vector<8x8xbf16>
    %c8_989 = arith.constant 8 : index
    %c0_990 = arith.constant 0 : index
    %725 = vector.load %arg13[%c8_989, %c0_990] : memref<72x8xbf16, #tpu.memory_space<vmem>>, vector<8x8xbf16>
    tpu.vector_store %arg13[%c8_989, %c0_990], %724 {strides = array<i32>} : memref<72x8xbf16, #tpu.memory_space<vmem>>, vector<8x8xbf16>,
    %c6_991 = arith.constant 6 : index
    %c0_992 = arith.constant 0 : index
    %c2_993 = arith.constant 2 : index
    %726 = vector.load %arg10[%c6_991, %c0_992, %c2_993] : memref<10x8x10xbf16, #tpu.memory_space<vmem>>, vector<1x8x8xbf16>
    %727 = vector.shape_cast %726 : vector<1x8x8xbf16> to vector<8x8xbf16>
    %c16_994 = arith.constant 16 : index
    %c0_995 = arith.constant 0 : index
    %728 = vector.load %arg13[%c16_994, %c0_995] : memref<72x8xbf16, #tpu.memory_space<vmem>>, vector<8x8xbf16>
    tpu.vector_store %arg13[%c16_994, %c0_995], %727 {strides = array<i32>} : memref<72x8xbf16, #tpu.memory_space<vmem>>, vector<8x8xbf16>,
    %c7_996 = arith.constant 7 : index
    %c0_997 = arith.constant 0 : index
    %c0_998 = arith.constant 0 : index
    %729 = vector.load %arg10[%c7_996, %c0_997, %c0_998] : memref<10x8x10xbf16, #tpu.memory_space<vmem>>, vector<1x8x8xbf16>
    %730 = vector.shape_cast %729 : vector<1x8x8xbf16> to vector<8x8xbf16>
    %c24_999 = arith.constant 24 : index
    %c0_1000 = arith.constant 0 : index
    %731 = vector.load %arg13[%c24_999, %c0_1000] : memref<72x8xbf16, #tpu.memory_space<vmem>>, vector<8x8xbf16>
    tpu.vector_store %arg13[%c24_999, %c0_1000], %730 {strides = array<i32>} : memref<72x8xbf16, #tpu.memory_space<vmem>>, vector<8x8xbf16>,
    %c7_1001 = arith.constant 7 : index
    %c0_1002 = arith.constant 0 : index
    %c1_1003 = arith.constant 1 : index
    %732 = vector.load %arg10[%c7_1001, %c0_1002, %c1_1003] : memref<10x8x10xbf16, #tpu.memory_space<vmem>>, vector<1x8x8xbf16>
    %733 = vector.shape_cast %732 : vector<1x8x8xbf16> to vector<8x8xbf16>
    %c32_1004 = arith.constant 32 : index
    %c0_1005 = arith.constant 0 : index
    %734 = vector.load %arg13[%c32_1004, %c0_1005] : memref<72x8xbf16, #tpu.memory_space<vmem>>, vector<8x8xbf16>
    tpu.vector_store %arg13[%c32_1004, %c0_1005], %733 {strides = array<i32>} : memref<72x8xbf16, #tpu.memory_space<vmem>>, vector<8x8xbf16>,
    %c7_1006 = arith.constant 7 : index
    %c0_1007 = arith.constant 0 : index
    %c2_1008 = arith.constant 2 : index
    %735 = vector.load %arg10[%c7_1006, %c0_1007, %c2_1008] : memref<10x8x10xbf16, #tpu.memory_space<vmem>>, vector<1x8x8xbf16>
    %736 = vector.shape_cast %735 : vector<1x8x8xbf16> to vector<8x8xbf16>
    %c40_1009 = arith.constant 40 : index
    %c0_1010 = arith.constant 0 : index
    %737 = vector.load %arg13[%c40_1009, %c0_1010] : memref<72x8xbf16, #tpu.memory_space<vmem>>, vector<8x8xbf16>
    tpu.vector_store %arg13[%c40_1009, %c0_1010], %736 {strides = array<i32>} : memref<72x8xbf16, #tpu.memory_space<vmem>>, vector<8x8xbf16>,
    %c8_1011 = arith.constant 8 : index
    %c0_1012 = arith.constant 0 : index
    %c0_1013 = arith.constant 0 : index
    %738 = vector.load %arg10[%c8_1011, %c0_1012, %c0_1013] : memref<10x8x10xbf16, #tpu.memory_space<vmem>>, vector<1x8x8xbf16>
    %739 = vector.shape_cast %738 : vector<1x8x8xbf16> to vector<8x8xbf16>
    %c48_1014 = arith.constant 48 : index
    %c0_1015 = arith.constant 0 : index
    %740 = vector.load %arg13[%c48_1014, %c0_1015] : memref<72x8xbf16, #tpu.memory_space<vmem>>, vector<8x8xbf16>
    tpu.vector_store %arg13[%c48_1014, %c0_1015], %739 {strides = array<i32>} : memref<72x8xbf16, #tpu.memory_space<vmem>>, vector<8x8xbf16>,
    %c8_1016 = arith.constant 8 : index
    %c0_1017 = arith.constant 0 : index
    %c1_1018 = arith.constant 1 : index
    %741 = vector.load %arg10[%c8_1016, %c0_1017, %c1_1018] : memref<10x8x10xbf16, #tpu.memory_space<vmem>>, vector<1x8x8xbf16>
    %742 = vector.shape_cast %741 : vector<1x8x8xbf16> to vector<8x8xbf16>
    %c56_1019 = arith.constant 56 : index
    %c0_1020 = arith.constant 0 : index
    %743 = vector.load %arg13[%c56_1019, %c0_1020] : memref<72x8xbf16, #tpu.memory_space<vmem>>, vector<8x8xbf16>
    tpu.vector_store %arg13[%c56_1019, %c0_1020], %742 {strides = array<i32>} : memref<72x8xbf16, #tpu.memory_space<vmem>>, vector<8x8xbf16>,
    %c8_1021 = arith.constant 8 : index
    %c0_1022 = arith.constant 0 : index
    %c2_1023 = arith.constant 2 : index
    %744 = vector.load %arg10[%c8_1021, %c0_1022, %c2_1023] : memref<10x8x10xbf16, #tpu.memory_space<vmem>>, vector<1x8x8xbf16>
    %745 = vector.shape_cast %744 : vector<1x8x8xbf16> to vector<8x8xbf16>
    %c64_1024 = arith.constant 64 : index
    %c0_1025 = arith.constant 0 : index
    %746 = vector.load %arg13[%c64_1024, %c0_1025] : memref<72x8xbf16, #tpu.memory_space<vmem>>, vector<8x8xbf16>
    tpu.vector_store %arg13[%c64_1024, %c0_1025], %745 {strides = array<i32>} : memref<72x8xbf16, #tpu.memory_space<vmem>>, vector<8x8xbf16>,
    %c0_1026 = arith.constant 0 : index
    %c0_1027 = arith.constant 0 : index
    %747 = vector.load %arg13[%c0_1026, %c0_1027] : memref<72x8xbf16, #tpu.memory_space<vmem>>, vector<72x8xbf16>
    %cst_1028 = arith.constant dense<0.000000e+00> : vector<8x8xf32>
    %748 = tpu.matmul %496, %747, %cst_1028 {dimension_numbers = #tpu.dot_dimension_numbers<[1], [0], [0], [1], [0, 0, 1, 1], [], []>} : vector<8x72xbf16>, vector<72x8xbf16>, vector<8x8xf32> -> vector<8x8xf32>
    %749 = vector.broadcast %497 : vector<8x1xf32> to vector<8x8xf32>
    %750 = arith.addf %748, %749 : vector<8x8xf32>
    %cst_1029 = arith.constant 1.000000e-01 : f32
    %751 = vector.broadcast %cst_1029 : f32 to vector<8x8xf32>
    %752 = arith.mulf %751, %750 : vector<8x8xf32>
    %753 = arith.maximumf %750, %752 : vector<8x8xf32>
    %c0_1030 = arith.constant 0 : index
    %c6_1031 = arith.constant 6 : index
    %c0_1032 = arith.constant 0 : index
    %c0_1033 = arith.constant 0 : index
    %754 = vector.load %arg8[%c0_1030, %c6_1031, %c0_1032, %c0_1033] : memref<1x8x8x8xf32, #tpu.memory_space<vmem>>, vector<1x1x8x8xf32>
    %755 = vector.shape_cast %754 : vector<1x1x8x8xf32> to vector<8x8xf32>
    %756 = vector.shape_cast %753 : vector<8x8xf32> to vector<1x1x8x8xf32>
    tpu.vector_store %arg8[%c0_1030, %c6_1031, %c0_1032, %c0_1033], %756 {strides = array<i32>} : memref<1x8x8x8xf32, #tpu.memory_space<vmem>>, vector<1x1x8x8xf32>,
    %c7_1034 = arith.constant 7 : index
    %c0_1035 = arith.constant 0 : index
    %c0_1036 = arith.constant 0 : index
    %757 = vector.load %arg10[%c7_1034, %c0_1035, %c0_1036] : memref<10x8x10xbf16, #tpu.memory_space<vmem>>, vector<1x8x8xbf16>
    %758 = vector.shape_cast %757 : vector<1x8x8xbf16> to vector<8x8xbf16>
    %c0_1037 = arith.constant 0 : index
    %c0_1038 = arith.constant 0 : index
    %759 = vector.load %arg13[%c0_1037, %c0_1038] : memref<72x8xbf16, #tpu.memory_space<vmem>>, vector<8x8xbf16>
    tpu.vector_store %arg13[%c0_1037, %c0_1038], %758 {strides = array<i32>} : memref<72x8xbf16, #tpu.memory_space<vmem>>, vector<8x8xbf16>,
    %c7_1039 = arith.constant 7 : index
    %c0_1040 = arith.constant 0 : index
    %c1_1041 = arith.constant 1 : index
    %760 = vector.load %arg10[%c7_1039, %c0_1040, %c1_1041] : memref<10x8x10xbf16, #tpu.memory_space<vmem>>, vector<1x8x8xbf16>
    %761 = vector.shape_cast %760 : vector<1x8x8xbf16> to vector<8x8xbf16>
    %c8_1042 = arith.constant 8 : index
    %c0_1043 = arith.constant 0 : index
    %762 = vector.load %arg13[%c8_1042, %c0_1043] : memref<72x8xbf16, #tpu.memory_space<vmem>>, vector<8x8xbf16>
    tpu.vector_store %arg13[%c8_1042, %c0_1043], %761 {strides = array<i32>} : memref<72x8xbf16, #tpu.memory_space<vmem>>, vector<8x8xbf16>,
    %c7_1044 = arith.constant 7 : index
    %c0_1045 = arith.constant 0 : index
    %c2_1046 = arith.constant 2 : index
    %763 = vector.load %arg10[%c7_1044, %c0_1045, %c2_1046] : memref<10x8x10xbf16, #tpu.memory_space<vmem>>, vector<1x8x8xbf16>
    %764 = vector.shape_cast %763 : vector<1x8x8xbf16> to vector<8x8xbf16>
    %c16_1047 = arith.constant 16 : index
    %c0_1048 = arith.constant 0 : index
    %765 = vector.load %arg13[%c16_1047, %c0_1048] : memref<72x8xbf16, #tpu.memory_space<vmem>>, vector<8x8xbf16>
    tpu.vector_store %arg13[%c16_1047, %c0_1048], %764 {strides = array<i32>} : memref<72x8xbf16, #tpu.memory_space<vmem>>, vector<8x8xbf16>,
    %c8_1049 = arith.constant 8 : index
    %c0_1050 = arith.constant 0 : index
    %c0_1051 = arith.constant 0 : index
    %766 = vector.load %arg10[%c8_1049, %c0_1050, %c0_1051] : memref<10x8x10xbf16, #tpu.memory_space<vmem>>, vector<1x8x8xbf16>
    %767 = vector.shape_cast %766 : vector<1x8x8xbf16> to vector<8x8xbf16>
    %c24_1052 = arith.constant 24 : index
    %c0_1053 = arith.constant 0 : index
    %768 = vector.load %arg13[%c24_1052, %c0_1053] : memref<72x8xbf16, #tpu.memory_space<vmem>>, vector<8x8xbf16>
    tpu.vector_store %arg13[%c24_1052, %c0_1053], %767 {strides = array<i32>} : memref<72x8xbf16, #tpu.memory_space<vmem>>, vector<8x8xbf16>,
    %c8_1054 = arith.constant 8 : index
    %c0_1055 = arith.constant 0 : index
    %c1_1056 = arith.constant 1 : index
    %769 = vector.load %arg10[%c8_1054, %c0_1055, %c1_1056] : memref<10x8x10xbf16, #tpu.memory_space<vmem>>, vector<1x8x8xbf16>
    %770 = vector.shape_cast %769 : vector<1x8x8xbf16> to vector<8x8xbf16>
    %c32_1057 = arith.constant 32 : index
    %c0_1058 = arith.constant 0 : index
    %771 = vector.load %arg13[%c32_1057, %c0_1058] : memref<72x8xbf16, #tpu.memory_space<vmem>>, vector<8x8xbf16>
    tpu.vector_store %arg13[%c32_1057, %c0_1058], %770 {strides = array<i32>} : memref<72x8xbf16, #tpu.memory_space<vmem>>, vector<8x8xbf16>,
    %c8_1059 = arith.constant 8 : index
    %c0_1060 = arith.constant 0 : index
    %c2_1061 = arith.constant 2 : index
    %772 = vector.load %arg10[%c8_1059, %c0_1060, %c2_1061] : memref<10x8x10xbf16, #tpu.memory_space<vmem>>, vector<1x8x8xbf16>
    %773 = vector.shape_cast %772 : vector<1x8x8xbf16> to vector<8x8xbf16>
    %c40_1062 = arith.constant 40 : index
    %c0_1063 = arith.constant 0 : index
    %774 = vector.load %arg13[%c40_1062, %c0_1063] : memref<72x8xbf16, #tpu.memory_space<vmem>>, vector<8x8xbf16>
    tpu.vector_store %arg13[%c40_1062, %c0_1063], %773 {strides = array<i32>} : memref<72x8xbf16, #tpu.memory_space<vmem>>, vector<8x8xbf16>,
    %c9_1064 = arith.constant 9 : index
    %c0_1065 = arith.constant 0 : index
    %c0_1066 = arith.constant 0 : index
    %775 = vector.load %arg10[%c9_1064, %c0_1065, %c0_1066] : memref<10x8x10xbf16, #tpu.memory_space<vmem>>, vector<1x8x8xbf16>
    %776 = vector.shape_cast %775 : vector<1x8x8xbf16> to vector<8x8xbf16>
    %c48_1067 = arith.constant 48 : index
    %c0_1068 = arith.constant 0 : index
    %777 = vector.load %arg13[%c48_1067, %c0_1068] : memref<72x8xbf16, #tpu.memory_space<vmem>>, vector<8x8xbf16>
    tpu.vector_store %arg13[%c48_1067, %c0_1068], %776 {strides = array<i32>} : memref<72x8xbf16, #tpu.memory_space<vmem>>, vector<8x8xbf16>,
    %c9_1069 = arith.constant 9 : index
    %c0_1070 = arith.constant 0 : index
    %c1_1071 = arith.constant 1 : index
    %778 = vector.load %arg10[%c9_1069, %c0_1070, %c1_1071] : memref<10x8x10xbf16, #tpu.memory_space<vmem>>, vector<1x8x8xbf16>
    %779 = vector.shape_cast %778 : vector<1x8x8xbf16> to vector<8x8xbf16>
    %c56_1072 = arith.constant 56 : index
    %c0_1073 = arith.constant 0 : index
    %780 = vector.load %arg13[%c56_1072, %c0_1073] : memref<72x8xbf16, #tpu.memory_space<vmem>>, vector<8x8xbf16>
    tpu.vector_store %arg13[%c56_1072, %c0_1073], %779 {strides = array<i32>} : memref<72x8xbf16, #tpu.memory_space<vmem>>, vector<8x8xbf16>,
    %c9_1074 = arith.constant 9 : index
    %c0_1075 = arith.constant 0 : index
    %c2_1076 = arith.constant 2 : index
    %781 = vector.load %arg10[%c9_1074, %c0_1075, %c2_1076] : memref<10x8x10xbf16, #tpu.memory_space<vmem>>, vector<1x8x8xbf16>
    %782 = vector.shape_cast %781 : vector<1x8x8xbf16> to vector<8x8xbf16>
    %c64_1077 = arith.constant 64 : index
    %c0_1078 = arith.constant 0 : index
    %783 = vector.load %arg13[%c64_1077, %c0_1078] : memref<72x8xbf16, #tpu.memory_space<vmem>>, vector<8x8xbf16>
    tpu.vector_store %arg13[%c64_1077, %c0_1078], %782 {strides = array<i32>} : memref<72x8xbf16, #tpu.memory_space<vmem>>, vector<8x8xbf16>,
    %c0_1079 = arith.constant 0 : index
    %c0_1080 = arith.constant 0 : index
    %784 = vector.load %arg13[%c0_1079, %c0_1080] : memref<72x8xbf16, #tpu.memory_space<vmem>>, vector<72x8xbf16>
    %cst_1081 = arith.constant dense<0.000000e+00> : vector<8x8xf32>
    %785 = tpu.matmul %496, %784, %cst_1081 {dimension_numbers = #tpu.dot_dimension_numbers<[1], [0], [0], [1], [0, 0, 1, 1], [], []>} : vector<8x72xbf16>, vector<72x8xbf16>, vector<8x8xf32> -> vector<8x8xf32>
    %786 = vector.broadcast %497 : vector<8x1xf32> to vector<8x8xf32>
    %787 = arith.addf %785, %786 : vector<8x8xf32>
    %cst_1082 = arith.constant 1.000000e-01 : f32
    %788 = vector.broadcast %cst_1082 : f32 to vector<8x8xf32>
    %789 = arith.mulf %788, %787 : vector<8x8xf32>
    %790 = arith.maximumf %787, %789 : vector<8x8xf32>
    %c0_1083 = arith.constant 0 : index
    %c7_1084 = arith.constant 7 : index
    %c0_1085 = arith.constant 0 : index
    %c0_1086 = arith.constant 0 : index
    %791 = vector.load %arg8[%c0_1083, %c7_1084, %c0_1085, %c0_1086] : memref<1x8x8x8xf32, #tpu.memory_space<vmem>>, vector<1x1x8x8xf32>
    %792 = vector.shape_cast %791 : vector<1x1x8x8xf32> to vector<8x8xf32>
    %793 = vector.shape_cast %790 : vector<8x8xf32> to vector<1x1x8x8xf32>
    tpu.vector_store %arg8[%c0_1083, %c7_1084, %c0_1085, %c0_1086], %793 {strides = array<i32>} : memref<1x8x8x8xf32, #tpu.memory_space<vmem>>, vector<1x1x8x8xf32>,
    return
  }
  func.func @transform_0(%arg0: i32) -> (i32, i32, i32, i32) {
    %c0_i32 = arith.constant 0 : i32
    %c0_i32_0 = arith.constant 0 : i32
    %c0_i32_1 = arith.constant 0 : i32
    %c0_i32_2 = arith.constant 0 : i32
    return %arg0, %c0_i32, %c0_i32_0, %c0_i32_1 : i32, i32, i32, i32
  }
  func.func @transform_1(%arg0: i32) -> (i32, i32) {
    %c0_i32 = arith.constant 0 : i32
    %c0_i32_0 = arith.constant 0 : i32
    %c0_i32_1 = arith.constant 0 : i32
    return %c0_i32, %c0_i32_0 : i32, i32
  }
  func.func @transform_2(%arg0: i32) -> (i32, i32) {
    %c0_i32 = arith.constant 0 : i32
    %c0_i32_0 = arith.constant 0 : i32
    %c0_i32_1 = arith.constant 0 : i32
    return %c0_i32, %c0_i32_0 : i32, i32
  }
  func.func @transform_3(%arg0: i32) -> (i32, i32) {
    %c0_i32 = arith.constant 0 : i32
    %c0_i32_0 = arith.constant 0 : i32
    %c0_i32_1 = arith.constant 0 : i32
    return %c0_i32, %c0_i32_0 : i32, i32
  }
  func.func @transform_4(%arg0: i32) -> (i32, i32) {
    %c0_i32 = arith.constant 0 : i32
    %c0_i32_0 = arith.constant 0 : i32
    %c0_i32_1 = arith.constant 0 : i32
    return %c0_i32, %c0_i32_0 : i32, i32
  }
  func.func @transform_5(%arg0: i32) -> (i32, i32) {
    %c0_i32 = arith.constant 0 : i32
    %c0_i32_0 = arith.constant 0 : i32
    %c0_i32_1 = arith.constant 0 : i32
    return %c0_i32, %c0_i32_0 : i32, i32
  }
  func.func @transform_6(%arg0: i32) -> (i32, i32) {
    %c0_i32 = arith.constant 0 : i32
    %c0_i32_0 = arith.constant 0 : i32
    %c0_i32_1 = arith.constant 0 : i32
    return %c0_i32, %c0_i32_0 : i32, i32
  }
  func.func @transform_7(%arg0: i32) -> (i32, i32, i32, i32) {
    %c0_i32 = arith.constant 0 : i32
    %c0_i32_0 = arith.constant 0 : i32
    %c0_i32_1 = arith.constant 0 : i32
    %c0_i32_2 = arith.constant 0 : i32
    return %arg0, %c0_i32, %c0_i32_0, %c0_i32_1 : i32, i32, i32, i32
  }
}

</mosaic_0001>

<llo_original>
// kernel: down2d_forward.1
$region0: #{down2d_forward.1}
  #allocation0 [shape = 'u32[]', space=smem, size = 0x4, offset = 0x4, fixed_abs, tag = 'smem constant byte address 0x4 - core index']
  #allocation1 [shape = 'u32[144,128]{1,0:T(1,128)}', space=vmem, size = 0x12000, scoped, tag = 'internal scratch']
  #allocation2 [shape = 'bf16[10,4,10]{2,1,0:T(4,128)(2,1)}', space=vmem, size = 0x2800, scoped, tag = 'scratch operand']
  #allocation3 [shape = 'bf16[10,8,10]{2,1,0:T(8,128)(2,1)}', space=vmem, size = 0x5000, scoped, tag = 'scratch operand']
  #allocation4 [shape = 'bf16[64,8]{1,0:T(8,128)(2,1)}', space=vmem, size = 0x4000, scoped, tag = 'scratch operand']
  #allocation5 [shape = 'bf16[36,8]{1,0:T(8,128)(2,1)}', space=vmem, size = 0x2800, scoped, tag = 'scratch operand']
  #allocation6 [shape = 'bf16[72,8]{1,0:T(8,128)(2,1)}', space=vmem, size = 0x4800, scoped, tag = 'scratch operand']
  %s0 = inlined_call_operand.vmem [shape: bf16[2,9,16,9], index: 0, kind: input, shape index: {}]
  %s1 = inlined_call_operand.vmem [shape: bf16[4,64], index: 1, kind: input, shape index: {}]
  %s2 = inlined_call_operand.vmem [shape: f32[4,1], index: 2, kind: input, shape index: {}]
  %s3 = inlined_call_operand.vmem [shape: bf16[8,36], index: 3, kind: input, shape index: {}]
  %s4 = inlined_call_operand.vmem [shape: f32[8,1], index: 4, kind: input, shape index: {}]
  %s5 = inlined_call_operand.vmem [shape: bf16[8,72], index: 5, kind: input, shape index: {}]
  %s6 = inlined_call_operand.vmem [shape: f32[8,1], index: 6, kind: input, shape index: {}]
  %s7 = inlined_call_operand.vmem [shape: f32[2,8,8,8], index: 7, kind: output, shape index: {}]
  %s8 = sld [smem:[#allocation0]]
  $region61: #{down2d_forward.1} parent=0
    _
  %s10 = ssub.s32 1, %s8
  %s11 = scalar_select 0, %s10, %s8
  loop: start=0, step=1, limit=4
  $region2: #{down2d_forward.1} parent=0 // loop_pre_header
    _
  $region3: #{down2d_forward.1} parent=0 // loop_header
    %s13 = sphi 0, %s17
    %p14 = scmp.ge.s32.totalorder %s13, 4
    %s23 = sphi 0, %s25
    %s26 = sphi 0, %s23
    %s27 = sphi 0, %s26
    %s43 = sphi 0, %s27
    %s47 = sphi 0, %s47
    %s49 = sphi 0, %s47
    %s50 = sphi 0, %s49
    %s64 = sphi 0, %s50
    %s68 = sphi 0, %s68
    %s70 = sphi 0, %s68
    %s71 = sphi 0, %s70
    %s85 = sphi 0, %s71
    %s89 = sphi 0, %s89
    %s91 = sphi 0, %s89
    %s92 = sphi 0, %s91
    %s106 = sphi 0, %s92
    %s110 = sphi 0, %s110
    %s112 = sphi 0, %s110
    %s113 = sphi 0, %s112
    %s127 = sphi 0, %s113
    %s131 = sphi 0, %s131
    %s133 = sphi 0, %s131
    %s134 = sphi 0, %s133
    %s148 = sphi 0, %s134
    %s152 = sphi 0, %s152
    %s154 = sphi 0, %s152
    %s155 = sphi 0, %s154
    %s169 = sphi 0, %s155
    %s175 = sphi 0, %s177
    %s178 = sphi 0, %s175
    %s179 = sphi 0, %s178
    %s195 = sphi 0, %s179
  $region4: #{down2d_forward.1} parent=0 // loop_header_branch
    %16 = sbr.rel (%p14) target = $region8
  $region5: #{down2d_forward.1} parent=0 // loop_body
    %s18 = ssub.s32 %s13, 1
    %s19 = ssub.s32 %s13, 2
    %s20 = sadd.s32 %s13, 1
    %s21 = ssub.s32 %s13, %s20
    %p22 = scmp.eq.s32.totalorder %s21, 0
    %s24 = sadd.s32 %s23, 1
    %s25 = scalar_select %p22, %s23, %s24
    %p28 = pneg %p22
    %p29 = scmp.eq.s32.totalorder %s13, 1
    %p30 = por %p28, %p29
    %p31 = scmp.ne.s32.totalorder %s23, %s26
    %p32 = scmp.eq.s32.totalorder %s13, 0
    %p33 = por %p31, %p32
    %p34 = scmp.ne.s32.totalorder %s23, %s26
    %p35 = scmp.eq.s32.totalorder %s18, 1
    %p36 = por %p34, %p35
    %p37 = scmp.ne.s32.totalorder %s26, %s27
    %p38 = scmp.eq.s32.totalorder %s18, 0
    %p39 = por %p37, %p38
    %p40 = scmp.ne.s32.totalorder %s26, %s27
    %p41 = scmp.eq.s32.totalorder %s19, 1
    %p42 = por %p40, %p41
    %p44 = scmp.ne.s32.totalorder %s27, %s43
    %p45 = scmp.eq.s32.totalorder %s19, 0
    %p46 = por %p44, %p45
    %s48 = sadd.s32 %s47, 1
    %p51 = scmp.eq.s32.totalorder %s13, 1
    %p52 = scmp.ne.s32.totalorder %s47, %s49
    %p53 = scmp.eq.s32.totalorder %s13, 0
    %p54 = por %p52, %p53
    %p55 = scmp.ne.s32.totalorder %s47, %s49
    %p56 = scmp.eq.s32.totalorder %s18, 1
    %p57 = por %p55, %p56
    %p58 = scmp.ne.s32.totalorder %s49, %s50
    %p59 = scmp.eq.s32.totalorder %s18, 0
    %p60 = por %p58, %p59
    %p61 = scmp.ne.s32.totalorder %s49, %s50
    %p62 = scmp.eq.s32.totalorder %s19, 1
    %p63 = por %p61, %p62
    %p65 = scmp.ne.s32.totalorder %s50, %s64
    %p66 = scmp.eq.s32.totalorder %s19, 0
    %p67 = por %p65, %p66
    %s69 = sadd.s32 %s68, 1
    %p72 = scmp.eq.s32.totalorder %s13, 1
    %p73 = scmp.ne.s32.totalorder %s68, %s70
    %p74 = scmp.eq.s32.totalorder %s13, 0
    %p75 = por %p73, %p74
    %p76 = scmp.ne.s32.totalorder %s68, %s70
    %p77 = scmp.eq.s32.totalorder %s18, 1
    %p78 = por %p76, %p77
    %p79 = scmp.ne.s32.totalorder %s70, %s71
    %p80 = scmp.eq.s32.totalorder %s18, 0
    %p81 = por %p79, %p80
    %p82 = scmp.ne.s32.totalorder %s70, %s71
    %p83 = scmp.eq.s32.totalorder %s19, 1
    %p84 = por %p82, %p83
    %p86 = scmp.ne.s32.totalorder %s71, %s85
    %p87 = scmp.eq.s32.totalorder %s19, 0
    %p88 = por %p86, %p87
    %s90 = sadd.s32 %s89, 1
    %p93 = scmp.eq.s32.totalorder %s13, 1
    %p94 = scmp.ne.s32.totalorder %s89, %s91
    %p95 = scmp.eq.s32.totalorder %s13, 0
    %p96 = por %p94, %p95
    %p97 = scmp.ne.s32.totalorder %s89, %s91
    %p98 = scmp.eq.s32.totalorder %s18, 1
    %p99 = por %p97, %p98
    %p100 = scmp.ne.s32.totalorder %s91, %s92
    %p101 = scmp.eq.s32.totalorder %s18, 0
    %p102 = por %p100, %p101
    %p103 = scmp.ne.s32.totalorder %s91, %s92
    %p104 = scmp.eq.s32.totalorder %s19, 1
    %p105 = por %p103, %p104
    %p107 = scmp.ne.s32.totalorder %s92, %s106
    %p108 = scmp.eq.s32.totalorder %s19, 0
    %p109 = por %p107, %p108
    %s111 = sadd.s32 %s110, 1
    %p114 = scmp.eq.s32.totalorder %s13, 1
    %p115 = scmp.ne.s32.totalorder %s110, %s112
    %p116 = scmp.eq.s32.totalorder %s13, 0
    %p117 = por %p115, %p116
    %p118 = scmp.ne.s32.totalorder %s110, %s112
    %p119 = scmp.eq.s32.totalorder %s18, 1
    %p120 = por %p118, %p119
    %p121 = scmp.ne.s32.totalorder %s112, %s113
    %p122 = scmp.eq.s32.totalorder %s18, 0
    %p123 = por %p121, %p122
    %p124 = scmp.ne.s32.totalorder %s112, %s113
    %p125 = scmp.eq.s32.totalorder %s19, 1
    %p126 = por %p124, %p125
    %p128 = scmp.ne.s32.totalorder %s113, %s127
    %p129 = scmp.eq.s32.totalorder %s19, 0
    %p130 = por %p128, %p129
    %s132 = sadd.s32 %s131, 1
    %p135 = scmp.eq.s32.totalorder %s13, 1
    %p136 = scmp.ne.s32.totalorder %s131, %s133
    %p137 = scmp.eq.s32.totalorder %s13, 0
    %p138 = por %p136, %p137
    %p139 = scmp.ne.s32.totalorder %s131, %s133
    %p140 = scmp.eq.s32.totalorder %s18, 1
    %p141 = por %p139, %p140
    %p142 = scmp.ne.s32.totalorder %s133, %s134
    %p143 = scmp.eq.s32.totalorder %s18, 0
    %p144 = por %p142, %p143
    %p145 = scmp.ne.s32.totalorder %s133, %s134
    %p146 = scmp.eq.s32.totalorder %s19, 1
    %p147 = por %p145, %p146
    %p149 = scmp.ne.s32.totalorder %s134, %s148
    %p150 = scmp.eq.s32.totalorder %s19, 0
    %p151 = por %p149, %p150
    %s153 = sadd.s32 %s152, 1
    %p156 = scmp.eq.s32.totalorder %s13, 1
    %p157 = scmp.ne.s32.totalorder %s152, %s154
    %p158 = scmp.eq.s32.totalorder %s13, 0
    %p159 = por %p157, %p158
    %p160 = scmp.ne.s32.totalorder %s152, %s154
    %p161 = scmp.eq.s32.totalorder %s18, 1
    %p162 = por %p160, %p161
    %p163 = scmp.ne.s32.totalorder %s154, %s155
    %p164 = scmp.eq.s32.totalorder %s18, 0
    %p165 = por %p163, %p164
    %p166 = scmp.ne.s32.totalorder %s154, %s155
    %p167 = scmp.eq.s32.totalorder %s19, 1
    %p168 = por %p166, %p167
    %p170 = scmp.ne.s32.totalorder %s155, %s169
    %p171 = scmp.eq.s32.totalorder %s19, 0
    %p172 = por %p170, %p171
    %s173 = ssub.s32 %s13, %s20
    %p174 = scmp.eq.s32.totalorder %s173, 0
    %s176 = sadd.s32 %s175, 1
    %s177 = scalar_select %p174, %s175, %s176
    %p180 = pneg %p174
    %p181 = scmp.eq.s32.totalorder %s13, 1
    %p182 = por %p180, %p181
    %p183 = scmp.ne.s32.totalorder %s175, %s178
    %p184 = scmp.eq.s32.totalorder %s13, 0
    %p185 = por %p183, %p184
    %p186 = scmp.ne.s32.totalorder %s175, %s178
    %p187 = scmp.eq.s32.totalorder %s18, 1
    %p188 = por %p186, %p187
    %p189 = scmp.ne.s32.totalorder %s178, %s179
    %p190 = scmp.eq.s32.totalorder %s18, 0
    %p191 = por %p189, %p190
    %p192 = scmp.ne.s32.totalorder %s178, %s179
    %p193 = scmp.eq.s32.totalorder %s19, 1
    %p194 = por %p192, %p193
    %p196 = scmp.ne.s32.totalorder %s179, %s195
    %p197 = scmp.eq.s32.totalorder %s19, 0
    %p198 = por %p196, %p197
    %p199 = scmp.le.s32.totalorder 1, %s13
    %p200 = scmp.lt.s32.totalorder %s13, 3
    %p201 = pnand %p199, %p200
    %p202 = pneg %p201
    // Predicated region
    $region9: #{down2d_forward.1} parent=5 // pred_check
      _
    $region10: #{down2d_forward.1} parent=5 // pred_check_branch
      %204 = sbr.rel (%p201) target = $region12
    $region11: #{down2d_forward.1} parent=5 // pred_region
      %s205 = ssub.s32 %s13, 1
      // Predicated region
      $region13: #{down2d_forward.1} parent=11 // pred_check
        %p206 = pneg %p60
      $region14: #{down2d_forward.1} parent=11 // pred_check_branch
        %208 = sbr.rel (%p206) target = $region16
      $region15: #{down2d_forward.1} parent=11 // pred_region
        _
      $region16: #{down2d_forward.1} parent=11 // pred_fallthru
        _
      // Predicated region
      $region17: #{down2d_forward.1} parent=11 // pred_check
        %p209 = pneg %p81
      $region18: #{down2d_forward.1} parent=11 // pred_check_branch
        %211 = sbr.rel (%p209) target = $region20
      $region19: #{down2d_forward.1} parent=11 // pred_region
        _
      $region20: #{down2d_forward.1} parent=11 // pred_fallthru
        _
      // Predicated region
      $region21: #{down2d_forward.1} parent=11 // pred_check
        %p212 = pneg %p102
      $region22: #{down2d_forward.1} parent=11 // pred_check_branch
        %214 = sbr.rel (%p212) target = $region24
      $region23: #{down2d_forward.1} parent=11 // pred_region
        _
      $region24: #{down2d_forward.1} parent=11 // pred_fallthru
        _
      // Predicated region
      $region25: #{down2d_forward.1} parent=11 // pred_check
        %p215 = pneg %p123
      $region26: #{down2d_forward.1} parent=11 // pred_check_branch
        %217 = sbr.rel (%p215) target = $region28
      $region27: #{down2d_forward.1} parent=11 // pred_region
        _
      $region28: #{down2d_forward.1} parent=11 // pred_fallthru
        _
      // Predicated region
      $region29: #{down2d_forward.1} parent=11 // pred_check
        %p218 = pneg %p144
      $region30: #{down2d_forward.1} parent=11 // pred_check_branch
        %220 = sbr.rel (%p218) target = $region32
      $region31: #{down2d_forward.1} parent=11 // pred_region
        _
      $region32: #{down2d_forward.1} parent=11 // pred_fallthru
        _
      // Predicated region
      $region33: #{down2d_forward.1} parent=11 // pred_check
        %p221 = pneg %p165
      $region34: #{down2d_forward.1} parent=11 // pred_check_branch
        %223 = sbr.rel (%p221) target = $region36
      $region35: #{down2d_forward.1} parent=11 // pred_region
        _
      $region36: #{down2d_forward.1} parent=11 // pred_fallthru
        _
    $region12: #{down2d_forward.1} parent=5 // pred_fallthru
      _
    %p224 = scmp.lt.s32.totalorder %s13, 2
    // Predicated region
    $region37: #{down2d_forward.1} parent=5 // pred_check
      %p225 = pneg %p224
    $region38: #{down2d_forward.1} parent=5 // pred_check_branch
      %227 = sbr.rel (%p225) target = $region40
    $region39: #{down2d_forward.1} parent=5 // pred_region
      // Predicated region
      $region41: #{down2d_forward.1} parent=39 // pred_check
        %p228 = pneg %p33
      $region42: #{down2d_forward.1} parent=39 // pred_check_branch
        %230 = sbr.rel (%p228) target = $region44
      $region43: #{down2d_forward.1} parent=39 // pred_region
        %p231 = scmp.lt.s32.totalorder %s13, 1
        %s232 = scalar_select %p231, %s13, 1
        %s233 = smul.addr %s232, 18
        %s234 = smul.addr %s233, 4
        %s235 = scalar_lea.vmem %s0, %s234
      $region44: #{down2d_forward.1} parent=39 // pred_fallthru
        _
    $region40: #{down2d_forward.1} parent=5 // pred_fallthru
      _
    %p236 = scmp.le.s32.totalorder 1, %s13
    %p237 = scmp.lt.s32.totalorder %s13, 3
    %p238 = pnand %p236, %p237
    %p239 = pneg %p238
    // Predicated region
    $region45: #{down2d_forward.1} parent=5 // pred_check
      _
    $region46: #{down2d_forward.1} parent=5 // pred_check_branch
      %241 = sbr.rel (%p238) target = $region48
    $region47: #{down2d_forward.1} parent=5 // pred_region
      %s242 = ssub.s32 %s13, 1
      %p243 = scmp.lt.s32.totalorder %s18, 1
      %s244 = scalar_select %p243, %s18, 1
      %s245 = smul.addr %s244, 18
      %s246 = smul.addr %s245, 4
      %s247 = scalar_lea.vmem %s0, %s246
      %p248 = pneg %p39
      %p249 = pneg %p36
      %p250 = pneg %p60
      %p251 = pneg %p57
      %p252 = pneg %p81
      %p253 = pneg %p78
      %p254 = pneg %p102
      %p255 = pneg %p99
      %p256 = pneg %p123
      %p257 = pneg %p120
      %p258 = pneg %p144
      %p259 = pneg %p141
      %p260 = pneg %p165
      %p261 = pneg %p162
      %p262 = pneg %p191
      %p263 = pneg %p188
      %p264 = scmp.lt.s32.totalorder %s18, 1
      %s265 = scalar_select %p264, %s18, 1
      %s266 = smul.addr %s265, 8
      %s267 = smul.addr %s266, 8
      %s268 = scalar_lea.vmem %s7, %s267
      %p269 = scmp.lt.s32.totalorder %s18, 1
      %s270 = scalar_select %p269, %s18, 1
      %s271 = smul.addr %s270, 18
      %s272 = smul.addr %s271, 4
      %s273 = scalar_lea.vmem %s0, %s272
      %p274 = scmp.lt.s32.totalorder %s18, 1
      %s275 = scalar_select %p274, %s18, 1
      %s276 = smul.addr %s275, 8
      %s277 = smul.addr %s276, 8
      %s278 = scalar_lea.vmem %s7, %s277
      %vm280 = vcmask 74752
      %281 = vst.msk [vmem:[#allocation2] sm:$0x3] %vm280, 0
      %282 = vst.msk [vmem:[#allocation2 + $0x2] sm:$0x3] %vm280, 0
      %283 = vst.msk [vmem:[#allocation2 + $0x4] sm:$0x3] %vm280, 0
      %284 = vst.msk [vmem:[#allocation2 + $0x6] sm:$0x3] %vm280, 0
      %285 = vst.msk [vmem:[#allocation2 + $0x8] sm:$0x3] %vm280, 0
      %286 = vst.msk [vmem:[#allocation2 + $0xa] sm:$0x3] %vm280, 0
      %287 = vst.msk [vmem:[#allocation2 + $0xc] sm:$0x3] %vm280, 0
      %288 = vst.msk [vmem:[#allocation2 + $0xe] sm:$0x3] %vm280, 0
      %289 = vst.msk [vmem:[#allocation2 + $0x10] sm:$0x3] %vm280, 0
      %290 = vst.msk [vmem:[#allocation2 + $0x12] sm:$0x3] %vm280, 0
      %vm291 = vcmask 76800
      %292 = vst.msk [vmem:[#allocation3] sm:$0xf] %vm291, 0
      %293 = vst.msk [vmem:[#allocation3 + $0x4] sm:$0xf] %vm291, 0
      %294 = vst.msk [vmem:[#allocation3 + $0x8] sm:$0xf] %vm291, 0
      %295 = vst.msk [vmem:[#allocation3 + $0xc] sm:$0xf] %vm291, 0
      %296 = vst.msk [vmem:[#allocation3 + $0x10] sm:$0xf] %vm291, 0
      %297 = vst.msk [vmem:[#allocation3 + $0x14] sm:$0xf] %vm291, 0
      %298 = vst.msk [vmem:[#allocation3 + $0x18] sm:$0xf] %vm291, 0
      %299 = vst.msk [vmem:[#allocation3 + $0x1c] sm:$0xf] %vm291, 0
      %300 = vst.msk [vmem:[#allocation3 + $0x20] sm:$0xf] %vm291, 0
      %301 = vst.msk [vmem:[#allocation3 + $0x24] sm:$0xf] %vm291, 0
      %v302 = vld [vmem:[%s1] sm:$0x3]
      %v303 = vld [vmem:[%s2] sm:$0xf]
      %v304 = vld [vmem:[%s273] sm:$0xf]
      %v305 = vld [vmem:[%s273 + $0x4] sm:$0xf]
      %vm306 = vcmask 60416
      %307 = vst.msk [vmem:[#allocation4] sm:$0xf] %vm306, %v304
      %308 = vst.msk [vmem:[#allocation4 + $0x4] sm:$0xf] %vm306, %v305
      %v309 = vld [vmem:[%s273] sm:$0xf]
      %v310 = vld [vmem:[%s273 + $0x4] sm:$0xf]
      %313 = vrot.lane.b32.xlu0 %v309, 127
      %v314 = vpop.permute.xlu0 %313
      %315 = vrot.lane.b32.xlu0 %v310, 127
      %v316 = vpop.permute.xlu0 %315
      %319 = vst.msk [vmem:[#allocation4 + $0x8] sm:$0xf] %vm306, %v314
      %320 = vst.msk [vmem:[#allocation4 + $0xc] sm:$0xf] %vm306, %v316
      %s321 = scalar_lea.vmem %s273, 8
      %v322 = vld [vmem:[%s321] sm:$0xf]
      %v323 = vld [vmem:[%s321 + $0x4] sm:$0xf]
      %324 = vst.msk [vmem:[#allocation4 + $0x10] sm:$0xf] %vm306, %v322
      %325 = vst.msk [vmem:[#allocation4 + $0x14] sm:$0xf] %vm306, %v323
      %v326 = vld [vmem:[%s321] sm:$0xf]
      %v327 = vld [vmem:[%s321 + $0x4] sm:$0xf]
      %330 = vrot.lane.b32.xlu0 %v326, 127
      %v331 = vpop.permute.xlu0 %330
      %332 = vrot.lane.b32.xlu0 %v327, 127
      %v333 = vpop.permute.xlu0 %332
      %336 = vst.msk [vmem:[#allocation4 + $0x18] sm:$0xf] %vm306, %v331
      %337 = vst.msk [vmem:[#allocation4 + $0x1c] sm:$0xf] %vm306, %v333
      %v338 = vld [vmem:[#allocation4] sm:$0xf]
      %v339 = vld [vmem:[#allocation4 + $0x4] sm:$0xf]
      %v340 = vld [vmem:[#allocation4 + $0x8] sm:$0xf]
      %v341 = vld [vmem:[#allocation4 + $0xc] sm:$0xf]
      %v342 = vld [vmem:[#allocation4 + $0x10] sm:$0xf]
      %v343 = vld [vmem:[#allocation4 + $0x14] sm:$0xf]
      %v344 = vld [vmem:[#allocation4 + $0x18] sm:$0xf]
      %v345 = vld [vmem:[#allocation4 + $0x1c] sm:$0xf]
      %347 = vset.pattern.permute.xlu0 0
      %348 = vperm.xlu0 %347, %v303
      %v349 = vpop.permute.xlu0 %348
      %v359 = vunpack.c.l.b16 %v338
      %v360 = vunpack.c.l.b16 %v339
      %v361 = vunpack.c.l.b16 %v340
      %v362 = vunpack.c.l.b16 %v341
      %v363 = vunpack.c.l.b16 %v342
      %v364 = vunpack.c.l.b16 %v343
      %v365 = vunpack.c.l.b16 %v344
      %v366 = vunpack.c.l.b16 %v345
      %v367 = vpack.c.b16 %v360, %v359
      %v368 = vpack.c.b16 %v362, %v361
      %v369 = vpack.c.b16 %v364, %v363
      %v370 = vpack.c.b16 %v366, %v365
      %vm375 = vcmask 523264
      %v377 = vsel %vm375, %v302, 0
      %379 = vmatprep.subr.bf16.mxu0 0
      %380 = vmatpush1.bf16.msra.mxu0 0
      %381 = vmatprep.subr.bf16.mxu0 0
      %382 = vmatpush1.bf16.msra.mxu0 0
      %383 = vmatprep.subr.bf16.mxu0 0
      %384 = vmatpush1.bf16.msra.mxu0 0
      %385 = vmatprep.subr.bf16.mxu0 0
      %386 = vmatpush1.bf16.msra.mxu0 0
      %387 = vmatprep.subr.bf16.mxu0 0
      %388 = vmatpush1.bf16.msra.mxu0 %v370
      %389 = vmatprep.subr.bf16.mxu0 0
      %390 = vmatpush1.bf16.msra.mxu0 %v369
      %391 = vmatprep.subr.bf16.mxu0 0
      %392 = vmatpush1.bf16.msra.mxu0 %v368
      %393 = vmatprep.subr.bf16.mxu0 0
      %394 = vmatpush1.bf16.msra.mxu0 %v367
      %395 = vmatprep.subr.bf16.mxu0 0
      %396 = vmatpush2.bf16.msra.mxu0 0
      %397 = vmatprep.subr.bf16.mxu0 0
      %398 = vmatpush2.bf16.msra.mxu0 0
      %399 = vmatprep.subr.bf16.mxu0 0
      %400 = vmatpush2.bf16.msra.mxu0 0
      %401 = vmatprep.subr.bf16.mxu0 0
      %402 = vmatpush2.bf16.msra.mxu0 0
      %403 = vmatprep.subr.bf16.mxu0 0
      %404 = vmatpush2.bf16.msra.mxu0 0
      %405 = vmatprep.subr.bf16.mxu0 0
      %406 = vmatpush2.bf16.msra.mxu0 0
      %407 = vmatprep.subr.bf16.mxu0 0
      %408 = vmatpush2.bf16.msra.mxu0 0
      %409 = vmatprep.subr.bf16.mxu0 0
      %410 = vmatpush2.bf16.msra.mxu0 0
      %411 = vmatprep.mubr.bf16.mxu0 0
      %412 = vmatmul.mubr.bf16.gmra.mxu0 %v377
      %v413 = vpop.f32.mrf.mxu0
      %v414 = vadd.f32 %v349, %v413
      %v415 = vpop.f32.mrf.mxu0
      %v416 = vpop.f32.mrf.mxu0
      %v417 = vpop.f32.mrf.mxu0
      %418 = vdwg.mxu0
      %v419 = vmul.f32 %v414, 0.1
      %v420 = vmax.f32 %v414, %v419
      %v421 = vpack.c.bf16 %v420, %v420
      %v424 = vunpack.c.l.s4 1983009808
      %v425 = vunpack.c.0.s8 %v424
      %v426 = vlaneseq
      %v427 = vshrl.u32 %v426, 7
      %v428 = vsub.s32 %v425, %v427
      %v429 = vrot.slane %v421, %v428
      %430 = vrot.lane.b32.xlu0 %v429, 1
      %v431 = vpop.permute.xlu0 %430
      %s433 = scalar_lea.vmem [#allocation2], 2
      %vm434 = vcmask 66568
      %435 = vst.msk [vmem:[%s433] sm:$0x3] %vm434, %v431
      %v436 = vld [vmem:[%s321] sm:$0xf]
      %v437 = vld [vmem:[%s321 + $0x4] sm:$0xf]
      %438 = vst.msk [vmem:[#allocation4] sm:$0xf] %vm306, %v436
      %439 = vst.msk [vmem:[#allocation4 + $0x4] sm:$0xf] %vm306, %v437
      %v440 = vld [vmem:[%s321] sm:$0xf]
      %v441 = vld [vmem:[%s321 + $0x4] sm:$0xf]
      %444 = vrot.lane.b32.xlu0 %v440, 127
      %v445 = vpop.permute.xlu0 %444
      %446 = vrot.lane.b32.xlu0 %v441, 127
      %v447 = vpop.permute.xlu0 %446
      %450 = vst.msk [vmem:[#allocation4 + $0x8] sm:$0xf] %vm306, %v445
      %451 = vst.msk [vmem:[#allocation4 + $0xc] sm:$0xf] %vm306, %v447
      %s452 = scalar_lea.vmem %s273, 16
      %v453 = vld [vmem:[%s452] sm:$0xf]
      %v454 = vld [vmem:[%s452 + $0x4] sm:$0xf]
      %455 = vst.msk [vmem:[#allocation4 + $0x10] sm:$0xf] %vm306, %v453
      %456 = vst.msk [vmem:[#allocation4 + $0x14] sm:$0xf] %vm306, %v454
      %v457 = vld [vmem:[%s452] sm:$0xf]
      %v458 = vld [vmem:[%s452 + $0x4] sm:$0xf]
      %461 = vrot.lane.b32.xlu0 %v457, 127
      %v462 = vpop.permute.xlu0 %461
      %463 = vrot.lane.b32.xlu0 %v458, 127
      %v464 = vpop.permute.xlu0 %463
      %467 = vst.msk [vmem:[#allocation4 + $0x18] sm:$0xf] %vm306, %v462
      %468 = vst.msk [vmem:[#allocation4 + $0x1c] sm:$0xf] %vm306, %v464
      %v469 = vld [vmem:[#allocation4] sm:$0xf]
      %v470 = vld [vmem:[#allocation4 + $0x4] sm:$0xf]
      %v471 = vld [vmem:[#allocation4 + $0x8] sm:$0xf]
      %v472 = vld [vmem:[#allocation4 + $0xc] sm:$0xf]
      %v473 = vld [vmem:[#allocation4 + $0x10] sm:$0xf]
      %v474 = vld [vmem:[#allocation4 + $0x14] sm:$0xf]
      %v475 = vld [vmem:[#allocation4 + $0x18] sm:$0xf]
      %v476 = vld [vmem:[#allocation4 + $0x1c] sm:$0xf]
      %v485 = vunpack.c.l.b16 %v469
      %v486 = vunpack.c.l.b16 %v470
      %v487 = vunpack.c.l.b16 %v471
      %v488 = vunpack.c.l.b16 %v472
      %v489 = vunpack.c.l.b16 %v473
      %v490 = vunpack.c.l.b16 %v474
      %v491 = vunpack.c.l.b16 %v475
      %v492 = vunpack.c.l.b16 %v476
      %v493 = vpack.c.b16 %v486, %v485
      %v494 = vpack.c.b16 %v488, %v487
      %v495 = vpack.c.b16 %v490, %v489
      %v496 = vpack.c.b16 %v492, %v491
      %501 = vmatprep.subr.bf16.mxu0 0
      %502 = vmatpush1.bf16.msra.mxu0 0
      %503 = vmatprep.subr.bf16.mxu0 0
      %504 = vmatpush1.bf16.msra.mxu0 0
      %505 = vmatprep.subr.bf16.mxu0 0
      %506 = vmatpush1.bf16.msra.mxu0 0
      %507 = vmatprep.subr.bf16.mxu0 0
      %508 = vmatpush1.bf16.msra.mxu0 0
      %509 = vmatprep.subr.bf16.mxu0 0
      %510 = vmatpush1.bf16.msra.mxu0 %v496
      %511 = vmatprep.subr.bf16.mxu0 0
      %512 = vmatpush1.bf16.msra.mxu0 %v495
      %513 = vmatprep.subr.bf16.mxu0 0
      %514 = vmatpush1.bf16.msra.mxu0 %v494
      %515 = vmatprep.subr.bf16.mxu0 0
      %516 = vmatpush1.bf16.msra.mxu0 %v493
      %517 = vmatprep.subr.bf16.mxu0 0
      %518 = vmatpush2.bf16.msra.mxu0 0
      %519 = vmatprep.subr.bf16.mxu0 0
      %520 = vmatpush2.bf16.msra.mxu0 0
      %521 = vmatprep.subr.bf16.mxu0 0
      %522 = vmatpush2.bf16.msra.mxu0 0
      %523 = vmatprep.subr.bf16.mxu0 0
      %524 = vmatpush2.bf16.msra.mxu0 0
      %525 = vmatprep.subr.bf16.mxu0 0
      %526 = vmatpush2.bf16.msra.mxu0 0
      %527 = vmatprep.subr.bf16.mxu0 0
      %528 = vmatpush2.bf16.msra.mxu0 0
      %529 = vmatprep.subr.bf16.mxu0 0
      %530 = vmatpush2.bf16.msra.mxu0 0
      %531 = vmatprep.subr.bf16.mxu0 0
      %532 = vmatpush2.bf16.msra.mxu0 0
      %533 = vmatprep.mubr.bf16.mxu0 0
      %534 = vmatmul.mubr.bf16.gmra.mxu0 %v377
      %v535 = vpop.f32.mrf.mxu0
      %v536 = vadd.f32 %v349, %v535
      %v537 = vpop.f32.mrf.mxu0
      %v538 = vpop.f32.mrf.mxu0
      %v539 = vpop.f32.mrf.mxu0
      %540 = vdwg.mxu0
      %v541 = vmul.f32 %v536, 0.1
      %v542 = vmax.f32 %v536, %v541
      %v543 = vpack.c.bf16 %v542, %v542
      %v546 = vunpack.c.l.s4 1983009808
      %v547 = vunpack.c.0.s8 %v546
      %v548 = vlaneseq
      %v549 = vshrl.u32 %v548, 7
      %v550 = vsub.s32 %v547, %v549
      %v551 = vrot.slane %v543, %v550
      %552 = vrot.lane.b32.xlu0 %v551, 1
      %v553 = vpop.permute.xlu0 %552
      %s555 = scalar_lea.vmem [#allocation2], 4
      %556 = vst.msk [vmem:[%s555] sm:$0x3] %vm434, %v553
      %v557 = vld [vmem:[%s452] sm:$0xf]
      %v558 = vld [vmem:[%s452 + $0x4] sm:$0xf]
      %559 = vst.msk [vmem:[#allocation4] sm:$0xf] %vm306, %v557
      %560 = vst.msk [vmem:[#allocation4 + $0x4] sm:$0xf] %vm306, %v558
      %v561 = vld [vmem:[%s452] sm:$0xf]
      %v562 = vld [vmem:[%s452 + $0x4] sm:$0xf]
      %565 = vrot.lane.b32.xlu0 %v561, 127
      %v566 = vpop.permute.xlu0 %565
      %567 = vrot.lane.b32.xlu0 %v562, 127
      %v568 = vpop.permute.xlu0 %567
      %571 = vst.msk [vmem:[#allocation4 + $0x8] sm:$0xf] %vm306, %v566
      %572 = vst.msk [vmem:[#allocation4 + $0xc] sm:$0xf] %vm306, %v568
      %s573 = scalar_lea.vmem %s273, 24
      %v574 = vld [vmem:[%s573] sm:$0xf]
      %v575 = vld [vmem:[%s573 + $0x4] sm:$0xf]
      %576 = vst.msk [vmem:[#allocation4 + $0x10] sm:$0xf] %vm306, %v574
      %577 = vst.msk [vmem:[#allocation4 + $0x14] sm:$0xf] %vm306, %v575
      %v578 = vld [vmem:[%s573] sm:$0xf]
      %v579 = vld [vmem:[%s573 + $0x4] sm:$0xf]
      %582 = vrot.lane.b32.xlu0 %v578, 127
      %v583 = vpop.permute.xlu0 %582
      %584 = vrot.lane.b32.xlu0 %v579, 127
      %v585 = vpop.permute.xlu0 %584
      %588 = vst.msk [vmem:[#allocation4 + $0x18] sm:$0xf] %vm306, %v583
      %589 = vst.msk [vmem:[#allocation4 + $0x1c] sm:$0xf] %vm306, %v585
      %v590 = vld [vmem:[#allocation4] sm:$0xf]
      %v591 = vld [vmem:[#allocation4 + $0x4] sm:$0xf]
      %v592 = vld [vmem:[#allocation4 + $0x8] sm:$0xf]
      %v593 = vld [vmem:[#allocation4 + $0xc] sm:$0xf]
      %v594 = vld [vmem:[#allocation4 + $0x10] sm:$0xf]
      %v595 = vld [vmem:[#allocation4 + $0x14] sm:$0xf]
      %v596 = vld [vmem:[#allocation4 + $0x18] sm:$0xf]
      %v597 = vld [vmem:[#allocation4 + $0x1c] sm:$0xf]
      %v606 = vunpack.c.l.b16 %v590
      %v607 = vunpack.c.l.b16 %v591
      %v608 = vunpack.c.l.b16 %v592
      %v609 = vunpack.c.l.b16 %v593
      %v610 = vunpack.c.l.b16 %v594
      %v611 = vunpack.c.l.b16 %v595
      %v612 = vunpack.c.l.b16 %v596
      %v613 = vunpack.c.l.b16 %v597
      %v614 = vpack.c.b16 %v607, %v606
      %v615 = vpack.c.b16 %v609, %v608
      %v616 = vpack.c.b16 %v611, %v610
      %v617 = vpack.c.b16 %v613, %v612
      %622 = vmatprep.subr.bf16.mxu0 0
      %623 = vmatpush1.bf16.msra.mxu0 0
      %624 = vmatprep.subr.bf16.mxu0 0
      %625 = vmatpush1.bf16.msra.mxu0 0
      %626 = vmatprep.subr.bf16.mxu0 0
      %627 = vmatpush1.bf16.msra.mxu0 0
      %628 = vmatprep.subr.bf16.mxu0 0
      %629 = vmatpush1.bf16.msra.mxu0 0
      %630 = vmatprep.subr.bf16.mxu0 0
      %631 = vmatpush1.bf16.msra.mxu0 %v617
      %632 = vmatprep.subr.bf16.mxu0 0
      %633 = vmatpush1.bf16.msra.mxu0 %v616
      %634 = vmatprep.subr.bf16.mxu0 0
      %635 = vmatpush1.bf16.msra.mxu0 %v615
      %636 = vmatprep.subr.bf16.mxu0 0
      %637 = vmatpush1.bf16.msra.mxu0 %v614
      %638 = vmatprep.subr.bf16.mxu0 0
      %639 = vmatpush2.bf16.msra.mxu0 0
      %640 = vmatprep.subr.bf16.mxu0 0
      %641 = vmatpush2.bf16.msra.mxu0 0
      %642 = vmatprep.subr.bf16.mxu0 0
      %643 = vmatpush2.bf16.msra.mxu0 0
      %644 = vmatprep.subr.bf16.mxu0 0
      %645 = vmatpush2.bf16.msra.mxu0 0
      %646 = vmatprep.subr.bf16.mxu0 0
      %647 = vmatpush2.bf16.msra.mxu0 0
      %648 = vmatprep.subr.bf16.mxu0 0
      %649 = vmatpush2.bf16.msra.mxu0 0
      %650 = vmatprep.subr.bf16.mxu0 0
      %651 = vmatpush2.bf16.msra.mxu0 0
      %652 = vmatprep.subr.bf16.mxu0 0
      %653 = vmatpush2.bf16.msra.mxu0 0
      %654 = vmatprep.mubr.bf16.mxu0 0
      %655 = vmatmul.mubr.bf16.gmra.mxu0 %v377
      %v656 = vpop.f32.mrf.mxu0
      %v657 = vadd.f32 %v349, %v656
      %v658 = vpop.f32.mrf.mxu0
      %v659 = vpop.f32.mrf.mxu0
      %v660 = vpop.f32.mrf.mxu0
      %661 = vdwg.mxu0
      %v662 = vmul.f32 %v657, 0.1
      %v663 = vmax.f32 %v657, %v662
      %v664 = vpack.c.bf16 %v663, %v663
      %v667 = vunpack.c.l.s4 1983009808
      %v668 = vunpack.c.0.s8 %v667
      %v669 = vlaneseq
      %v670 = vshrl.u32 %v669, 7
      %v671 = vsub.s32 %v668, %v670
      %v672 = vrot.slane %v664, %v671
      %673 = vrot.lane.b32.xlu0 %v672, 1
      %v674 = vpop.permute.xlu0 %673
      %s676 = scalar_lea.vmem [#allocation2], 6
      %677 = vst.msk [vmem:[%s676] sm:$0x3] %vm434, %v674
      %v678 = vld [vmem:[%s573] sm:$0xf]
      %v679 = vld [vmem:[%s573 + $0x4] sm:$0xf]
      %680 = vst.msk [vmem:[#allocation4] sm:$0xf] %vm306, %v678
      %681 = vst.msk [vmem:[#allocation4 + $0x4] sm:$0xf] %vm306, %v679
      %v682 = vld [vmem:[%s573] sm:$0xf]
      %v683 = vld [vmem:[%s573 + $0x4] sm:$0xf]
      %686 = vrot.lane.b32.xlu0 %v682, 127
      %v687 = vpop.permute.xlu0 %686
      %688 = vrot.lane.b32.xlu0 %v683, 127
      %v689 = vpop.permute.xlu0 %688
      %692 = vst.msk [vmem:[#allocation4 + $0x8] sm:$0xf] %vm306, %v687
      %693 = vst.msk [vmem:[#allocation4 + $0xc] sm:$0xf] %vm306, %v689
      %s694 = scalar_lea.vmem %s273, 32
      %v695 = vld [vmem:[%s694] sm:$0xf]
      %v696 = vld [vmem:[%s694 + $0x4] sm:$0xf]
      %697 = vst.msk [vmem:[#allocation4 + $0x10] sm:$0xf] %vm306, %v695
      %698 = vst.msk [vmem:[#allocation4 + $0x14] sm:$0xf] %vm306, %v696
      %v699 = vld [vmem:[%s694] sm:$0xf]
      %v700 = vld [vmem:[%s694 + $0x4] sm:$0xf]
      %703 = vrot.lane.b32.xlu0 %v699, 127
      %v704 = vpop.permute.xlu0 %703
      %705 = vrot.lane.b32.xlu0 %v700, 127
      %v706 = vpop.permute.xlu0 %705
      %709 = vst.msk [vmem:[#allocation4 + $0x18] sm:$0xf] %vm306, %v704
      %710 = vst.msk [vmem:[#allocation4 + $0x1c] sm:$0xf] %vm306, %v706
      %v711 = vld [vmem:[#allocation4] sm:$0xf]
      %v712 = vld [vmem:[#allocation4 + $0x4] sm:$0xf]
      %v713 = vld [vmem:[#allocation4 + $0x8] sm:$0xf]
      %v714 = vld [vmem:[#allocation4 + $0xc] sm:$0xf]
      %v715 = vld [vmem:[#allocation4 + $0x10] sm:$0xf]
      %v716 = vld [vmem:[#allocation4 + $0x14] sm:$0xf]
      %v717 = vld [vmem:[#allocation4 + $0x18] sm:$0xf]
      %v718 = vld [vmem:[#allocation4 + $0x1c] sm:$0xf]
      %v727 = vunpack.c.l.b16 %v711
      %v728 = vunpack.c.l.b16 %v712
      %v729 = vunpack.c.l.b16 %v713
      %v730 = vunpack.c.l.b16 %v714
      %v731 = vunpack.c.l.b16 %v715
      %v732 = vunpack.c.l.b16 %v716
      %v733 = vunpack.c.l.b16 %v717
      %v734 = vunpack.c.l.b16 %v718
      %v735 = vpack.c.b16 %v728, %v727
      %v736 = vpack.c.b16 %v730, %v729
      %v737 = vpack.c.b16 %v732, %v731
      %v738 = vpack.c.b16 %v734, %v733
      %743 = vmatprep.subr.bf16.mxu0 0
      %744 = vmatpush1.bf16.msra.mxu0 0
      %745 = vmatprep.subr.bf16.mxu0 0
      %746 = vmatpush1.bf16.msra.mxu0 0
      %747 = vmatprep.subr.bf16.mxu0 0
      %748 = vmatpush1.bf16.msra.mxu0 0
      %749 = vmatprep.subr.bf16.mxu0 0
      %750 = vmatpush1.bf16.msra.mxu0 0
      %751 = vmatprep.subr.bf16.mxu0 0
      %752 = vmatpush1.bf16.msra.mxu0 %v738
      %753 = vmatprep.subr.bf16.mxu0 0
      %754 = vmatpush1.bf16.msra.mxu0 %v737
      %755 = vmatprep.subr.bf16.mxu0 0
      %756 = vmatpush1.bf16.msra.mxu0 %v736
      %757 = vmatprep.subr.bf16.mxu0 0
      %758 = vmatpush1.bf16.msra.mxu0 %v735
      %759 = vmatprep.subr.bf16.mxu0 0
      %760 = vmatpush2.bf16.msra.mxu0 0
      %761 = vmatprep.subr.bf16.mxu0 0
      %762 = vmatpush2.bf16.msra.mxu0 0
      %763 = vmatprep.subr.bf16.mxu0 0
      %764 = vmatpush2.bf16.msra.mxu0 0
      %765 = vmatprep.subr.bf16.mxu0 0
      %766 = vmatpush2.bf16.msra.mxu0 0
      %767 = vmatprep.subr.bf16.mxu0 0
      %768 = vmatpush2.bf16.msra.mxu0 0
      %769 = vmatprep.subr.bf16.mxu0 0
      %770 = vmatpush2.bf16.msra.mxu0 0
      %771 = vmatprep.subr.bf16.mxu0 0
      %772 = vmatpush2.bf16.msra.mxu0 0
      %773 = vmatprep.subr.bf16.mxu0 0
      %774 = vmatpush2.bf16.msra.mxu0 0
      %775 = vmatprep.mubr.bf16.mxu0 0
      %776 = vmatmul.mubr.bf16.gmra.mxu0 %v377
      %v777 = vpop.f32.mrf.mxu0
      %v778 = vadd.f32 %v349, %v777
      %v779 = vpop.f32.mrf.mxu0
      %v780 = vpop.f32.mrf.mxu0
      %v781 = vpop.f32.mrf.mxu0
      %782 = vdwg.mxu0
      %v783 = vmul.f32 %v778, 0.1
      %v784 = vmax.f32 %v778, %v783
      %v785 = vpack.c.bf16 %v784, %v784
      %v788 = vunpack.c.l.s4 1983009808
      %v789 = vunpack.c.0.s8 %v788
      %v790 = vlaneseq
      %v791 = vshrl.u32 %v790, 7
      %v792 = vsub.s32 %v789, %v791
      %v793 = vrot.slane %v785, %v792
      %794 = vrot.lane.b32.xlu0 %v793, 1
      %v795 = vpop.permute.xlu0 %794
      %s797 = scalar_lea.vmem [#allocation2], 8
      %798 = vst.msk [vmem:[%s797] sm:$0x3] %vm434, %v795
      %v799 = vld [vmem:[%s694] sm:$0xf]
      %v800 = vld [vmem:[%s694 + $0x4] sm:$0xf]
      %801 = vst.msk [vmem:[#allocation4] sm:$0xf] %vm306, %v799
      %802 = vst.msk [vmem:[#allocation4 + $0x4] sm:$0xf] %vm306, %v800
      %v803 = vld [vmem:[%s694] sm:$0xf]
      %v804 = vld [vmem:[%s694 + $0x4] sm:$0xf]
      %807 = vrot.lane.b32.xlu0 %v803, 127
      %v808 = vpop.permute.xlu0 %807
      %809 = vrot.lane.b32.xlu0 %v804, 127
      %v810 = vpop.permute.xlu0 %809
      %813 = vst.msk [vmem:[#allocation4 + $0x8] sm:$0xf] %vm306, %v808
      %814 = vst.msk [vmem:[#allocation4 + $0xc] sm:$0xf] %vm306, %v810
      %s815 = scalar_lea.vmem %s273, 40
      %v816 = vld [vmem:[%s815] sm:$0xf]
      %v817 = vld [vmem:[%s815 + $0x4] sm:$0xf]
      %818 = vst.msk [vmem:[#allocation4 + $0x10] sm:$0xf] %vm306, %v816
      %819 = vst.msk [vmem:[#allocation4 + $0x14] sm:$0xf] %vm306, %v817
      %v820 = vld [vmem:[%s815] sm:$0xf]
      %v821 = vld [vmem:[%s815 + $0x4] sm:$0xf]
      %824 = vrot.lane.b32.xlu0 %v820, 127
      %v825 = vpop.permute.xlu0 %824
      %826 = vrot.lane.b32.xlu0 %v821, 127
      %v827 = vpop.permute.xlu0 %826
      %830 = vst.msk [vmem:[#allocation4 + $0x18] sm:$0xf] %vm306, %v825
      %831 = vst.msk [vmem:[#allocation4 + $0x1c] sm:$0xf] %vm306, %v827
      %v832 = vld [vmem:[#allocation4] sm:$0xf]
      %v833 = vld [vmem:[#allocation4 + $0x4] sm:$0xf]
      %v834 = vld [vmem:[#allocation4 + $0x8] sm:$0xf]
      %v835 = vld [vmem:[#allocation4 + $0xc] sm:$0xf]
      %v836 = vld [vmem:[#allocation4 + $0x10] sm:$0xf]
      %v837 = vld [vmem:[#allocation4 + $0x14] sm:$0xf]
      %v838 = vld [vmem:[#allocation4 + $0x18] sm:$0xf]
      %v839 = vld [vmem:[#allocation4 + $0x1c] sm:$0xf]
      %v848 = vunpack.c.l.b16 %v832
      %v849 = vunpack.c.l.b16 %v833
      %v850 = vunpack.c.l.b16 %v834
      %v851 = vunpack.c.l.b16 %v835
      %v852 = vunpack.c.l.b16 %v836
      %v853 = vunpack.c.l.b16 %v837
      %v854 = vunpack.c.l.b16 %v838
      %v855 = vunpack.c.l.b16 %v839
      %v856 = vpack.c.b16 %v849, %v848
      %v857 = vpack.c.b16 %v851, %v850
      %v858 = vpack.c.b16 %v853, %v852
      %v859 = vpack.c.b16 %v855, %v854
      %864 = vmatprep.subr.bf16.mxu0 0
      %865 = vmatpush1.bf16.msra.mxu0 0
      %866 = vmatprep.subr.bf16.mxu0 0
      %867 = vmatpush1.bf16.msra.mxu0 0
      %868 = vmatprep.subr.bf16.mxu0 0
      %869 = vmatpush1.bf16.msra.mxu0 0
      %870 = vmatprep.subr.bf16.mxu0 0
      %871 = vmatpush1.bf16.msra.mxu0 0
      %872 = vmatprep.subr.bf16.mxu0 0
      %873 = vmatpush1.bf16.msra.mxu0 %v859
      %874 = vmatprep.subr.bf16.mxu0 0
      %875 = vmatpush1.bf16.msra.mxu0 %v858
      %876 = vmatprep.subr.bf16.mxu0 0
      %877 = vmatpush1.bf16.msra.mxu0 %v857
      %878 = vmatprep.subr.bf16.mxu0 0
      %879 = vmatpush1.bf16.msra.mxu0 %v856
      %880 = vmatprep.subr.bf16.mxu0 0
      %881 = vmatpush2.bf16.msra.mxu0 0
      %882 = vmatprep.subr.bf16.mxu0 0
      %883 = vmatpush2.bf16.msra.mxu0 0
      %884 = vmatprep.subr.bf16.mxu0 0
      %885 = vmatpush2.bf16.msra.mxu0 0
      %886 = vmatprep.subr.bf16.mxu0 0
      %887 = vmatpush2.bf16.msra.mxu0 0
      %888 = vmatprep.subr.bf16.mxu0 0
      %889 = vmatpush2.bf16.msra.mxu0 0
      %890 = vmatprep.subr.bf16.mxu0 0
      %891 = vmatpush2.bf16.msra.mxu0 0
      %892 = vmatprep.subr.bf16.mxu0 0
      %893 = vmatpush2.bf16.msra.mxu0 0
      %894 = vmatprep.subr.bf16.mxu0 0
      %895 = vmatpush2.bf16.msra.mxu0 0
      %896 = vmatprep.mubr.bf16.mxu0 0
      %897 = vmatmul.mubr.bf16.gmra.mxu0 %v377
      %v898 = vpop.f32.mrf.mxu0
      %v899 = vadd.f32 %v349, %v898
      %v900 = vpop.f32.mrf.mxu0
      %v901 = vpop.f32.mrf.mxu0
      %v902 = vpop.f32.mrf.mxu0
      %903 = vdwg.mxu0
      %v904 = vmul.f32 %v899, 0.1
      %v905 = vmax.f32 %v899, %v904
      %v906 = vpack.c.bf16 %v905, %v905
      %v909 = vunpack.c.l.s4 1983009808
      %v910 = vunpack.c.0.s8 %v909
      %v911 = vlaneseq
      %v912 = vshrl.u32 %v911, 7
      %v913 = vsub.s32 %v910, %v912
      %v914 = vrot.slane %v906, %v913
      %915 = vrot.lane.b32.xlu0 %v914, 1
      %v916 = vpop.permute.xlu0 %915
      %s918 = scalar_lea.vmem [#allocation2], 10
      %919 = vst.msk [vmem:[%s918] sm:$0x3] %vm434, %v916
      %v920 = vld [vmem:[%s815] sm:$0xf]
      %v921 = vld [vmem:[%s815 + $0x4] sm:$0xf]
      %922 = vst.msk [vmem:[#allocation4] sm:$0xf] %vm306, %v920
      %923 = vst.msk [vmem:[#allocation4 + $0x4] sm:$0xf] %vm306, %v921
      %v924 = vld [vmem:[%s815] sm:$0xf]
      %v925 = vld [vmem:[%s815 + $0x4] sm:$0xf]
      %928 = vrot.lane.b32.xlu0 %v924, 127
      %v929 = vpop.permute.xlu0 %928
      %930 = vrot.lane.b32.xlu0 %v925, 127
      %v931 = vpop.permute.xlu0 %930
      %934 = vst.msk [vmem:[#allocation4 + $0x8] sm:$0xf] %vm306, %v929
      %935 = vst.msk [vmem:[#allocation4 + $0xc] sm:$0xf] %vm306, %v931
      %s936 = scalar_lea.vmem %s273, 48
      %v937 = vld [vmem:[%s936] sm:$0xf]
      %v938 = vld [vmem:[%s936 + $0x4] sm:$0xf]
      %939 = vst.msk [vmem:[#allocation4 + $0x10] sm:$0xf] %vm306, %v937
      %940 = vst.msk [vmem:[#allocation4 + $0x14] sm:$0xf] %vm306, %v938
      %v941 = vld [vmem:[%s936] sm:$0xf]
      %v942 = vld [vmem:[%s936 + $0x4] sm:$0xf]
      %945 = vrot.lane.b32.xlu0 %v941, 127
      %v946 = vpop.permute.xlu0 %945
      %947 = vrot.lane.b32.xlu0 %v942, 127
      %v948 = vpop.permute.xlu0 %947
      %951 = vst.msk [vmem:[#allocation4 + $0x18] sm:$0xf] %vm306, %v946
      %952 = vst.msk [vmem:[#allocation4 + $0x1c] sm:$0xf] %vm306, %v948
      %v953 = vld [vmem:[#allocation4] sm:$0xf]
      %v954 = vld [vmem:[#allocation4 + $0x4] sm:$0xf]
      %v955 = vld [vmem:[#allocation4 + $0x8] sm:$0xf]
      %v956 = vld [vmem:[#allocation4 + $0xc] sm:$0xf]
      %v957 = vld [vmem:[#allocation4 + $0x10] sm:$0xf]
      %v958 = vld [vmem:[#allocation4 + $0x14] sm:$0xf]
      %v959 = vld [vmem:[#allocation4 + $0x18] sm:$0xf]
      %v960 = vld [vmem:[#allocation4 + $0x1c] sm:$0xf]
      %v969 = vunpack.c.l.b16 %v953
      %v970 = vunpack.c.l.b16 %v954
      %v971 = vunpack.c.l.b16 %v955
      %v972 = vunpack.c.l.b16 %v956
      %v973 = vunpack.c.l.b16 %v957
      %v974 = vunpack.c.l.b16 %v958
      %v975 = vunpack.c.l.b16 %v959
      %v976 = vunpack.c.l.b16 %v960
      %v977 = vpack.c.b16 %v970, %v969
      %v978 = vpack.c.b16 %v972, %v971
      %v979 = vpack.c.b16 %v974, %v973
      %v980 = vpack.c.b16 %v976, %v975
      %985 = vmatprep.subr.bf16.mxu0 0
      %986 = vmatpush1.bf16.msra.mxu0 0
      %987 = vmatprep.subr.bf16.mxu0 0
      %988 = vmatpush1.bf16.msra.mxu0 0
      %989 = vmatprep.subr.bf16.mxu0 0
      %990 = vmatpush1.bf16.msra.mxu0 0
      %991 = vmatprep.subr.bf16.mxu0 0
      %992 = vmatpush1.bf16.msra.mxu0 0
      %993 = vmatprep.subr.bf16.mxu0 0
      %994 = vmatpush1.bf16.msra.mxu0 %v980
      %995 = vmatprep.subr.bf16.mxu0 0
      %996 = vmatpush1.bf16.msra.mxu0 %v979
      %997 = vmatprep.subr.bf16.mxu0 0
      %998 = vmatpush1.bf16.msra.mxu0 %v978
      %999 = vmatprep.subr.bf16.mxu0 0
      %1000 = vmatpush1.bf16.msra.mxu0 %v977
      %1001 = vmatprep.subr.bf16.mxu0 0
      %1002 = vmatpush2.bf16.msra.mxu0 0
      %1003 = vmatprep.subr.bf16.mxu0 0
      %1004 = vmatpush2.bf16.msra.mxu0 0
      %1005 = vmatprep.subr.bf16.mxu0 0
      %1006 = vmatpush2.bf16.msra.mxu0 0
      %1007 = vmatprep.subr.bf16.mxu0 0
      %1008 = vmatpush2.bf16.msra.mxu0 0
      %1009 = vmatprep.subr.bf16.mxu0 0
      %1010 = vmatpush2.bf16.msra.mxu0 0
      %1011 = vmatprep.subr.bf16.mxu0 0
      %1012 = vmatpush2.bf16.msra.mxu0 0
      %1013 = vmatprep.subr.bf16.mxu0 0
      %1014 = vmatpush2.bf16.msra.mxu0 0
      %1015 = vmatprep.subr.bf16.mxu0 0
      %1016 = vmatpush2.bf16.msra.mxu0 0
      %1017 = vmatprep.mubr.bf16.mxu0 0
      %1018 = vmatmul.mubr.bf16.gmra.mxu0 %v377
      %v1019 = vpop.f32.mrf.mxu0
      %v1020 = vadd.f32 %v349, %v1019
      %v1021 = vpop.f32.mrf.mxu0
      %v1022 = vpop.f32.mrf.mxu0
      %v1023 = vpop.f32.mrf.mxu0
      %1024 = vdwg.mxu0
      %v1025 = vmul.f32 %v1020, 0.1
      %v1026 = vmax.f32 %v1020, %v1025
      %v1027 = vpack.c.bf16 %v1026, %v1026
      %v1030 = vunpack.c.l.s4 1983009808
      %v1031 = vunpack.c.0.s8 %v1030
      %v1032 = vlaneseq
      %v1033 = vshrl.u32 %v1032, 7
      %v1034 = vsub.s32 %v1031, %v1033
      %v1035 = vrot.slane %v1027, %v1034
      %1036 = vrot.lane.b32.xlu0 %v1035, 1
      %v1037 = vpop.permute.xlu0 %1036
      %s1039 = scalar_lea.vmem [#allocation2], 12
      %1040 = vst.msk [vmem:[%s1039] sm:$0x3] %vm434, %v1037
      %v1041 = vld [vmem:[%s936] sm:$0xf]
      %v1042 = vld [vmem:[%s936 + $0x4] sm:$0xf]
      %1043 = vst.msk [vmem:[#allocation4] sm:$0xf] %vm306, %v1041
      %1044 = vst.msk [vmem:[#allocation4 + $0x4] sm:$0xf] %vm306, %v1042
      %v1045 = vld [vmem:[%s936] sm:$0xf]
      %v1046 = vld [vmem:[%s936 + $0x4] sm:$0xf]
      %1049 = vrot.lane.b32.xlu0 %v1045, 127
      %v1050 = vpop.permute.xlu0 %1049
      %1051 = vrot.lane.b32.xlu0 %v1046, 127
      %v1052 = vpop.permute.xlu0 %1051
      %1055 = vst.msk [vmem:[#allocation4 + $0x8] sm:$0xf] %vm306, %v1050
      %1056 = vst.msk [vmem:[#allocation4 + $0xc] sm:$0xf] %vm306, %v1052
      %s1057 = scalar_lea.vmem %s273, 56
      %v1058 = vld [vmem:[%s1057] sm:$0xf]
      %v1059 = vld [vmem:[%s1057 + $0x4] sm:$0xf]
      %1060 = vst.msk [vmem:[#allocation4 + $0x10] sm:$0xf] %vm306, %v1058
      %1061 = vst.msk [vmem:[#allocation4 + $0x14] sm:$0xf] %vm306, %v1059
      %v1062 = vld [vmem:[%s1057] sm:$0xf]
      %v1063 = vld [vmem:[%s1057 + $0x4] sm:$0xf]
      %1066 = vrot.lane.b32.xlu0 %v1062, 127
      %v1067 = vpop.permute.xlu0 %1066
      %1068 = vrot.lane.b32.xlu0 %v1063, 127
      %v1069 = vpop.permute.xlu0 %1068
      %1072 = vst.msk [vmem:[#allocation4 + $0x18] sm:$0xf] %vm306, %v1067
      %1073 = vst.msk [vmem:[#allocation4 + $0x1c] sm:$0xf] %vm306, %v1069
      %v1074 = vld [vmem:[#allocation4] sm:$0xf]
      %v1075 = vld [vmem:[#allocation4 + $0x4] sm:$0xf]
      %v1076 = vld [vmem:[#allocation4 + $0x8] sm:$0xf]
      %v1077 = vld [vmem:[#allocation4 + $0xc] sm:$0xf]
      %v1078 = vld [vmem:[#allocation4 + $0x10] sm:$0xf]
      %v1079 = vld [vmem:[#allocation4 + $0x14] sm:$0xf]
      %v1080 = vld [vmem:[#allocation4 + $0x18] sm:$0xf]
      %v1081 = vld [vmem:[#allocation4 + $0x1c] sm:$0xf]
      %v1090 = vunpack.c.l.b16 %v1074
      %v1091 = vunpack.c.l.b16 %v1075
      %v1092 = vunpack.c.l.b16 %v1076
      %v1093 = vunpack.c.l.b16 %v1077
      %v1094 = vunpack.c.l.b16 %v1078
      %v1095 = vunpack.c.l.b16 %v1079
      %v1096 = vunpack.c.l.b16 %v1080
      %v1097 = vunpack.c.l.b16 %v1081
      %v1098 = vpack.c.b16 %v1091, %v1090
      %v1099 = vpack.c.b16 %v1093, %v1092
      %v1100 = vpack.c.b16 %v1095, %v1094
      %v1101 = vpack.c.b16 %v1097, %v1096
      %1106 = vmatprep.subr.bf16.mxu0 0
      %1107 = vmatpush1.bf16.msra.mxu0 0
      %1108 = vmatprep.subr.bf16.mxu0 0
      %1109 = vmatpush1.bf16.msra.mxu0 0
      %1110 = vmatprep.subr.bf16.mxu0 0
      %1111 = vmatpush1.bf16.msra.mxu0 0
      %1112 = vmatprep.subr.bf16.mxu0 0
      %1113 = vmatpush1.bf16.msra.mxu0 0
      %1114 = vmatprep.subr.bf16.mxu0 0
      %1115 = vmatpush1.bf16.msra.mxu0 %v1101
      %1116 = vmatprep.subr.bf16.mxu0 0
      %1117 = vmatpush1.bf16.msra.mxu0 %v1100
      %1118 = vmatprep.subr.bf16.mxu0 0
      %1119 = vmatpush1.bf16.msra.mxu0 %v1099
      %1120 = vmatprep.subr.bf16.mxu0 0
      %1121 = vmatpush1.bf16.msra.mxu0 %v1098
      %1122 = vmatprep.subr.bf16.mxu0 0
      %1123 = vmatpush2.bf16.msra.mxu0 0
      %1124 = vmatprep.subr.bf16.mxu0 0
      %1125 = vmatpush2.bf16.msra.mxu0 0
      %1126 = vmatprep.subr.bf16.mxu0 0
      %1127 = vmatpush2.bf16.msra.mxu0 0
      %1128 = vmatprep.subr.bf16.mxu0 0
      %1129 = vmatpush2.bf16.msra.mxu0 0
      %1130 = vmatprep.subr.bf16.mxu0 0
      %1131 = vmatpush2.bf16.msra.mxu0 0
      %1132 = vmatprep.subr.bf16.mxu0 0
      %1133 = vmatpush2.bf16.msra.mxu0 0
      %1134 = vmatprep.subr.bf16.mxu0 0
      %1135 = vmatpush2.bf16.msra.mxu0 0
      %1136 = vmatprep.subr.bf16.mxu0 0
      %1137 = vmatpush2.bf16.msra.mxu0 0
      %1138 = vmatprep.mubr.bf16.mxu0 0
      %1139 = vmatmul.mubr.bf16.gmra.mxu0 %v377
      %v1140 = vpop.f32.mrf.mxu0
      %v1141 = vadd.f32 %v349, %v1140
      %v1142 = vpop.f32.mrf.mxu0
      %v1143 = vpop.f32.mrf.mxu0
      %v1144 = vpop.f32.mrf.mxu0
      %1145 = vdwg.mxu0
      %v1146 = vmul.f32 %v1141, 0.1
      %v1147 = vmax.f32 %v1141, %v1146
      %v1148 = vpack.c.bf16 %v1147, %v1147
      %v1151 = vunpack.c.l.s4 1983009808
      %v1152 = vunpack.c.0.s8 %v1151
      %v1153 = vlaneseq
      %v1154 = vshrl.u32 %v1153, 7
      %v1155 = vsub.s32 %v1152, %v1154
      %v1156 = vrot.slane %v1148, %v1155
      %1157 = vrot.lane.b32.xlu0 %v1156, 1
      %v1158 = vpop.permute.xlu0 %1157
      %s1160 = scalar_lea.vmem [#allocation2], 14
      %1161 = vst.msk [vmem:[%s1160] sm:$0x3] %vm434, %v1158
      %v1162 = vld [vmem:[%s1057] sm:$0xf]
      %v1163 = vld [vmem:[%s1057 + $0x4] sm:$0xf]
      %1164 = vst.msk [vmem:[#allocation4] sm:$0xf] %vm306, %v1162
      %1165 = vst.msk [vmem:[#allocation4 + $0x4] sm:$0xf] %vm306, %v1163
      %v1166 = vld [vmem:[%s1057] sm:$0xf]
      %v1167 = vld [vmem:[%s1057 + $0x4] sm:$0xf]
      %1170 = vrot.lane.b32.xlu0 %v1166, 127
      %v1171 = vpop.permute.xlu0 %1170
      %1172 = vrot.lane.b32.xlu0 %v1167, 127
      %v1173 = vpop.permute.xlu0 %1172
      %1176 = vst.msk [vmem:[#allocation4 + $0x8] sm:$0xf] %vm306, %v1171
      %1177 = vst.msk [vmem:[#allocation4 + $0xc] sm:$0xf] %vm306, %v1173
      %s1178 = scalar_lea.vmem %s273, 64
      %v1179 = vld [vmem:[%s1178] sm:$0xf]
      %v1180 = vld [vmem:[%s1178 + $0x4] sm:$0xf]
      %1181 = vst.msk [vmem:[#allocation4 + $0x10] sm:$0xf] %vm306, %v1179
      %1182 = vst.msk [vmem:[#allocation4 + $0x14] sm:$0xf] %vm306, %v1180
      %v1183 = vld [vmem:[%s1178] sm:$0xf]
      %v1184 = vld [vmem:[%s1178 + $0x4] sm:$0xf]
      %1187 = vrot.lane.b32.xlu0 %v1183, 127
      %v1188 = vpop.permute.xlu0 %1187
      %1189 = vrot.lane.b32.xlu0 %v1184, 127
      %v1190 = vpop.permute.xlu0 %1189
      %1193 = vst.msk [vmem:[#allocation4 + $0x18] sm:$0xf] %vm306, %v1188
      %1194 = vst.msk [vmem:[#allocation4 + $0x1c] sm:$0xf] %vm306, %v1190
      %v1195 = vld [vmem:[#allocation4] sm:$0xf]
      %v1196 = vld [vmem:[#allocation4 + $0x4] sm:$0xf]
      %v1197 = vld [vmem:[#allocation4 + $0x8] sm:$0xf]
      %v1198 = vld [vmem:[#allocation4 + $0xc] sm:$0xf]
      %v1199 = vld [vmem:[#allocation4 + $0x10] sm:$0xf]
      %v1200 = vld [vmem:[#allocation4 + $0x14] sm:$0xf]
      %v1201 = vld [vmem:[#allocation4 + $0x18] sm:$0xf]
      %v1202 = vld [vmem:[#allocation4 + $0x1c] sm:$0xf]
      %v1211 = vunpack.c.l.b16 %v1195
      %v1212 = vunpack.c.l.b16 %v1196
      %v1213 = vunpack.c.l.b16 %v1197
      %v1214 = vunpack.c.l.b16 %v1198
      %v1215 = vunpack.c.l.b16 %v1199
      %v1216 = vunpack.c.l.b16 %v1200
      %v1217 = vunpack.c.l.b16 %v1201
      %v1218 = vunpack.c.l.b16 %v1202
      %v1219 = vpack.c.b16 %v1212, %v1211
      %v1220 = vpack.c.b16 %v1214, %v1213
      %v1221 = vpack.c.b16 %v1216, %v1215
      %v1222 = vpack.c.b16 %v1218, %v1217
      %1227 = vmatprep.subr.bf16.mxu0 0
      %1228 = vmatpush1.bf16.msra.mxu0 0
      %1229 = vmatprep.subr.bf16.mxu0 0
      %1230 = vmatpush1.bf16.msra.mxu0 0
      %1231 = vmatprep.subr.bf16.mxu0 0
      %1232 = vmatpush1.bf16.msra.mxu0 0
      %1233 = vmatprep.subr.bf16.mxu0 0
      %1234 = vmatpush1.bf16.msra.mxu0 0
      %1235 = vmatprep.subr.bf16.mxu0 0
      %1236 = vmatpush1.bf16.msra.mxu0 %v1222
      %1237 = vmatprep.subr.bf16.mxu0 0
      %1238 = vmatpush1.bf16.msra.mxu0 %v1221
      %1239 = vmatprep.subr.bf16.mxu0 0
      %1240 = vmatpush1.bf16.msra.mxu0 %v1220
      %1241 = vmatprep.subr.bf16.mxu0 0
      %1242 = vmatpush1.bf16.msra.mxu0 %v1219
      %1243 = vmatprep.subr.bf16.mxu0 0
      %1244 = vmatpush2.bf16.msra.mxu0 0
      %1245 = vmatprep.subr.bf16.mxu0 0
      %1246 = vmatpush2.bf16.msra.mxu0 0
      %1247 = vmatprep.subr.bf16.mxu0 0
      %1248 = vmatpush2.bf16.msra.mxu0 0
      %1249 = vmatprep.subr.bf16.mxu0 0
      %1250 = vmatpush2.bf16.msra.mxu0 0
      %1251 = vmatprep.subr.bf16.mxu0 0
      %1252 = vmatpush2.bf16.msra.mxu0 0
      %1253 = vmatprep.subr.bf16.mxu0 0
      %1254 = vmatpush2.bf16.msra.mxu0 0
      %1255 = vmatprep.subr.bf16.mxu0 0
      %1256 = vmatpush2.bf16.msra.mxu0 0
      %1257 = vmatprep.subr.bf16.mxu0 0
      %1258 = vmatpush2.bf16.msra.mxu0 0
      %1259 = vmatprep.mubr.bf16.mxu0 0
      %1260 = vmatmul.mubr.bf16.gmra.mxu0 %v377
      %v1261 = vpop.f32.mrf.mxu0
      %v1262 = vadd.f32 %v349, %v1261
      %v1263 = vpop.f32.mrf.mxu0
      %v1264 = vpop.f32.mrf.mxu0
      %v1265 = vpop.f32.mrf.mxu0
      %1266 = vdwg.mxu0
      %v1267 = vmul.f32 %v1262, 0.1
      %v1268 = vmax.f32 %v1262, %v1267
      %v1269 = vpack.c.bf16 %v1268, %v1268
      %v1272 = vunpack.c.l.s4 1983009808
      %v1273 = vunpack.c.0.s8 %v1272
      %v1274 = vlaneseq
      %v1275 = vshrl.u32 %v1274, 7
      %v1276 = vsub.s32 %v1273, %v1275
      %v1277 = vrot.slane %v1269, %v1276
      %1278 = vrot.lane.b32.xlu0 %v1277, 1
      %v1279 = vpop.permute.xlu0 %1278
      %s1281 = scalar_lea.vmem [#allocation2], 16
      %1282 = vst.msk [vmem:[%s1281] sm:$0x3] %vm434, %v1279
      %v1283 = vld [vmem:[%s3] sm:$0xf]
      %v1284 = vld [vmem:[%s4] sm:$0xff]
      %v1285 = vld [vmem:[#allocation2] sm:$0x3]
      %vm1286 = vcmask 58368
      %1287 = vst.msk [vmem:[#allocation5] sm:$0x3] %vm1286, %v1285
      %v1288 = vld [vmem:[#allocation2] sm:$0x3]
      %v1290 = vcombine.low %v1288, %v1288
      %v1292 = vunpack.c.l.s4 1983009808
      %v1293 = vunpack.c.0.s8 %v1292
      %v1294 = vlaneseq
      %v1295 = vshrl.u32 %v1294, 7
      %v1296 = vsub.s32 %v1293, %v1295
      %v1297 = vrot.slane %v1290, %v1296
      %1298 = vrot.lane.b32.xlu0 %v1297, 127
      %v1299 = vpop.permute.xlu0 %1298
      %vm1301 = vcmask 60418
      %1302 = vst.msk [vmem:[#allocation5] sm:$0xc] %vm1301, %v1299
      %v1303 = vld [vmem:[#allocation2] sm:$0x3]
      %v1306 = vunpack.c.l.s4 1983009808
      %v1307 = vunpack.c.0.s8 %v1306
      %v1308 = vlaneseq
      %v1309 = vshrl.u32 %v1308, 7
      %v1310 = vsub.s32 %v1307, %v1309
      %v1311 = vrot.slane %v1303, %v1310
      %1312 = vrot.lane.b32.xlu0 %v1311, 126
      %v1313 = vpop.permute.xlu0 %1312
      %1315 = vst.msk [vmem:[#allocation5 + $0x4] sm:$0x3] %vm1286, %v1313
      %v1316 = vld [vmem:[%s433] sm:$0x3]
      %v1318 = vcombine.low %v1316, %v1316
      %v1320 = vunpack.c.l.s4 1983009808
      %v1321 = vunpack.c.0.s8 %v1320
      %v1322 = vlaneseq
      %v1323 = vshrl.u32 %v1322, 7
      %v1324 = vsub.s32 %v1321, %v1323
      %v1325 = vrot.slane %v1318, %v1324
      %1327 = vst.msk [vmem:[#allocation5 + $0x4] sm:$0xc] %vm1301, %v1325
      %v1328 = vld [vmem:[%s433] sm:$0x3]
      %v1331 = vunpack.c.l.s4 1983009808
      %v1332 = vunpack.c.0.s8 %v1331
      %v1333 = vlaneseq
      %v1334 = vshrl.u32 %v1333, 7
      %v1335 = vsub.s32 %v1332, %v1334
      %v1336 = vrot.slane %v1328, %v1335
      %1337 = vrot.lane.b32.xlu0 %v1336, 127
      %v1338 = vpop.permute.xlu0 %1337
      %1340 = vst.msk [vmem:[#allocation5 + $0x8] sm:$0x3] %vm1286, %v1338
      %v1341 = vld [vmem:[%s433] sm:$0x3]
      %v1343 = vcombine.low %v1341, %v1341
      %v1345 = vunpack.c.l.s4 1983009808
      %v1346 = vunpack.c.0.s8 %v1345
      %v1347 = vlaneseq
      %v1348 = vshrl.u32 %v1347, 7
      %v1349 = vsub.s32 %v1346, %v1348
      %v1350 = vrot.slane %v1343, %v1349
      %1351 = vrot.lane.b32.xlu0 %v1350, 126
      %v1352 = vpop.permute.xlu0 %1351
      %1354 = vst.msk [vmem:[#allocation5 + $0x8] sm:$0xc] %vm1301, %v1352
      %v1355 = vld [vmem:[%s555] sm:$0x3]
      %1356 = vst.msk [vmem:[#allocation5 + $0xc] sm:$0x3] %vm1286, %v1355
      %v1357 = vld [vmem:[%s555] sm:$0x3]
      %v1359 = vcombine.low %v1357, %v1357
      %v1361 = vunpack.c.l.s4 1983009808
      %v1362 = vunpack.c.0.s8 %v1361
      %v1363 = vlaneseq
      %v1364 = vshrl.u32 %v1363, 7
      %v1365 = vsub.s32 %v1362, %v1364
      %v1366 = vrot.slane %v1359, %v1365
      %1367 = vrot.lane.b32.xlu0 %v1366, 127
      %v1368 = vpop.permute.xlu0 %1367
      %1370 = vst.msk [vmem:[#allocation5 + $0xc] sm:$0xc] %vm1301, %v1368
      %v1371 = vld [vmem:[%s555] sm:$0x3]
      %v1374 = vunpack.c.l.s4 1983009808
      %v1375 = vunpack.c.0.s8 %v1374
      %v1376 = vlaneseq
      %v1377 = vshrl.u32 %v1376, 7
      %v1378 = vsub.s32 %v1375, %v1377
      %v1379 = vrot.slane %v1371, %v1378
      %1380 = vrot.lane.b32.xlu0 %v1379, 126
      %v1381 = vpop.permute.xlu0 %1380
      %1383 = vst.msk [vmem:[#allocation5 + $0x10] sm:$0x3] %vm1286, %v1381
      %v1384 = vld [vmem:[#allocation5] sm:$0xf]
      %v1385 = vld [vmem:[#allocation5 + $0x4] sm:$0xf]
      %v1386 = vld [vmem:[#allocation5 + $0x8] sm:$0xf]
      %v1387 = vld [vmem:[#allocation5 + $0xc] sm:$0xf]
      %v1388 = vld [vmem:[#allocation5 + $0x10] sm:$0x3]
      %1390 = vset.pattern.permute.xlu0 0
      %1391 = vperm.xlu0 %1390, %v1284
      %v1392 = vpop.permute.xlu0 %1391
      %v1399 = vunpack.c.l.b16 %v1384
      %v1400 = vunpack.c.l.b16 %v1385
      %v1401 = vunpack.c.l.b16 %v1386
      %v1402 = vunpack.c.l.b16 %v1387
      %v1403 = vunpack.c.l.b16 %v1388
      %v1404 = vpack.c.b16 %v1400, %v1399
      %v1405 = vpack.c.b16 %v1402, %v1401
      %v1406 = vpack.c.b16 %v1403, %v1403
      %vm1409 = vcmask 293888
      %v1411 = vsel %vm1409, %v1283, 0
      %vm1413 = vcmask 1041408
      %v1415 = vsel %vm1413, %v1406, 0
      %1417 = vmatprep.subr.bf16.mxu0 0
      %1418 = vmatpush1.bf16.msra.mxu0 0
      %1419 = vmatprep.subr.bf16.mxu0 0
      %1420 = vmatpush1.bf16.msra.mxu0 0
      %1421 = vmatprep.subr.bf16.mxu0 0
      %1422 = vmatpush1.bf16.msra.mxu0 0
      %1423 = vmatprep.subr.bf16.mxu0 0
      %1424 = vmatpush1.bf16.msra.mxu0 0
      %1425 = vmatprep.subr.bf16.mxu0 0
      %1426 = vmatpush1.bf16.msra.mxu0 0
      %1427 = vmatprep.subr.bf16.mxu0 0
      %1428 = vmatpush1.bf16.msra.mxu0 %v1415
      %1429 = vmatprep.subr.bf16.mxu0 0
      %1430 = vmatpush1.bf16.msra.mxu0 %v1405
      %1431 = vmatprep.subr.bf16.mxu0 0
      %1432 = vmatpush1.bf16.msra.mxu0 %v1404
      %1433 = vmatprep.subr.bf16.mxu0 0
      %1434 = vmatpush2.bf16.msra.mxu0 0
      %1435 = vmatprep.subr.bf16.mxu0 0
      %1436 = vmatpush2.bf16.msra.mxu0 0
      %1437 = vmatprep.subr.bf16.mxu0 0
      %1438 = vmatpush2.bf16.msra.mxu0 0
      %1439 = vmatprep.subr.bf16.mxu0 0
      %1440 = vmatpush2.bf16.msra.mxu0 0
      %1441 = vmatprep.subr.bf16.mxu0 0
      %1442 = vmatpush2.bf16.msra.mxu0 0
      %1443 = vmatprep.subr.bf16.mxu0 0
      %1444 = vmatpush2.bf16.msra.mxu0 0
      %1445 = vmatprep.subr.bf16.mxu0 0
      %1446 = vmatpush2.bf16.msra.mxu0 0
      %1447 = vmatprep.subr.bf16.mxu0 0
      %1448 = vmatpush2.bf16.msra.mxu0 0
      %1449 = vmatprep.mubr.bf16.mxu0 0
      %1450 = vmatmul.mubr.bf16.gmra.mxu0 %v1411
      %v1451 = vpop.f32.mrf.mxu0
      %v1452 = vadd.f32 %v1392, %v1451
      %v1453 = vpop.f32.mrf.mxu0
      %v1454 = vpop.f32.mrf.mxu0
      %v1455 = vpop.f32.mrf.mxu0
      %1456 = vdwg.mxu0
      %v1457 = vmul.f32 %v1452, 0.1
      %v1458 = vmax.f32 %v1452, %v1457
      %v1459 = vpack.c.bf16 %v1458, %v1458
      %v1461 = vunpack.c.l.b16 %v1459
      %v1462 = vpack.c.b16 %v1461, %v1461
      %1463 = vrot.lane.b32.xlu0 %v1462, 1
      %v1464 = vpop.permute.xlu0 %1463
      %s1466 = scalar_lea.vmem [#allocation3], 4
      %vm1467 = vcmask 68616
      %1468 = vst.msk [vmem:[%s1466] sm:$0xf] %vm1467, %v1464
      %v1469 = vld [vmem:[%s433] sm:$0x3]
      %1470 = vst.msk [vmem:[#allocation5] sm:$0x3] %vm1286, %v1469
      %v1471 = vld [vmem:[%s433] sm:$0x3]
      %v1473 = vcombine.low %v1471, %v1471
      %v1475 = vunpack.c.l.s4 1983009808
      %v1476 = vunpack.c.0.s8 %v1475
      %v1477 = vlaneseq
      %v1478 = vshrl.u32 %v1477, 7
      %v1479 = vsub.s32 %v1476, %v1478
      %v1480 = vrot.slane %v1473, %v1479
      %1481 = vrot.lane.b32.xlu0 %v1480, 127
      %v1482 = vpop.permute.xlu0 %1481
      %1484 = vst.msk [vmem:[#allocation5] sm:$0xc] %vm1301, %v1482
      %v1485 = vld [vmem:[%s433] sm:$0x3]
      %v1488 = vunpack.c.l.s4 1983009808
      %v1489 = vunpack.c.0.s8 %v1488
      %v1490 = vlaneseq
      %v1491 = vshrl.u32 %v1490, 7
      %v1492 = vsub.s32 %v1489, %v1491
      %v1493 = vrot.slane %v1485, %v1492
      %1494 = vrot.lane.b32.xlu0 %v1493, 126
      %v1495 = vpop.permute.xlu0 %1494
      %1497 = vst.msk [vmem:[#allocation5 + $0x4] sm:$0x3] %vm1286, %v1495
      %v1498 = vld [vmem:[%s555] sm:$0x3]
      %v1500 = vcombine.low %v1498, %v1498
      %v1502 = vunpack.c.l.s4 1983009808
      %v1503 = vunpack.c.0.s8 %v1502
      %v1504 = vlaneseq
      %v1505 = vshrl.u32 %v1504, 7
      %v1506 = vsub.s32 %v1503, %v1505
      %v1507 = vrot.slane %v1500, %v1506
      %1509 = vst.msk [vmem:[#allocation5 + $0x4] sm:$0xc] %vm1301, %v1507
      %v1510 = vld [vmem:[%s555] sm:$0x3]
      %v1513 = vunpack.c.l.s4 1983009808
      %v1514 = vunpack.c.0.s8 %v1513
      %v1515 = vlaneseq
      %v1516 = vshrl.u32 %v1515, 7
      %v1517 = vsub.s32 %v1514, %v1516
      %v1518 = vrot.slane %v1510, %v1517
      %1519 = vrot.lane.b32.xlu0 %v1518, 127
      %v1520 = vpop.permute.xlu0 %1519
      %1522 = vst.msk [vmem:[#allocation5 + $0x8] sm:$0x3] %vm1286, %v1520
      %v1523 = vld [vmem:[%s555] sm:$0x3]
      %v1525 = vcombine.low %v1523, %v1523
      %v1527 = vunpack.c.l.s4 1983009808
      %v1528 = vunpack.c.0.s8 %v1527
      %v1529 = vlaneseq
      %v1530 = vshrl.u32 %v1529, 7
      %v1531 = vsub.s32 %v1528, %v1530
      %v1532 = vrot.slane %v1525, %v1531
      %1533 = vrot.lane.b32.xlu0 %v1532, 126
      %v1534 = vpop.permute.xlu0 %1533
      %1536 = vst.msk [vmem:[#allocation5 + $0x8] sm:$0xc] %vm1301, %v1534
      %v1537 = vld [vmem:[%s676] sm:$0x3]
      %1538 = vst.msk [vmem:[#allocation5 + $0xc] sm:$0x3] %vm1286, %v1537
      %v1539 = vld [vmem:[%s676] sm:$0x3]
      %v1541 = vcombine.low %v1539, %v1539
      %v1543 = vunpack.c.l.s4 1983009808
      %v1544 = vunpack.c.0.s8 %v1543
      %v1545 = vlaneseq
      %v1546 = vshrl.u32 %v1545, 7
      %v1547 = vsub.s32 %v1544, %v1546
      %v1548 = vrot.slane %v1541, %v1547
      %1549 = vrot.lane.b32.xlu0 %v1548, 127
      %v1550 = vpop.permute.xlu0 %1549
      %1552 = vst.msk [vmem:[#allocation5 + $0xc] sm:$0xc] %vm1301, %v1550
      %v1553 = vld [vmem:[%s676] sm:$0x3]
      %v1556 = vunpack.c.l.s4 1983009808
      %v1557 = vunpack.c.0.s8 %v1556
      %v1558 = vlaneseq
      %v1559 = vshrl.u32 %v1558, 7
      %v1560 = vsub.s32 %v1557, %v1559
      %v1561 = vrot.slane %v1553, %v1560
      %1562 = vrot.lane.b32.xlu0 %v1561, 126
      %v1563 = vpop.permute.xlu0 %1562
      %1565 = vst.msk [vmem:[#allocation5 + $0x10] sm:$0x3] %vm1286, %v1563
      %v1566 = vld [vmem:[#allocation5] sm:$0xf]
      %v1567 = vld [vmem:[#allocation5 + $0x4] sm:$0xf]
      %v1568 = vld [vmem:[#allocation5 + $0x8] sm:$0xf]
      %v1569 = vld [vmem:[#allocation5 + $0xc] sm:$0xf]
      %v1570 = vld [vmem:[#allocation5 + $0x10] sm:$0x3]
      %v1576 = vunpack.c.l.b16 %v1566
      %v1577 = vunpack.c.l.b16 %v1567
      %v1578 = vunpack.c.l.b16 %v1568
      %v1579 = vunpack.c.l.b16 %v1569
      %v1580 = vunpack.c.l.b16 %v1570
      %v1581 = vpack.c.b16 %v1577, %v1576
      %v1582 = vpack.c.b16 %v1579, %v1578
      %v1583 = vpack.c.b16 %v1580, %v1580
      %v1587 = vsel %vm1413, %v1583, 0
      %1589 = vmatprep.subr.bf16.mxu0 0
      %1590 = vmatpush1.bf16.msra.mxu0 0
      %1591 = vmatprep.subr.bf16.mxu0 0
      %1592 = vmatpush1.bf16.msra.mxu0 0
      %1593 = vmatprep.subr.bf16.mxu0 0
      %1594 = vmatpush1.bf16.msra.mxu0 0
      %1595 = vmatprep.subr.bf16.mxu0 0
      %1596 = vmatpush1.bf16.msra.mxu0 0
      %1597 = vmatprep.subr.bf16.mxu0 0
      %1598 = vmatpush1.bf16.msra.mxu0 0
      %1599 = vmatprep.subr.bf16.mxu0 0
      %1600 = vmatpush1.bf16.msra.mxu0 %v1587
      %1601 = vmatprep.subr.bf16.mxu0 0
      %1602 = vmatpush1.bf16.msra.mxu0 %v1582
      %1603 = vmatprep.subr.bf16.mxu0 0
      %1604 = vmatpush1.bf16.msra.mxu0 %v1581
      %1605 = vmatprep.subr.bf16.mxu0 0
      %1606 = vmatpush2.bf16.msra.mxu0 0
      %1607 = vmatprep.subr.bf16.mxu0 0
      %1608 = vmatpush2.bf16.msra.mxu0 0
      %1609 = vmatprep.subr.bf16.mxu0 0
      %1610 = vmatpush2.bf16.msra.mxu0 0
      %1611 = vmatprep.subr.bf16.mxu0 0
      %1612 = vmatpush2.bf16.msra.mxu0 0
      %1613 = vmatprep.subr.bf16.mxu0 0
      %1614 = vmatpush2.bf16.msra.mxu0 0
      %1615 = vmatprep.subr.bf16.mxu0 0
      %1616 = vmatpush2.bf16.msra.mxu0 0
      %1617 = vmatprep.subr.bf16.mxu0 0
      %1618 = vmatpush2.bf16.msra.mxu0 0
      %1619 = vmatprep.subr.bf16.mxu0 0
      %1620 = vmatpush2.bf16.msra.mxu0 0
      %1621 = vmatprep.mubr.bf16.mxu0 0
      %1622 = vmatmul.mubr.bf16.gmra.mxu0 %v1411
      %v1623 = vpop.f32.mrf.mxu0
      %v1624 = vadd.f32 %v1392, %v1623
      %v1625 = vpop.f32.mrf.mxu0
      %v1626 = vpop.f32.mrf.mxu0
      %v1627 = vpop.f32.mrf.mxu0
      %1628 = vdwg.mxu0
      %v1629 = vmul.f32 %v1624, 0.1
      %v1630 = vmax.f32 %v1624, %v1629
      %v1631 = vpack.c.bf16 %v1630, %v1630
      %v1633 = vunpack.c.l.b16 %v1631
      %v1634 = vpack.c.b16 %v1633, %v1633
      %1635 = vrot.lane.b32.xlu0 %v1634, 1
      %v1636 = vpop.permute.xlu0 %1635
      %s1638 = scalar_lea.vmem [#allocation3], 8
      %1639 = vst.msk [vmem:[%s1638] sm:$0xf] %vm1467, %v1636
      %v1640 = vld [vmem:[%s555] sm:$0x3]
      %1641 = vst.msk [vmem:[#allocation5] sm:$0x3] %vm1286, %v1640
      %v1642 = vld [vmem:[%s555] sm:$0x3]
      %v1644 = vcombine.low %v1642, %v1642
      %v1646 = vunpack.c.l.s4 1983009808
      %v1647 = vunpack.c.0.s8 %v1646
      %v1648 = vlaneseq
      %v1649 = vshrl.u32 %v1648, 7
      %v1650 = vsub.s32 %v1647, %v1649
      %v1651 = vrot.slane %v1644, %v1650
      %1652 = vrot.lane.b32.xlu0 %v1651, 127
      %v1653 = vpop.permute.xlu0 %1652
      %1655 = vst.msk [vmem:[#allocation5] sm:$0xc] %vm1301, %v1653
      %v1656 = vld [vmem:[%s555] sm:$0x3]
      %v1659 = vunpack.c.l.s4 1983009808
      %v1660 = vunpack.c.0.s8 %v1659
      %v1661 = vlaneseq
      %v1662 = vshrl.u32 %v1661, 7
      %v1663 = vsub.s32 %v1660, %v1662
      %v1664 = vrot.slane %v1656, %v1663
      %1665 = vrot.lane.b32.xlu0 %v1664, 126
      %v1666 = vpop.permute.xlu0 %1665
      %1668 = vst.msk [vmem:[#allocation5 + $0x4] sm:$0x3] %vm1286, %v1666
      %v1669 = vld [vmem:[%s676] sm:$0x3]
      %v1671 = vcombine.low %v1669, %v1669
      %v1673 = vunpack.c.l.s4 1983009808
      %v1674 = vunpack.c.0.s8 %v1673
      %v1675 = vlaneseq
      %v1676 = vshrl.u32 %v1675, 7
      %v1677 = vsub.s32 %v1674, %v1676
      %v1678 = vrot.slane %v1671, %v1677
      %1680 = vst.msk [vmem:[#allocation5 + $0x4] sm:$0xc] %vm1301, %v1678
      %v1681 = vld [vmem:[%s676] sm:$0x3]
      %v1684 = vunpack.c.l.s4 1983009808
      %v1685 = vunpack.c.0.s8 %v1684
      %v1686 = vlaneseq
      %v1687 = vshrl.u32 %v1686, 7
      %v1688 = vsub.s32 %v1685, %v1687
      %v1689 = vrot.slane %v1681, %v1688
      %1690 = vrot.lane.b32.xlu0 %v1689, 127
      %v1691 = vpop.permute.xlu0 %1690
      %1693 = vst.msk [vmem:[#allocation5 + $0x8] sm:$0x3] %vm1286, %v1691
      %v1694 = vld [vmem:[%s676] sm:$0x3]
      %v1696 = vcombine.low %v1694, %v1694
      %v1698 = vunpack.c.l.s4 1983009808
      %v1699 = vunpack.c.0.s8 %v1698
      %v1700 = vlaneseq
      %v1701 = vshrl.u32 %v1700, 7
      %v1702 = vsub.s32 %v1699, %v1701
      %v1703 = vrot.slane %v1696, %v1702
      %1704 = vrot.lane.b32.xlu0 %v1703, 126
      %v1705 = vpop.permute.xlu0 %1704
      %1707 = vst.msk [vmem:[#allocation5 + $0x8] sm:$0xc] %vm1301, %v1705
      %v1708 = vld [vmem:[%s797] sm:$0x3]
      %1709 = vst.msk [vmem:[#allocation5 + $0xc] sm:$0x3] %vm1286, %v1708
      %v1710 = vld [vmem:[%s797] sm:$0x3]
      %v1712 = vcombine.low %v1710, %v1710
      %v1714 = vunpack.c.l.s4 1983009808
      %v1715 = vunpack.c.0.s8 %v1714
      %v1716 = vlaneseq
      %v1717 = vshrl.u32 %v1716, 7
      %v1718 = vsub.s32 %v1715, %v1717
      %v1719 = vrot.slane %v1712, %v1718
      %1720 = vrot.lane.b32.xlu0 %v1719, 127
      %v1721 = vpop.permute.xlu0 %1720
      %1723 = vst.msk [vmem:[#allocation5 + $0xc] sm:$0xc] %vm1301, %v1721
      %v1724 = vld [vmem:[%s797] sm:$0x3]
      %v1727 = vunpack.c.l.s4 1983009808
      %v1728 = vunpack.c.0.s8 %v1727
      %v1729 = vlaneseq
      %v1730 = vshrl.u32 %v1729, 7
      %v1731 = vsub.s32 %v1728, %v1730
      %v1732 = vrot.slane %v1724, %v1731
      %1733 = vrot.lane.b32.xlu0 %v1732, 126
      %v1734 = vpop.permute.xlu0 %1733
      %1736 = vst.msk [vmem:[#allocation5 + $0x10] sm:$0x3] %vm1286, %v1734
      %v1737 = vld [vmem:[#allocation5] sm:$0xf]
      %v1738 = vld [vmem:[#allocation5 + $0x4] sm:$0xf]
      %v1739 = vld [vmem:[#allocation5 + $0x8] sm:$0xf]
      %v1740 = vld [vmem:[#allocation5 + $0xc] sm:$0xf]
      %v1741 = vld [vmem:[#allocation5 + $0x10] sm:$0x3]
      %v1747 = vunpack.c.l.b16 %v1737
      %v1748 = vunpack.c.l.b16 %v1738
      %v1749 = vunpack.c.l.b16 %v1739
      %v1750 = vunpack.c.l.b16 %v1740
      %v1751 = vunpack.c.l.b16 %v1741
      %v1752 = vpack.c.b16 %v1748, %v1747
      %v1753 = vpack.c.b16 %v1750, %v1749
      %v1754 = vpack.c.b16 %v1751, %v1751
      %v1758 = vsel %vm1413, %v1754, 0
      %1760 = vmatprep.subr.bf16.mxu0 0
      %1761 = vmatpush1.bf16.msra.mxu0 0
      %1762 = vmatprep.subr.bf16.mxu0 0
      %1763 = vmatpush1.bf16.msra.mxu0 0
      %1764 = vmatprep.subr.bf16.mxu0 0
      %1765 = vmatpush1.bf16.msra.mxu0 0
      %1766 = vmatprep.subr.bf16.mxu0 0
      %1767 = vmatpush1.bf16.msra.mxu0 0
      %1768 = vmatprep.subr.bf16.mxu0 0
      %1769 = vmatpush1.bf16.msra.mxu0 0
      %1770 = vmatprep.subr.bf16.mxu0 0
      %1771 = vmatpush1.bf16.msra.mxu0 %v1758
      %1772 = vmatprep.subr.bf16.mxu0 0
      %1773 = vmatpush1.bf16.msra.mxu0 %v1753
      %1774 = vmatprep.subr.bf16.mxu0 0
      %1775 = vmatpush1.bf16.msra.mxu0 %v1752
      %1776 = vmatprep.subr.bf16.mxu0 0
      %1777 = vmatpush2.bf16.msra.mxu0 0
      %1778 = vmatprep.subr.bf16.mxu0 0
      %1779 = vmatpush2.bf16.msra.mxu0 0
      %1780 = vmatprep.subr.bf16.mxu0 0
      %1781 = vmatpush2.bf16.msra.mxu0 0
      %1782 = vmatprep.subr.bf16.mxu0 0
      %1783 = vmatpush2.bf16.msra.mxu0 0
      %1784 = vmatprep.subr.bf16.mxu0 0
      %1785 = vmatpush2.bf16.msra.mxu0 0
      %1786 = vmatprep.subr.bf16.mxu0 0
      %1787 = vmatpush2.bf16.msra.mxu0 0
      %1788 = vmatprep.subr.bf16.mxu0 0
      %1789 = vmatpush2.bf16.msra.mxu0 0
      %1790 = vmatprep.subr.bf16.mxu0 0
      %1791 = vmatpush2.bf16.msra.mxu0 0
      %1792 = vmatprep.mubr.bf16.mxu0 0
      %1793 = vmatmul.mubr.bf16.gmra.mxu0 %v1411
      %v1794 = vpop.f32.mrf.mxu0
      %v1795 = vadd.f32 %v1392, %v1794
      %v1796 = vpop.f32.mrf.mxu0
      %v1797 = vpop.f32.mrf.mxu0
      %v1798 = vpop.f32.mrf.mxu0
      %1799 = vdwg.mxu0
      %v1800 = vmul.f32 %v1795, 0.1
      %v1801 = vmax.f32 %v1795, %v1800
      %v1802 = vpack.c.bf16 %v1801, %v1801
      %v1804 = vunpack.c.l.b16 %v1802
      %v1805 = vpack.c.b16 %v1804, %v1804
      %1806 = vrot.lane.b32.xlu0 %v1805, 1
      %v1807 = vpop.permute.xlu0 %1806
      %s1809 = scalar_lea.vmem [#allocation3], 12
      %1810 = vst.msk [vmem:[%s1809] sm:$0xf] %vm1467, %v1807
      %v1811 = vld [vmem:[%s676] sm:$0x3]
      %1812 = vst.msk [vmem:[#allocation5] sm:$0x3] %vm1286, %v1811
      %v1813 = vld [vmem:[%s676] sm:$0x3]
      %v1815 = vcombine.low %v1813, %v1813
      %v1817 = vunpack.c.l.s4 1983009808
      %v1818 = vunpack.c.0.s8 %v1817
      %v1819 = vlaneseq
      %v1820 = vshrl.u32 %v1819, 7
      %v1821 = vsub.s32 %v1818, %v1820
      %v1822 = vrot.slane %v1815, %v1821
      %1823 = vrot.lane.b32.xlu0 %v1822, 127
      %v1824 = vpop.permute.xlu0 %1823
      %1826 = vst.msk [vmem:[#allocation5] sm:$0xc] %vm1301, %v1824
      %v1827 = vld [vmem:[%s676] sm:$0x3]
      %v1830 = vunpack.c.l.s4 1983009808
      %v1831 = vunpack.c.0.s8 %v1830
      %v1832 = vlaneseq
      %v1833 = vshrl.u32 %v1832, 7
      %v1834 = vsub.s32 %v1831, %v1833
      %v1835 = vrot.slane %v1827, %v1834
      %1836 = vrot.lane.b32.xlu0 %v1835, 126
      %v1837 = vpop.permute.xlu0 %1836
      %1839 = vst.msk [vmem:[#allocation5 + $0x4] sm:$0x3] %vm1286, %v1837
      %v1840 = vld [vmem:[%s797] sm:$0x3]
      %v1842 = vcombine.low %v1840, %v1840
      %v1844 = vunpack.c.l.s4 1983009808
      %v1845 = vunpack.c.0.s8 %v1844
      %v1846 = vlaneseq
      %v1847 = vshrl.u32 %v1846, 7
      %v1848 = vsub.s32 %v1845, %v1847
      %v1849 = vrot.slane %v1842, %v1848
      %1851 = vst.msk [vmem:[#allocation5 + $0x4] sm:$0xc] %vm1301, %v1849
      %v1852 = vld [vmem:[%s797] sm:$0x3]
      %v1855 = vunpack.c.l.s4 1983009808
      %v1856 = vunpack.c.0.s8 %v1855
      %v1857 = vlaneseq
      %v1858 = vshrl.u32 %v1857, 7
      %v1859 = vsub.s32 %v1856, %v1858
      %v1860 = vrot.slane %v1852, %v1859
      %1861 = vrot.lane.b32.xlu0 %v1860, 127
      %v1862 = vpop.permute.xlu0 %1861
      %1864 = vst.msk [vmem:[#allocation5 + $0x8] sm:$0x3] %vm1286, %v1862
      %v1865 = vld [vmem:[%s797] sm:$0x3]
      %v1867 = vcombine.low %v1865, %v1865
      %v1869 = vunpack.c.l.s4 1983009808
      %v1870 = vunpack.c.0.s8 %v1869
      %v1871 = vlaneseq
      %v1872 = vshrl.u32 %v1871, 7
      %v1873 = vsub.s32 %v1870, %v1872
      %v1874 = vrot.slane %v1867, %v1873
      %1875 = vrot.lane.b32.xlu0 %v1874, 126
      %v1876 = vpop.permute.xlu0 %1875
      %1878 = vst.msk [vmem:[#allocation5 + $0x8] sm:$0xc] %vm1301, %v1876
      %v1879 = vld [vmem:[%s918] sm:$0x3]
      %1880 = vst.msk [vmem:[#allocation5 + $0xc] sm:$0x3] %vm1286, %v1879
      %v1881 = vld [vmem:[%s918] sm:$0x3]
      %v1883 = vcombine.low %v1881, %v1881
      %v1885 = vunpack.c.l.s4 1983009808
      %v1886 = vunpack.c.0.s8 %v1885
      %v1887 = vlaneseq
      %v1888 = vshrl.u32 %v1887, 7
      %v1889 = vsub.s32 %v1886, %v1888
      %v1890 = vrot.slane %v1883, %v1889
      %1891 = vrot.lane.b32.xlu0 %v1890, 127
      %v1892 = vpop.permute.xlu0 %1891
      %1894 = vst.msk [vmem:[#allocation5 + $0xc] sm:$0xc] %vm1301, %v1892
      %v1895 = vld [vmem:[%s918] sm:$0x3]
      %v1898 = vunpack.c.l.s4 1983009808
      %v1899 = vunpack.c.0.s8 %v1898
      %v1900 = vlaneseq
      %v1901 = vshrl.u32 %v1900, 7
      %v1902 = vsub.s32 %v1899, %v1901
      %v1903 = vrot.slane %v1895, %v1902
      %1904 = vrot.lane.b32.xlu0 %v1903, 126
      %v1905 = vpop.permute.xlu0 %1904
      %1907 = vst.msk [vmem:[#allocation5 + $0x10] sm:$0x3] %vm1286, %v1905
      %v1908 = vld [vmem:[#allocation5] sm:$0xf]
      %v1909 = vld [vmem:[#allocation5 + $0x4] sm:$0xf]
      %v1910 = vld [vmem:[#allocation5 + $0x8] sm:$0xf]
      %v1911 = vld [vmem:[#allocation5 + $0xc] sm:$0xf]
      %v1912 = vld [vmem:[#allocation5 + $0x10] sm:$0x3]
      %v1918 = vunpack.c.l.b16 %v1908
      %v1919 = vunpack.c.l.b16 %v1909
      %v1920 = vunpack.c.l.b16 %v1910
      %v1921 = vunpack.c.l.b16 %v1911
      %v1922 = vunpack.c.l.b16 %v1912
      %v1923 = vpack.c.b16 %v1919, %v1918
      %v1924 = vpack.c.b16 %v1921, %v1920
      %v1925 = vpack.c.b16 %v1922, %v1922
      %v1929 = vsel %vm1413, %v1925, 0
      %1931 = vmatprep.subr.bf16.mxu0 0
      %1932 = vmatpush1.bf16.msra.mxu0 0
      %1933 = vmatprep.subr.bf16.mxu0 0
      %1934 = vmatpush1.bf16.msra.mxu0 0
      %1935 = vmatprep.subr.bf16.mxu0 0
      %1936 = vmatpush1.bf16.msra.mxu0 0
      %1937 = vmatprep.subr.bf16.mxu0 0
      %1938 = vmatpush1.bf16.msra.mxu0 0
      %1939 = vmatprep.subr.bf16.mxu0 0
      %1940 = vmatpush1.bf16.msra.mxu0 0
      %1941 = vmatprep.subr.bf16.mxu0 0
      %1942 = vmatpush1.bf16.msra.mxu0 %v1929
      %1943 = vmatprep.subr.bf16.mxu0 0
      %1944 = vmatpush1.bf16.msra.mxu0 %v1924
      %1945 = vmatprep.subr.bf16.mxu0 0
      %1946 = vmatpush1.bf16.msra.mxu0 %v1923
      %1947 = vmatprep.subr.bf16.mxu0 0
      %1948 = vmatpush2.bf16.msra.mxu0 0
      %1949 = vmatprep.subr.bf16.mxu0 0
      %1950 = vmatpush2.bf16.msra.mxu0 0
      %1951 = vmatprep.subr.bf16.mxu0 0
      %1952 = vmatpush2.bf16.msra.mxu0 0
      %1953 = vmatprep.subr.bf16.mxu0 0
      %1954 = vmatpush2.bf16.msra.mxu0 0
      %1955 = vmatprep.subr.bf16.mxu0 0
      %1956 = vmatpush2.bf16.msra.mxu0 0
      %1957 = vmatprep.subr.bf16.mxu0 0
      %1958 = vmatpush2.bf16.msra.mxu0 0
      %1959 = vmatprep.subr.bf16.mxu0 0
      %1960 = vmatpush2.bf16.msra.mxu0 0
      %1961 = vmatprep.subr.bf16.mxu0 0
      %1962 = vmatpush2.bf16.msra.mxu0 0
      %1963 = vmatprep.mubr.bf16.mxu0 0
      %1964 = vmatmul.mubr.bf16.gmra.mxu0 %v1411
      %v1965 = vpop.f32.mrf.mxu0
      %v1966 = vadd.f32 %v1392, %v1965
      %v1967 = vpop.f32.mrf.mxu0
      %v1968 = vpop.f32.mrf.mxu0
      %v1969 = vpop.f32.mrf.mxu0
      %1970 = vdwg.mxu0
      %v1971 = vmul.f32 %v1966, 0.1
      %v1972 = vmax.f32 %v1966, %v1971
      %v1973 = vpack.c.bf16 %v1972, %v1972
      %v1975 = vunpack.c.l.b16 %v1973
      %v1976 = vpack.c.b16 %v1975, %v1975
      %1977 = vrot.lane.b32.xlu0 %v1976, 1
      %v1978 = vpop.permute.xlu0 %1977
      %s1980 = scalar_lea.vmem [#allocation3], 16
      %1981 = vst.msk [vmem:[%s1980] sm:$0xf] %vm1467, %v1978
      %v1982 = vld [vmem:[%s797] sm:$0x3]
      %1983 = vst.msk [vmem:[#allocation5] sm:$0x3] %vm1286, %v1982
      %v1984 = vld [vmem:[%s797] sm:$0x3]
      %v1986 = vcombine.low %v1984, %v1984
      %v1988 = vunpack.c.l.s4 1983009808
      %v1989 = vunpack.c.0.s8 %v1988
      %v1990 = vlaneseq
      %v1991 = vshrl.u32 %v1990, 7
      %v1992 = vsub.s32 %v1989, %v1991
      %v1993 = vrot.slane %v1986, %v1992
      %1994 = vrot.lane.b32.xlu0 %v1993, 127
      %v1995 = vpop.permute.xlu0 %1994
      %1997 = vst.msk [vmem:[#allocation5] sm:$0xc] %vm1301, %v1995
      %v1998 = vld [vmem:[%s797] sm:$0x3]
      %v2001 = vunpack.c.l.s4 1983009808
      %v2002 = vunpack.c.0.s8 %v2001
      %v2003 = vlaneseq
      %v2004 = vshrl.u32 %v2003, 7
      %v2005 = vsub.s32 %v2002, %v2004
      %v2006 = vrot.slane %v1998, %v2005
      %2007 = vrot.lane.b32.xlu0 %v2006, 126
      %v2008 = vpop.permute.xlu0 %2007
      %2010 = vst.msk [vmem:[#allocation5 + $0x4] sm:$0x3] %vm1286, %v2008
      %v2011 = vld [vmem:[%s918] sm:$0x3]
      %v2013 = vcombine.low %v2011, %v2011
      %v2015 = vunpack.c.l.s4 1983009808
      %v2016 = vunpack.c.0.s8 %v2015
      %v2017 = vlaneseq
      %v2018 = vshrl.u32 %v2017, 7
      %v2019 = vsub.s32 %v2016, %v2018
      %v2020 = vrot.slane %v2013, %v2019
      %2022 = vst.msk [vmem:[#allocation5 + $0x4] sm:$0xc] %vm1301, %v2020
      %v2023 = vld [vmem:[%s918] sm:$0x3]
      %v2026 = vunpack.c.l.s4 1983009808
      %v2027 = vunpack.c.0.s8 %v2026
      %v2028 = vlaneseq
      %v2029 = vshrl.u32 %v2028, 7
      %v2030 = vsub.s32 %v2027, %v2029
      %v2031 = vrot.slane %v2023, %v2030
      %2032 = vrot.lane.b32.xlu0 %v2031, 127
      %v2033 = vpop.permute.xlu0 %2032
      %2035 = vst.msk [vmem:[#allocation5 + $0x8] sm:$0x3] %vm1286, %v2033
      %v2036 = vld [vmem:[%s918] sm:$0x3]
      %v2038 = vcombine.low %v2036, %v2036
      %v2040 = vunpack.c.l.s4 1983009808
      %v2041 = vunpack.c.0.s8 %v2040
      %v2042 = vlaneseq
      %v2043 = vshrl.u32 %v2042, 7
      %v2044 = vsub.s32 %v2041, %v2043
      %v2045 = vrot.slane %v2038, %v2044
      %2046 = vrot.lane.b32.xlu0 %v2045, 126
      %v2047 = vpop.permute.xlu0 %2046
      %2049 = vst.msk [vmem:[#allocation5 + $0x8] sm:$0xc] %vm1301, %v2047
      %v2050 = vld [vmem:[%s1039] sm:$0x3]
      %2051 = vst.msk [vmem:[#allocation5 + $0xc] sm:$0x3] %vm1286, %v2050
      %v2052 = vld [vmem:[%s1039] sm:$0x3]
      %v2054 = vcombine.low %v2052, %v2052
      %v2056 = vunpack.c.l.s4 1983009808
      %v2057 = vunpack.c.0.s8 %v2056
      %v2058 = vlaneseq
      %v2059 = vshrl.u32 %v2058, 7
      %v2060 = vsub.s32 %v2057, %v2059
      %v2061 = vrot.slane %v2054, %v2060
      %2062 = vrot.lane.b32.xlu0 %v2061, 127
      %v2063 = vpop.permute.xlu0 %2062
      %2065 = vst.msk [vmem:[#allocation5 + $0xc] sm:$0xc] %vm1301, %v2063
      %v2066 = vld [vmem:[%s1039] sm:$0x3]
      %v2069 = vunpack.c.l.s4 1983009808
      %v2070 = vunpack.c.0.s8 %v2069
      %v2071 = vlaneseq
      %v2072 = vshrl.u32 %v2071, 7
      %v2073 = vsub.s32 %v2070, %v2072
      %v2074 = vrot.slane %v2066, %v2073
      %2075 = vrot.lane.b32.xlu0 %v2074, 126
      %v2076 = vpop.permute.xlu0 %2075
      %2078 = vst.msk [vmem:[#allocation5 + $0x10] sm:$0x3] %vm1286, %v2076
      %v2079 = vld [vmem:[#allocation5] sm:$0xf]
      %v2080 = vld [vmem:[#allocation5 + $0x4] sm:$0xf]
      %v2081 = vld [vmem:[#allocation5 + $0x8] sm:$0xf]
      %v2082 = vld [vmem:[#allocation5 + $0xc] sm:$0xf]
      %v2083 = vld [vmem:[#allocation5 + $0x10] sm:$0x3]
      %v2089 = vunpack.c.l.b16 %v2079
      %v2090 = vunpack.c.l.b16 %v2080
      %v2091 = vunpack.c.l.b16 %v2081
      %v2092 = vunpack.c.l.b16 %v2082
      %v2093 = vunpack.c.l.b16 %v2083
      %v2094 = vpack.c.b16 %v2090, %v2089
      %v2095 = vpack.c.b16 %v2092, %v2091
      %v2096 = vpack.c.b16 %v2093, %v2093
      %v2100 = vsel %vm1413, %v2096, 0
      %2102 = vmatprep.subr.bf16.mxu0 0
      %2103 = vmatpush1.bf16.msra.mxu0 0
      %2104 = vmatprep.subr.bf16.mxu0 0
      %2105 = vmatpush1.bf16.msra.mxu0 0
      %2106 = vmatprep.subr.bf16.mxu0 0
      %2107 = vmatpush1.bf16.msra.mxu0 0
      %2108 = vmatprep.subr.bf16.mxu0 0
      %2109 = vmatpush1.bf16.msra.mxu0 0
      %2110 = vmatprep.subr.bf16.mxu0 0
      %2111 = vmatpush1.bf16.msra.mxu0 0
      %2112 = vmatprep.subr.bf16.mxu0 0
      %2113 = vmatpush1.bf16.msra.mxu0 %v2100
      %2114 = vmatprep.subr.bf16.mxu0 0
      %2115 = vmatpush1.bf16.msra.mxu0 %v2095
      %2116 = vmatprep.subr.bf16.mxu0 0
      %2117 = vmatpush1.bf16.msra.mxu0 %v2094
      %2118 = vmatprep.subr.bf16.mxu0 0
      %2119 = vmatpush2.bf16.msra.mxu0 0
      %2120 = vmatprep.subr.bf16.mxu0 0
      %2121 = vmatpush2.bf16.msra.mxu0 0
      %2122 = vmatprep.subr.bf16.mxu0 0
      %2123 = vmatpush2.bf16.msra.mxu0 0
      %2124 = vmatprep.subr.bf16.mxu0 0
      %2125 = vmatpush2.bf16.msra.mxu0 0
      %2126 = vmatprep.subr.bf16.mxu0 0
      %2127 = vmatpush2.bf16.msra.mxu0 0
      %2128 = vmatprep.subr.bf16.mxu0 0
      %2129 = vmatpush2.bf16.msra.mxu0 0
      %2130 = vmatprep.subr.bf16.mxu0 0
      %2131 = vmatpush2.bf16.msra.mxu0 0
      %2132 = vmatprep.subr.bf16.mxu0 0
      %2133 = vmatpush2.bf16.msra.mxu0 0
      %2134 = vmatprep.mubr.bf16.mxu0 0
      %2135 = vmatmul.mubr.bf16.gmra.mxu0 %v1411
      %v2136 = vpop.f32.mrf.mxu0
      %v2137 = vadd.f32 %v1392, %v2136
      %v2138 = vpop.f32.mrf.mxu0
      %v2139 = vpop.f32.mrf.mxu0
      %v2140 = vpop.f32.mrf.mxu0
      %2141 = vdwg.mxu0
      %v2142 = vmul.f32 %v2137, 0.1
      %v2143 = vmax.f32 %v2137, %v2142
      %v2144 = vpack.c.bf16 %v2143, %v2143
      %v2146 = vunpack.c.l.b16 %v2144
      %v2147 = vpack.c.b16 %v2146, %v2146
      %2148 = vrot.lane.b32.xlu0 %v2147, 1
      %v2149 = vpop.permute.xlu0 %2148
      %s2151 = scalar_lea.vmem [#allocation3], 20
      %2152 = vst.msk [vmem:[%s2151] sm:$0xf] %vm1467, %v2149
      %v2153 = vld [vmem:[%s918] sm:$0x3]
      %2154 = vst.msk [vmem:[#allocation5] sm:$0x3] %vm1286, %v2153
      %v2155 = vld [vmem:[%s918] sm:$0x3]
      %v2157 = vcombine.low %v2155, %v2155
      %v2159 = vunpack.c.l.s4 1983009808
      %v2160 = vunpack.c.0.s8 %v2159
      %v2161 = vlaneseq
      %v2162 = vshrl.u32 %v2161, 7
      %v2163 = vsub.s32 %v2160, %v2162
      %v2164 = vrot.slane %v2157, %v2163
      %2165 = vrot.lane.b32.xlu0 %v2164, 127
      %v2166 = vpop.permute.xlu0 %2165
      %2168 = vst.msk [vmem:[#allocation5] sm:$0xc] %vm1301, %v2166
      %v2169 = vld [vmem:[%s918] sm:$0x3]
      %v2172 = vunpack.c.l.s4 1983009808
      %v2173 = vunpack.c.0.s8 %v2172
      %v2174 = vlaneseq
      %v2175 = vshrl.u32 %v2174, 7
      %v2176 = vsub.s32 %v2173, %v2175
      %v2177 = vrot.slane %v2169, %v2176
      %2178 = vrot.lane.b32.xlu0 %v2177, 126
      %v2179 = vpop.permute.xlu0 %2178
      %2181 = vst.msk [vmem:[#allocation5 + $0x4] sm:$0x3] %vm1286, %v2179
      %v2182 = vld [vmem:[%s1039] sm:$0x3]
      %v2184 = vcombine.low %v2182, %v2182
      %v2186 = vunpack.c.l.s4 1983009808
      %v2187 = vunpack.c.0.s8 %v2186
      %v2188 = vlaneseq
      %v2189 = vshrl.u32 %v2188, 7
      %v2190 = vsub.s32 %v2187, %v2189
      %v2191 = vrot.slane %v2184, %v2190
      %2193 = vst.msk [vmem:[#allocation5 + $0x4] sm:$0xc] %vm1301, %v2191
      %v2194 = vld [vmem:[%s1039] sm:$0x3]
      %v2197 = vunpack.c.l.s4 1983009808
      %v2198 = vunpack.c.0.s8 %v2197
      %v2199 = vlaneseq
      %v2200 = vshrl.u32 %v2199, 7
      %v2201 = vsub.s32 %v2198, %v2200
      %v2202 = vrot.slane %v2194, %v2201
      %2203 = vrot.lane.b32.xlu0 %v2202, 127
      %v2204 = vpop.permute.xlu0 %2203
      %2206 = vst.msk [vmem:[#allocation5 + $0x8] sm:$0x3] %vm1286, %v2204
      %v2207 = vld [vmem:[%s1039] sm:$0x3]
      %v2209 = vcombine.low %v2207, %v2207
      %v2211 = vunpack.c.l.s4 1983009808
      %v2212 = vunpack.c.0.s8 %v2211
      %v2213 = vlaneseq
      %v2214 = vshrl.u32 %v2213, 7
      %v2215 = vsub.s32 %v2212, %v2214
      %v2216 = vrot.slane %v2209, %v2215
      %2217 = vrot.lane.b32.xlu0 %v2216, 126
      %v2218 = vpop.permute.xlu0 %2217
      %2220 = vst.msk [vmem:[#allocation5 + $0x8] sm:$0xc] %vm1301, %v2218
      %v2221 = vld [vmem:[%s1160] sm:$0x3]
      %2222 = vst.msk [vmem:[#allocation5 + $0xc] sm:$0x3] %vm1286, %v2221
      %v2223 = vld [vmem:[%s1160] sm:$0x3]
      %v2225 = vcombine.low %v2223, %v2223
      %v2227 = vunpack.c.l.s4 1983009808
      %v2228 = vunpack.c.0.s8 %v2227
      %v2229 = vlaneseq
      %v2230 = vshrl.u32 %v2229, 7
      %v2231 = vsub.s32 %v2228, %v2230
      %v2232 = vrot.slane %v2225, %v2231
      %2233 = vrot.lane.b32.xlu0 %v2232, 127
      %v2234 = vpop.permute.xlu0 %2233
      %2236 = vst.msk [vmem:[#allocation5 + $0xc] sm:$0xc] %vm1301, %v2234
      %v2237 = vld [vmem:[%s1160] sm:$0x3]
      %v2240 = vunpack.c.l.s4 1983009808
      %v2241 = vunpack.c.0.s8 %v2240
      %v2242 = vlaneseq
      %v2243 = vshrl.u32 %v2242, 7
      %v2244 = vsub.s32 %v2241, %v2243
      %v2245 = vrot.slane %v2237, %v2244
      %2246 = vrot.lane.b32.xlu0 %v2245, 126
      %v2247 = vpop.permute.xlu0 %2246
      %2249 = vst.msk [vmem:[#allocation5 + $0x10] sm:$0x3] %vm1286, %v2247
      %v2250 = vld [vmem:[#allocation5] sm:$0xf]
      %v2251 = vld [vmem:[#allocation5 + $0x4] sm:$0xf]
      %v2252 = vld [vmem:[#allocation5 + $0x8] sm:$0xf]
      %v2253 = vld [vmem:[#allocation5 + $0xc] sm:$0xf]
      %v2254 = vld [vmem:[#allocation5 + $0x10] sm:$0x3]
      %v2260 = vunpack.c.l.b16 %v2250
      %v2261 = vunpack.c.l.b16 %v2251
      %v2262 = vunpack.c.l.b16 %v2252
      %v2263 = vunpack.c.l.b16 %v2253
      %v2264 = vunpack.c.l.b16 %v2254
      %v2265 = vpack.c.b16 %v2261, %v2260
      %v2266 = vpack.c.b16 %v2263, %v2262
      %v2267 = vpack.c.b16 %v2264, %v2264
      %v2271 = vsel %vm1413, %v2267, 0
      %2273 = vmatprep.subr.bf16.mxu0 0
      %2274 = vmatpush1.bf16.msra.mxu0 0
      %2275 = vmatprep.subr.bf16.mxu0 0
      %2276 = vmatpush1.bf16.msra.mxu0 0
      %2277 = vmatprep.subr.bf16.mxu0 0
      %2278 = vmatpush1.bf16.msra.mxu0 0
      %2279 = vmatprep.subr.bf16.mxu0 0
      %2280 = vmatpush1.bf16.msra.mxu0 0
      %2281 = vmatprep.subr.bf16.mxu0 0
      %2282 = vmatpush1.bf16.msra.mxu0 0
      %2283 = vmatprep.subr.bf16.mxu0 0
      %2284 = vmatpush1.bf16.msra.mxu0 %v2271
      %2285 = vmatprep.subr.bf16.mxu0 0
      %2286 = vmatpush1.bf16.msra.mxu0 %v2266
      %2287 = vmatprep.subr.bf16.mxu0 0
      %2288 = vmatpush1.bf16.msra.mxu0 %v2265
      %2289 = vmatprep.subr.bf16.mxu0 0
      %2290 = vmatpush2.bf16.msra.mxu0 0
      %2291 = vmatprep.subr.bf16.mxu0 0
      %2292 = vmatpush2.bf16.msra.mxu0 0
      %2293 = vmatprep.subr.bf16.mxu0 0
      %2294 = vmatpush2.bf16.msra.mxu0 0
      %2295 = vmatprep.subr.bf16.mxu0 0
      %2296 = vmatpush2.bf16.msra.mxu0 0
      %2297 = vmatprep.subr.bf16.mxu0 0
      %2298 = vmatpush2.bf16.msra.mxu0 0
      %2299 = vmatprep.subr.bf16.mxu0 0
      %2300 = vmatpush2.bf16.msra.mxu0 0
      %2301 = vmatprep.subr.bf16.mxu0 0
      %2302 = vmatpush2.bf16.msra.mxu0 0
      %2303 = vmatprep.subr.bf16.mxu0 0
      %2304 = vmatpush2.bf16.msra.mxu0 0
      %2305 = vmatprep.mubr.bf16.mxu0 0
      %2306 = vmatmul.mubr.bf16.gmra.mxu0 %v1411
      %v2307 = vpop.f32.mrf.mxu0
      %v2308 = vadd.f32 %v1392, %v2307
      %v2309 = vpop.f32.mrf.mxu0
      %v2310 = vpop.f32.mrf.mxu0
      %v2311 = vpop.f32.mrf.mxu0
      %2312 = vdwg.mxu0
      %v2313 = vmul.f32 %v2308, 0.1
      %v2314 = vmax.f32 %v2308, %v2313
      %v2315 = vpack.c.bf16 %v2314, %v2314
      %v2317 = vunpack.c.l.b16 %v2315
      %v2318 = vpack.c.b16 %v2317, %v2317
      %2319 = vrot.lane.b32.xlu0 %v2318, 1
      %v2320 = vpop.permute.xlu0 %2319
      %s2322 = scalar_lea.vmem [#allocation3], 24
      %2323 = vst.msk [vmem:[%s2322] sm:$0xf] %vm1467, %v2320
      %v2324 = vld [vmem:[%s1039] sm:$0x3]
      %2325 = vst.msk [vmem:[#allocation5] sm:$0x3] %vm1286, %v2324
      %v2326 = vld [vmem:[%s1039] sm:$0x3]
      %v2328 = vcombine.low %v2326, %v2326
      %v2330 = vunpack.c.l.s4 1983009808
      %v2331 = vunpack.c.0.s8 %v2330
      %v2332 = vlaneseq
      %v2333 = vshrl.u32 %v2332, 7
      %v2334 = vsub.s32 %v2331, %v2333
      %v2335 = vrot.slane %v2328, %v2334
      %2336 = vrot.lane.b32.xlu0 %v2335, 127
      %v2337 = vpop.permute.xlu0 %2336
      %2339 = vst.msk [vmem:[#allocation5] sm:$0xc] %vm1301, %v2337
      %v2340 = vld [vmem:[%s1039] sm:$0x3]
      %v2343 = vunpack.c.l.s4 1983009808
      %v2344 = vunpack.c.0.s8 %v2343
      %v2345 = vlaneseq
      %v2346 = vshrl.u32 %v2345, 7
      %v2347 = vsub.s32 %v2344, %v2346
      %v2348 = vrot.slane %v2340, %v2347
      %2349 = vrot.lane.b32.xlu0 %v2348, 126
      %v2350 = vpop.permute.xlu0 %2349
      %2352 = vst.msk [vmem:[#allocation5 + $0x4] sm:$0x3] %vm1286, %v2350
      %v2353 = vld [vmem:[%s1160] sm:$0x3]
      %v2355 = vcombine.low %v2353, %v2353
      %v2357 = vunpack.c.l.s4 1983009808
      %v2358 = vunpack.c.0.s8 %v2357
      %v2359 = vlaneseq
      %v2360 = vshrl.u32 %v2359, 7
      %v2361 = vsub.s32 %v2358, %v2360
      %v2362 = vrot.slane %v2355, %v2361
      %2364 = vst.msk [vmem:[#allocation5 + $0x4] sm:$0xc] %vm1301, %v2362
      %v2365 = vld [vmem:[%s1160] sm:$0x3]
      %v2368 = vunpack.c.l.s4 1983009808
      %v2369 = vunpack.c.0.s8 %v2368
      %v2370 = vlaneseq
      %v2371 = vshrl.u32 %v2370, 7
      %v2372 = vsub.s32 %v2369, %v2371
      %v2373 = vrot.slane %v2365, %v2372
      %2374 = vrot.lane.b32.xlu0 %v2373, 127
      %v2375 = vpop.permute.xlu0 %2374
      %2377 = vst.msk [vmem:[#allocation5 + $0x8] sm:$0x3] %vm1286, %v2375
      %v2378 = vld [vmem:[%s1160] sm:$0x3]
      %v2380 = vcombine.low %v2378, %v2378
      %v2382 = vunpack.c.l.s4 1983009808
      %v2383 = vunpack.c.0.s8 %v2382
      %v2384 = vlaneseq
      %v2385 = vshrl.u32 %v2384, 7
      %v2386 = vsub.s32 %v2383, %v2385
      %v2387 = vrot.slane %v2380, %v2386
      %2388 = vrot.lane.b32.xlu0 %v2387, 126
      %v2389 = vpop.permute.xlu0 %2388
      %2391 = vst.msk [vmem:[#allocation5 + $0x8] sm:$0xc] %vm1301, %v2389
      %v2392 = vld [vmem:[%s1281] sm:$0x3]
      %2393 = vst.msk [vmem:[#allocation5 + $0xc] sm:$0x3] %vm1286, %v2392
      %v2394 = vld [vmem:[%s1281] sm:$0x3]
      %v2396 = vcombine.low %v2394, %v2394
      %v2398 = vunpack.c.l.s4 1983009808
      %v2399 = vunpack.c.0.s8 %v2398
      %v2400 = vlaneseq
      %v2401 = vshrl.u32 %v2400, 7
      %v2402 = vsub.s32 %v2399, %v2401
      %v2403 = vrot.slane %v2396, %v2402
      %2404 = vrot.lane.b32.xlu0 %v2403, 127
      %v2405 = vpop.permute.xlu0 %2404
      %2407 = vst.msk [vmem:[#allocation5 + $0xc] sm:$0xc] %vm1301, %v2405
      %v2408 = vld [vmem:[%s1281] sm:$0x3]
      %v2411 = vunpack.c.l.s4 1983009808
      %v2412 = vunpack.c.0.s8 %v2411
      %v2413 = vlaneseq
      %v2414 = vshrl.u32 %v2413, 7
      %v2415 = vsub.s32 %v2412, %v2414
      %v2416 = vrot.slane %v2408, %v2415
      %2417 = vrot.lane.b32.xlu0 %v2416, 126
      %v2418 = vpop.permute.xlu0 %2417
      %2420 = vst.msk [vmem:[#allocation5 + $0x10] sm:$0x3] %vm1286, %v2418
      %v2421 = vld [vmem:[#allocation5] sm:$0xf]
      %v2422 = vld [vmem:[#allocation5 + $0x4] sm:$0xf]
      %v2423 = vld [vmem:[#allocation5 + $0x8] sm:$0xf]
      %v2424 = vld [vmem:[#allocation5 + $0xc] sm:$0xf]
      %v2425 = vld [vmem:[#allocation5 + $0x10] sm:$0x3]
      %v2431 = vunpack.c.l.b16 %v2421
      %v2432 = vunpack.c.l.b16 %v2422
      %v2433 = vunpack.c.l.b16 %v2423
      %v2434 = vunpack.c.l.b16 %v2424
      %v2435 = vunpack.c.l.b16 %v2425
      %v2436 = vpack.c.b16 %v2432, %v2431
      %v2437 = vpack.c.b16 %v2434, %v2433
      %v2438 = vpack.c.b16 %v2435, %v2435
      %v2442 = vsel %vm1413, %v2438, 0
      %2444 = vmatprep.subr.bf16.mxu0 0
      %2445 = vmatpush1.bf16.msra.mxu0 0
      %2446 = vmatprep.subr.bf16.mxu0 0
      %2447 = vmatpush1.bf16.msra.mxu0 0
      %2448 = vmatprep.subr.bf16.mxu0 0
      %2449 = vmatpush1.bf16.msra.mxu0 0
      %2450 = vmatprep.subr.bf16.mxu0 0
      %2451 = vmatpush1.bf16.msra.mxu0 0
      %2452 = vmatprep.subr.bf16.mxu0 0
      %2453 = vmatpush1.bf16.msra.mxu0 0
      %2454 = vmatprep.subr.bf16.mxu0 0
      %2455 = vmatpush1.bf16.msra.mxu0 %v2442
      %2456 = vmatprep.subr.bf16.mxu0 0
      %2457 = vmatpush1.bf16.msra.mxu0 %v2437
      %2458 = vmatprep.subr.bf16.mxu0 0
      %2459 = vmatpush1.bf16.msra.mxu0 %v2436
      %2460 = vmatprep.subr.bf16.mxu0 0
      %2461 = vmatpush2.bf16.msra.mxu0 0
      %2462 = vmatprep.subr.bf16.mxu0 0
      %2463 = vmatpush2.bf16.msra.mxu0 0
      %2464 = vmatprep.subr.bf16.mxu0 0
      %2465 = vmatpush2.bf16.msra.mxu0 0
      %2466 = vmatprep.subr.bf16.mxu0 0
      %2467 = vmatpush2.bf16.msra.mxu0 0
      %2468 = vmatprep.subr.bf16.mxu0 0
      %2469 = vmatpush2.bf16.msra.mxu0 0
      %2470 = vmatprep.subr.bf16.mxu0 0
      %2471 = vmatpush2.bf16.msra.mxu0 0
      %2472 = vmatprep.subr.bf16.mxu0 0
      %2473 = vmatpush2.bf16.msra.mxu0 0
      %2474 = vmatprep.subr.bf16.mxu0 0
      %2475 = vmatpush2.bf16.msra.mxu0 0
      %2476 = vmatprep.mubr.bf16.mxu0 0
      %2477 = vmatmul.mubr.bf16.gmra.mxu0 %v1411
      %v2478 = vpop.f32.mrf.mxu0
      %v2479 = vadd.f32 %v1392, %v2478
      %v2480 = vpop.f32.mrf.mxu0
      %v2481 = vpop.f32.mrf.mxu0
      %v2482 = vpop.f32.mrf.mxu0
      %2483 = vdwg.mxu0
      %v2484 = vmul.f32 %v2479, 0.1
      %v2485 = vmax.f32 %v2479, %v2484
      %v2486 = vpack.c.bf16 %v2485, %v2485
      %v2488 = vunpack.c.l.b16 %v2486
      %v2489 = vpack.c.b16 %v2488, %v2488
      %2490 = vrot.lane.b32.xlu0 %v2489, 1
      %v2491 = vpop.permute.xlu0 %2490
      %s2493 = scalar_lea.vmem [#allocation3], 28
      %2494 = vst.msk [vmem:[%s2493] sm:$0xf] %vm1467, %v2491
      %v2495 = vld [vmem:[%s1160] sm:$0x3]
      %2496 = vst.msk [vmem:[#allocation5] sm:$0x3] %vm1286, %v2495
      %v2497 = vld [vmem:[%s1160] sm:$0x3]
      %v2499 = vcombine.low %v2497, %v2497
      %v2501 = vunpack.c.l.s4 1983009808
      %v2502 = vunpack.c.0.s8 %v2501
      %v2503 = vlaneseq
      %v2504 = vshrl.u32 %v2503, 7
      %v2505 = vsub.s32 %v2502, %v2504
      %v2506 = vrot.slane %v2499, %v2505
      %2507 = vrot.lane.b32.xlu0 %v2506, 127
      %v2508 = vpop.permute.xlu0 %2507
      %2510 = vst.msk [vmem:[#allocation5] sm:$0xc] %vm1301, %v2508
      %v2511 = vld [vmem:[%s1160] sm:$0x3]
      %v2514 = vunpack.c.l.s4 1983009808
      %v2515 = vunpack.c.0.s8 %v2514
      %v2516 = vlaneseq
      %v2517 = vshrl.u32 %v2516, 7
      %v2518 = vsub.s32 %v2515, %v2517
      %v2519 = vrot.slane %v2511, %v2518
      %2520 = vrot.lane.b32.xlu0 %v2519, 126
      %v2521 = vpop.permute.xlu0 %2520
      %2523 = vst.msk [vmem:[#allocation5 + $0x4] sm:$0x3] %vm1286, %v2521
      %v2524 = vld [vmem:[%s1281] sm:$0x3]
      %v2526 = vcombine.low %v2524, %v2524
      %v2528 = vunpack.c.l.s4 1983009808
      %v2529 = vunpack.c.0.s8 %v2528
      %v2530 = vlaneseq
      %v2531 = vshrl.u32 %v2530, 7
      %v2532 = vsub.s32 %v2529, %v2531
      %v2533 = vrot.slane %v2526, %v2532
      %2535 = vst.msk [vmem:[#allocation5 + $0x4] sm:$0xc] %vm1301, %v2533
      %v2536 = vld [vmem:[%s1281] sm:$0x3]
      %v2539 = vunpack.c.l.s4 1983009808
      %v2540 = vunpack.c.0.s8 %v2539
      %v2541 = vlaneseq
      %v2542 = vshrl.u32 %v2541, 7
      %v2543 = vsub.s32 %v2540, %v2542
      %v2544 = vrot.slane %v2536, %v2543
      %2545 = vrot.lane.b32.xlu0 %v2544, 127
      %v2546 = vpop.permute.xlu0 %2545
      %2548 = vst.msk [vmem:[#allocation5 + $0x8] sm:$0x3] %vm1286, %v2546
      %v2549 = vld [vmem:[%s1281] sm:$0x3]
      %v2551 = vcombine.low %v2549, %v2549
      %v2553 = vunpack.c.l.s4 1983009808
      %v2554 = vunpack.c.0.s8 %v2553
      %v2555 = vlaneseq
      %v2556 = vshrl.u32 %v2555, 7
      %v2557 = vsub.s32 %v2554, %v2556
      %v2558 = vrot.slane %v2551, %v2557
      %2559 = vrot.lane.b32.xlu0 %v2558, 126
      %v2560 = vpop.permute.xlu0 %2559
      %2562 = vst.msk [vmem:[#allocation5 + $0x8] sm:$0xc] %vm1301, %v2560
      %s2563 = scalar_lea.vmem [#allocation2], 18
      %v2564 = vld [vmem:[%s2563] sm:$0x3]
      %2565 = vst.msk [vmem:[#allocation5 + $0xc] sm:$0x3] %vm1286, %v2564
      %v2566 = vld [vmem:[%s2563] sm:$0x3]
      %v2568 = vcombine.low %v2566, %v2566
      %v2570 = vunpack.c.l.s4 1983009808
      %v2571 = vunpack.c.0.s8 %v2570
      %v2572 = vlaneseq
      %v2573 = vshrl.u32 %v2572, 7
      %v2574 = vsub.s32 %v2571, %v2573
      %v2575 = vrot.slane %v2568, %v2574
      %2576 = vrot.lane.b32.xlu0 %v2575, 127
      %v2577 = vpop.permute.xlu0 %2576
      %2579 = vst.msk [vmem:[#allocation5 + $0xc] sm:$0xc] %vm1301, %v2577
      %v2580 = vld [vmem:[%s2563] sm:$0x3]
      %v2583 = vunpack.c.l.s4 1983009808
      %v2584 = vunpack.c.0.s8 %v2583
      %v2585 = vlaneseq
      %v2586 = vshrl.u32 %v2585, 7
      %v2587 = vsub.s32 %v2584, %v2586
      %v2588 = vrot.slane %v2580, %v2587
      %2589 = vrot.lane.b32.xlu0 %v2588, 126
      %v2590 = vpop.permute.xlu0 %2589
      %2592 = vst.msk [vmem:[#allocation5 + $0x10] sm:$0x3] %vm1286, %v2590
      %v2593 = vld [vmem:[#allocation5] sm:$0xf]
      %v2594 = vld [vmem:[#allocation5 + $0x4] sm:$0xf]
      %v2595 = vld [vmem:[#allocation5 + $0x8] sm:$0xf]
      %v2596 = vld [vmem:[#allocation5 + $0xc] sm:$0xf]
      %v2597 = vld [vmem:[#allocation5 + $0x10] sm:$0x3]
      %v2603 = vunpack.c.l.b16 %v2593
      %v2604 = vunpack.c.l.b16 %v2594
      %v2605 = vunpack.c.l.b16 %v2595
      %v2606 = vunpack.c.l.b16 %v2596
      %v2607 = vunpack.c.l.b16 %v2597
      %v2608 = vpack.c.b16 %v2604, %v2603
      %v2609 = vpack.c.b16 %v2606, %v2605
      %v2610 = vpack.c.b16 %v2607, %v2607
      %v2614 = vsel %vm1413, %v2610, 0
      %2616 = vmatprep.subr.bf16.mxu0 0
      %2617 = vmatpush1.bf16.msra.mxu0 0
      %2618 = vmatprep.subr.bf16.mxu0 0
      %2619 = vmatpush1.bf16.msra.mxu0 0
      %2620 = vmatprep.subr.bf16.mxu0 0
      %2621 = vmatpush1.bf16.msra.mxu0 0
      %2622 = vmatprep.subr.bf16.mxu0 0
      %2623 = vmatpush1.bf16.msra.mxu0 0
      %2624 = vmatprep.subr.bf16.mxu0 0
      %2625 = vmatpush1.bf16.msra.mxu0 0
      %2626 = vmatprep.subr.bf16.mxu0 0
      %2627 = vmatpush1.bf16.msra.mxu0 %v2614
      %2628 = vmatprep.subr.bf16.mxu0 0
      %2629 = vmatpush1.bf16.msra.mxu0 %v2609
      %2630 = vmatprep.subr.bf16.mxu0 0
      %2631 = vmatpush1.bf16.msra.mxu0 %v2608
      %2632 = vmatprep.subr.bf16.mxu0 0
      %2633 = vmatpush2.bf16.msra.mxu0 0
      %2634 = vmatprep.subr.bf16.mxu0 0
      %2635 = vmatpush2.bf16.msra.mxu0 0
      %2636 = vmatprep.subr.bf16.mxu0 0
      %2637 = vmatpush2.bf16.msra.mxu0 0
      %2638 = vmatprep.subr.bf16.mxu0 0
      %2639 = vmatpush2.bf16.msra.mxu0 0
      %2640 = vmatprep.subr.bf16.mxu0 0
      %2641 = vmatpush2.bf16.msra.mxu0 0
      %2642 = vmatprep.subr.bf16.mxu0 0
      %2643 = vmatpush2.bf16.msra.mxu0 0
      %2644 = vmatprep.subr.bf16.mxu0 0
      %2645 = vmatpush2.bf16.msra.mxu0 0
      %2646 = vmatprep.subr.bf16.mxu0 0
      %2647 = vmatpush2.bf16.msra.mxu0 0
      %2648 = vmatprep.mubr.bf16.mxu0 0
      %2649 = vmatmul.mubr.bf16.gmra.mxu0 %v1411
      %v2650 = vpop.f32.mrf.mxu0
      %v2651 = vadd.f32 %v1392, %v2650
      %v2652 = vpop.f32.mrf.mxu0
      %v2653 = vpop.f32.mrf.mxu0
      %v2654 = vpop.f32.mrf.mxu0
      %2655 = vdwg.mxu0
      %v2656 = vmul.f32 %v2651, 0.1
      %v2657 = vmax.f32 %v2651, %v2656
      %v2658 = vpack.c.bf16 %v2657, %v2657
      %v2660 = vunpack.c.l.b16 %v2658
      %v2661 = vpack.c.b16 %v2660, %v2660
      %2662 = vrot.lane.b32.xlu0 %v2661, 1
      %v2663 = vpop.permute.xlu0 %2662
      %s2665 = scalar_lea.vmem [#allocation3], 32
      %2666 = vst.msk [vmem:[%s2665] sm:$0xf] %vm1467, %v2663
      %v2667 = vld [vmem:[%s5] sm:$0xf]
      %v2668 = vld [vmem:[%s6] sm:$0xff]
      %v2669 = vld [vmem:[#allocation3] sm:$0xf]
      %2670 = vst.msk [vmem:[#allocation6] sm:$0xf] %vm306, %v2669
      %v2671 = vld [vmem:[#allocation3] sm:$0xf]
      %2673 = vrot.lane.b32.xlu0 %v2671, 127
      %v2674 = vpop.permute.xlu0 %2673
      %2676 = vst.msk [vmem:[#allocation6 + $0x4] sm:$0xf] %vm306, %v2674
      %v2677 = vld [vmem:[#allocation3] sm:$0xf]
      %2679 = vrot.lane.b32.xlu0 %v2677, 126
      %v2680 = vpop.permute.xlu0 %2679
      %2682 = vst.msk [vmem:[#allocation6 + $0x8] sm:$0xf] %vm306, %v2680
      %v2683 = vld [vmem:[%s1466] sm:$0xf]
      %2684 = vst.msk [vmem:[#allocation6 + $0xc] sm:$0xf] %vm306, %v2683
      %v2685 = vld [vmem:[%s1466] sm:$0xf]
      %2687 = vrot.lane.b32.xlu0 %v2685, 127
      %v2688 = vpop.permute.xlu0 %2687
      %2690 = vst.msk [vmem:[#allocation6 + $0x10] sm:$0xf] %vm306, %v2688
      %v2691 = vld [vmem:[%s1466] sm:$0xf]
      %2693 = vrot.lane.b32.xlu0 %v2691, 126
      %v2694 = vpop.permute.xlu0 %2693
      %2696 = vst.msk [vmem:[#allocation6 + $0x14] sm:$0xf] %vm306, %v2694
      %v2697 = vld [vmem:[%s1638] sm:$0xf]
      %2698 = vst.msk [vmem:[#allocation6 + $0x18] sm:$0xf] %vm306, %v2697
      %v2699 = vld [vmem:[%s1638] sm:$0xf]
      %2701 = vrot.lane.b32.xlu0 %v2699, 127
      %v2702 = vpop.permute.xlu0 %2701
      %2704 = vst.msk [vmem:[#allocation6 + $0x1c] sm:$0xf] %vm306, %v2702
      %v2705 = vld [vmem:[%s1638] sm:$0xf]
      %2707 = vrot.lane.b32.xlu0 %v2705, 126
      %v2708 = vpop.permute.xlu0 %2707
      %2710 = vst.msk [vmem:[#allocation6 + $0x20] sm:$0xf] %vm306, %v2708
      %v2711 = vld [vmem:[#allocation6] sm:$0xf]
      %v2712 = vld [vmem:[#allocation6 + $0x4] sm:$0xf]
      %v2713 = vld [vmem:[#allocation6 + $0x8] sm:$0xf]
      %v2714 = vld [vmem:[#allocation6 + $0xc] sm:$0xf]
      %v2715 = vld [vmem:[#allocation6 + $0x10] sm:$0xf]
      %v2716 = vld [vmem:[#allocation6 + $0x14] sm:$0xf]
      %v2717 = vld [vmem:[#allocation6 + $0x18] sm:$0xf]
      %v2718 = vld [vmem:[#allocation6 + $0x1c] sm:$0xf]
      %v2719 = vld [vmem:[#allocation6 + $0x20] sm:$0xf]
      %2721 = vset.pattern.permute.xlu0 0
      %2722 = vperm.xlu0 %2721, %v2668
      %v2723 = vpop.permute.xlu0 %2722
      %v2734 = vunpack.c.l.b16 %v2711
      %v2735 = vunpack.c.l.b16 %v2712
      %v2736 = vunpack.c.l.b16 %v2713
      %v2737 = vunpack.c.l.b16 %v2714
      %v2738 = vunpack.c.l.b16 %v2715
      %v2739 = vunpack.c.l.b16 %v2716
      %v2740 = vunpack.c.l.b16 %v2717
      %v2741 = vunpack.c.l.b16 %v2718
      %v2742 = vunpack.c.l.b16 %v2719
      %v2743 = vpack.c.b16 %v2735, %v2734
      %v2744 = vpack.c.b16 %v2737, %v2736
      %v2745 = vpack.c.b16 %v2739, %v2738
      %v2746 = vpack.c.b16 %v2741, %v2740
      %v2747 = vpack.c.b16 %v2742, %v2742
      %vm2752 = vcmask 588800
      %v2754 = vsel %vm2752, %v2667, 0
      %vm2756 = vcmask 1043456
      %v2758 = vsel %vm2756, %v2747, 0
      %2760 = vmatprep.subr.bf16.mxu0 0
      %2761 = vmatpush1.bf16.msra.mxu0 0
      %2762 = vmatprep.subr.bf16.mxu0 0
      %2763 = vmatpush1.bf16.msra.mxu0 0
      %2764 = vmatprep.subr.bf16.mxu0 0
      %2765 = vmatpush1.bf16.msra.mxu0 0
      %2766 = vmatprep.subr.bf16.mxu0 0
      %2767 = vmatpush1.bf16.msra.mxu0 %v2758
      %2768 = vmatprep.subr.bf16.mxu0 0
      %2769 = vmatpush1.bf16.msra.mxu0 %v2746
      %2770 = vmatprep.subr.bf16.mxu0 0
      %2771 = vmatpush1.bf16.msra.mxu0 %v2745
      %2772 = vmatprep.subr.bf16.mxu0 0
      %2773 = vmatpush1.bf16.msra.mxu0 %v2744
      %2774 = vmatprep.subr.bf16.mxu0 0
      %2775 = vmatpush1.bf16.msra.mxu0 %v2743
      %2776 = vmatprep.subr.bf16.mxu0 0
      %2777 = vmatpush2.bf16.msra.mxu0 0
      %2778 = vmatprep.subr.bf16.mxu0 0
      %2779 = vmatpush2.bf16.msra.mxu0 0
      %2780 = vmatprep.subr.bf16.mxu0 0
      %2781 = vmatpush2.bf16.msra.mxu0 0
      %2782 = vmatprep.subr.bf16.mxu0 0
      %2783 = vmatpush2.bf16.msra.mxu0 0
      %2784 = vmatprep.subr.bf16.mxu0 0
      %2785 = vmatpush2.bf16.msra.mxu0 0
      %2786 = vmatprep.subr.bf16.mxu0 0
      %2787 = vmatpush2.bf16.msra.mxu0 0
      %2788 = vmatprep.subr.bf16.mxu0 0
      %2789 = vmatpush2.bf16.msra.mxu0 0
      %2790 = vmatprep.subr.bf16.mxu0 0
      %2791 = vmatpush2.bf16.msra.mxu0 0
      %2792 = vmatprep.mubr.bf16.mxu0 0
      %2793 = vmatmul.mubr.bf16.gmra.mxu0 %v2754
      %v2794 = vpop.f32.mrf.mxu0
      %v2795 = vadd.f32 %v2723, %v2794
      %v2796 = vpop.f32.mrf.mxu0
      %v2797 = vpop.f32.mrf.mxu0
      %v2798 = vpop.f32.mrf.mxu0
      %2799 = vdwg.mxu0
      %v2800 = vmul.f32 %v2795, 0.1
      %v2801 = vmax.f32 %v2795, %v2800
      %vm2802 = vcmask 64512
      %2803 = vst.msk [vmem:[%s278] sm:$0xff] %vm2802, %v2801
      %v2804 = vld [vmem:[%s1466] sm:$0xf]
      %2805 = vst.msk [vmem:[#allocation6] sm:$0xf] %vm306, %v2804
      %v2806 = vld [vmem:[%s1466] sm:$0xf]
      %2808 = vrot.lane.b32.xlu0 %v2806, 127
      %v2809 = vpop.permute.xlu0 %2808
      %2811 = vst.msk [vmem:[#allocation6 + $0x4] sm:$0xf] %vm306, %v2809
      %v2812 = vld [vmem:[%s1466] sm:$0xf]
      %2814 = vrot.lane.b32.xlu0 %v2812, 126
      %v2815 = vpop.permute.xlu0 %2814
      %2817 = vst.msk [vmem:[#allocation6 + $0x8] sm:$0xf] %vm306, %v2815
      %v2818 = vld [vmem:[%s1638] sm:$0xf]
      %2819 = vst.msk [vmem:[#allocation6 + $0xc] sm:$0xf] %vm306, %v2818
      %v2820 = vld [vmem:[%s1638] sm:$0xf]
      %2822 = vrot.lane.b32.xlu0 %v2820, 127
      %v2823 = vpop.permute.xlu0 %2822
      %2825 = vst.msk [vmem:[#allocation6 + $0x10] sm:$0xf] %vm306, %v2823
      %v2826 = vld [vmem:[%s1638] sm:$0xf]
      %2828 = vrot.lane.b32.xlu0 %v2826, 126
      %v2829 = vpop.permute.xlu0 %2828
      %2831 = vst.msk [vmem:[#allocation6 + $0x14] sm:$0xf] %vm306, %v2829
      %v2832 = vld [vmem:[%s1809] sm:$0xf]
      %2833 = vst.msk [vmem:[#allocation6 + $0x18] sm:$0xf] %vm306, %v2832
      %v2834 = vld [vmem:[%s1809] sm:$0xf]
      %2836 = vrot.lane.b32.xlu0 %v2834, 127
      %v2837 = vpop.permute.xlu0 %2836
      %2839 = vst.msk [vmem:[#allocation6 + $0x1c] sm:$0xf] %vm306, %v2837
      %v2840 = vld [vmem:[%s1809] sm:$0xf]
      %2842 = vrot.lane.b32.xlu0 %v2840, 126
      %v2843 = vpop.permute.xlu0 %2842
      %2845 = vst.msk [vmem:[#allocation6 + $0x20] sm:$0xf] %vm306, %v2843
      %v2846 = vld [vmem:[#allocation6] sm:$0xf]
      %v2847 = vld [vmem:[#allocation6 + $0x4] sm:$0xf]
      %v2848 = vld [vmem:[#allocation6 + $0x8] sm:$0xf]
      %v2849 = vld [vmem:[#allocation6 + $0xc] sm:$0xf]
      %v2850 = vld [vmem:[#allocation6 + $0x10] sm:$0xf]
      %v2851 = vld [vmem:[#allocation6 + $0x14] sm:$0xf]
      %v2852 = vld [vmem:[#allocation6 + $0x18] sm:$0xf]
      %v2853 = vld [vmem:[#allocation6 + $0x1c] sm:$0xf]
      %v2854 = vld [vmem:[#allocation6 + $0x20] sm:$0xf]
      %v2864 = vunpack.c.l.b16 %v2846
      %v2865 = vunpack.c.l.b16 %v2847
      %v2866 = vunpack.c.l.b16 %v2848
      %v2867 = vunpack.c.l.b16 %v2849
      %v2868 = vunpack.c.l.b16 %v2850
      %v2869 = vunpack.c.l.b16 %v2851
      %v2870 = vunpack.c.l.b16 %v2852
      %v2871 = vunpack.c.l.b16 %v2853
      %v2872 = vunpack.c.l.b16 %v2854
      %v2873 = vpack.c.b16 %v2865, %v2864
      %v2874 = vpack.c.b16 %v2867, %v2866
      %v2875 = vpack.c.b16 %v2869, %v2868
      %v2876 = vpack.c.b16 %v2871, %v2870
      %v2877 = vpack.c.b16 %v2872, %v2872
      %v2883 = vsel %vm2756, %v2877, 0
      %2885 = vmatprep.subr.bf16.mxu0 0
      %2886 = vmatpush1.bf16.msra.mxu0 0
      %2887 = vmatprep.subr.bf16.mxu0 0
      %2888 = vmatpush1.bf16.msra.mxu0 0
      %2889 = vmatprep.subr.bf16.mxu0 0
      %2890 = vmatpush1.bf16.msra.mxu0 0
      %2891 = vmatprep.subr.bf16.mxu0 0
      %2892 = vmatpush1.bf16.msra.mxu0 %v2883
      %2893 = vmatprep.subr.bf16.mxu0 0
      %2894 = vmatpush1.bf16.msra.mxu0 %v2876
      %2895 = vmatprep.subr.bf16.mxu0 0
      %2896 = vmatpush1.bf16.msra.mxu0 %v2875
      %2897 = vmatprep.subr.bf16.mxu0 0
      %2898 = vmatpush1.bf16.msra.mxu0 %v2874
      %2899 = vmatprep.subr.bf16.mxu0 0
      %2900 = vmatpush1.bf16.msra.mxu0 %v2873
      %2901 = vmatprep.subr.bf16.mxu0 0
      %2902 = vmatpush2.bf16.msra.mxu0 0
      %2903 = vmatprep.subr.bf16.mxu0 0
      %2904 = vmatpush2.bf16.msra.mxu0 0
      %2905 = vmatprep.subr.bf16.mxu0 0
      %2906 = vmatpush2.bf16.msra.mxu0 0
      %2907 = vmatprep.subr.bf16.mxu0 0
      %2908 = vmatpush2.bf16.msra.mxu0 0
      %2909 = vmatprep.subr.bf16.mxu0 0
      %2910 = vmatpush2.bf16.msra.mxu0 0
      %2911 = vmatprep.subr.bf16.mxu0 0
      %2912 = vmatpush2.bf16.msra.mxu0 0
      %2913 = vmatprep.subr.bf16.mxu0 0
      %2914 = vmatpush2.bf16.msra.mxu0 0
      %2915 = vmatprep.subr.bf16.mxu0 0
      %2916 = vmatpush2.bf16.msra.mxu0 0
      %2917 = vmatprep.mubr.bf16.mxu0 0
      %2918 = vmatmul.mubr.bf16.gmra.mxu0 %v2754
      %v2919 = vpop.f32.mrf.mxu0
      %v2920 = vadd.f32 %v2723, %v2919
      %v2921 = vpop.f32.mrf.mxu0
      %v2922 = vpop.f32.mrf.mxu0
      %v2923 = vpop.f32.mrf.mxu0
      %2924 = vdwg.mxu0
      %v2925 = vmul.f32 %v2920, 0.1
      %v2926 = vmax.f32 %v2920, %v2925
      %s2927 = scalar_lea.vmem %s278, 8
      %2928 = vst.msk [vmem:[%s2927] sm:$0xff] %vm2802, %v2926
      %v2929 = vld [vmem:[%s1638] sm:$0xf]
      %2930 = vst.msk [vmem:[#allocation6] sm:$0xf] %vm306, %v2929
      %v2931 = vld [vmem:[%s1638] sm:$0xf]
      %2933 = vrot.lane.b32.xlu0 %v2931, 127
      %v2934 = vpop.permute.xlu0 %2933
      %2936 = vst.msk [vmem:[#allocation6 + $0x4] sm:$0xf] %vm306, %v2934
      %v2937 = vld [vmem:[%s1638] sm:$0xf]
      %2939 = vrot.lane.b32.xlu0 %v2937, 126
      %v2940 = vpop.permute.xlu0 %2939
      %2942 = vst.msk [vmem:[#allocation6 + $0x8] sm:$0xf] %vm306, %v2940
      %v2943 = vld [vmem:[%s1809] sm:$0xf]
      %2944 = vst.msk [vmem:[#allocation6 + $0xc] sm:$0xf] %vm306, %v2943
      %v2945 = vld [vmem:[%s1809] sm:$0xf]
      %2947 = vrot.lane.b32.xlu0 %v2945, 127
      %v2948 = vpop.permute.xlu0 %2947
      %2950 = vst.msk [vmem:[#allocation6 + $0x10] sm:$0xf] %vm306, %v2948
      %v2951 = vld [vmem:[%s1809] sm:$0xf]
      %2953 = vrot.lane.b32.xlu0 %v2951, 126
      %v2954 = vpop.permute.xlu0 %2953
      %2956 = vst.msk [vmem:[#allocation6 + $0x14] sm:$0xf] %vm306, %v2954
      %v2957 = vld [vmem:[%s1980] sm:$0xf]
      %2958 = vst.msk [vmem:[#allocation6 + $0x18] sm:$0xf] %vm306, %v2957
      %v2959 = vld [vmem:[%s1980] sm:$0xf]
      %2961 = vrot.lane.b32.xlu0 %v2959, 127
      %v2962 = vpop.permute.xlu0 %2961
      %2964 = vst.msk [vmem:[#allocation6 + $0x1c] sm:$0xf] %vm306, %v2962
      %v2965 = vld [vmem:[%s1980] sm:$0xf]
      %2967 = vrot.lane.b32.xlu0 %v2965, 126
      %v2968 = vpop.permute.xlu0 %2967
      %2970 = vst.msk [vmem:[#allocation6 + $0x20] sm:$0xf] %vm306, %v2968
      %v2971 = vld [vmem:[#allocation6] sm:$0xf]
      %v2972 = vld [vmem:[#allocation6 + $0x4] sm:$0xf]
      %v2973 = vld [vmem:[#allocation6 + $0x8] sm:$0xf]
      %v2974 = vld [vmem:[#allocation6 + $0xc] sm:$0xf]
      %v2975 = vld [vmem:[#allocation6 + $0x10] sm:$0xf]
      %v2976 = vld [vmem:[#allocation6 + $0x14] sm:$0xf]
      %v2977 = vld [vmem:[#allocation6 + $0x18] sm:$0xf]
      %v2978 = vld [vmem:[#allocation6 + $0x1c] sm:$0xf]
      %v2979 = vld [vmem:[#allocation6 + $0x20] sm:$0xf]
      %v2989 = vunpack.c.l.b16 %v2971
      %v2990 = vunpack.c.l.b16 %v2972
      %v2991 = vunpack.c.l.b16 %v2973
      %v2992 = vunpack.c.l.b16 %v2974
      %v2993 = vunpack.c.l.b16 %v2975
      %v2994 = vunpack.c.l.b16 %v2976
      %v2995 = vunpack.c.l.b16 %v2977
      %v2996 = vunpack.c.l.b16 %v2978
      %v2997 = vunpack.c.l.b16 %v2979
      %v2998 = vpack.c.b16 %v2990, %v2989
      %v2999 = vpack.c.b16 %v2992, %v2991
      %v3000 = vpack.c.b16 %v2994, %v2993
      %v3001 = vpack.c.b16 %v2996, %v2995
      %v3002 = vpack.c.b16 %v2997, %v2997
      %v3008 = vsel %vm2756, %v3002, 0
      %3010 = vmatprep.subr.bf16.mxu0 0
      %3011 = vmatpush1.bf16.msra.mxu0 0
      %3012 = vmatprep.subr.bf16.mxu0 0
      %3013 = vmatpush1.bf16.msra.mxu0 0
      %3014 = vmatprep.subr.bf16.mxu0 0
      %3015 = vmatpush1.bf16.msra.mxu0 0
      %3016 = vmatprep.subr.bf16.mxu0 0
      %3017 = vmatpush1.bf16.msra.mxu0 %v3008
      %3018 = vmatprep.subr.bf16.mxu0 0
      %3019 = vmatpush1.bf16.msra.mxu0 %v3001
      %3020 = vmatprep.subr.bf16.mxu0 0
      %3021 = vmatpush1.bf16.msra.mxu0 %v3000
      %3022 = vmatprep.subr.bf16.mxu0 0
      %3023 = vmatpush1.bf16.msra.mxu0 %v2999
      %3024 = vmatprep.subr.bf16.mxu0 0
      %3025 = vmatpush1.bf16.msra.mxu0 %v2998
      %3026 = vmatprep.subr.bf16.mxu0 0
      %3027 = vmatpush2.bf16.msra.mxu0 0
      %3028 = vmatprep.subr.bf16.mxu0 0
      %3029 = vmatpush2.bf16.msra.mxu0 0
      %3030 = vmatprep.subr.bf16.mxu0 0
      %3031 = vmatpush2.bf16.msra.mxu0 0
      %3032 = vmatprep.subr.bf16.mxu0 0
      %3033 = vmatpush2.bf16.msra.mxu0 0
      %3034 = vmatprep.subr.bf16.mxu0 0
      %3035 = vmatpush2.bf16.msra.mxu0 0
      %3036 = vmatprep.subr.bf16.mxu0 0
      %3037 = vmatpush2.bf16.msra.mxu0 0
      %3038 = vmatprep.subr.bf16.mxu0 0
      %3039 = vmatpush2.bf16.msra.mxu0 0
      %3040 = vmatprep.subr.bf16.mxu0 0
      %3041 = vmatpush2.bf16.msra.mxu0 0
      %3042 = vmatprep.mubr.bf16.mxu0 0
      %3043 = vmatmul.mubr.bf16.gmra.mxu0 %v2754
      %v3044 = vpop.f32.mrf.mxu0
      %v3045 = vadd.f32 %v2723, %v3044
      %v3046 = vpop.f32.mrf.mxu0
      %v3047 = vpop.f32.mrf.mxu0
      %v3048 = vpop.f32.mrf.mxu0
      %3049 = vdwg.mxu0
      %v3050 = vmul.f32 %v3045, 0.1
      %v3051 = vmax.f32 %v3045, %v3050
      %s3052 = scalar_lea.vmem %s278, 16
      %3053 = vst.msk [vmem:[%s3052] sm:$0xff] %vm2802, %v3051
      %v3054 = vld [vmem:[%s1809] sm:$0xf]
      %3055 = vst.msk [vmem:[#allocation6] sm:$0xf] %vm306, %v3054
      %v3056 = vld [vmem:[%s1809] sm:$0xf]
      %3058 = vrot.lane.b32.xlu0 %v3056, 127
      %v3059 = vpop.permute.xlu0 %3058
      %3061 = vst.msk [vmem:[#allocation6 + $0x4] sm:$0xf] %vm306, %v3059
      %v3062 = vld [vmem:[%s1809] sm:$0xf]
      %3064 = vrot.lane.b32.xlu0 %v3062, 126
      %v3065 = vpop.permute.xlu0 %3064
      %3067 = vst.msk [vmem:[#allocation6 + $0x8] sm:$0xf] %vm306, %v3065
      %v3068 = vld [vmem:[%s1980] sm:$0xf]
      %3069 = vst.msk [vmem:[#allocation6 + $0xc] sm:$0xf] %vm306, %v3068
      %v3070 = vld [vmem:[%s1980] sm:$0xf]
      %3072 = vrot.lane.b32.xlu0 %v3070, 127
      %v3073 = vpop.permute.xlu0 %3072
      %3075 = vst.msk [vmem:[#allocation6 + $0x10] sm:$0xf] %vm306, %v3073
      %v3076 = vld [vmem:[%s1980] sm:$0xf]
      %3078 = vrot.lane.b32.xlu0 %v3076, 126
      %v3079 = vpop.permute.xlu0 %3078
      %3081 = vst.msk [vmem:[#allocation6 + $0x14] sm:$0xf] %vm306, %v3079
      %v3082 = vld [vmem:[%s2151] sm:$0xf]
      %3083 = vst.msk [vmem:[#allocation6 + $0x18] sm:$0xf] %vm306, %v3082
      %v3084 = vld [vmem:[%s2151] sm:$0xf]
      %3086 = vrot.lane.b32.xlu0 %v3084, 127
      %v3087 = vpop.permute.xlu0 %3086
      %3089 = vst.msk [vmem:[#allocation6 + $0x1c] sm:$0xf] %vm306, %v3087
      %v3090 = vld [vmem:[%s2151] sm:$0xf]
      %3092 = vrot.lane.b32.xlu0 %v3090, 126
      %v3093 = vpop.permute.xlu0 %3092
      %3095 = vst.msk [vmem:[#allocation6 + $0x20] sm:$0xf] %vm306, %v3093
      %v3096 = vld [vmem:[#allocation6] sm:$0xf]
      %v3097 = vld [vmem:[#allocation6 + $0x4] sm:$0xf]
      %v3098 = vld [vmem:[#allocation6 + $0x8] sm:$0xf]
      %v3099 = vld [vmem:[#allocation6 + $0xc] sm:$0xf]
      %v3100 = vld [vmem:[#allocation6 + $0x10] sm:$0xf]
      %v3101 = vld [vmem:[#allocation6 + $0x14] sm:$0xf]
      %v3102 = vld [vmem:[#allocation6 + $0x18] sm:$0xf]
      %v3103 = vld [vmem:[#allocation6 + $0x1c] sm:$0xf]
      %v3104 = vld [vmem:[#allocation6 + $0x20] sm:$0xf]
      %v3114 = vunpack.c.l.b16 %v3096
      %v3115 = vunpack.c.l.b16 %v3097
      %v3116 = vunpack.c.l.b16 %v3098
      %v3117 = vunpack.c.l.b16 %v3099
      %v3118 = vunpack.c.l.b16 %v3100
      %v3119 = vunpack.c.l.b16 %v3101
      %v3120 = vunpack.c.l.b16 %v3102
      %v3121 = vunpack.c.l.b16 %v3103
      %v3122 = vunpack.c.l.b16 %v3104
      %v3123 = vpack.c.b16 %v3115, %v3114
      %v3124 = vpack.c.b16 %v3117, %v3116
      %v3125 = vpack.c.b16 %v3119, %v3118
      %v3126 = vpack.c.b16 %v3121, %v3120
      %v3127 = vpack.c.b16 %v3122, %v3122
      %v3133 = vsel %vm2756, %v3127, 0
      %3135 = vmatprep.subr.bf16.mxu0 0
      %3136 = vmatpush1.bf16.msra.mxu0 0
      %3137 = vmatprep.subr.bf16.mxu0 0
      %3138 = vmatpush1.bf16.msra.mxu0 0
      %3139 = vmatprep.subr.bf16.mxu0 0
      %3140 = vmatpush1.bf16.msra.mxu0 0
      %3141 = vmatprep.subr.bf16.mxu0 0
      %3142 = vmatpush1.bf16.msra.mxu0 %v3133
      %3143 = vmatprep.subr.bf16.mxu0 0
      %3144 = vmatpush1.bf16.msra.mxu0 %v3126
      %3145 = vmatprep.subr.bf16.mxu0 0
      %3146 = vmatpush1.bf16.msra.mxu0 %v3125
      %3147 = vmatprep.subr.bf16.mxu0 0
      %3148 = vmatpush1.bf16.msra.mxu0 %v3124
      %3149 = vmatprep.subr.bf16.mxu0 0
      %3150 = vmatpush1.bf16.msra.mxu0 %v3123
      %3151 = vmatprep.subr.bf16.mxu0 0
      %3152 = vmatpush2.bf16.msra.mxu0 0
      %3153 = vmatprep.subr.bf16.mxu0 0
      %3154 = vmatpush2.bf16.msra.mxu0 0
      %3155 = vmatprep.subr.bf16.mxu0 0
      %3156 = vmatpush2.bf16.msra.mxu0 0
      %3157 = vmatprep.subr.bf16.mxu0 0
      %3158 = vmatpush2.bf16.msra.mxu0 0
      %3159 = vmatprep.subr.bf16.mxu0 0
      %3160 = vmatpush2.bf16.msra.mxu0 0
      %3161 = vmatprep.subr.bf16.mxu0 0
      %3162 = vmatpush2.bf16.msra.mxu0 0
      %3163 = vmatprep.subr.bf16.mxu0 0
      %3164 = vmatpush2.bf16.msra.mxu0 0
      %3165 = vmatprep.subr.bf16.mxu0 0
      %3166 = vmatpush2.bf16.msra.mxu0 0
      %3167 = vmatprep.mubr.bf16.mxu0 0
      %3168 = vmatmul.mubr.bf16.gmra.mxu0 %v2754
      %v3169 = vpop.f32.mrf.mxu0
      %v3170 = vadd.f32 %v2723, %v3169
      %v3171 = vpop.f32.mrf.mxu0
      %v3172 = vpop.f32.mrf.mxu0
      %v3173 = vpop.f32.mrf.mxu0
      %3174 = vdwg.mxu0
      %v3175 = vmul.f32 %v3170, 0.1
      %v3176 = vmax.f32 %v3170, %v3175
      %s3177 = scalar_lea.vmem %s278, 24
      %3178 = vst.msk [vmem:[%s3177] sm:$0xff] %vm2802, %v3176
      %v3179 = vld [vmem:[%s1980] sm:$0xf]
      %3180 = vst.msk [vmem:[#allocation6] sm:$0xf] %vm306, %v3179
      %v3181 = vld [vmem:[%s1980] sm:$0xf]
      %3183 = vrot.lane.b32.xlu0 %v3181, 127
      %v3184 = vpop.permute.xlu0 %3183
      %3186 = vst.msk [vmem:[#allocation6 + $0x4] sm:$0xf] %vm306, %v3184
      %v3187 = vld [vmem:[%s1980] sm:$0xf]
      %3189 = vrot.lane.b32.xlu0 %v3187, 126
      %v3190 = vpop.permute.xlu0 %3189
      %3192 = vst.msk [vmem:[#allocation6 + $0x8] sm:$0xf] %vm306, %v3190
      %v3193 = vld [vmem:[%s2151] sm:$0xf]
      %3194 = vst.msk [vmem:[#allocation6 + $0xc] sm:$0xf] %vm306, %v3193
      %v3195 = vld [vmem:[%s2151] sm:$0xf]
      %3197 = vrot.lane.b32.xlu0 %v3195, 127
      %v3198 = vpop.permute.xlu0 %3197
      %3200 = vst.msk [vmem:[#allocation6 + $0x10] sm:$0xf] %vm306, %v3198
      %v3201 = vld [vmem:[%s2151] sm:$0xf]
      %3203 = vrot.lane.b32.xlu0 %v3201, 126
      %v3204 = vpop.permute.xlu0 %3203
      %3206 = vst.msk [vmem:[#allocation6 + $0x14] sm:$0xf] %vm306, %v3204
      %v3207 = vld [vmem:[%s2322] sm:$0xf]
      %3208 = vst.msk [vmem:[#allocation6 + $0x18] sm:$0xf] %vm306, %v3207
      %v3209 = vld [vmem:[%s2322] sm:$0xf]
      %3211 = vrot.lane.b32.xlu0 %v3209, 127
      %v3212 = vpop.permute.xlu0 %3211
      %3214 = vst.msk [vmem:[#allocation6 + $0x1c] sm:$0xf] %vm306, %v3212
      %v3215 = vld [vmem:[%s2322] sm:$0xf]
      %3217 = vrot.lane.b32.xlu0 %v3215, 126
      %v3218 = vpop.permute.xlu0 %3217
      %3220 = vst.msk [vmem:[#allocation6 + $0x20] sm:$0xf] %vm306, %v3218
      %v3221 = vld [vmem:[#allocation6] sm:$0xf]
      %v3222 = vld [vmem:[#allocation6 + $0x4] sm:$0xf]
      %v3223 = vld [vmem:[#allocation6 + $0x8] sm:$0xf]
      %v3224 = vld [vmem:[#allocation6 + $0xc] sm:$0xf]
      %v3225 = vld [vmem:[#allocation6 + $0x10] sm:$0xf]
      %v3226 = vld [vmem:[#allocation6 + $0x14] sm:$0xf]
      %v3227 = vld [vmem:[#allocation6 + $0x18] sm:$0xf]
      %v3228 = vld [vmem:[#allocation6 + $0x1c] sm:$0xf]
      %v3229 = vld [vmem:[#allocation6 + $0x20] sm:$0xf]
      %v3239 = vunpack.c.l.b16 %v3221
      %v3240 = vunpack.c.l.b16 %v3222
      %v3241 = vunpack.c.l.b16 %v3223
      %v3242 = vunpack.c.l.b16 %v3224
      %v3243 = vunpack.c.l.b16 %v3225
      %v3244 = vunpack.c.l.b16 %v3226
      %v3245 = vunpack.c.l.b16 %v3227
      %v3246 = vunpack.c.l.b16 %v3228
      %v3247 = vunpack.c.l.b16 %v3229
      %v3248 = vpack.c.b16 %v3240, %v3239
      %v3249 = vpack.c.b16 %v3242, %v3241
      %v3250 = vpack.c.b16 %v3244, %v3243
      %v3251 = vpack.c.b16 %v3246, %v3245
      %v3252 = vpack.c.b16 %v3247, %v3247
      %v3258 = vsel %vm2756, %v3252, 0
      %3260 = vmatprep.subr.bf16.mxu0 0
      %3261 = vmatpush1.bf16.msra.mxu0 0
      %3262 = vmatprep.subr.bf16.mxu0 0
      %3263 = vmatpush1.bf16.msra.mxu0 0
      %3264 = vmatprep.subr.bf16.mxu0 0
      %3265 = vmatpush1.bf16.msra.mxu0 0
      %3266 = vmatprep.subr.bf16.mxu0 0
      %3267 = vmatpush1.bf16.msra.mxu0 %v3258
      %3268 = vmatprep.subr.bf16.mxu0 0
      %3269 = vmatpush1.bf16.msra.mxu0 %v3251
      %3270 = vmatprep.subr.bf16.mxu0 0
      %3271 = vmatpush1.bf16.msra.mxu0 %v3250
      %3272 = vmatprep.subr.bf16.mxu0 0
      %3273 = vmatpush1.bf16.msra.mxu0 %v3249
      %3274 = vmatprep.subr.bf16.mxu0 0
      %3275 = vmatpush1.bf16.msra.mxu0 %v3248
      %3276 = vmatprep.subr.bf16.mxu0 0
      %3277 = vmatpush2.bf16.msra.mxu0 0
      %3278 = vmatprep.subr.bf16.mxu0 0
      %3279 = vmatpush2.bf16.msra.mxu0 0
      %3280 = vmatprep.subr.bf16.mxu0 0
      %3281 = vmatpush2.bf16.msra.mxu0 0
      %3282 = vmatprep.subr.bf16.mxu0 0
      %3283 = vmatpush2.bf16.msra.mxu0 0
      %3284 = vmatprep.subr.bf16.mxu0 0
      %3285 = vmatpush2.bf16.msra.mxu0 0
      %3286 = vmatprep.subr.bf16.mxu0 0
      %3287 = vmatpush2.bf16.msra.mxu0 0
      %3288 = vmatprep.subr.bf16.mxu0 0
      %3289 = vmatpush2.bf16.msra.mxu0 0
      %3290 = vmatprep.subr.bf16.mxu0 0
      %3291 = vmatpush2.bf16.msra.mxu0 0
      %3292 = vmatprep.mubr.bf16.mxu0 0
      %3293 = vmatmul.mubr.bf16.gmra.mxu0 %v2754
      %v3294 = vpop.f32.mrf.mxu0
      %v3295 = vadd.f32 %v2723, %v3294
      %v3296 = vpop.f32.mrf.mxu0
      %v3297 = vpop.f32.mrf.mxu0
      %v3298 = vpop.f32.mrf.mxu0
      %3299 = vdwg.mxu0
      %v3300 = vmul.f32 %v3295, 0.1
      %v3301 = vmax.f32 %v3295, %v3300
      %s3302 = scalar_lea.vmem %s278, 32
      %3303 = vst.msk [vmem:[%s3302] sm:$0xff] %vm2802, %v3301
      %v3304 = vld [vmem:[%s2151] sm:$0xf]
      %3305 = vst.msk [vmem:[#allocation6] sm:$0xf] %vm306, %v3304
      %v3306 = vld [vmem:[%s2151] sm:$0xf]
      %3308 = vrot.lane.b32.xlu0 %v3306, 127
      %v3309 = vpop.permute.xlu0 %3308
      %3311 = vst.msk [vmem:[#allocation6 + $0x4] sm:$0xf] %vm306, %v3309
      %v3312 = vld [vmem:[%s2151] sm:$0xf]
      %3314 = vrot.lane.b32.xlu0 %v3312, 126
      %v3315 = vpop.permute.xlu0 %3314
      %3317 = vst.msk [vmem:[#allocation6 + $0x8] sm:$0xf] %vm306, %v3315
      %v3318 = vld [vmem:[%s2322] sm:$0xf]
      %3319 = vst.msk [vmem:[#allocation6 + $0xc] sm:$0xf] %vm306, %v3318
      %v3320 = vld [vmem:[%s2322] sm:$0xf]
      %3322 = vrot.lane.b32.xlu0 %v3320, 127
      %v3323 = vpop.permute.xlu0 %3322
      %3325 = vst.msk [vmem:[#allocation6 + $0x10] sm:$0xf] %vm306, %v3323
      %v3326 = vld [vmem:[%s2322] sm:$0xf]
      %3328 = vrot.lane.b32.xlu0 %v3326, 126
      %v3329 = vpop.permute.xlu0 %3328
      %3331 = vst.msk [vmem:[#allocation6 + $0x14] sm:$0xf] %vm306, %v3329
      %v3332 = vld [vmem:[%s2493] sm:$0xf]
      %3333 = vst.msk [vmem:[#allocation6 + $0x18] sm:$0xf] %vm306, %v3332
      %v3334 = vld [vmem:[%s2493] sm:$0xf]
      %3336 = vrot.lane.b32.xlu0 %v3334, 127
      %v3337 = vpop.permute.xlu0 %3336
      %3339 = vst.msk [vmem:[#allocation6 + $0x1c] sm:$0xf] %vm306, %v3337
      %v3340 = vld [vmem:[%s2493] sm:$0xf]
      %3342 = vrot.lane.b32.xlu0 %v3340, 126
      %v3343 = vpop.permute.xlu0 %3342
      %3345 = vst.msk [vmem:[#allocation6 + $0x20] sm:$0xf] %vm306, %v3343
      %v3346 = vld [vmem:[#allocation6] sm:$0xf]
      %v3347 = vld [vmem:[#allocation6 + $0x4] sm:$0xf]
      %v3348 = vld [vmem:[#allocation6 + $0x8] sm:$0xf]
      %v3349 = vld [vmem:[#allocation6 + $0xc] sm:$0xf]
      %v3350 = vld [vmem:[#allocation6 + $0x10] sm:$0xf]
      %v3351 = vld [vmem:[#allocation6 + $0x14] sm:$0xf]
      %v3352 = vld [vmem:[#allocation6 + $0x18] sm:$0xf]
      %v3353 = vld [vmem:[#allocation6 + $0x1c] sm:$0xf]
      %v3354 = vld [vmem:[#allocation6 + $0x20] sm:$0xf]
      %v3364 = vunpack.c.l.b16 %v3346
      %v3365 = vunpack.c.l.b16 %v3347
      %v3366 = vunpack.c.l.b16 %v3348
      %v3367 = vunpack.c.l.b16 %v3349
      %v3368 = vunpack.c.l.b16 %v3350
      %v3369 = vunpack.c.l.b16 %v3351
      %v3370 = vunpack.c.l.b16 %v3352
      %v3371 = vunpack.c.l.b16 %v3353
      %v3372 = vunpack.c.l.b16 %v3354
      %v3373 = vpack.c.b16 %v3365, %v3364
      %v3374 = vpack.c.b16 %v3367, %v3366
      %v3375 = vpack.c.b16 %v3369, %v3368
      %v3376 = vpack.c.b16 %v3371, %v3370
      %v3377 = vpack.c.b16 %v3372, %v3372
      %v3383 = vsel %vm2756, %v3377, 0
      %3385 = vmatprep.subr.bf16.mxu0 0
      %3386 = vmatpush1.bf16.msra.mxu0 0
      %3387 = vmatprep.subr.bf16.mxu0 0
      %3388 = vmatpush1.bf16.msra.mxu0 0
      %3389 = vmatprep.subr.bf16.mxu0 0
      %3390 = vmatpush1.bf16.msra.mxu0 0
      %3391 = vmatprep.subr.bf16.mxu0 0
      %3392 = vmatpush1.bf16.msra.mxu0 %v3383
      %3393 = vmatprep.subr.bf16.mxu0 0
      %3394 = vmatpush1.bf16.msra.mxu0 %v3376
      %3395 = vmatprep.subr.bf16.mxu0 0
      %3396 = vmatpush1.bf16.msra.mxu0 %v3375
      %3397 = vmatprep.subr.bf16.mxu0 0
      %3398 = vmatpush1.bf16.msra.mxu0 %v3374
      %3399 = vmatprep.subr.bf16.mxu0 0
      %3400 = vmatpush1.bf16.msra.mxu0 %v3373
      %3401 = vmatprep.subr.bf16.mxu0 0
      %3402 = vmatpush2.bf16.msra.mxu0 0
      %3403 = vmatprep.subr.bf16.mxu0 0
      %3404 = vmatpush2.bf16.msra.mxu0 0
      %3405 = vmatprep.subr.bf16.mxu0 0
      %3406 = vmatpush2.bf16.msra.mxu0 0
      %3407 = vmatprep.subr.bf16.mxu0 0
      %3408 = vmatpush2.bf16.msra.mxu0 0
      %3409 = vmatprep.subr.bf16.mxu0 0
      %3410 = vmatpush2.bf16.msra.mxu0 0
      %3411 = vmatprep.subr.bf16.mxu0 0
      %3412 = vmatpush2.bf16.msra.mxu0 0
      %3413 = vmatprep.subr.bf16.mxu0 0
      %3414 = vmatpush2.bf16.msra.mxu0 0
      %3415 = vmatprep.subr.bf16.mxu0 0
      %3416 = vmatpush2.bf16.msra.mxu0 0
      %3417 = vmatprep.mubr.bf16.mxu0 0
      %3418 = vmatmul.mubr.bf16.gmra.mxu0 %v2754
      %v3419 = vpop.f32.mrf.mxu0
      %v3420 = vadd.f32 %v2723, %v3419
      %v3421 = vpop.f32.mrf.mxu0
      %v3422 = vpop.f32.mrf.mxu0
      %v3423 = vpop.f32.mrf.mxu0
      %3424 = vdwg.mxu0
      %v3425 = vmul.f32 %v3420, 0.1
      %v3426 = vmax.f32 %v3420, %v3425
      %s3427 = scalar_lea.vmem %s278, 40
      %3428 = vst.msk [vmem:[%s3427] sm:$0xff] %vm2802, %v3426
      %v3429 = vld [vmem:[%s2322] sm:$0xf]
      %3430 = vst.msk [vmem:[#allocation6] sm:$0xf] %vm306, %v3429
      %v3431 = vld [vmem:[%s2322] sm:$0xf]
      %3433 = vrot.lane.b32.xlu0 %v3431, 127
      %v3434 = vpop.permute.xlu0 %3433
      %3436 = vst.msk [vmem:[#allocation6 + $0x4] sm:$0xf] %vm306, %v3434
      %v3437 = vld [vmem:[%s2322] sm:$0xf]
      %3439 = vrot.lane.b32.xlu0 %v3437, 126
      %v3440 = vpop.permute.xlu0 %3439
      %3442 = vst.msk [vmem:[#allocation6 + $0x8] sm:$0xf] %vm306, %v3440
      %v3443 = vld [vmem:[%s2493] sm:$0xf]
      %3444 = vst.msk [vmem:[#allocation6 + $0xc] sm:$0xf] %vm306, %v3443
      %v3445 = vld [vmem:[%s2493] sm:$0xf]
      %3447 = vrot.lane.b32.xlu0 %v3445, 127
      %v3448 = vpop.permute.xlu0 %3447
      %3450 = vst.msk [vmem:[#allocation6 + $0x10] sm:$0xf] %vm306, %v3448
      %v3451 = vld [vmem:[%s2493] sm:$0xf]
      %3453 = vrot.lane.b32.xlu0 %v3451, 126
      %v3454 = vpop.permute.xlu0 %3453
      %3456 = vst.msk [vmem:[#allocation6 + $0x14] sm:$0xf] %vm306, %v3454
      %v3457 = vld [vmem:[%s2665] sm:$0xf]
      %3458 = vst.msk [vmem:[#allocation6 + $0x18] sm:$0xf] %vm306, %v3457
      %v3459 = vld [vmem:[%s2665] sm:$0xf]
      %3461 = vrot.lane.b32.xlu0 %v3459, 127
      %v3462 = vpop.permute.xlu0 %3461
      %3464 = vst.msk [vmem:[#allocation6 + $0x1c] sm:$0xf] %vm306, %v3462
      %v3465 = vld [vmem:[%s2665] sm:$0xf]
      %3467 = vrot.lane.b32.xlu0 %v3465, 126
      %v3468 = vpop.permute.xlu0 %3467
      %3470 = vst.msk [vmem:[#allocation6 + $0x20] sm:$0xf] %vm306, %v3468
      %v3471 = vld [vmem:[#allocation6] sm:$0xf]
      %v3472 = vld [vmem:[#allocation6 + $0x4] sm:$0xf]
      %v3473 = vld [vmem:[#allocation6 + $0x8] sm:$0xf]
      %v3474 = vld [vmem:[#allocation6 + $0xc] sm:$0xf]
      %v3475 = vld [vmem:[#allocation6 + $0x10] sm:$0xf]
      %v3476 = vld [vmem:[#allocation6 + $0x14] sm:$0xf]
      %v3477 = vld [vmem:[#allocation6 + $0x18] sm:$0xf]
      %v3478 = vld [vmem:[#allocation6 + $0x1c] sm:$0xf]
      %v3479 = vld [vmem:[#allocation6 + $0x20] sm:$0xf]
      %v3489 = vunpack.c.l.b16 %v3471
      %v3490 = vunpack.c.l.b16 %v3472
      %v3491 = vunpack.c.l.b16 %v3473
      %v3492 = vunpack.c.l.b16 %v3474
      %v3493 = vunpack.c.l.b16 %v3475
      %v3494 = vunpack.c.l.b16 %v3476
      %v3495 = vunpack.c.l.b16 %v3477
      %v3496 = vunpack.c.l.b16 %v3478
      %v3497 = vunpack.c.l.b16 %v3479
      %v3498 = vpack.c.b16 %v3490, %v3489
      %v3499 = vpack.c.b16 %v3492, %v3491
      %v3500 = vpack.c.b16 %v3494, %v3493
      %v3501 = vpack.c.b16 %v3496, %v3495
      %v3502 = vpack.c.b16 %v3497, %v3497
      %v3508 = vsel %vm2756, %v3502, 0
      %3510 = vmatprep.subr.bf16.mxu0 0
      %3511 = vmatpush1.bf16.msra.mxu0 0
      %3512 = vmatprep.subr.bf16.mxu0 0
      %3513 = vmatpush1.bf16.msra.mxu0 0
      %3514 = vmatprep.subr.bf16.mxu0 0
      %3515 = vmatpush1.bf16.msra.mxu0 0
      %3516 = vmatprep.subr.bf16.mxu0 0
      %3517 = vmatpush1.bf16.msra.mxu0 %v3508
      %3518 = vmatprep.subr.bf16.mxu0 0
      %3519 = vmatpush1.bf16.msra.mxu0 %v3501
      %3520 = vmatprep.subr.bf16.mxu0 0
      %3521 = vmatpush1.bf16.msra.mxu0 %v3500
      %3522 = vmatprep.subr.bf16.mxu0 0
      %3523 = vmatpush1.bf16.msra.mxu0 %v3499
      %3524 = vmatprep.subr.bf16.mxu0 0
      %3525 = vmatpush1.bf16.msra.mxu0 %v3498
      %3526 = vmatprep.subr.bf16.mxu0 0
      %3527 = vmatpush2.bf16.msra.mxu0 0
      %3528 = vmatprep.subr.bf16.mxu0 0
      %3529 = vmatpush2.bf16.msra.mxu0 0
      %3530 = vmatprep.subr.bf16.mxu0 0
      %3531 = vmatpush2.bf16.msra.mxu0 0
      %3532 = vmatprep.subr.bf16.mxu0 0
      %3533 = vmatpush2.bf16.msra.mxu0 0
      %3534 = vmatprep.subr.bf16.mxu0 0
      %3535 = vmatpush2.bf16.msra.mxu0 0
      %3536 = vmatprep.subr.bf16.mxu0 0
      %3537 = vmatpush2.bf16.msra.mxu0 0
      %3538 = vmatprep.subr.bf16.mxu0 0
      %3539 = vmatpush2.bf16.msra.mxu0 0
      %3540 = vmatprep.subr.bf16.mxu0 0
      %3541 = vmatpush2.bf16.msra.mxu0 0
      %3542 = vmatprep.mubr.bf16.mxu0 0
      %3543 = vmatmul.mubr.bf16.gmra.mxu0 %v2754
      %v3544 = vpop.f32.mrf.mxu0
      %v3545 = vadd.f32 %v2723, %v3544
      %v3546 = vpop.f32.mrf.mxu0
      %v3547 = vpop.f32.mrf.mxu0
      %v3548 = vpop.f32.mrf.mxu0
      %3549 = vdwg.mxu0
      %v3550 = vmul.f32 %v3545, 0.1
      %v3551 = vmax.f32 %v3545, %v3550
      %s3552 = scalar_lea.vmem %s278, 48
      %3553 = vst.msk [vmem:[%s3552] sm:$0xff] %vm2802, %v3551
      %v3554 = vld [vmem:[%s2493] sm:$0xf]
      %3555 = vst.msk [vmem:[#allocation6] sm:$0xf] %vm306, %v3554
      %v3556 = vld [vmem:[%s2493] sm:$0xf]
      %3558 = vrot.lane.b32.xlu0 %v3556, 127
      %v3559 = vpop.permute.xlu0 %3558
      %3561 = vst.msk [vmem:[#allocation6 + $0x4] sm:$0xf] %vm306, %v3559
      %v3562 = vld [vmem:[%s2493] sm:$0xf]
      %3564 = vrot.lane.b32.xlu0 %v3562, 126
      %v3565 = vpop.permute.xlu0 %3564
      %3567 = vst.msk [vmem:[#allocation6 + $0x8] sm:$0xf] %vm306, %v3565
      %v3568 = vld [vmem:[%s2665] sm:$0xf]
      %3569 = vst.msk [vmem:[#allocation6 + $0xc] sm:$0xf] %vm306, %v3568
      %v3570 = vld [vmem:[%s2665] sm:$0xf]
      %3572 = vrot.lane.b32.xlu0 %v3570, 127
      %v3573 = vpop.permute.xlu0 %3572
      %3575 = vst.msk [vmem:[#allocation6 + $0x10] sm:$0xf] %vm306, %v3573
      %v3576 = vld [vmem:[%s2665] sm:$0xf]
      %3578 = vrot.lane.b32.xlu0 %v3576, 126
      %v3579 = vpop.permute.xlu0 %3578
      %3581 = vst.msk [vmem:[#allocation6 + $0x14] sm:$0xf] %vm306, %v3579
      %s3582 = scalar_lea.vmem [#allocation3], 36
      %v3583 = vld [vmem:[%s3582] sm:$0xf]
      %3584 = vst.msk [vmem:[#allocation6 + $0x18] sm:$0xf] %vm306, %v3583
      %v3585 = vld [vmem:[%s3582] sm:$0xf]
      %3587 = vrot.lane.b32.xlu0 %v3585, 127
      %v3588 = vpop.permute.xlu0 %3587
      %3590 = vst.msk [vmem:[#allocation6 + $0x1c] sm:$0xf] %vm306, %v3588
      %v3591 = vld [vmem:[%s3582] sm:$0xf]
      %3593 = vrot.lane.b32.xlu0 %v3591, 126
      %v3594 = vpop.permute.xlu0 %3593
      %3596 = vst.msk [vmem:[#allocation6 + $0x20] sm:$0xf] %vm306, %v3594
      %v3597 = vld [vmem:[#allocation6] sm:$0xf]
      %v3598 = vld [vmem:[#allocation6 + $0x4] sm:$0xf]
      %v3599 = vld [vmem:[#allocation6 + $0x8] sm:$0xf]
      %v3600 = vld [vmem:[#allocation6 + $0xc] sm:$0xf]
      %v3601 = vld [vmem:[#allocation6 + $0x10] sm:$0xf]
      %v3602 = vld [vmem:[#allocation6 + $0x14] sm:$0xf]
      %v3603 = vld [vmem:[#allocation6 + $0x18] sm:$0xf]
      %v3604 = vld [vmem:[#allocation6 + $0x1c] sm:$0xf]
      %v3605 = vld [vmem:[#allocation6 + $0x20] sm:$0xf]
      %v3615 = vunpack.c.l.b16 %v3597
      %v3616 = vunpack.c.l.b16 %v3598
      %v3617 = vunpack.c.l.b16 %v3599
      %v3618 = vunpack.c.l.b16 %v3600
      %v3619 = vunpack.c.l.b16 %v3601
      %v3620 = vunpack.c.l.b16 %v3602
      %v3621 = vunpack.c.l.b16 %v3603
      %v3622 = vunpack.c.l.b16 %v3604
      %v3623 = vunpack.c.l.b16 %v3605
      %v3624 = vpack.c.b16 %v3616, %v3615
      %v3625 = vpack.c.b16 %v3618, %v3617
      %v3626 = vpack.c.b16 %v3620, %v3619
      %v3627 = vpack.c.b16 %v3622, %v3621
      %v3628 = vpack.c.b16 %v3623, %v3623
      %v3634 = vsel %vm2756, %v3628, 0
      %3636 = vmatprep.subr.bf16.mxu0 0
      %3637 = vmatpush1.bf16.msra.mxu0 0
      %3638 = vmatprep.subr.bf16.mxu0 0
      %3639 = vmatpush1.bf16.msra.mxu0 0
      %3640 = vmatprep.subr.bf16.mxu0 0
      %3641 = vmatpush1.bf16.msra.mxu0 0
      %3642 = vmatprep.subr.bf16.mxu0 0
      %3643 = vmatpush1.bf16.msra.mxu0 %v3634
      %3644 = vmatprep.subr.bf16.mxu0 0
      %3645 = vmatpush1.bf16.msra.mxu0 %v3627
      %3646 = vmatprep.subr.bf16.mxu0 0
      %3647 = vmatpush1.bf16.msra.mxu0 %v3626
      %3648 = vmatprep.subr.bf16.mxu0 0
      %3649 = vmatpush1.bf16.msra.mxu0 %v3625
      %3650 = vmatprep.subr.bf16.mxu0 0
      %3651 = vmatpush1.bf16.msra.mxu0 %v3624
      %3652 = vmatprep.subr.bf16.mxu0 0
      %3653 = vmatpush2.bf16.msra.mxu0 0
      %3654 = vmatprep.subr.bf16.mxu0 0
      %3655 = vmatpush2.bf16.msra.mxu0 0
      %3656 = vmatprep.subr.bf16.mxu0 0
      %3657 = vmatpush2.bf16.msra.mxu0 0
      %3658 = vmatprep.subr.bf16.mxu0 0
      %3659 = vmatpush2.bf16.msra.mxu0 0
      %3660 = vmatprep.subr.bf16.mxu0 0
      %3661 = vmatpush2.bf16.msra.mxu0 0
      %3662 = vmatprep.subr.bf16.mxu0 0
      %3663 = vmatpush2.bf16.msra.mxu0 0
      %3664 = vmatprep.subr.bf16.mxu0 0
      %3665 = vmatpush2.bf16.msra.mxu0 0
      %3666 = vmatprep.subr.bf16.mxu0 0
      %3667 = vmatpush2.bf16.msra.mxu0 0
      %3668 = vmatprep.mubr.bf16.mxu0 0
      %3669 = vmatmul.mubr.bf16.gmra.mxu0 %v2754
      %v3670 = vpop.f32.mrf.mxu0
      %v3671 = vadd.f32 %v2723, %v3670
      %v3672 = vpop.f32.mrf.mxu0
      %v3673 = vpop.f32.mrf.mxu0
      %v3674 = vpop.f32.mrf.mxu0
      %3675 = vdwg.mxu0
      %v3676 = vmul.f32 %v3671, 0.1
      %v3677 = vmax.f32 %v3671, %v3676
      %s3678 = scalar_lea.vmem %s278, 56
      %3679 = vst.msk [vmem:[%s3678] sm:$0xff] %vm2802, %v3677
      %p3680 = scmp.lt.s32.totalorder %s18, 1
      %s3681 = scalar_select %p3680, %s18, 1
      %s3682 = smul.addr %s3681, 8
      %s3683 = smul.addr %s3682, 8
      %s3684 = scalar_lea.vmem %s7, %s3683
      // Predicated region
      $region49: #{down2d_forward.1} parent=47 // pred_check
        %p3685 = pneg %p188
      $region50: #{down2d_forward.1} parent=47 // pred_check_branch
        %3687 = sbr.rel (%p3685) target = $region52
      $region51: #{down2d_forward.1} parent=47 // pred_region
        _
      $region52: #{down2d_forward.1} parent=47 // pred_fallthru
        _
    $region48: #{down2d_forward.1} parent=5 // pred_fallthru
      _
    %p3688 = scmp.le.s32.totalorder 2, %s13
    // Predicated region
    $region53: #{down2d_forward.1} parent=5 // pred_check
      %p3689 = pneg %p3688
    $region54: #{down2d_forward.1} parent=5 // pred_check_branch
      %3691 = sbr.rel (%p3689) target = $region56
    $region55: #{down2d_forward.1} parent=5 // pred_region
      %s3692 = ssub.s32 %s13, 2
      // Predicated region
      $region57: #{down2d_forward.1} parent=55 // pred_check
        %p3693 = pneg %p194
      $region58: #{down2d_forward.1} parent=55 // pred_check_branch
        %3695 = sbr.rel (%p3693) target = $region60
      $region59: #{down2d_forward.1} parent=55 // pred_region
        %p3696 = scmp.lt.s32.totalorder %s19, 1
        %s3697 = scalar_select %p3696, %s19, 1
        %s3698 = smul.addr %s3697, 8
        %s3699 = smul.addr %s3698, 8
        %s3700 = scalar_lea.vmem %s7, %s3699
      $region60: #{down2d_forward.1} parent=55 // pred_fallthru
        _
    $region56: #{down2d_forward.1} parent=5 // pred_fallthru
      _
  $region6: #{down2d_forward.1} parent=0 // loop_footer
    %s17 = sadd.s32 1, %s13
  $region7: #{down2d_forward.1} parent=0 // loop_footer_branch
    %12 = sbr.rel target = $region3
  $region8: #{down2d_forward.1} parent=0 // loop_exit
    _

</llo_original>
